<compile_context>
chip_gen: v6e
topology: v6e:2x2x1
jax: 0.10.0
libtpu: 0.0.40
codegen_flags: <defaults>
</compile_context>

<pallas_src>
import functools
import math

import jax
import jax.numpy as jnp
from jax.experimental import pallas as pl
from jax.experimental.pallas import tpu as pltpu

# ---- Config (mirrors transform.Config) -------------------------------------
D_MODEL = 20
N_HEADS = 2
DIM_K = D_MODEL // N_HEADS          # 10
DIM_V = D_MODEL // N_HEADS          # 10
HEAD_DIM = DIM_K // N_HEADS         # 5  (the torch reshape's trailing dim)
HIDDEN = 2048                       # Feed_Forward default hidden_dim
EPS = 1e-5                          # nn.LayerNorm default eps
SCALE = 1.0 / math.sqrt(D_MODEL)    # norm_fact


# ============================== Pallas kernel ================================

def _add_layernorm(z, batch, seq, eps):
    """LayerNorm over (S, D) jointly, per batch element (weight=1, bias=0)."""
    parts = []
    for b in range(batch):
        zb = z[b * seq:(b + 1) * seq, :]
        m = jnp.mean(zb)
        zc = zb - m
        var = jnp.mean(zc * zc)
        parts.append(zc * jax.lax.rsqrt(var + eps))
    return jnp.concatenate(parts, axis=0) if batch > 1 else parts[0]


def _block(xp, v_src, wq, bq, wk, bk, wv, bv, wo, bo, w1, b1, w2, b2,
           *, batch, seq, n_heads, eps, scale):
    """One Encoder/Decoder block on (B*S, D) values; returns (B*S, D)."""
    f32 = jnp.float32
    hd = DIM_K // n_heads               # 5
    rpg = seq // n_heads                # rows per head-group block (4)
    n_groups = n_heads * batch          # 4

    # ---- Q/K/V projections: three full-width matmuls; scale folded into Q ---
    q = (jnp.dot(xp, wq, preferred_element_type=f32) + bq) * scale   # (BS,10)
    k = jnp.dot(xp, wk, preferred_element_type=f32) + bk             # (BS,10)
    v = jnp.dot(v_src, wv, preferred_element_type=f32) + bv          # (BS,10)
    kt = k.T                                                         # (10,BS), one XLU transpose

    # ---- multi-head attention (no softmax) + output projection --------------
    # Per contiguous 4-row group:  KtV = sum_h K_h^T V_h  (5x5);
    # rows_out = sum_h Q_h @ (KtV @ wo[h-chunk])          (4x20).
    blocks = []
    for g in range(n_groups):
        r0 = g * rpg
        ktv = None
        for h in range(n_heads):
            c0 = h * hd
            t = jnp.dot(kt[c0:c0 + hd, r0:r0 + rpg],                  # (5,4)
                        v[r0:r0 + rpg, c0:c0 + hd],                   # (4,5)
                        preferred_element_type=f32)                   # (5,5)
            ktv = t if ktv is None else ktv + t
        acc = None
        for h in range(n_heads):
            c0 = h * hd
            m = jnp.dot(ktv, wo[c0:c0 + hd, :],
                        preferred_element_type=f32)                   # (5,20)
            t = jnp.dot(q[r0:r0 + rpg, c0:c0 + hd], m,
                        preferred_element_type=f32)                   # (4,20)
            acc = t if acc is None else acc + t
        blocks.append(acc)
    mha = jnp.concatenate(blocks, axis=0) + bo                        # (BS,20)

    # ---- Add & LayerNorm #1 --------------------------------------------------
    # TODO(synk): nn.Dropout(p=0.1) treated as identity (inference semantics).
    ln1 = _add_layernorm(xp + mha, batch, seq, eps)

    # ---- Feed forward (kept f32; see header note on bf16) --------------------
    h_ = jnp.maximum(jnp.dot(ln1, w1, preferred_element_type=f32) + b1, 0.0)
    ffn = jnp.dot(h_, w2, preferred_element_type=f32) + b2

    # ---- Add & LayerNorm #2 ---------------------------------------------------
    return _add_layernorm(ln1 + ffn, batch, seq, eps)


def _transformer_kernel(x_in_ref, x_out_ref, pe_ref,
                        e_wq, e_bq, e_wk, e_bk, e_wv, e_bv, e_wo, e_bo,
                        e_w1, e_b1, e_w2, e_b2,
                        d_wq, d_bq, d_wk, d_bk, d_wv, d_bv, d_wo, d_bo,
                        d_w1, d_b1, d_w2, d_b2,
                        enc_ref, dec_ref,
                        *, batch, seq, n_heads, eps, scale):
    pe = pe_ref[...]
    xi = x_in_ref[...] + pe            # encoder input + positional encoding
    xo = x_out_ref[...] + pe           # decoder input + positional encoding

    # -------- Encoder block --------
    enc = _block(xi, xi,
                 e_wq[...], e_bq[...], e_wk[...], e_bk[...],
                 e_wv[...], e_bv[...], e_wo[...], e_bo[...],
                 e_w1[...], e_b1[...], e_w2[...], e_b2[...],
                 batch=batch, seq=seq, n_heads=n_heads, eps=eps, scale=scale)
    enc_ref[...] = enc                 # single full-block store

    # -------- Decoder block (first add_norm of the reference is discarded) ---
    dec = _block(xo, enc,
                 d_wq[...], d_bq[...], d_wk[...], d_bk[...],
                 d_wv[...], d_bv[...], d_wo[...], d_bo[...],
                 d_w1[...], d_b1[...], d_w2[...], d_b2[...],
                 batch=batch, seq=seq, n_heads=n_heads, eps=eps, scale=scale)
    dec_ref[...] = dec                 # single full-block store


# ============================== Wrappers =====================================

def positional_encoding(seq_len, d_model):
    # PE[pos, i] = sin(pos / 10000**(2*i/d_model)) if i even else cos(...)
    pos = jnp.arange(seq_len, dtype=jnp.float32)[:, None]
    i = jnp.arange(d_model, dtype=jnp.float32)[None, :]
    angle = pos / jnp.power(10000.0, 2.0 * i / float(D_MODEL))
    even = (jnp.arange(d_model)[None, :] % 2) == 0
    return jnp.where(even, jnp.sin(angle), jnp.cos(angle)).astype(jnp.float32)


def _flat_params(p):
    """Raw weights (no splitting); biases as (1, n) rows for broadcasting."""
    return [p["wq"], p["bq"].reshape(1, DIM_K),
            p["wk"], p["bk"].reshape(1, DIM_K),
            p["wv"], p["bv"].reshape(1, DIM_V),
            p["wo"], p["bo"].reshape(1, D_MODEL),
            p["w1"], p["b1"].reshape(1, HIDDEN),
            p["w2"], p["b2"].reshape(1, D_MODEL)]


@jax.jit
def transformer_layer(x_input, x_output, enc_params, dec_params):
    B, S, D = x_input.shape
    assert D == D_MODEL and S % N_HEADS == 0
    assert x_output.shape == x_input.shape

    pe = jnp.tile(positional_encoding(S, D), (B, 1))   # (B*S, D), const-folded

    operands = ([x_input.reshape(B * S, D), x_output.reshape(B * S, D), pe]
                + _flat_params(enc_params) + _flat_params(dec_params))

    kernel = functools.partial(_transformer_kernel, batch=B, seq=S,
                               n_heads=N_HEADS, eps=EPS, scale=SCALE)

    vmem = pltpu.MemorySpace.VMEM
    # Single grid-less launch; everything (weights + activations, incl. the
    # (B*S, 2048) FFN hidden) fits comfortably in VMEM at this size.
    # TODO(synk): if B*S is ever scaled up, switch to a row-tiled parallel
    #             grid and set vmem_limit_bytes explicitly (v7x: 64 MiB VMEM).
    enc2, dec2 = pl.pallas_call(
        kernel,
        out_shape=(jax.ShapeDtypeStruct((B * S, D), jnp.float32),
                   jax.ShapeDtypeStruct((B * S, D), jnp.float32)),
        in_specs=[pl.BlockSpec(memory_space=vmem)] * len(operands),
        out_specs=(pl.BlockSpec(memory_space=vmem),
                   pl.BlockSpec(memory_space=vmem)),
    )(*operands)
    return enc2.reshape(B, S, D), dec2.reshape(B, S, D)


# ================== Pure-JAX reference of the PyTorch forward ================

def _ref_mha(x, y, p):
    B, S, D = x.shape
    hd = DIM_K // N_HEADS
    q = (x.reshape(B * S, D) @ p["wq"] + p["bq"]).reshape(-1, B, S, hd)
    k = (x.reshape(B * S, D) @ p["wk"] + p["bk"]).reshape(-1, B, S, hd)
    v = (y.reshape(B * S, D) @ p["wv"] + p["bv"]).reshape(-1, B, S, hd)
    score = jnp.einsum("hbij,hbkj->hbik", q, k) * SCALE          # no softmax
    out = jnp.einsum("hbik,hbkj->hbij", score, v).reshape(B, S, DIM_V)
    return (out.reshape(B * S, DIM_V) @ p["wo"] + p["bo"]).reshape(B, S, D)


def _ref_add_norm(x, sub):
    z = x + sub
    m = jnp.mean(z, axis=(1, 2), keepdims=True)
    var = jnp.mean(jnp.square(z - m), axis=(1, 2), keepdims=True)
    return (z - m) * jax.lax.rsqrt(var + EPS)


def _ref_ffn(x, p):
    B, S, D = x.shape
    h = jnp.maximum(x.reshape(B * S, D) @ p["w1"] + p["b1"], 0.0)
    return (h @ p["w2"] + p["b2"]).reshape(B, S, D)


def _ref_encoder(x, p):
    x = x + positional_encoding(x.shape[1], D_MODEL)[None]
    out = _ref_add_norm(x, _ref_mha(x, x, p))
    return _ref_add_norm(out, _ref_ffn(out, p))


def _ref_decoder(x, enc, p):
    x = x + positional_encoding(x.shape[1], D_MODEL)[None]
    # first add_norm result is discarded by the reference -> skipped
    out = _ref_add_norm(x, _ref_mha(x, enc, p))
    return _ref_add_norm(out, _ref_ffn(out, p))


# ============================== Parameter init ===============================

def init_block_params(key):
    ks = jax.random.split(key, 12)
    s = 0.1
    return {
        "wq": jax.random.normal(ks[0], (D_MODEL, DIM_K), jnp.float32) * s,
        "bq": jax.random.normal(ks[1], (DIM_K,), jnp.float32) * s,
        "wk": jax.random.normal(ks[2], (D_MODEL, DIM_K), jnp.float32) * s,
        "bk": jax.random.normal(ks[3], (DIM_K,), jnp.float32) * s,
        "wv": jax.random.normal(ks[4], (D_MODEL, DIM_V), jnp.float32) * s,
        "bv": jax.random.normal(ks[5], (DIM_V,), jnp.float32) * s,
        "wo": jax.random.normal(ks[6], (DIM_V, D_MODEL), jnp.float32) * s,
        "bo": jax.random.normal(ks[7], (D_MODEL,), jnp.float32) * s,
        "w1": jax.random.normal(ks[8], (D_MODEL, HIDDEN), jnp.float32) * s,
        "b1": jax.random.normal(ks[9], (HIDDEN,), jnp.float32) * s,
        "w2": jax.random.normal(ks[10], (HIDDEN, D_MODEL), jnp.float32) * s,
        "b2": jax.random.normal(ks[11], (D_MODEL,), jnp.float32) * s,
    }


# ================================== Main =====================================

if __name__ == "__main__":
    key = jax.random.PRNGKey(0)
    k_in, k_out, k_enc, k_dec = jax.random.split(key, 4)

    B, S = 2, 8
    x_input = jax.random.normal(k_in, (B, S, D_MODEL), jnp.float32)
    x_output = jax.random.normal(k_out, (B, S, D_MODEL), jnp.float32)

    enc_params = init_block_params(k_enc)
    dec_params = init_block_params(k_dec)

    enc_out, dec_out = transformer_layer(x_input, x_output, enc_params, dec_params)
    jax.block_until_ready((enc_out, dec_out))

    assert enc_out.shape == (B, S, D_MODEL) and dec_out.shape == (B, S, D_MODEL)

    # Validate the fused kernel against a pure-JAX replica of the PyTorch math
    # (same buggy head reshape, no softmax, LayerNorm over (S, D)).
    ref_enc = _ref_encoder(x_input, enc_params)
    ref_dec = _ref_decoder(x_output, ref_enc, dec_params)
    assert bool(jnp.allclose(enc_out, ref_enc, atol=1e-3, rtol=1e-3))
    assert bool(jnp.allclose(dec_out, ref_dec, atol=1e-3, rtol=1e-3))

    print("KERNEL_OK")
</pallas_src>

<mosaic_0001>
module attributes {stable_mosaic.version = 11 : i64} {
  func.func @_transformer_kernel(%arg0: memref<16x20xf32, #tpu.memory_space<vmem>>, %arg1: memref<16x20xf32, #tpu.memory_space<vmem>>, %arg2: memref<16x20xf32, #tpu.memory_space<vmem>>, %arg3: memref<20x10xf32, #tpu.memory_space<vmem>>, %arg4: memref<1x10xf32, #tpu.memory_space<vmem>>, %arg5: memref<20x10xf32, #tpu.memory_space<vmem>>, %arg6: memref<1x10xf32, #tpu.memory_space<vmem>>, %arg7: memref<20x10xf32, #tpu.memory_space<vmem>>, %arg8: memref<1x10xf32, #tpu.memory_space<vmem>>, %arg9: memref<10x20xf32, #tpu.memory_space<vmem>>, %arg10: memref<1x20xf32, #tpu.memory_space<vmem>>, %arg11: memref<20x2048xf32, #tpu.memory_space<vmem>>, %arg12: memref<1x2048xf32, #tpu.memory_space<vmem>>, %arg13: memref<2048x20xf32, #tpu.memory_space<vmem>>, %arg14: memref<1x20xf32, #tpu.memory_space<vmem>>, %arg15: memref<20x10xf32, #tpu.memory_space<vmem>>, %arg16: memref<1x10xf32, #tpu.memory_space<vmem>>, %arg17: memref<20x10xf32, #tpu.memory_space<vmem>>, %arg18: memref<1x10xf32, #tpu.memory_space<vmem>>, %arg19: memref<20x10xf32, #tpu.memory_space<vmem>>, %arg20: memref<1x10xf32, #tpu.memory_space<vmem>>, %arg21: memref<10x20xf32, #tpu.memory_space<vmem>>, %arg22: memref<1x20xf32, #tpu.memory_space<vmem>>, %arg23: memref<20x2048xf32, #tpu.memory_space<vmem>>, %arg24: memref<1x2048xf32, #tpu.memory_space<vmem>>, %arg25: memref<2048x20xf32, #tpu.memory_space<vmem>>, %arg26: memref<1x20xf32, #tpu.memory_space<vmem>>, %arg27: memref<16x20xf32, #tpu.memory_space<vmem>>, %arg28: memref<16x20xf32, #tpu.memory_space<vmem>>) attributes {dimension_semantics = [], scalar_prefetch = 0 : i64, scratch_operands = 0 : i64, tpu.core_type = #tpu.core_type<tc>} {
    %c0 = arith.constant 0 : index
    %c0_0 = arith.constant 0 : index
    %0 = vector.load %arg2[%c0, %c0_0] : memref<16x20xf32, #tpu.memory_space<vmem>>, vector<16x20xf32>
    %c0_1 = arith.constant 0 : index
    %c0_2 = arith.constant 0 : index
    %1 = vector.load %arg0[%c0_1, %c0_2] : memref<16x20xf32, #tpu.memory_space<vmem>>, vector<16x20xf32>
    %2 = arith.addf %1, %0 : vector<16x20xf32>
    %c0_3 = arith.constant 0 : index
    %c0_4 = arith.constant 0 : index
    %3 = vector.load %arg1[%c0_3, %c0_4] : memref<16x20xf32, #tpu.memory_space<vmem>>, vector<16x20xf32>
    %4 = arith.addf %3, %0 : vector<16x20xf32>
    %c0_5 = arith.constant 0 : index
    %c0_6 = arith.constant 0 : index
    %5 = vector.load %arg3[%c0_5, %c0_6] : memref<20x10xf32, #tpu.memory_space<vmem>>, vector<20x10xf32>
    %c0_7 = arith.constant 0 : index
    %c0_8 = arith.constant 0 : index
    %6 = vector.load %arg4[%c0_7, %c0_8] : memref<1x10xf32, #tpu.memory_space<vmem>>, vector<1x10xf32>
    %c0_9 = arith.constant 0 : index
    %c0_10 = arith.constant 0 : index
    %7 = vector.load %arg5[%c0_9, %c0_10] : memref<20x10xf32, #tpu.memory_space<vmem>>, vector<20x10xf32>
    %c0_11 = arith.constant 0 : index
    %c0_12 = arith.constant 0 : index
    %8 = vector.load %arg6[%c0_11, %c0_12] : memref<1x10xf32, #tpu.memory_space<vmem>>, vector<1x10xf32>
    %c0_13 = arith.constant 0 : index
    %c0_14 = arith.constant 0 : index
    %9 = vector.load %arg7[%c0_13, %c0_14] : memref<20x10xf32, #tpu.memory_space<vmem>>, vector<20x10xf32>
    %c0_15 = arith.constant 0 : index
    %c0_16 = arith.constant 0 : index
    %10 = vector.load %arg8[%c0_15, %c0_16] : memref<1x10xf32, #tpu.memory_space<vmem>>, vector<1x10xf32>
    %c0_17 = arith.constant 0 : index
    %c0_18 = arith.constant 0 : index
    %11 = vector.load %arg9[%c0_17, %c0_18] : memref<10x20xf32, #tpu.memory_space<vmem>>, vector<10x20xf32>
    %c0_19 = arith.constant 0 : index
    %c0_20 = arith.constant 0 : index
    %12 = vector.load %arg10[%c0_19, %c0_20] : memref<1x20xf32, #tpu.memory_space<vmem>>, vector<1x20xf32>
    %c0_21 = arith.constant 0 : index
    %c0_22 = arith.constant 0 : index
    %13 = vector.load %arg11[%c0_21, %c0_22] : memref<20x2048xf32, #tpu.memory_space<vmem>>, vector<20x2048xf32>
    %c0_23 = arith.constant 0 : index
    %c0_24 = arith.constant 0 : index
    %14 = vector.load %arg12[%c0_23, %c0_24] : memref<1x2048xf32, #tpu.memory_space<vmem>>, vector<1x2048xf32>
    %c0_25 = arith.constant 0 : index
    %c0_26 = arith.constant 0 : index
    %15 = vector.load %arg13[%c0_25, %c0_26] : memref<2048x20xf32, #tpu.memory_space<vmem>>, vector<2048x20xf32>
    %c0_27 = arith.constant 0 : index
    %c0_28 = arith.constant 0 : index
    %16 = vector.load %arg14[%c0_27, %c0_28] : memref<1x20xf32, #tpu.memory_space<vmem>>, vector<1x20xf32>
    %cst = arith.constant dense<0.000000e+00> : vector<16x10xf32>
    %17 = tpu.matmul %2, %5, %cst {dimension_numbers = #tpu.dot_dimension_numbers<[1], [0], [0], [1], [0, 0, 1, 1], [], []>} : vector<16x20xf32>, vector<20x10xf32>, vector<16x10xf32> -> vector<16x10xf32>
    %18 = vector.broadcast %6 : vector<1x10xf32> to vector<16x10xf32>
    %19 = arith.addf %17, %18 : vector<16x10xf32>
    %cst_29 = arith.constant 0.223606795 : f32
    %20 = vector.broadcast %cst_29 : f32 to vector<16x10xf32>
    %21 = arith.mulf %19, %20 : vector<16x10xf32>
    %cst_30 = arith.constant dense<0.000000e+00> : vector<16x10xf32>
    %22 = tpu.matmul %2, %7, %cst_30 {dimension_numbers = #tpu.dot_dimension_numbers<[1], [0], [0], [1], [0, 0, 1, 1], [], []>} : vector<16x20xf32>, vector<20x10xf32>, vector<16x10xf32> -> vector<16x10xf32>
    %23 = vector.broadcast %8 : vector<1x10xf32> to vector<16x10xf32>
    %24 = arith.addf %22, %23 : vector<16x10xf32>
    %cst_31 = arith.constant dense<0.000000e+00> : vector<16x10xf32>
    %25 = tpu.matmul %2, %9, %cst_31 {dimension_numbers = #tpu.dot_dimension_numbers<[1], [0], [0], [1], [0, 0, 1, 1], [], []>} : vector<16x20xf32>, vector<20x10xf32>, vector<16x10xf32> -> vector<16x10xf32>
    %26 = vector.broadcast %10 : vector<1x10xf32> to vector<16x10xf32>
    %27 = arith.addf %25, %26 : vector<16x10xf32>
    %28 = tpu.transpose %24, [1, 0] : vector<16x10xf32> -> vector<10x16xf32>
    %29 = vector.extract_strided_slice %28 {offsets = [0, 0], sizes = [5, 4], strides = [1, 1]} : vector<10x16xf32> to vector<5x4xf32>
    %30 = vector.extract_strided_slice %27 {offsets = [0, 0], sizes = [4, 5], strides = [1, 1]} : vector<16x10xf32> to vector<4x5xf32>
    %cst_32 = arith.constant dense<0.000000e+00> : vector<5x5xf32>
    %31 = tpu.matmul %29, %30, %cst_32 {dimension_numbers = #tpu.dot_dimension_numbers<[1], [0], [0], [1], [0, 0, 1, 1], [], []>} : vector<5x4xf32>, vector<4x5xf32>, vector<5x5xf32> -> vector<5x5xf32>
    %32 = vector.extract_strided_slice %28 {offsets = [5, 0], sizes = [5, 4], strides = [1, 1]} : vector<10x16xf32> to vector<5x4xf32>
    %33 = vector.extract_strided_slice %27 {offsets = [0, 5], sizes = [4, 5], strides = [1, 1]} : vector<16x10xf32> to vector<4x5xf32>
    %cst_33 = arith.constant dense<0.000000e+00> : vector<5x5xf32>
    %34 = tpu.matmul %32, %33, %cst_33 {dimension_numbers = #tpu.dot_dimension_numbers<[1], [0], [0], [1], [0, 0, 1, 1], [], []>} : vector<5x4xf32>, vector<4x5xf32>, vector<5x5xf32> -> vector<5x5xf32>
    %35 = arith.addf %31, %34 : vector<5x5xf32>
    %36 = vector.extract_strided_slice %11 {offsets = [0, 0], sizes = [5, 20], strides = [1, 1]} : vector<10x20xf32> to vector<5x20xf32>
    %cst_34 = arith.constant dense<0.000000e+00> : vector<5x20xf32>
    %37 = tpu.matmul %35, %36, %cst_34 {dimension_numbers = #tpu.dot_dimension_numbers<[1], [0], [0], [1], [0, 0, 1, 1], [], []>} : vector<5x5xf32>, vector<5x20xf32>, vector<5x20xf32> -> vector<5x20xf32>
    %38 = vector.extract_strided_slice %21 {offsets = [0, 0], sizes = [4, 5], strides = [1, 1]} : vector<16x10xf32> to vector<4x5xf32>
    %cst_35 = arith.constant dense<0.000000e+00> : vector<4x20xf32>
    %39 = tpu.matmul %38, %37, %cst_35 {dimension_numbers = #tpu.dot_dimension_numbers<[1], [0], [0], [1], [0, 0, 1, 1], [], []>} : vector<4x5xf32>, vector<5x20xf32>, vector<4x20xf32> -> vector<4x20xf32>
    %40 = vector.extract_strided_slice %11 {offsets = [5, 0], sizes = [5, 20], strides = [1, 1]} : vector<10x20xf32> to vector<5x20xf32>
    %cst_36 = arith.constant dense<0.000000e+00> : vector<5x20xf32>
    %41 = tpu.matmul %35, %40, %cst_36 {dimension_numbers = #tpu.dot_dimension_numbers<[1], [0], [0], [1], [0, 0, 1, 1], [], []>} : vector<5x5xf32>, vector<5x20xf32>, vector<5x20xf32> -> vector<5x20xf32>
    %42 = vector.extract_strided_slice %21 {offsets = [0, 5], sizes = [4, 5], strides = [1, 1]} : vector<16x10xf32> to vector<4x5xf32>
    %cst_37 = arith.constant dense<0.000000e+00> : vector<4x20xf32>
    %43 = tpu.matmul %42, %41, %cst_37 {dimension_numbers = #tpu.dot_dimension_numbers<[1], [0], [0], [1], [0, 0, 1, 1], [], []>} : vector<4x5xf32>, vector<5x20xf32>, vector<4x20xf32> -> vector<4x20xf32>
    %44 = arith.addf %39, %43 : vector<4x20xf32>
    %45 = vector.extract_strided_slice %28 {offsets = [0, 4], sizes = [5, 4], strides = [1, 1]} : vector<10x16xf32> to vector<5x4xf32>
    %46 = vector.extract_strided_slice %27 {offsets = [4, 0], sizes = [4, 5], strides = [1, 1]} : vector<16x10xf32> to vector<4x5xf32>
    %cst_38 = arith.constant dense<0.000000e+00> : vector<5x5xf32>
    %47 = tpu.matmul %45, %46, %cst_38 {dimension_numbers = #tpu.dot_dimension_numbers<[1], [0], [0], [1], [0, 0, 1, 1], [], []>} : vector<5x4xf32>, vector<4x5xf32>, vector<5x5xf32> -> vector<5x5xf32>
    %48 = vector.extract_strided_slice %28 {offsets = [5, 4], sizes = [5, 4], strides = [1, 1]} : vector<10x16xf32> to vector<5x4xf32>
    %49 = vector.extract_strided_slice %27 {offsets = [4, 5], sizes = [4, 5], strides = [1, 1]} : vector<16x10xf32> to vector<4x5xf32>
    %cst_39 = arith.constant dense<0.000000e+00> : vector<5x5xf32>
    %50 = tpu.matmul %48, %49, %cst_39 {dimension_numbers = #tpu.dot_dimension_numbers<[1], [0], [0], [1], [0, 0, 1, 1], [], []>} : vector<5x4xf32>, vector<4x5xf32>, vector<5x5xf32> -> vector<5x5xf32>
    %51 = arith.addf %47, %50 : vector<5x5xf32>
    %52 = vector.extract_strided_slice %11 {offsets = [0, 0], sizes = [5, 20], strides = [1, 1]} : vector<10x20xf32> to vector<5x20xf32>
    %cst_40 = arith.constant dense<0.000000e+00> : vector<5x20xf32>
    %53 = tpu.matmul %51, %52, %cst_40 {dimension_numbers = #tpu.dot_dimension_numbers<[1], [0], [0], [1], [0, 0, 1, 1], [], []>} : vector<5x5xf32>, vector<5x20xf32>, vector<5x20xf32> -> vector<5x20xf32>
    %54 = vector.extract_strided_slice %21 {offsets = [4, 0], sizes = [4, 5], strides = [1, 1]} : vector<16x10xf32> to vector<4x5xf32>
    %cst_41 = arith.constant dense<0.000000e+00> : vector<4x20xf32>
    %55 = tpu.matmul %54, %53, %cst_41 {dimension_numbers = #tpu.dot_dimension_numbers<[1], [0], [0], [1], [0, 0, 1, 1], [], []>} : vector<4x5xf32>, vector<5x20xf32>, vector<4x20xf32> -> vector<4x20xf32>
    %56 = vector.extract_strided_slice %11 {offsets = [5, 0], sizes = [5, 20], strides = [1, 1]} : vector<10x20xf32> to vector<5x20xf32>
    %cst_42 = arith.constant dense<0.000000e+00> : vector<5x20xf32>
    %57 = tpu.matmul %51, %56, %cst_42 {dimension_numbers = #tpu.dot_dimension_numbers<[1], [0], [0], [1], [0, 0, 1, 1], [], []>} : vector<5x5xf32>, vector<5x20xf32>, vector<5x20xf32> -> vector<5x20xf32>
    %58 = vector.extract_strided_slice %21 {offsets = [4, 5], sizes = [4, 5], strides = [1, 1]} : vector<16x10xf32> to vector<4x5xf32>
    %cst_43 = arith.constant dense<0.000000e+00> : vector<4x20xf32>
    %59 = tpu.matmul %58, %57, %cst_43 {dimension_numbers = #tpu.dot_dimension_numbers<[1], [0], [0], [1], [0, 0, 1, 1], [], []>} : vector<4x5xf32>, vector<5x20xf32>, vector<4x20xf32> -> vector<4x20xf32>
    %60 = arith.addf %55, %59 : vector<4x20xf32>
    %61 = vector.extract_strided_slice %28 {offsets = [0, 8], sizes = [5, 4], strides = [1, 1]} : vector<10x16xf32> to vector<5x4xf32>
    %62 = vector.extract_strided_slice %27 {offsets = [8, 0], sizes = [4, 5], strides = [1, 1]} : vector<16x10xf32> to vector<4x5xf32>
    %cst_44 = arith.constant dense<0.000000e+00> : vector<5x5xf32>
    %63 = tpu.matmul %61, %62, %cst_44 {dimension_numbers = #tpu.dot_dimension_numbers<[1], [0], [0], [1], [0, 0, 1, 1], [], []>} : vector<5x4xf32>, vector<4x5xf32>, vector<5x5xf32> -> vector<5x5xf32>
    %64 = vector.extract_strided_slice %28 {offsets = [5, 8], sizes = [5, 4], strides = [1, 1]} : vector<10x16xf32> to vector<5x4xf32>
    %65 = vector.extract_strided_slice %27 {offsets = [8, 5], sizes = [4, 5], strides = [1, 1]} : vector<16x10xf32> to vector<4x5xf32>
    %cst_45 = arith.constant dense<0.000000e+00> : vector<5x5xf32>
    %66 = tpu.matmul %64, %65, %cst_45 {dimension_numbers = #tpu.dot_dimension_numbers<[1], [0], [0], [1], [0, 0, 1, 1], [], []>} : vector<5x4xf32>, vector<4x5xf32>, vector<5x5xf32> -> vector<5x5xf32>
    %67 = arith.addf %63, %66 : vector<5x5xf32>
    %68 = vector.extract_strided_slice %11 {offsets = [0, 0], sizes = [5, 20], strides = [1, 1]} : vector<10x20xf32> to vector<5x20xf32>
    %cst_46 = arith.constant dense<0.000000e+00> : vector<5x20xf32>
    %69 = tpu.matmul %67, %68, %cst_46 {dimension_numbers = #tpu.dot_dimension_numbers<[1], [0], [0], [1], [0, 0, 1, 1], [], []>} : vector<5x5xf32>, vector<5x20xf32>, vector<5x20xf32> -> vector<5x20xf32>
    %70 = vector.extract_strided_slice %21 {offsets = [8, 0], sizes = [4, 5], strides = [1, 1]} : vector<16x10xf32> to vector<4x5xf32>
    %cst_47 = arith.constant dense<0.000000e+00> : vector<4x20xf32>
    %71 = tpu.matmul %70, %69, %cst_47 {dimension_numbers = #tpu.dot_dimension_numbers<[1], [0], [0], [1], [0, 0, 1, 1], [], []>} : vector<4x5xf32>, vector<5x20xf32>, vector<4x20xf32> -> vector<4x20xf32>
    %72 = vector.extract_strided_slice %11 {offsets = [5, 0], sizes = [5, 20], strides = [1, 1]} : vector<10x20xf32> to vector<5x20xf32>
    %cst_48 = arith.constant dense<0.000000e+00> : vector<5x20xf32>
    %73 = tpu.matmul %67, %72, %cst_48 {dimension_numbers = #tpu.dot_dimension_numbers<[1], [0], [0], [1], [0, 0, 1, 1], [], []>} : vector<5x5xf32>, vector<5x20xf32>, vector<5x20xf32> -> vector<5x20xf32>
    %74 = vector.extract_strided_slice %21 {offsets = [8, 5], sizes = [4, 5], strides = [1, 1]} : vector<16x10xf32> to vector<4x5xf32>
    %cst_49 = arith.constant dense<0.000000e+00> : vector<4x20xf32>
    %75 = tpu.matmul %74, %73, %cst_49 {dimension_numbers = #tpu.dot_dimension_numbers<[1], [0], [0], [1], [0, 0, 1, 1], [], []>} : vector<4x5xf32>, vector<5x20xf32>, vector<4x20xf32> -> vector<4x20xf32>
    %76 = arith.addf %71, %75 : vector<4x20xf32>
    %77 = vector.extract_strided_slice %28 {offsets = [0, 12], sizes = [5, 4], strides = [1, 1]} : vector<10x16xf32> to vector<5x4xf32>
    %78 = vector.extract_strided_slice %27 {offsets = [12, 0], sizes = [4, 5], strides = [1, 1]} : vector<16x10xf32> to vector<4x5xf32>
    %cst_50 = arith.constant dense<0.000000e+00> : vector<5x5xf32>
    %79 = tpu.matmul %77, %78, %cst_50 {dimension_numbers = #tpu.dot_dimension_numbers<[1], [0], [0], [1], [0, 0, 1, 1], [], []>} : vector<5x4xf32>, vector<4x5xf32>, vector<5x5xf32> -> vector<5x5xf32>
    %80 = vector.extract_strided_slice %28 {offsets = [5, 12], sizes = [5, 4], strides = [1, 1]} : vector<10x16xf32> to vector<5x4xf32>
    %81 = vector.extract_strided_slice %27 {offsets = [12, 5], sizes = [4, 5], strides = [1, 1]} : vector<16x10xf32> to vector<4x5xf32>
    %cst_51 = arith.constant dense<0.000000e+00> : vector<5x5xf32>
    %82 = tpu.matmul %80, %81, %cst_51 {dimension_numbers = #tpu.dot_dimension_numbers<[1], [0], [0], [1], [0, 0, 1, 1], [], []>} : vector<5x4xf32>, vector<4x5xf32>, vector<5x5xf32> -> vector<5x5xf32>
    %83 = arith.addf %79, %82 : vector<5x5xf32>
    %84 = vector.extract_strided_slice %11 {offsets = [0, 0], sizes = [5, 20], strides = [1, 1]} : vector<10x20xf32> to vector<5x20xf32>
    %cst_52 = arith.constant dense<0.000000e+00> : vector<5x20xf32>
    %85 = tpu.matmul %83, %84, %cst_52 {dimension_numbers = #tpu.dot_dimension_numbers<[1], [0], [0], [1], [0, 0, 1, 1], [], []>} : vector<5x5xf32>, vector<5x20xf32>, vector<5x20xf32> -> vector<5x20xf32>
    %86 = vector.extract_strided_slice %21 {offsets = [12, 0], sizes = [4, 5], strides = [1, 1]} : vector<16x10xf32> to vector<4x5xf32>
    %cst_53 = arith.constant dense<0.000000e+00> : vector<4x20xf32>
    %87 = tpu.matmul %86, %85, %cst_53 {dimension_numbers = #tpu.dot_dimension_numbers<[1], [0], [0], [1], [0, 0, 1, 1], [], []>} : vector<4x5xf32>, vector<5x20xf32>, vector<4x20xf32> -> vector<4x20xf32>
    %88 = vector.extract_strided_slice %11 {offsets = [5, 0], sizes = [5, 20], strides = [1, 1]} : vector<10x20xf32> to vector<5x20xf32>
    %cst_54 = arith.constant dense<0.000000e+00> : vector<5x20xf32>
    %89 = tpu.matmul %83, %88, %cst_54 {dimension_numbers = #tpu.dot_dimension_numbers<[1], [0], [0], [1], [0, 0, 1, 1], [], []>} : vector<5x5xf32>, vector<5x20xf32>, vector<5x20xf32> -> vector<5x20xf32>
    %90 = vector.extract_strided_slice %21 {offsets = [12, 5], sizes = [4, 5], strides = [1, 1]} : vector<16x10xf32> to vector<4x5xf32>
    %cst_55 = arith.constant dense<0.000000e+00> : vector<4x20xf32>
    %91 = tpu.matmul %90, %89, %cst_55 {dimension_numbers = #tpu.dot_dimension_numbers<[1], [0], [0], [1], [0, 0, 1, 1], [], []>} : vector<4x5xf32>, vector<5x20xf32>, vector<4x20xf32> -> vector<4x20xf32>
    %92 = arith.addf %87, %91 : vector<4x20xf32>
    %93 = tpu.concatenate %44, %60, %76, %92 in 0 : vector<4x20xf32>, vector<4x20xf32>, vector<4x20xf32>, vector<4x20xf32> -> vector<16x20xf32>
    %94 = vector.broadcast %12 : vector<1x20xf32> to vector<16x20xf32>
    %95 = arith.addf %93, %94 : vector<16x20xf32>
    %96 = arith.addf %2, %95 : vector<16x20xf32>
    %97 = vector.extract_strided_slice %96 {offsets = [0, 0], sizes = [8, 20], strides = [1, 1]} : vector<16x20xf32> to vector<8x20xf32>
    %98 = vector.shape_cast %97 : vector<8x20xf32> to vector<1x8x20xf32>
    %cst_56 = arith.constant dense<0.000000e+00> : vector<1xf32>
    %99 = vector.multi_reduction <add>, %98, %cst_56 [1, 2] : vector<1x8x20xf32> to vector<1xf32>
    %100 = vector.shape_cast %99 : vector<1xf32> to vector<1x1x1xf32>
    %101 = vector.extract %100[0, 0, 0] : f32 from vector<1x1x1xf32>
    %cst_57 = arith.constant 1.600000e+02 : f32
    %102 = arith.divf %101, %cst_57 : f32
    %103 = vector.broadcast %102 : f32 to vector<8x20xf32>
    %104 = arith.subf %97, %103 : vector<8x20xf32>
    %105 = arith.mulf %104, %104 : vector<8x20xf32>
    %106 = vector.shape_cast %105 : vector<8x20xf32> to vector<1x8x20xf32>
    %cst_58 = arith.constant dense<0.000000e+00> : vector<1xf32>
    %107 = vector.multi_reduction <add>, %106, %cst_58 [1, 2] : vector<1x8x20xf32> to vector<1xf32>
    %108 = vector.shape_cast %107 : vector<1xf32> to vector<1x1x1xf32>
    %109 = vector.extract %108[0, 0, 0] : f32 from vector<1x1x1xf32>
    %cst_59 = arith.constant 1.600000e+02 : f32
    %110 = arith.divf %109, %cst_59 : f32
    %cst_60 = arith.constant 9.99999974E-6 : f32
    %111 = arith.addf %110, %cst_60 : f32
    %112 = math.rsqrt %111 : f32
    %113 = vector.broadcast %112 : f32 to vector<8x20xf32>
    %114 = arith.mulf %104, %113 : vector<8x20xf32>
    %115 = vector.extract_strided_slice %96 {offsets = [8, 0], sizes = [8, 20], strides = [1, 1]} : vector<16x20xf32> to vector<8x20xf32>
    %116 = vector.shape_cast %115 : vector<8x20xf32> to vector<1x8x20xf32>
    %cst_61 = arith.constant dense<0.000000e+00> : vector<1xf32>
    %117 = vector.multi_reduction <add>, %116, %cst_61 [1, 2] : vector<1x8x20xf32> to vector<1xf32>
    %118 = vector.shape_cast %117 : vector<1xf32> to vector<1x1x1xf32>
    %119 = vector.extract %118[0, 0, 0] : f32 from vector<1x1x1xf32>
    %cst_62 = arith.constant 1.600000e+02 : f32
    %120 = arith.divf %119, %cst_62 : f32
    %121 = vector.broadcast %120 : f32 to vector<8x20xf32>
    %122 = arith.subf %115, %121 : vector<8x20xf32>
    %123 = arith.mulf %122, %122 : vector<8x20xf32>
    %124 = vector.shape_cast %123 : vector<8x20xf32> to vector<1x8x20xf32>
    %cst_63 = arith.constant dense<0.000000e+00> : vector<1xf32>
    %125 = vector.multi_reduction <add>, %124, %cst_63 [1, 2] : vector<1x8x20xf32> to vector<1xf32>
    %126 = vector.shape_cast %125 : vector<1xf32> to vector<1x1x1xf32>
    %127 = vector.extract %126[0, 0, 0] : f32 from vector<1x1x1xf32>
    %cst_64 = arith.constant 1.600000e+02 : f32
    %128 = arith.divf %127, %cst_64 : f32
    %cst_65 = arith.constant 9.99999974E-6 : f32
    %129 = arith.addf %128, %cst_65 : f32
    %130 = math.rsqrt %129 : f32
    %131 = vector.broadcast %130 : f32 to vector<8x20xf32>
    %132 = arith.mulf %122, %131 : vector<8x20xf32>
    %133 = tpu.concatenate %114, %132 in 0 : vector<8x20xf32>, vector<8x20xf32> -> vector<16x20xf32>
    %cst_66 = arith.constant dense<0.000000e+00> : vector<16x2048xf32>
    %134 = tpu.matmul %133, %13, %cst_66 {dimension_numbers = #tpu.dot_dimension_numbers<[1], [0], [0], [1], [0, 0, 1, 1], [], []>} : vector<16x20xf32>, vector<20x2048xf32>, vector<16x2048xf32> -> vector<16x2048xf32>
    %135 = vector.broadcast %14 : vector<1x2048xf32> to vector<16x2048xf32>
    %136 = arith.addf %134, %135 : vector<16x2048xf32>
    %cst_67 = arith.constant 0.000000e+00 : f32
    %137 = vector.broadcast %cst_67 : f32 to vector<16x2048xf32>
    %138 = arith.maximumf %136, %137 : vector<16x2048xf32>
    %cst_68 = arith.constant dense<0.000000e+00> : vector<16x20xf32>
    %139 = tpu.matmul %138, %15, %cst_68 {dimension_numbers = #tpu.dot_dimension_numbers<[1], [0], [0], [1], [0, 0, 1, 1], [], []>} : vector<16x2048xf32>, vector<2048x20xf32>, vector<16x20xf32> -> vector<16x20xf32>
    %140 = vector.broadcast %16 : vector<1x20xf32> to vector<16x20xf32>
    %141 = arith.addf %139, %140 : vector<16x20xf32>
    %142 = arith.addf %133, %141 : vector<16x20xf32>
    %143 = vector.extract_strided_slice %142 {offsets = [0, 0], sizes = [8, 20], strides = [1, 1]} : vector<16x20xf32> to vector<8x20xf32>
    %144 = vector.shape_cast %143 : vector<8x20xf32> to vector<1x8x20xf32>
    %cst_69 = arith.constant dense<0.000000e+00> : vector<1xf32>
    %145 = vector.multi_reduction <add>, %144, %cst_69 [1, 2] : vector<1x8x20xf32> to vector<1xf32>
    %146 = vector.shape_cast %145 : vector<1xf32> to vector<1x1x1xf32>
    %147 = vector.extract %146[0, 0, 0] : f32 from vector<1x1x1xf32>
    %cst_70 = arith.constant 1.600000e+02 : f32
    %148 = arith.divf %147, %cst_70 : f32
    %149 = vector.broadcast %148 : f32 to vector<8x20xf32>
    %150 = arith.subf %143, %149 : vector<8x20xf32>
    %151 = arith.mulf %150, %150 : vector<8x20xf32>
    %152 = vector.shape_cast %151 : vector<8x20xf32> to vector<1x8x20xf32>
    %cst_71 = arith.constant dense<0.000000e+00> : vector<1xf32>
    %153 = vector.multi_reduction <add>, %152, %cst_71 [1, 2] : vector<1x8x20xf32> to vector<1xf32>
    %154 = vector.shape_cast %153 : vector<1xf32> to vector<1x1x1xf32>
    %155 = vector.extract %154[0, 0, 0] : f32 from vector<1x1x1xf32>
    %cst_72 = arith.constant 1.600000e+02 : f32
    %156 = arith.divf %155, %cst_72 : f32
    %cst_73 = arith.constant 9.99999974E-6 : f32
    %157 = arith.addf %156, %cst_73 : f32
    %158 = math.rsqrt %157 : f32
    %159 = vector.broadcast %158 : f32 to vector<8x20xf32>
    %160 = arith.mulf %150, %159 : vector<8x20xf32>
    %161 = vector.extract_strided_slice %142 {offsets = [8, 0], sizes = [8, 20], strides = [1, 1]} : vector<16x20xf32> to vector<8x20xf32>
    %162 = vector.shape_cast %161 : vector<8x20xf32> to vector<1x8x20xf32>
    %cst_74 = arith.constant dense<0.000000e+00> : vector<1xf32>
    %163 = vector.multi_reduction <add>, %162, %cst_74 [1, 2] : vector<1x8x20xf32> to vector<1xf32>
    %164 = vector.shape_cast %163 : vector<1xf32> to vector<1x1x1xf32>
    %165 = vector.extract %164[0, 0, 0] : f32 from vector<1x1x1xf32>
    %cst_75 = arith.constant 1.600000e+02 : f32
    %166 = arith.divf %165, %cst_75 : f32
    %167 = vector.broadcast %166 : f32 to vector<8x20xf32>
    %168 = arith.subf %161, %167 : vector<8x20xf32>
    %169 = arith.mulf %168, %168 : vector<8x20xf32>
    %170 = vector.shape_cast %169 : vector<8x20xf32> to vector<1x8x20xf32>
    %cst_76 = arith.constant dense<0.000000e+00> : vector<1xf32>
    %171 = vector.multi_reduction <add>, %170, %cst_76 [1, 2] : vector<1x8x20xf32> to vector<1xf32>
    %172 = vector.shape_cast %171 : vector<1xf32> to vector<1x1x1xf32>
    %173 = vector.extract %172[0, 0, 0] : f32 from vector<1x1x1xf32>
    %cst_77 = arith.constant 1.600000e+02 : f32
    %174 = arith.divf %173, %cst_77 : f32
    %cst_78 = arith.constant 9.99999974E-6 : f32
    %175 = arith.addf %174, %cst_78 : f32
    %176 = math.rsqrt %175 : f32
    %177 = vector.broadcast %176 : f32 to vector<8x20xf32>
    %178 = arith.mulf %168, %177 : vector<8x20xf32>
    %179 = tpu.concatenate %160, %178 in 0 : vector<8x20xf32>, vector<8x20xf32> -> vector<16x20xf32>
    %c0_79 = arith.constant 0 : index
    %c0_80 = arith.constant 0 : index
    %180 = vector.load %arg27[%c0_79, %c0_80] : memref<16x20xf32, #tpu.memory_space<vmem>>, vector<16x20xf32>
    tpu.vector_store %arg27[%c0_79, %c0_80], %179 {strides = array<i32>} : memref<16x20xf32, #tpu.memory_space<vmem>>, vector<16x20xf32>,
    %c0_81 = arith.constant 0 : index
    %c0_82 = arith.constant 0 : index
    %181 = vector.load %arg15[%c0_81, %c0_82] : memref<20x10xf32, #tpu.memory_space<vmem>>, vector<20x10xf32>
    %c0_83 = arith.constant 0 : index
    %c0_84 = arith.constant 0 : index
    %182 = vector.load %arg16[%c0_83, %c0_84] : memref<1x10xf32, #tpu.memory_space<vmem>>, vector<1x10xf32>
    %c0_85 = arith.constant 0 : index
    %c0_86 = arith.constant 0 : index
    %183 = vector.load %arg17[%c0_85, %c0_86] : memref<20x10xf32, #tpu.memory_space<vmem>>, vector<20x10xf32>
    %c0_87 = arith.constant 0 : index
    %c0_88 = arith.constant 0 : index
    %184 = vector.load %arg18[%c0_87, %c0_88] : memref<1x10xf32, #tpu.memory_space<vmem>>, vector<1x10xf32>
    %c0_89 = arith.constant 0 : index
    %c0_90 = arith.constant 0 : index
    %185 = vector.load %arg19[%c0_89, %c0_90] : memref<20x10xf32, #tpu.memory_space<vmem>>, vector<20x10xf32>
    %c0_91 = arith.constant 0 : index
    %c0_92 = arith.constant 0 : index
    %186 = vector.load %arg20[%c0_91, %c0_92] : memref<1x10xf32, #tpu.memory_space<vmem>>, vector<1x10xf32>
    %c0_93 = arith.constant 0 : index
    %c0_94 = arith.constant 0 : index
    %187 = vector.load %arg21[%c0_93, %c0_94] : memref<10x20xf32, #tpu.memory_space<vmem>>, vector<10x20xf32>
    %c0_95 = arith.constant 0 : index
    %c0_96 = arith.constant 0 : index
    %188 = vector.load %arg22[%c0_95, %c0_96] : memref<1x20xf32, #tpu.memory_space<vmem>>, vector<1x20xf32>
    %c0_97 = arith.constant 0 : index
    %c0_98 = arith.constant 0 : index
    %189 = vector.load %arg23[%c0_97, %c0_98] : memref<20x2048xf32, #tpu.memory_space<vmem>>, vector<20x2048xf32>
    %c0_99 = arith.constant 0 : index
    %c0_100 = arith.constant 0 : index
    %190 = vector.load %arg24[%c0_99, %c0_100] : memref<1x2048xf32, #tpu.memory_space<vmem>>, vector<1x2048xf32>
    %c0_101 = arith.constant 0 : index
    %c0_102 = arith.constant 0 : index
    %191 = vector.load %arg25[%c0_101, %c0_102] : memref<2048x20xf32, #tpu.memory_space<vmem>>, vector<2048x20xf32>
    %c0_103 = arith.constant 0 : index
    %c0_104 = arith.constant 0 : index
    %192 = vector.load %arg26[%c0_103, %c0_104] : memref<1x20xf32, #tpu.memory_space<vmem>>, vector<1x20xf32>
    %cst_105 = arith.constant dense<0.000000e+00> : vector<16x10xf32>
    %193 = tpu.matmul %4, %181, %cst_105 {dimension_numbers = #tpu.dot_dimension_numbers<[1], [0], [0], [1], [0, 0, 1, 1], [], []>} : vector<16x20xf32>, vector<20x10xf32>, vector<16x10xf32> -> vector<16x10xf32>
    %194 = vector.broadcast %182 : vector<1x10xf32> to vector<16x10xf32>
    %195 = arith.addf %193, %194 : vector<16x10xf32>
    %cst_106 = arith.constant 0.223606795 : f32
    %196 = vector.broadcast %cst_106 : f32 to vector<16x10xf32>
    %197 = arith.mulf %195, %196 : vector<16x10xf32>
    %cst_107 = arith.constant dense<0.000000e+00> : vector<16x10xf32>
    %198 = tpu.matmul %4, %183, %cst_107 {dimension_numbers = #tpu.dot_dimension_numbers<[1], [0], [0], [1], [0, 0, 1, 1], [], []>} : vector<16x20xf32>, vector<20x10xf32>, vector<16x10xf32> -> vector<16x10xf32>
    %199 = vector.broadcast %184 : vector<1x10xf32> to vector<16x10xf32>
    %200 = arith.addf %198, %199 : vector<16x10xf32>
    %cst_108 = arith.constant dense<0.000000e+00> : vector<16x10xf32>
    %201 = tpu.matmul %179, %185, %cst_108 {dimension_numbers = #tpu.dot_dimension_numbers<[1], [0], [0], [1], [0, 0, 1, 1], [], []>} : vector<16x20xf32>, vector<20x10xf32>, vector<16x10xf32> -> vector<16x10xf32>
    %202 = vector.broadcast %186 : vector<1x10xf32> to vector<16x10xf32>
    %203 = arith.addf %201, %202 : vector<16x10xf32>
    %204 = tpu.transpose %200, [1, 0] : vector<16x10xf32> -> vector<10x16xf32>
    %205 = vector.extract_strided_slice %204 {offsets = [0, 0], sizes = [5, 4], strides = [1, 1]} : vector<10x16xf32> to vector<5x4xf32>
    %206 = vector.extract_strided_slice %203 {offsets = [0, 0], sizes = [4, 5], strides = [1, 1]} : vector<16x10xf32> to vector<4x5xf32>
    %cst_109 = arith.constant dense<0.000000e+00> : vector<5x5xf32>
    %207 = tpu.matmul %205, %206, %cst_109 {dimension_numbers = #tpu.dot_dimension_numbers<[1], [0], [0], [1], [0, 0, 1, 1], [], []>} : vector<5x4xf32>, vector<4x5xf32>, vector<5x5xf32> -> vector<5x5xf32>
    %208 = vector.extract_strided_slice %204 {offsets = [5, 0], sizes = [5, 4], strides = [1, 1]} : vector<10x16xf32> to vector<5x4xf32>
    %209 = vector.extract_strided_slice %203 {offsets = [0, 5], sizes = [4, 5], strides = [1, 1]} : vector<16x10xf32> to vector<4x5xf32>
    %cst_110 = arith.constant dense<0.000000e+00> : vector<5x5xf32>
    %210 = tpu.matmul %208, %209, %cst_110 {dimension_numbers = #tpu.dot_dimension_numbers<[1], [0], [0], [1], [0, 0, 1, 1], [], []>} : vector<5x4xf32>, vector<4x5xf32>, vector<5x5xf32> -> vector<5x5xf32>
    %211 = arith.addf %207, %210 : vector<5x5xf32>
    %212 = vector.extract_strided_slice %187 {offsets = [0, 0], sizes = [5, 20], strides = [1, 1]} : vector<10x20xf32> to vector<5x20xf32>
    %cst_111 = arith.constant dense<0.000000e+00> : vector<5x20xf32>
    %213 = tpu.matmul %211, %212, %cst_111 {dimension_numbers = #tpu.dot_dimension_numbers<[1], [0], [0], [1], [0, 0, 1, 1], [], []>} : vector<5x5xf32>, vector<5x20xf32>, vector<5x20xf32> -> vector<5x20xf32>
    %214 = vector.extract_strided_slice %197 {offsets = [0, 0], sizes = [4, 5], strides = [1, 1]} : vector<16x10xf32> to vector<4x5xf32>
    %cst_112 = arith.constant dense<0.000000e+00> : vector<4x20xf32>
    %215 = tpu.matmul %214, %213, %cst_112 {dimension_numbers = #tpu.dot_dimension_numbers<[1], [0], [0], [1], [0, 0, 1, 1], [], []>} : vector<4x5xf32>, vector<5x20xf32>, vector<4x20xf32> -> vector<4x20xf32>
    %216 = vector.extract_strided_slice %187 {offsets = [5, 0], sizes = [5, 20], strides = [1, 1]} : vector<10x20xf32> to vector<5x20xf32>
    %cst_113 = arith.constant dense<0.000000e+00> : vector<5x20xf32>
    %217 = tpu.matmul %211, %216, %cst_113 {dimension_numbers = #tpu.dot_dimension_numbers<[1], [0], [0], [1], [0, 0, 1, 1], [], []>} : vector<5x5xf32>, vector<5x20xf32>, vector<5x20xf32> -> vector<5x20xf32>
    %218 = vector.extract_strided_slice %197 {offsets = [0, 5], sizes = [4, 5], strides = [1, 1]} : vector<16x10xf32> to vector<4x5xf32>
    %cst_114 = arith.constant dense<0.000000e+00> : vector<4x20xf32>
    %219 = tpu.matmul %218, %217, %cst_114 {dimension_numbers = #tpu.dot_dimension_numbers<[1], [0], [0], [1], [0, 0, 1, 1], [], []>} : vector<4x5xf32>, vector<5x20xf32>, vector<4x20xf32> -> vector<4x20xf32>
    %220 = arith.addf %215, %219 : vector<4x20xf32>
    %221 = vector.extract_strided_slice %204 {offsets = [0, 4], sizes = [5, 4], strides = [1, 1]} : vector<10x16xf32> to vector<5x4xf32>
    %222 = vector.extract_strided_slice %203 {offsets = [4, 0], sizes = [4, 5], strides = [1, 1]} : vector<16x10xf32> to vector<4x5xf32>
    %cst_115 = arith.constant dense<0.000000e+00> : vector<5x5xf32>
    %223 = tpu.matmul %221, %222, %cst_115 {dimension_numbers = #tpu.dot_dimension_numbers<[1], [0], [0], [1], [0, 0, 1, 1], [], []>} : vector<5x4xf32>, vector<4x5xf32>, vector<5x5xf32> -> vector<5x5xf32>
    %224 = vector.extract_strided_slice %204 {offsets = [5, 4], sizes = [5, 4], strides = [1, 1]} : vector<10x16xf32> to vector<5x4xf32>
    %225 = vector.extract_strided_slice %203 {offsets = [4, 5], sizes = [4, 5], strides = [1, 1]} : vector<16x10xf32> to vector<4x5xf32>
    %cst_116 = arith.constant dense<0.000000e+00> : vector<5x5xf32>
    %226 = tpu.matmul %224, %225, %cst_116 {dimension_numbers = #tpu.dot_dimension_numbers<[1], [0], [0], [1], [0, 0, 1, 1], [], []>} : vector<5x4xf32>, vector<4x5xf32>, vector<5x5xf32> -> vector<5x5xf32>
    %227 = arith.addf %223, %226 : vector<5x5xf32>
    %228 = vector.extract_strided_slice %187 {offsets = [0, 0], sizes = [5, 20], strides = [1, 1]} : vector<10x20xf32> to vector<5x20xf32>
    %cst_117 = arith.constant dense<0.000000e+00> : vector<5x20xf32>
    %229 = tpu.matmul %227, %228, %cst_117 {dimension_numbers = #tpu.dot_dimension_numbers<[1], [0], [0], [1], [0, 0, 1, 1], [], []>} : vector<5x5xf32>, vector<5x20xf32>, vector<5x20xf32> -> vector<5x20xf32>
    %230 = vector.extract_strided_slice %197 {offsets = [4, 0], sizes = [4, 5], strides = [1, 1]} : vector<16x10xf32> to vector<4x5xf32>
    %cst_118 = arith.constant dense<0.000000e+00> : vector<4x20xf32>
    %231 = tpu.matmul %230, %229, %cst_118 {dimension_numbers = #tpu.dot_dimension_numbers<[1], [0], [0], [1], [0, 0, 1, 1], [], []>} : vector<4x5xf32>, vector<5x20xf32>, vector<4x20xf32> -> vector<4x20xf32>
    %232 = vector.extract_strided_slice %187 {offsets = [5, 0], sizes = [5, 20], strides = [1, 1]} : vector<10x20xf32> to vector<5x20xf32>
    %cst_119 = arith.constant dense<0.000000e+00> : vector<5x20xf32>
    %233 = tpu.matmul %227, %232, %cst_119 {dimension_numbers = #tpu.dot_dimension_numbers<[1], [0], [0], [1], [0, 0, 1, 1], [], []>} : vector<5x5xf32>, vector<5x20xf32>, vector<5x20xf32> -> vector<5x20xf32>
    %234 = vector.extract_strided_slice %197 {offsets = [4, 5], sizes = [4, 5], strides = [1, 1]} : vector<16x10xf32> to vector<4x5xf32>
    %cst_120 = arith.constant dense<0.000000e+00> : vector<4x20xf32>
    %235 = tpu.matmul %234, %233, %cst_120 {dimension_numbers = #tpu.dot_dimension_numbers<[1], [0], [0], [1], [0, 0, 1, 1], [], []>} : vector<4x5xf32>, vector<5x20xf32>, vector<4x20xf32> -> vector<4x20xf32>
    %236 = arith.addf %231, %235 : vector<4x20xf32>
    %237 = vector.extract_strided_slice %204 {offsets = [0, 8], sizes = [5, 4], strides = [1, 1]} : vector<10x16xf32> to vector<5x4xf32>
    %238 = vector.extract_strided_slice %203 {offsets = [8, 0], sizes = [4, 5], strides = [1, 1]} : vector<16x10xf32> to vector<4x5xf32>
    %cst_121 = arith.constant dense<0.000000e+00> : vector<5x5xf32>
    %239 = tpu.matmul %237, %238, %cst_121 {dimension_numbers = #tpu.dot_dimension_numbers<[1], [0], [0], [1], [0, 0, 1, 1], [], []>} : vector<5x4xf32>, vector<4x5xf32>, vector<5x5xf32> -> vector<5x5xf32>
    %240 = vector.extract_strided_slice %204 {offsets = [5, 8], sizes = [5, 4], strides = [1, 1]} : vector<10x16xf32> to vector<5x4xf32>
    %241 = vector.extract_strided_slice %203 {offsets = [8, 5], sizes = [4, 5], strides = [1, 1]} : vector<16x10xf32> to vector<4x5xf32>
    %cst_122 = arith.constant dense<0.000000e+00> : vector<5x5xf32>
    %242 = tpu.matmul %240, %241, %cst_122 {dimension_numbers = #tpu.dot_dimension_numbers<[1], [0], [0], [1], [0, 0, 1, 1], [], []>} : vector<5x4xf32>, vector<4x5xf32>, vector<5x5xf32> -> vector<5x5xf32>
    %243 = arith.addf %239, %242 : vector<5x5xf32>
    %244 = vector.extract_strided_slice %187 {offsets = [0, 0], sizes = [5, 20], strides = [1, 1]} : vector<10x20xf32> to vector<5x20xf32>
    %cst_123 = arith.constant dense<0.000000e+00> : vector<5x20xf32>
    %245 = tpu.matmul %243, %244, %cst_123 {dimension_numbers = #tpu.dot_dimension_numbers<[1], [0], [0], [1], [0, 0, 1, 1], [], []>} : vector<5x5xf32>, vector<5x20xf32>, vector<5x20xf32> -> vector<5x20xf32>
    %246 = vector.extract_strided_slice %197 {offsets = [8, 0], sizes = [4, 5], strides = [1, 1]} : vector<16x10xf32> to vector<4x5xf32>
    %cst_124 = arith.constant dense<0.000000e+00> : vector<4x20xf32>
    %247 = tpu.matmul %246, %245, %cst_124 {dimension_numbers = #tpu.dot_dimension_numbers<[1], [0], [0], [1], [0, 0, 1, 1], [], []>} : vector<4x5xf32>, vector<5x20xf32>, vector<4x20xf32> -> vector<4x20xf32>
    %248 = vector.extract_strided_slice %187 {offsets = [5, 0], sizes = [5, 20], strides = [1, 1]} : vector<10x20xf32> to vector<5x20xf32>
    %cst_125 = arith.constant dense<0.000000e+00> : vector<5x20xf32>
    %249 = tpu.matmul %243, %248, %cst_125 {dimension_numbers = #tpu.dot_dimension_numbers<[1], [0], [0], [1], [0, 0, 1, 1], [], []>} : vector<5x5xf32>, vector<5x20xf32>, vector<5x20xf32> -> vector<5x20xf32>
    %250 = vector.extract_strided_slice %197 {offsets = [8, 5], sizes = [4, 5], strides = [1, 1]} : vector<16x10xf32> to vector<4x5xf32>
    %cst_126 = arith.constant dense<0.000000e+00> : vector<4x20xf32>
    %251 = tpu.matmul %250, %249, %cst_126 {dimension_numbers = #tpu.dot_dimension_numbers<[1], [0], [0], [1], [0, 0, 1, 1], [], []>} : vector<4x5xf32>, vector<5x20xf32>, vector<4x20xf32> -> vector<4x20xf32>
    %252 = arith.addf %247, %251 : vector<4x20xf32>
    %253 = vector.extract_strided_slice %204 {offsets = [0, 12], sizes = [5, 4], strides = [1, 1]} : vector<10x16xf32> to vector<5x4xf32>
    %254 = vector.extract_strided_slice %203 {offsets = [12, 0], sizes = [4, 5], strides = [1, 1]} : vector<16x10xf32> to vector<4x5xf32>
    %cst_127 = arith.constant dense<0.000000e+00> : vector<5x5xf32>
    %255 = tpu.matmul %253, %254, %cst_127 {dimension_numbers = #tpu.dot_dimension_numbers<[1], [0], [0], [1], [0, 0, 1, 1], [], []>} : vector<5x4xf32>, vector<4x5xf32>, vector<5x5xf32> -> vector<5x5xf32>
    %256 = vector.extract_strided_slice %204 {offsets = [5, 12], sizes = [5, 4], strides = [1, 1]} : vector<10x16xf32> to vector<5x4xf32>
    %257 = vector.extract_strided_slice %203 {offsets = [12, 5], sizes = [4, 5], strides = [1, 1]} : vector<16x10xf32> to vector<4x5xf32>
    %cst_128 = arith.constant dense<0.000000e+00> : vector<5x5xf32>
    %258 = tpu.matmul %256, %257, %cst_128 {dimension_numbers = #tpu.dot_dimension_numbers<[1], [0], [0], [1], [0, 0, 1, 1], [], []>} : vector<5x4xf32>, vector<4x5xf32>, vector<5x5xf32> -> vector<5x5xf32>
    %259 = arith.addf %255, %258 : vector<5x5xf32>
    %260 = vector.extract_strided_slice %187 {offsets = [0, 0], sizes = [5, 20], strides = [1, 1]} : vector<10x20xf32> to vector<5x20xf32>
    %cst_129 = arith.constant dense<0.000000e+00> : vector<5x20xf32>
    %261 = tpu.matmul %259, %260, %cst_129 {dimension_numbers = #tpu.dot_dimension_numbers<[1], [0], [0], [1], [0, 0, 1, 1], [], []>} : vector<5x5xf32>, vector<5x20xf32>, vector<5x20xf32> -> vector<5x20xf32>
    %262 = vector.extract_strided_slice %197 {offsets = [12, 0], sizes = [4, 5], strides = [1, 1]} : vector<16x10xf32> to vector<4x5xf32>
    %cst_130 = arith.constant dense<0.000000e+00> : vector<4x20xf32>
    %263 = tpu.matmul %262, %261, %cst_130 {dimension_numbers = #tpu.dot_dimension_numbers<[1], [0], [0], [1], [0, 0, 1, 1], [], []>} : vector<4x5xf32>, vector<5x20xf32>, vector<4x20xf32> -> vector<4x20xf32>
    %264 = vector.extract_strided_slice %187 {offsets = [5, 0], sizes = [5, 20], strides = [1, 1]} : vector<10x20xf32> to vector<5x20xf32>
    %cst_131 = arith.constant dense<0.000000e+00> : vector<5x20xf32>
    %265 = tpu.matmul %259, %264, %cst_131 {dimension_numbers = #tpu.dot_dimension_numbers<[1], [0], [0], [1], [0, 0, 1, 1], [], []>} : vector<5x5xf32>, vector<5x20xf32>, vector<5x20xf32> -> vector<5x20xf32>
    %266 = vector.extract_strided_slice %197 {offsets = [12, 5], sizes = [4, 5], strides = [1, 1]} : vector<16x10xf32> to vector<4x5xf32>
    %cst_132 = arith.constant dense<0.000000e+00> : vector<4x20xf32>
    %267 = tpu.matmul %266, %265, %cst_132 {dimension_numbers = #tpu.dot_dimension_numbers<[1], [0], [0], [1], [0, 0, 1, 1], [], []>} : vector<4x5xf32>, vector<5x20xf32>, vector<4x20xf32> -> vector<4x20xf32>
    %268 = arith.addf %263, %267 : vector<4x20xf32>
    %269 = tpu.concatenate %220, %236, %252, %268 in 0 : vector<4x20xf32>, vector<4x20xf32>, vector<4x20xf32>, vector<4x20xf32> -> vector<16x20xf32>
    %270 = vector.broadcast %188 : vector<1x20xf32> to vector<16x20xf32>
    %271 = arith.addf %269, %270 : vector<16x20xf32>
    %272 = arith.addf %4, %271 : vector<16x20xf32>
    %273 = vector.extract_strided_slice %272 {offsets = [0, 0], sizes = [8, 20], strides = [1, 1]} : vector<16x20xf32> to vector<8x20xf32>
    %274 = vector.shape_cast %273 : vector<8x20xf32> to vector<1x8x20xf32>
    %cst_133 = arith.constant dense<0.000000e+00> : vector<1xf32>
    %275 = vector.multi_reduction <add>, %274, %cst_133 [1, 2] : vector<1x8x20xf32> to vector<1xf32>
    %276 = vector.shape_cast %275 : vector<1xf32> to vector<1x1x1xf32>
    %277 = vector.extract %276[0, 0, 0] : f32 from vector<1x1x1xf32>
    %cst_134 = arith.constant 1.600000e+02 : f32
    %278 = arith.divf %277, %cst_134 : f32
    %279 = vector.broadcast %278 : f32 to vector<8x20xf32>
    %280 = arith.subf %273, %279 : vector<8x20xf32>
    %281 = arith.mulf %280, %280 : vector<8x20xf32>
    %282 = vector.shape_cast %281 : vector<8x20xf32> to vector<1x8x20xf32>
    %cst_135 = arith.constant dense<0.000000e+00> : vector<1xf32>
    %283 = vector.multi_reduction <add>, %282, %cst_135 [1, 2] : vector<1x8x20xf32> to vector<1xf32>
    %284 = vector.shape_cast %283 : vector<1xf32> to vector<1x1x1xf32>
    %285 = vector.extract %284[0, 0, 0] : f32 from vector<1x1x1xf32>
    %cst_136 = arith.constant 1.600000e+02 : f32
    %286 = arith.divf %285, %cst_136 : f32
    %cst_137 = arith.constant 9.99999974E-6 : f32
    %287 = arith.addf %286, %cst_137 : f32
    %288 = math.rsqrt %287 : f32
    %289 = vector.broadcast %288 : f32 to vector<8x20xf32>
    %290 = arith.mulf %280, %289 : vector<8x20xf32>
    %291 = vector.extract_strided_slice %272 {offsets = [8, 0], sizes = [8, 20], strides = [1, 1]} : vector<16x20xf32> to vector<8x20xf32>
    %292 = vector.shape_cast %291 : vector<8x20xf32> to vector<1x8x20xf32>
    %cst_138 = arith.constant dense<0.000000e+00> : vector<1xf32>
    %293 = vector.multi_reduction <add>, %292, %cst_138 [1, 2] : vector<1x8x20xf32> to vector<1xf32>
    %294 = vector.shape_cast %293 : vector<1xf32> to vector<1x1x1xf32>
    %295 = vector.extract %294[0, 0, 0] : f32 from vector<1x1x1xf32>
    %cst_139 = arith.constant 1.600000e+02 : f32
    %296 = arith.divf %295, %cst_139 : f32
    %297 = vector.broadcast %296 : f32 to vector<8x20xf32>
    %298 = arith.subf %291, %297 : vector<8x20xf32>
    %299 = arith.mulf %298, %298 : vector<8x20xf32>
    %300 = vector.shape_cast %299 : vector<8x20xf32> to vector<1x8x20xf32>
    %cst_140 = arith.constant dense<0.000000e+00> : vector<1xf32>
    %301 = vector.multi_reduction <add>, %300, %cst_140 [1, 2] : vector<1x8x20xf32> to vector<1xf32>
    %302 = vector.shape_cast %301 : vector<1xf32> to vector<1x1x1xf32>
    %303 = vector.extract %302[0, 0, 0] : f32 from vector<1x1x1xf32>
    %cst_141 = arith.constant 1.600000e+02 : f32
    %304 = arith.divf %303, %cst_141 : f32
    %cst_142 = arith.constant 9.99999974E-6 : f32
    %305 = arith.addf %304, %cst_142 : f32
    %306 = math.rsqrt %305 : f32
    %307 = vector.broadcast %306 : f32 to vector<8x20xf32>
    %308 = arith.mulf %298, %307 : vector<8x20xf32>
    %309 = tpu.concatenate %290, %308 in 0 : vector<8x20xf32>, vector<8x20xf32> -> vector<16x20xf32>
    %cst_143 = arith.constant dense<0.000000e+00> : vector<16x2048xf32>
    %310 = tpu.matmul %309, %189, %cst_143 {dimension_numbers = #tpu.dot_dimension_numbers<[1], [0], [0], [1], [0, 0, 1, 1], [], []>} : vector<16x20xf32>, vector<20x2048xf32>, vector<16x2048xf32> -> vector<16x2048xf32>
    %311 = vector.broadcast %190 : vector<1x2048xf32> to vector<16x2048xf32>
    %312 = arith.addf %310, %311 : vector<16x2048xf32>
    %cst_144 = arith.constant 0.000000e+00 : f32
    %313 = vector.broadcast %cst_144 : f32 to vector<16x2048xf32>
    %314 = arith.maximumf %312, %313 : vector<16x2048xf32>
    %cst_145 = arith.constant dense<0.000000e+00> : vector<16x20xf32>
    %315 = tpu.matmul %314, %191, %cst_145 {dimension_numbers = #tpu.dot_dimension_numbers<[1], [0], [0], [1], [0, 0, 1, 1], [], []>} : vector<16x2048xf32>, vector<2048x20xf32>, vector<16x20xf32> -> vector<16x20xf32>
    %316 = vector.broadcast %192 : vector<1x20xf32> to vector<16x20xf32>
    %317 = arith.addf %315, %316 : vector<16x20xf32>
    %318 = arith.addf %309, %317 : vector<16x20xf32>
    %319 = vector.extract_strided_slice %318 {offsets = [0, 0], sizes = [8, 20], strides = [1, 1]} : vector<16x20xf32> to vector<8x20xf32>
    %320 = vector.shape_cast %319 : vector<8x20xf32> to vector<1x8x20xf32>
    %cst_146 = arith.constant dense<0.000000e+00> : vector<1xf32>
    %321 = vector.multi_reduction <add>, %320, %cst_146 [1, 2] : vector<1x8x20xf32> to vector<1xf32>
    %322 = vector.shape_cast %321 : vector<1xf32> to vector<1x1x1xf32>
    %323 = vector.extract %322[0, 0, 0] : f32 from vector<1x1x1xf32>
    %cst_147 = arith.constant 1.600000e+02 : f32
    %324 = arith.divf %323, %cst_147 : f32
    %325 = vector.broadcast %324 : f32 to vector<8x20xf32>
    %326 = arith.subf %319, %325 : vector<8x20xf32>
    %327 = arith.mulf %326, %326 : vector<8x20xf32>
    %328 = vector.shape_cast %327 : vector<8x20xf32> to vector<1x8x20xf32>
    %cst_148 = arith.constant dense<0.000000e+00> : vector<1xf32>
    %329 = vector.multi_reduction <add>, %328, %cst_148 [1, 2] : vector<1x8x20xf32> to vector<1xf32>
    %330 = vector.shape_cast %329 : vector<1xf32> to vector<1x1x1xf32>
    %331 = vector.extract %330[0, 0, 0] : f32 from vector<1x1x1xf32>
    %cst_149 = arith.constant 1.600000e+02 : f32
    %332 = arith.divf %331, %cst_149 : f32
    %cst_150 = arith.constant 9.99999974E-6 : f32
    %333 = arith.addf %332, %cst_150 : f32
    %334 = math.rsqrt %333 : f32
    %335 = vector.broadcast %334 : f32 to vector<8x20xf32>
    %336 = arith.mulf %326, %335 : vector<8x20xf32>
    %337 = vector.extract_strided_slice %318 {offsets = [8, 0], sizes = [8, 20], strides = [1, 1]} : vector<16x20xf32> to vector<8x20xf32>
    %338 = vector.shape_cast %337 : vector<8x20xf32> to vector<1x8x20xf32>
    %cst_151 = arith.constant dense<0.000000e+00> : vector<1xf32>
    %339 = vector.multi_reduction <add>, %338, %cst_151 [1, 2] : vector<1x8x20xf32> to vector<1xf32>
    %340 = vector.shape_cast %339 : vector<1xf32> to vector<1x1x1xf32>
    %341 = vector.extract %340[0, 0, 0] : f32 from vector<1x1x1xf32>
    %cst_152 = arith.constant 1.600000e+02 : f32
    %342 = arith.divf %341, %cst_152 : f32
    %343 = vector.broadcast %342 : f32 to vector<8x20xf32>
    %344 = arith.subf %337, %343 : vector<8x20xf32>
    %345 = arith.mulf %344, %344 : vector<8x20xf32>
    %346 = vector.shape_cast %345 : vector<8x20xf32> to vector<1x8x20xf32>
    %cst_153 = arith.constant dense<0.000000e+00> : vector<1xf32>
    %347 = vector.multi_reduction <add>, %346, %cst_153 [1, 2] : vector<1x8x20xf32> to vector<1xf32>
    %348 = vector.shape_cast %347 : vector<1xf32> to vector<1x1x1xf32>
    %349 = vector.extract %348[0, 0, 0] : f32 from vector<1x1x1xf32>
    %cst_154 = arith.constant 1.600000e+02 : f32
    %350 = arith.divf %349, %cst_154 : f32
    %cst_155 = arith.constant 9.99999974E-6 : f32
    %351 = arith.addf %350, %cst_155 : f32
    %352 = math.rsqrt %351 : f32
    %353 = vector.broadcast %352 : f32 to vector<8x20xf32>
    %354 = arith.mulf %344, %353 : vector<8x20xf32>
    %355 = tpu.concatenate %336, %354 in 0 : vector<8x20xf32>, vector<8x20xf32> -> vector<16x20xf32>
    %c0_156 = arith.constant 0 : index
    %c0_157 = arith.constant 0 : index
    %356 = vector.load %arg28[%c0_156, %c0_157] : memref<16x20xf32, #tpu.memory_space<vmem>>, vector<16x20xf32>
    tpu.vector_store %arg28[%c0_156, %c0_157], %355 {strides = array<i32>} : memref<16x20xf32, #tpu.memory_space<vmem>>, vector<16x20xf32>,
    return
  }
}

</mosaic_0001>

<llo_original>
// kernel: transformer_layer.1
$region0: #{transformer_layer.1}
  #allocation0 [shape = 'u32[]', space=smem, size = 0x4, offset = 0x4, fixed_abs, tag = 'smem constant byte address 0x4 - core index']
  #allocation1 [shape = 'u32[144,128]{1,0:T(1,128)}', space=vmem, size = 0x12000, scoped, tag = 'internal scratch']
  %s0 = inlined_call_operand.vmem [shape: f32[16,20], index: 0, kind: input, shape index: {}]
  %s1 = inlined_call_operand.vmem [shape: f32[16,20], index: 1, kind: input, shape index: {}]
  %s2 = inlined_call_operand.vmem [shape: f32[16,20], index: 2, kind: input, shape index: {}]
  %s3 = inlined_call_operand.vmem [shape: f32[20,10], index: 3, kind: input, shape index: {}]
  %s4 = inlined_call_operand.vmem [shape: f32[1,10], index: 4, kind: input, shape index: {}]
  %s5 = inlined_call_operand.vmem [shape: f32[20,10], index: 5, kind: input, shape index: {}]
  %s6 = inlined_call_operand.vmem [shape: f32[1,10], index: 6, kind: input, shape index: {}]
  %s7 = inlined_call_operand.vmem [shape: f32[20,10], index: 7, kind: input, shape index: {}]
  %s8 = inlined_call_operand.vmem [shape: f32[1,10], index: 8, kind: input, shape index: {}]
  %s9 = inlined_call_operand.vmem [shape: f32[10,20], index: 9, kind: input, shape index: {}]
  %s10 = inlined_call_operand.vmem [shape: f32[1,20], index: 10, kind: input, shape index: {}]
  %s11 = inlined_call_operand.vmem [shape: f32[20,2048], index: 11, kind: input, shape index: {}]
  %s12 = inlined_call_operand.vmem [shape: f32[1,2048], index: 12, kind: input, shape index: {}]
  %s13 = inlined_call_operand.vmem [shape: f32[2048,20], index: 13, kind: input, shape index: {}]
  %s14 = inlined_call_operand.vmem [shape: f32[1,20], index: 14, kind: input, shape index: {}]
  %s15 = inlined_call_operand.vmem [shape: f32[20,10], index: 15, kind: input, shape index: {}]
  %s16 = inlined_call_operand.vmem [shape: f32[1,10], index: 16, kind: input, shape index: {}]
  %s17 = inlined_call_operand.vmem [shape: f32[20,10], index: 17, kind: input, shape index: {}]
  %s18 = inlined_call_operand.vmem [shape: f32[1,10], index: 18, kind: input, shape index: {}]
  %s19 = inlined_call_operand.vmem [shape: f32[20,10], index: 19, kind: input, shape index: {}]
  %s20 = inlined_call_operand.vmem [shape: f32[1,10], index: 20, kind: input, shape index: {}]
  %s21 = inlined_call_operand.vmem [shape: f32[10,20], index: 21, kind: input, shape index: {}]
  %s22 = inlined_call_operand.vmem [shape: f32[1,20], index: 22, kind: input, shape index: {}]
  %s23 = inlined_call_operand.vmem [shape: f32[20,2048], index: 23, kind: input, shape index: {}]
  %s24 = inlined_call_operand.vmem [shape: f32[1,2048], index: 24, kind: input, shape index: {}]
  %s25 = inlined_call_operand.vmem [shape: f32[2048,20], index: 25, kind: input, shape index: {}]
  %s26 = inlined_call_operand.vmem [shape: f32[1,20], index: 26, kind: input, shape index: {}]
  %s27 = inlined_call_operand.hbm [shape: f32[16,20], index: 27, kind: output, shape index: {0}]
  %s28 = inlined_call_operand.hbm [shape: f32[16,20], index: 28, kind: output, shape index: {1}]
  %29 = xla_tuple %s27, %s28
  %s30 = sld [smem:[#allocation0]]
  $region126: #{transformer_layer.1} parent=0
    _
  %s32 = ssub.s32 1, %s30
  %s33 = scalar_select 0, %s32, %s30
  $region1: #{transformer_layer.1} parent=0
    #allocation2 [shape = 'u8[8192]{0}', space=vmem, size = 0x2000, scoped, tag = 'output window, operand 0, single buffered']
    #allocation3 [shape = 's32[1]{0}', space=sflag, size = 0x4, scoped, tag = 'scoped memory for transformer_layer.1']
    #allocation4 [shape = 'u8[8192]{0}', space=vmem, size = 0x2000, scoped, tag = 'output window, operand 1, single buffered']
    #allocation5 [shape = 's32[1]{0}', space=sflag, size = 0x4, scoped, tag = 'scoped memory for transformer_layer.1']
    %34 = vsyncpa [#allocation3], 0
    %35 = vsyncpa [#allocation5], 0
    // Predicated region
    $region2: #{transformer_layer.1} parent=1 // pred_check
      _
    $region3: #{transformer_layer.1} parent=1 // pred_check_branch
      %37 = sbr.rel (0) target = $region5
    $region4: #{transformer_layer.1} parent=1 // pred_region
      _
    $region5: #{transformer_layer.1} parent=1 // pred_fallthru
      _
    // Predicated region
    $region6: #{transformer_layer.1} parent=1 // pred_check
      _
    $region7: #{transformer_layer.1} parent=1 // pred_check_branch
      %39 = sbr.rel (0) target = $region9
    $region8: #{transformer_layer.1} parent=1 // pred_region
      _
    $region9: #{transformer_layer.1} parent=1 // pred_fallthru
      _
    // Predicated region
    $region10: #{transformer_layer.1} parent=1 // pred_check
      _
    $region11: #{transformer_layer.1} parent=1 // pred_check_branch
      %41 = sbr.rel (0) target = $region13
    $region12: #{transformer_layer.1} parent=1 // pred_region
      _
    $region13: #{transformer_layer.1} parent=1 // pred_fallthru
      _
    // Predicated region
    $region14: #{transformer_layer.1} parent=1 // pred_check
      _
    $region15: #{transformer_layer.1} parent=1 // pred_check_branch
      %43 = sbr.rel (0) target = $region17
    $region16: #{transformer_layer.1} parent=1 // pred_region
      _
    $region17: #{transformer_layer.1} parent=1 // pred_fallthru
      _
    // Predicated region
    $region18: #{transformer_layer.1} parent=1 // pred_check
      _
    $region19: #{transformer_layer.1} parent=1 // pred_check_branch
      %45 = sbr.rel (0) target = $region21
    $region20: #{transformer_layer.1} parent=1 // pred_region
      _
    $region21: #{transformer_layer.1} parent=1 // pred_fallthru
      _
    // Predicated region
    $region22: #{transformer_layer.1} parent=1 // pred_check
      _
    $region23: #{transformer_layer.1} parent=1 // pred_check_branch
      %47 = sbr.rel (0) target = $region25
    $region24: #{transformer_layer.1} parent=1 // pred_region
      _
    $region25: #{transformer_layer.1} parent=1 // pred_fallthru
      _
    // Predicated region
    $region26: #{transformer_layer.1} parent=1 // pred_check
      _
    $region27: #{transformer_layer.1} parent=1 // pred_check_branch
      %49 = sbr.rel (0) target = $region29
    $region28: #{transformer_layer.1} parent=1 // pred_region
      _
    $region29: #{transformer_layer.1} parent=1 // pred_fallthru
      _
    // Predicated region
    $region30: #{transformer_layer.1} parent=1 // pred_check
      _
    $region31: #{transformer_layer.1} parent=1 // pred_check_branch
      %51 = sbr.rel (0) target = $region33
    $region32: #{transformer_layer.1} parent=1 // pred_region
      _
    $region33: #{transformer_layer.1} parent=1 // pred_fallthru
      _
    // Predicated region
    $region34: #{transformer_layer.1} parent=1 // pred_check
      _
    $region35: #{transformer_layer.1} parent=1 // pred_check_branch
      %53 = sbr.rel (0) target = $region37
    $region36: #{transformer_layer.1} parent=1 // pred_region
      _
    $region37: #{transformer_layer.1} parent=1 // pred_fallthru
      _
    // Predicated region
    $region38: #{transformer_layer.1} parent=1 // pred_check
      _
    $region39: #{transformer_layer.1} parent=1 // pred_check_branch
      %55 = sbr.rel (0) target = $region41
    $region40: #{transformer_layer.1} parent=1 // pred_region
      _
    $region41: #{transformer_layer.1} parent=1 // pred_fallthru
      _
    // Predicated region
    $region42: #{transformer_layer.1} parent=1 // pred_check
      _
    $region43: #{transformer_layer.1} parent=1 // pred_check_branch
      %57 = sbr.rel (0) target = $region45
    $region44: #{transformer_layer.1} parent=1 // pred_region
      _
    $region45: #{transformer_layer.1} parent=1 // pred_fallthru
      _
    // Predicated region
    $region46: #{transformer_layer.1} parent=1 // pred_check
      _
    $region47: #{transformer_layer.1} parent=1 // pred_check_branch
      %59 = sbr.rel (0) target = $region49
    $region48: #{transformer_layer.1} parent=1 // pred_region
      _
    $region49: #{transformer_layer.1} parent=1 // pred_fallthru
      _
    // Predicated region
    $region50: #{transformer_layer.1} parent=1 // pred_check
      _
    $region51: #{transformer_layer.1} parent=1 // pred_check_branch
      %61 = sbr.rel (0) target = $region53
    $region52: #{transformer_layer.1} parent=1 // pred_region
      _
    $region53: #{transformer_layer.1} parent=1 // pred_fallthru
      _
    // Predicated region
    $region54: #{transformer_layer.1} parent=1 // pred_check
      _
    $region55: #{transformer_layer.1} parent=1 // pred_check_branch
      %63 = sbr.rel (0) target = $region57
    $region56: #{transformer_layer.1} parent=1 // pred_region
      _
    $region57: #{transformer_layer.1} parent=1 // pred_fallthru
      _
    // Predicated region
    $region58: #{transformer_layer.1} parent=1 // pred_check
      _
    $region59: #{transformer_layer.1} parent=1 // pred_check_branch
      %65 = sbr.rel (0) target = $region61
    $region60: #{transformer_layer.1} parent=1 // pred_region
      _
    $region61: #{transformer_layer.1} parent=1 // pred_fallthru
      _
    // Predicated region
    $region62: #{transformer_layer.1} parent=1 // pred_check
      _
    $region63: #{transformer_layer.1} parent=1 // pred_check_branch
      %67 = sbr.rel (0) target = $region65
    $region64: #{transformer_layer.1} parent=1 // pred_region
      _
    $region65: #{transformer_layer.1} parent=1 // pred_fallthru
      _
    // Predicated region
    $region66: #{transformer_layer.1} parent=1 // pred_check
      _
    $region67: #{transformer_layer.1} parent=1 // pred_check_branch
      %69 = sbr.rel (0) target = $region69
    $region68: #{transformer_layer.1} parent=1 // pred_region
      _
    $region69: #{transformer_layer.1} parent=1 // pred_fallthru
      _
    // Predicated region
    $region70: #{transformer_layer.1} parent=1 // pred_check
      _
    $region71: #{transformer_layer.1} parent=1 // pred_check_branch
      %71 = sbr.rel (0) target = $region73
    $region72: #{transformer_layer.1} parent=1 // pred_region
      _
    $region73: #{transformer_layer.1} parent=1 // pred_fallthru
      _
    // Predicated region
    $region74: #{transformer_layer.1} parent=1 // pred_check
      _
    $region75: #{transformer_layer.1} parent=1 // pred_check_branch
      %73 = sbr.rel (0) target = $region77
    $region76: #{transformer_layer.1} parent=1 // pred_region
      _
    $region77: #{transformer_layer.1} parent=1 // pred_fallthru
      _
    // Predicated region
    $region78: #{transformer_layer.1} parent=1 // pred_check
      _
    $region79: #{transformer_layer.1} parent=1 // pred_check_branch
      %75 = sbr.rel (0) target = $region81
    $region80: #{transformer_layer.1} parent=1 // pred_region
      _
    $region81: #{transformer_layer.1} parent=1 // pred_fallthru
      _
    // Predicated region
    $region82: #{transformer_layer.1} parent=1 // pred_check
      _
    $region83: #{transformer_layer.1} parent=1 // pred_check_branch
      %77 = sbr.rel (0) target = $region85
    $region84: #{transformer_layer.1} parent=1 // pred_region
      _
    $region85: #{transformer_layer.1} parent=1 // pred_fallthru
      _
    // Predicated region
    $region86: #{transformer_layer.1} parent=1 // pred_check
      _
    $region87: #{transformer_layer.1} parent=1 // pred_check_branch
      %79 = sbr.rel (0) target = $region89
    $region88: #{transformer_layer.1} parent=1 // pred_region
      _
    $region89: #{transformer_layer.1} parent=1 // pred_fallthru
      _
    // Predicated region
    $region90: #{transformer_layer.1} parent=1 // pred_check
      _
    $region91: #{transformer_layer.1} parent=1 // pred_check_branch
      %81 = sbr.rel (0) target = $region93
    $region92: #{transformer_layer.1} parent=1 // pred_region
      _
    $region93: #{transformer_layer.1} parent=1 // pred_fallthru
      _
    // Predicated region
    $region94: #{transformer_layer.1} parent=1 // pred_check
      _
    $region95: #{transformer_layer.1} parent=1 // pred_check_branch
      %83 = sbr.rel (0) target = $region97
    $region96: #{transformer_layer.1} parent=1 // pred_region
      _
    $region97: #{transformer_layer.1} parent=1 // pred_fallthru
      _
    // Predicated region
    $region98: #{transformer_layer.1} parent=1 // pred_check
      _
    $region99: #{transformer_layer.1} parent=1 // pred_check_branch
      %85 = sbr.rel (0) target = $region101
    $region100: #{transformer_layer.1} parent=1 // pred_region
      _
    $region101: #{transformer_layer.1} parent=1 // pred_fallthru
      _
    // Predicated region
    $region102: #{transformer_layer.1} parent=1 // pred_check
      _
    $region103: #{transformer_layer.1} parent=1 // pred_check_branch
      %87 = sbr.rel (0) target = $region105
    $region104: #{transformer_layer.1} parent=1 // pred_region
      _
    $region105: #{transformer_layer.1} parent=1 // pred_fallthru
      _
    // Predicated region
    $region106: #{transformer_layer.1} parent=1 // pred_check
      _
    $region107: #{transformer_layer.1} parent=1 // pred_check_branch
      %89 = sbr.rel (0) target = $region109
    $region108: #{transformer_layer.1} parent=1 // pred_region
      _
    $region109: #{transformer_layer.1} parent=1 // pred_fallthru
      _
    %v90 = vld [vmem:[%s2] sm:$0xff]
    %v91 = vld [vmem:[%s2 + $0x8] sm:$0xff]
    %v92 = vld [vmem:[%s0] sm:$0xff]
    %v93 = vld [vmem:[%s0 + $0x8] sm:$0xff]
    %v94 = vadd.f32 %v92, %v90
    %v95 = vadd.f32 %v93, %v91
    %v96 = vld [vmem:[%s1] sm:$0xff]
    %v97 = vld [vmem:[%s1 + $0x8] sm:$0xff]
    %v98 = vadd.f32 %v96, %v90
    %v99 = vadd.f32 %v97, %v91
    %v100 = vld [vmem:[%s3] sm:$0xff]
    %v101 = vld [vmem:[%s3 + $0x8] sm:$0xff]
    %v102 = vld [vmem:[%s3 + $0x10] sm:$0xf]
    %v103 = vld [vmem:[%s4] sm:$0x1]
    %v104 = vld [vmem:[%s5] sm:$0xff]
    %v105 = vld [vmem:[%s5 + $0x8] sm:$0xff]
    %v106 = vld [vmem:[%s5 + $0x10] sm:$0xf]
    %v107 = vld [vmem:[%s6] sm:$0x1]
    %v108 = vld [vmem:[%s7] sm:$0xff]
    %v109 = vld [vmem:[%s7 + $0x8] sm:$0xff]
    %v110 = vld [vmem:[%s7 + $0x10] sm:$0xf]
    %v111 = vld [vmem:[%s8] sm:$0x1]
    %v112 = vld [vmem:[%s9] sm:$0xff]
    %v113 = vld [vmem:[%s9 + $0x8] sm:$0x3]
    %v114 = vld [vmem:[%s10] sm:$0x1]
    %v115 = vld [vmem:[%s11] sm:$0xff]
    %v116 = vld [vmem:[%s11 + $0x8] sm:$0xff]
    %v117 = vld [vmem:[%s11 + $0x10] sm:$0xff]
    %v118 = vld [vmem:[%s11 + $0x18] sm:$0xff]
    %v119 = vld [vmem:[%s11 + $0x20] sm:$0xff]
    %v120 = vld [vmem:[%s11 + $0x28] sm:$0xff]
    %v121 = vld [vmem:[%s11 + $0x30] sm:$0xff]
    %v122 = vld [vmem:[%s11 + $0x38] sm:$0xff]
    %v123 = vld [vmem:[%s11 + $0x40] sm:$0xff]
    %v124 = vld [vmem:[%s11 + $0x48] sm:$0xff]
    %v125 = vld [vmem:[%s11 + $0x50] sm:$0xff]
    %v126 = vld [vmem:[%s11 + $0x58] sm:$0xff]
    %v127 = vld [vmem:[%s11 + $0x60] sm:$0xff]
    %v128 = vld [vmem:[%s11 + $0x68] sm:$0xff]
    %v129 = vld [vmem:[%s11 + $0x70] sm:$0xff]
    %v130 = vld [vmem:[%s11 + $0x78] sm:$0xff]
    %v131 = vld [vmem:[%s11 + $0x80] sm:$0xff]
    %v132 = vld [vmem:[%s11 + $0x88] sm:$0xff]
    %v133 = vld [vmem:[%s11 + $0x90] sm:$0xff]
    %v134 = vld [vmem:[%s11 + $0x98] sm:$0xff]
    %v135 = vld [vmem:[%s11 + $0xa0] sm:$0xff]
    %v136 = vld [vmem:[%s11 + $0xa8] sm:$0xff]
    %v137 = vld [vmem:[%s11 + $0xb0] sm:$0xff]
    %v138 = vld [vmem:[%s11 + $0xb8] sm:$0xff]
    %v139 = vld [vmem:[%s11 + $0xc0] sm:$0xff]
    %v140 = vld [vmem:[%s11 + $0xc8] sm:$0xff]
    %v141 = vld [vmem:[%s11 + $0xd0] sm:$0xff]
    %v142 = vld [vmem:[%s11 + $0xd8] sm:$0xff]
    %v143 = vld [vmem:[%s11 + $0xe0] sm:$0xff]
    %v144 = vld [vmem:[%s11 + $0xe8] sm:$0xff]
    %v145 = vld [vmem:[%s11 + $0xf0] sm:$0xff]
    %v146 = vld [vmem:[%s11 + $0xf8] sm:$0xff]
    %v147 = vld [vmem:[%s11 + $0x100] sm:$0xf]
    %v148 = vld [vmem:[%s11 + $0x108] sm:$0xf]
    %v149 = vld [vmem:[%s11 + $0x110] sm:$0xf]
    %v150 = vld [vmem:[%s11 + $0x118] sm:$0xf]
    %v151 = vld [vmem:[%s11 + $0x120] sm:$0xf]
    %v152 = vld [vmem:[%s11 + $0x128] sm:$0xf]
    %v153 = vld [vmem:[%s11 + $0x130] sm:$0xf]
    %v154 = vld [vmem:[%s11 + $0x138] sm:$0xf]
    %v155 = vld [vmem:[%s11 + $0x140] sm:$0xf]
    %v156 = vld [vmem:[%s11 + $0x148] sm:$0xf]
    %v157 = vld [vmem:[%s11 + $0x150] sm:$0xf]
    %v158 = vld [vmem:[%s11 + $0x158] sm:$0xf]
    %v159 = vld [vmem:[%s11 + $0x160] sm:$0xf]
    %v160 = vld [vmem:[%s11 + $0x168] sm:$0xf]
    %v161 = vld [vmem:[%s11 + $0x170] sm:$0xf]
    %v162 = vld [vmem:[%s11 + $0x178] sm:$0xf]
    %v163 = vld [vmem:[%s12] sm:$0xff]
    %v164 = vld [vmem:[%s12 + $0x8] sm:$0xff]
    %v165 = vld [vmem:[%s13] sm:$0xff]
    %v166 = vld [vmem:[%s13 + $0x8] sm:$0xff]
    %v167 = vld [vmem:[%s13 + $0x10] sm:$0xff]
    %v168 = vld [vmem:[%s13 + $0x18] sm:$0xff]
    %v169 = vld [vmem:[%s13 + $0x20] sm:$0xff]
    %v170 = vld [vmem:[%s13 + $0x28] sm:$0xff]
    %v171 = vld [vmem:[%s13 + $0x30] sm:$0xff]
    %v172 = vld [vmem:[%s13 + $0x38] sm:$0xff]
    %v173 = vld [vmem:[%s13 + $0x40] sm:$0xff]
    %v174 = vld [vmem:[%s13 + $0x48] sm:$0xff]
    %v175 = vld [vmem:[%s13 + $0x50] sm:$0xff]
    %v176 = vld [vmem:[%s13 + $0x58] sm:$0xff]
    %v177 = vld [vmem:[%s13 + $0x60] sm:$0xff]
    %v178 = vld [vmem:[%s13 + $0x68] sm:$0xff]
    %v179 = vld [vmem:[%s13 + $0x70] sm:$0xff]
    %v180 = vld [vmem:[%s13 + $0x78] sm:$0xff]
    %v181 = vld [vmem:[%s13 + $0x80] sm:$0xff]
    %v182 = vld [vmem:[%s13 + $0x88] sm:$0xff]
    %v183 = vld [vmem:[%s13 + $0x90] sm:$0xff]
    %v184 = vld [vmem:[%s13 + $0x98] sm:$0xff]
    %v185 = vld [vmem:[%s13 + $0xa0] sm:$0xff]
    %v186 = vld [vmem:[%s13 + $0xa8] sm:$0xff]
    %v187 = vld [vmem:[%s13 + $0xb0] sm:$0xff]
    %v188 = vld [vmem:[%s13 + $0xb8] sm:$0xff]
    %v189 = vld [vmem:[%s13 + $0xc0] sm:$0xff]
    %v190 = vld [vmem:[%s13 + $0xc8] sm:$0xff]
    %v191 = vld [vmem:[%s13 + $0xd0] sm:$0xff]
    %v192 = vld [vmem:[%s13 + $0xd8] sm:$0xff]
    %v193 = vld [vmem:[%s13 + $0xe0] sm:$0xff]
    %v194 = vld [vmem:[%s13 + $0xe8] sm:$0xff]
    %v195 = vld [vmem:[%s13 + $0xf0] sm:$0xff]
    %v196 = vld [vmem:[%s13 + $0xf8] sm:$0xff]
    %v197 = vld [vmem:[%s13 + $0x100] sm:$0xff]
    %v198 = vld [vmem:[%s13 + $0x108] sm:$0xff]
    %v199 = vld [vmem:[%s13 + $0x110] sm:$0xff]
    %v200 = vld [vmem:[%s13 + $0x118] sm:$0xff]
    %v201 = vld [vmem:[%s13 + $0x120] sm:$0xff]
    %v202 = vld [vmem:[%s13 + $0x128] sm:$0xff]
    %v203 = vld [vmem:[%s13 + $0x130] sm:$0xff]
    %v204 = vld [vmem:[%s13 + $0x138] sm:$0xff]
    %v205 = vld [vmem:[%s13 + $0x140] sm:$0xff]
    %v206 = vld [vmem:[%s13 + $0x148] sm:$0xff]
    %v207 = vld [vmem:[%s13 + $0x150] sm:$0xff]
    %v208 = vld [vmem:[%s13 + $0x158] sm:$0xff]
    %v209 = vld [vmem:[%s13 + $0x160] sm:$0xff]
    %v210 = vld [vmem:[%s13 + $0x168] sm:$0xff]
    %v211 = vld [vmem:[%s13 + $0x170] sm:$0xff]
    %v212 = vld [vmem:[%s13 + $0x178] sm:$0xff]
    %v213 = vld [vmem:[%s13 + $0x180] sm:$0xff]
    %v214 = vld [vmem:[%s13 + $0x188] sm:$0xff]
    %v215 = vld [vmem:[%s13 + $0x190] sm:$0xff]
    %v216 = vld [vmem:[%s13 + $0x198] sm:$0xff]
    %v217 = vld [vmem:[%s13 + $0x1a0] sm:$0xff]
    %v218 = vld [vmem:[%s13 + $0x1a8] sm:$0xff]
    %v219 = vld [vmem:[%s13 + $0x1b0] sm:$0xff]
    %v220 = vld [vmem:[%s13 + $0x1b8] sm:$0xff]
    %v221 = vld [vmem:[%s13 + $0x1c0] sm:$0xff]
    %v222 = vld [vmem:[%s13 + $0x1c8] sm:$0xff]
    %v223 = vld [vmem:[%s13 + $0x1d0] sm:$0xff]
    %v224 = vld [vmem:[%s13 + $0x1d8] sm:$0xff]
    %v225 = vld [vmem:[%s13 + $0x1e0] sm:$0xff]
    %v226 = vld [vmem:[%s13 + $0x1e8] sm:$0xff]
    %v227 = vld [vmem:[%s13 + $0x1f0] sm:$0xff]
    %v228 = vld [vmem:[%s13 + $0x1f8] sm:$0xff]
    %v229 = vld [vmem:[%s13 + $0x200] sm:$0xff]
    %v230 = vld [vmem:[%s13 + $0x208] sm:$0xff]
    %v231 = vld [vmem:[%s13 + $0x210] sm:$0xff]
    %v232 = vld [vmem:[%s13 + $0x218] sm:$0xff]
    %v233 = vld [vmem:[%s13 + $0x220] sm:$0xff]
    %v234 = vld [vmem:[%s13 + $0x228] sm:$0xff]
    %v235 = vld [vmem:[%s13 + $0x230] sm:$0xff]
    %v236 = vld [vmem:[%s13 + $0x238] sm:$0xff]
    %v237 = vld [vmem:[%s13 + $0x240] sm:$0xff]
    %v238 = vld [vmem:[%s13 + $0x248] sm:$0xff]
    %v239 = vld [vmem:[%s13 + $0x250] sm:$0xff]
    %v240 = vld [vmem:[%s13 + $0x258] sm:$0xff]
    %v241 = vld [vmem:[%s13 + $0x260] sm:$0xff]
    %v242 = vld [vmem:[%s13 + $0x268] sm:$0xff]
    %v243 = vld [vmem:[%s13 + $0x270] sm:$0xff]
    %v244 = vld [vmem:[%s13 + $0x278] sm:$0xff]
    %v245 = vld [vmem:[%s13 + $0x280] sm:$0xff]
    %v246 = vld [vmem:[%s13 + $0x288] sm:$0xff]
    %v247 = vld [vmem:[%s13 + $0x290] sm:$0xff]
    %v248 = vld [vmem:[%s13 + $0x298] sm:$0xff]
    %v249 = vld [vmem:[%s13 + $0x2a0] sm:$0xff]
    %v250 = vld [vmem:[%s13 + $0x2a8] sm:$0xff]
    %v251 = vld [vmem:[%s13 + $0x2b0] sm:$0xff]
    %v252 = vld [vmem:[%s13 + $0x2b8] sm:$0xff]
    %v253 = vld [vmem:[%s13 + $0x2c0] sm:$0xff]
    %v254 = vld [vmem:[%s13 + $0x2c8] sm:$0xff]
    %v255 = vld [vmem:[%s13 + $0x2d0] sm:$0xff]
    %v256 = vld [vmem:[%s13 + $0x2d8] sm:$0xff]
    %v257 = vld [vmem:[%s13 + $0x2e0] sm:$0xff]
    %v258 = vld [vmem:[%s13 + $0x2e8] sm:$0xff]
    %v259 = vld [vmem:[%s13 + $0x2f0] sm:$0xff]
    %v260 = vld [vmem:[%s13 + $0x2f8] sm:$0xff]
    %v261 = vld [vmem:[%s13 + $0x300] sm:$0xff]
    %v262 = vld [vmem:[%s13 + $0x308] sm:$0xff]
    %v263 = vld [vmem:[%s13 + $0x310] sm:$0xff]
    %v264 = vld [vmem:[%s13 + $0x318] sm:$0xff]
    %v265 = vld [vmem:[%s13 + $0x320] sm:$0xff]
    %v266 = vld [vmem:[%s13 + $0x328] sm:$0xff]
    %v267 = vld [vmem:[%s13 + $0x330] sm:$0xff]
    %v268 = vld [vmem:[%s13 + $0x338] sm:$0xff]
    %v269 = vld [vmem:[%s13 + $0x340] sm:$0xff]
    %v270 = vld [vmem:[%s13 + $0x348] sm:$0xff]
    %v271 = vld [vmem:[%s13 + $0x350] sm:$0xff]
    %v272 = vld [vmem:[%s13 + $0x358] sm:$0xff]
    %v273 = vld [vmem:[%s13 + $0x360] sm:$0xff]
    %v274 = vld [vmem:[%s13 + $0x368] sm:$0xff]
    %v275 = vld [vmem:[%s13 + $0x370] sm:$0xff]
    %v276 = vld [vmem:[%s13 + $0x378] sm:$0xff]
    %v277 = vld [vmem:[%s13 + $0x380] sm:$0xff]
    %v278 = vld [vmem:[%s13 + $0x388] sm:$0xff]
    %v279 = vld [vmem:[%s13 + $0x390] sm:$0xff]
    %v280 = vld [vmem:[%s13 + $0x398] sm:$0xff]
    %v281 = vld [vmem:[%s13 + $0x3a0] sm:$0xff]
    %v282 = vld [vmem:[%s13 + $0x3a8] sm:$0xff]
    %v283 = vld [vmem:[%s13 + $0x3b0] sm:$0xff]
    %v284 = vld [vmem:[%s13 + $0x3b8] sm:$0xff]
    %v285 = vld [vmem:[%s13 + $0x3c0] sm:$0xff]
    %v286 = vld [vmem:[%s13 + $0x3c8] sm:$0xff]
    %v287 = vld [vmem:[%s13 + $0x3d0] sm:$0xff]
    %v288 = vld [vmem:[%s13 + $0x3d8] sm:$0xff]
    %v289 = vld [vmem:[%s13 + $0x3e0] sm:$0xff]
    %v290 = vld [vmem:[%s13 + $0x3e8] sm:$0xff]
    %v291 = vld [vmem:[%s13 + $0x3f0] sm:$0xff]
    %v292 = vld [vmem:[%s13 + $0x3f8] sm:$0xff]
    %v293 = vld [vmem:[%s13 + $0x400] sm:$0xff]
    %v294 = vld [vmem:[%s13 + $0x408] sm:$0xff]
    %v295 = vld [vmem:[%s13 + $0x410] sm:$0xff]
    %v296 = vld [vmem:[%s13 + $0x418] sm:$0xff]
    %v297 = vld [vmem:[%s13 + $0x420] sm:$0xff]
    %v298 = vld [vmem:[%s13 + $0x428] sm:$0xff]
    %v299 = vld [vmem:[%s13 + $0x430] sm:$0xff]
    %v300 = vld [vmem:[%s13 + $0x438] sm:$0xff]
    %v301 = vld [vmem:[%s13 + $0x440] sm:$0xff]
    %v302 = vld [vmem:[%s13 + $0x448] sm:$0xff]
    %v303 = vld [vmem:[%s13 + $0x450] sm:$0xff]
    %v304 = vld [vmem:[%s13 + $0x458] sm:$0xff]
    %v305 = vld [vmem:[%s13 + $0x460] sm:$0xff]
    %v306 = vld [vmem:[%s13 + $0x468] sm:$0xff]
    %v307 = vld [vmem:[%s13 + $0x470] sm:$0xff]
    %v308 = vld [vmem:[%s13 + $0x478] sm:$0xff]
    %v309 = vld [vmem:[%s13 + $0x480] sm:$0xff]
    %v310 = vld [vmem:[%s13 + $0x488] sm:$0xff]
    %v311 = vld [vmem:[%s13 + $0x490] sm:$0xff]
    %v312 = vld [vmem:[%s13 + $0x498] sm:$0xff]
    %v313 = vld [vmem:[%s13 + $0x4a0] sm:$0xff]
    %v314 = vld [vmem:[%s13 + $0x4a8] sm:$0xff]
    %v315 = vld [vmem:[%s13 + $0x4b0] sm:$0xff]
    %v316 = vld [vmem:[%s13 + $0x4b8] sm:$0xff]
    %v317 = vld [vmem:[%s13 + $0x4c0] sm:$0xff]
    %v318 = vld [vmem:[%s13 + $0x4c8] sm:$0xff]
    %v319 = vld [vmem:[%s13 + $0x4d0] sm:$0xff]
    %v320 = vld [vmem:[%s13 + $0x4d8] sm:$0xff]
    %v321 = vld [vmem:[%s13 + $0x4e0] sm:$0xff]
    %v322 = vld [vmem:[%s13 + $0x4e8] sm:$0xff]
    %v323 = vld [vmem:[%s13 + $0x4f0] sm:$0xff]
    %v324 = vld [vmem:[%s13 + $0x4f8] sm:$0xff]
    %v325 = vld [vmem:[%s13 + $0x500] sm:$0xff]
    %v326 = vld [vmem:[%s13 + $0x508] sm:$0xff]
    %v327 = vld [vmem:[%s13 + $0x510] sm:$0xff]
    %v328 = vld [vmem:[%s13 + $0x518] sm:$0xff]
    %v329 = vld [vmem:[%s13 + $0x520] sm:$0xff]
    %v330 = vld [vmem:[%s13 + $0x528] sm:$0xff]
    %v331 = vld [vmem:[%s13 + $0x530] sm:$0xff]
    %v332 = vld [vmem:[%s13 + $0x538] sm:$0xff]
    %v333 = vld [vmem:[%s13 + $0x540] sm:$0xff]
    %v334 = vld [vmem:[%s13 + $0x548] sm:$0xff]
    %v335 = vld [vmem:[%s13 + $0x550] sm:$0xff]
    %v336 = vld [vmem:[%s13 + $0x558] sm:$0xff]
    %v337 = vld [vmem:[%s13 + $0x560] sm:$0xff]
    %v338 = vld [vmem:[%s13 + $0x568] sm:$0xff]
    %v339 = vld [vmem:[%s13 + $0x570] sm:$0xff]
    %v340 = vld [vmem:[%s13 + $0x578] sm:$0xff]
    %v341 = vld [vmem:[%s13 + $0x580] sm:$0xff]
    %v342 = vld [vmem:[%s13 + $0x588] sm:$0xff]
    %v343 = vld [vmem:[%s13 + $0x590] sm:$0xff]
    %v344 = vld [vmem:[%s13 + $0x598] sm:$0xff]
    %v345 = vld [vmem:[%s13 + $0x5a0] sm:$0xff]
    %v346 = vld [vmem:[%s13 + $0x5a8] sm:$0xff]
    %v347 = vld [vmem:[%s13 + $0x5b0] sm:$0xff]
    %v348 = vld [vmem:[%s13 + $0x5b8] sm:$0xff]
    %v349 = vld [vmem:[%s13 + $0x5c0] sm:$0xff]
    %v350 = vld [vmem:[%s13 + $0x5c8] sm:$0xff]
    %v351 = vld [vmem:[%s13 + $0x5d0] sm:$0xff]
    %v352 = vld [vmem:[%s13 + $0x5d8] sm:$0xff]
    %v353 = vld [vmem:[%s13 + $0x5e0] sm:$0xff]
    %v354 = vld [vmem:[%s13 + $0x5e8] sm:$0xff]
    %v355 = vld [vmem:[%s13 + $0x5f0] sm:$0xff]
    %v356 = vld [vmem:[%s13 + $0x5f8] sm:$0xff]
    %v357 = vld [vmem:[%s13 + $0x600] sm:$0xff]
    %v358 = vld [vmem:[%s13 + $0x608] sm:$0xff]
    %v359 = vld [vmem:[%s13 + $0x610] sm:$0xff]
    %v360 = vld [vmem:[%s13 + $0x618] sm:$0xff]
    %v361 = vld [vmem:[%s13 + $0x620] sm:$0xff]
    %v362 = vld [vmem:[%s13 + $0x628] sm:$0xff]
    %v363 = vld [vmem:[%s13 + $0x630] sm:$0xff]
    %v364 = vld [vmem:[%s13 + $0x638] sm:$0xff]
    %v365 = vld [vmem:[%s13 + $0x640] sm:$0xff]
    %v366 = vld [vmem:[%s13 + $0x648] sm:$0xff]
    %v367 = vld [vmem:[%s13 + $0x650] sm:$0xff]
    %v368 = vld [vmem:[%s13 + $0x658] sm:$0xff]
    %v369 = vld [vmem:[%s13 + $0x660] sm:$0xff]
    %v370 = vld [vmem:[%s13 + $0x668] sm:$0xff]
    %v371 = vld [vmem:[%s13 + $0x670] sm:$0xff]
    %v372 = vld [vmem:[%s13 + $0x678] sm:$0xff]
    %v373 = vld [vmem:[%s13 + $0x680] sm:$0xff]
    %v374 = vld [vmem:[%s13 + $0x688] sm:$0xff]
    %v375 = vld [vmem:[%s13 + $0x690] sm:$0xff]
    %v376 = vld [vmem:[%s13 + $0x698] sm:$0xff]
    %v377 = vld [vmem:[%s13 + $0x6a0] sm:$0xff]
    %v378 = vld [vmem:[%s13 + $0x6a8] sm:$0xff]
    %v379 = vld [vmem:[%s13 + $0x6b0] sm:$0xff]
    %v380 = vld [vmem:[%s13 + $0x6b8] sm:$0xff]
    %v381 = vld [vmem:[%s13 + $0x6c0] sm:$0xff]
    %v382 = vld [vmem:[%s13 + $0x6c8] sm:$0xff]
    %v383 = vld [vmem:[%s13 + $0x6d0] sm:$0xff]
    %v384 = vld [vmem:[%s13 + $0x6d8] sm:$0xff]
    %v385 = vld [vmem:[%s13 + $0x6e0] sm:$0xff]
    %v386 = vld [vmem:[%s13 + $0x6e8] sm:$0xff]
    %v387 = vld [vmem:[%s13 + $0x6f0] sm:$0xff]
    %v388 = vld [vmem:[%s13 + $0x6f8] sm:$0xff]
    %v389 = vld [vmem:[%s13 + $0x700] sm:$0xff]
    %v390 = vld [vmem:[%s13 + $0x708] sm:$0xff]
    %v391 = vld [vmem:[%s13 + $0x710] sm:$0xff]
    %v392 = vld [vmem:[%s13 + $0x718] sm:$0xff]
    %v393 = vld [vmem:[%s13 + $0x720] sm:$0xff]
    %v394 = vld [vmem:[%s13 + $0x728] sm:$0xff]
    %v395 = vld [vmem:[%s13 + $0x730] sm:$0xff]
    %v396 = vld [vmem:[%s13 + $0x738] sm:$0xff]
    %v397 = vld [vmem:[%s13 + $0x740] sm:$0xff]
    %v398 = vld [vmem:[%s13 + $0x748] sm:$0xff]
    %v399 = vld [vmem:[%s13 + $0x750] sm:$0xff]
    %v400 = vld [vmem:[%s13 + $0x758] sm:$0xff]
    %v401 = vld [vmem:[%s13 + $0x760] sm:$0xff]
    %v402 = vld [vmem:[%s13 + $0x768] sm:$0xff]
    %v403 = vld [vmem:[%s13 + $0x770] sm:$0xff]
    %v404 = vld [vmem:[%s13 + $0x778] sm:$0xff]
    %v405 = vld [vmem:[%s13 + $0x780] sm:$0xff]
    %v406 = vld [vmem:[%s13 + $0x788] sm:$0xff]
    %v407 = vld [vmem:[%s13 + $0x790] sm:$0xff]
    %v408 = vld [vmem:[%s13 + $0x798] sm:$0xff]
    %v409 = vld [vmem:[%s13 + $0x7a0] sm:$0xff]
    %v410 = vld [vmem:[%s13 + $0x7a8] sm:$0xff]
    %v411 = vld [vmem:[%s13 + $0x7b0] sm:$0xff]
    %v412 = vld [vmem:[%s13 + $0x7b8] sm:$0xff]
    %v413 = vld [vmem:[%s13 + $0x7c0] sm:$0xff]
    %v414 = vld [vmem:[%s13 + $0x7c8] sm:$0xff]
    %v415 = vld [vmem:[%s13 + $0x7d0] sm:$0xff]
    %v416 = vld [vmem:[%s13 + $0x7d8] sm:$0xff]
    %v417 = vld [vmem:[%s13 + $0x7e0] sm:$0xff]
    %v418 = vld [vmem:[%s13 + $0x7e8] sm:$0xff]
    %v419 = vld [vmem:[%s13 + $0x7f0] sm:$0xff]
    %v420 = vld [vmem:[%s13 + $0x7f8] sm:$0xff]
    %v421 = vld [vmem:[%s14] sm:$0x1]
    %v423 = vlaneseq
    %v424 = vshrl.u32 %v423, 7
    %v425 = vsub.s32 0, %v424
    %v426 = vrot.slane %v103, %v425
    %vm428 = vcmask 162816
    %v430 = vsel %vm428, %v94, 0
    %v433 = vsel %vm428, %v95, 0
    %vm435 = vcmask 1043456
    %v437 = vsel %vm435, %v102, 0
    %439 = vmatprep.subr.mxu0 0.0
    %440 = vmatpush1.msra.mxu0 0.0
    %441 = vmatprep.subr.mxu0 0.0
    %442 = vmatpush1.msra.mxu0 0.0
    %443 = vmatprep.subr.mxu0 0.0
    %444 = vmatpush1.msra.mxu0 0.0
    %445 = vmatprep.subr.mxu0 0.0
    %446 = vmatpush1.msra.mxu0 0.0
    %447 = vmatprep.subr.mxu0 0.0
    %448 = vmatpush1.msra.mxu0 0.0
    %449 = vmatprep.subr.mxu0 0.0
    %450 = vmatpush1.msra.mxu0 0.0
    %451 = vmatprep.subr.mxu0 0.0
    %452 = vmatpush1.msra.mxu0 0.0
    %453 = vmatprep.subr.mxu0 0.0
    %454 = vmatpush1.msra.mxu0 0.0
    %455 = vmatprep.subr.mxu0 0.0
    %456 = vmatpush1.msra.mxu0 0.0
    %457 = vmatprep.subr.mxu0 0.0
    %458 = vmatpush1.msra.mxu0 0.0
    %459 = vmatprep.subr.mxu0 0.0
    %460 = vmatpush1.msra.mxu0 0.0
    %461 = vmatprep.subr.mxu0 0.0
    %462 = vmatpush1.msra.mxu0 0.0
    %463 = vmatprep.subr.mxu0 0.0
    %464 = vmatpush1.msra.mxu0 0.0
    %465 = vmatprep.subr.mxu0 0.0
    %466 = vmatpush1.msra.mxu0 %v437
    %467 = vmatprep.subr.mxu0 0.0
    %468 = vmatpush1.msra.mxu0 %v101
    %469 = vmatprep.subr.mxu0 0.0
    %470 = vmatpush1.msra.mxu0 %v100
    %471 = vmatprep.subr.mxu0 0.0
    %472 = vmatpush2.msra.mxu0 0.0
    %473 = vmatprep.subr.mxu0 0.0
    %474 = vmatpush2.msra.mxu0 0.0
    %475 = vmatprep.subr.mxu0 0.0
    %476 = vmatpush2.msra.mxu0 0.0
    %477 = vmatprep.subr.mxu0 0.0
    %478 = vmatpush2.msra.mxu0 0.0
    %479 = vmatprep.subr.mxu0 0.0
    %480 = vmatpush2.msra.mxu0 0.0
    %481 = vmatprep.subr.mxu0 0.0
    %482 = vmatpush2.msra.mxu0 0.0
    %483 = vmatprep.subr.mxu0 0.0
    %484 = vmatpush2.msra.mxu0 0.0
    %485 = vmatprep.subr.mxu0 0.0
    %486 = vmatpush2.msra.mxu0 0.0
    %487 = vmatprep.subr.mxu0 0.0
    %488 = vmatpush2.msra.mxu0 0.0
    %489 = vmatprep.subr.mxu0 0.0
    %490 = vmatpush2.msra.mxu0 0.0
    %491 = vmatprep.subr.mxu0 0.0
    %492 = vmatpush2.msra.mxu0 0.0
    %493 = vmatprep.subr.mxu0 0.0
    %494 = vmatpush2.msra.mxu0 0.0
    %495 = vmatprep.subr.mxu0 0.0
    %496 = vmatpush2.msra.mxu0 0.0
    %497 = vmatprep.subr.mxu0 0.0
    %498 = vmatpush2.msra.mxu0 0.0
    %499 = vmatprep.subr.mxu0 0.0
    %500 = vmatpush2.msra.mxu0 0.0
    %501 = vmatprep.subr.mxu0 0.0
    %502 = vmatpush2.msra.mxu0 0.0
    %503 = vmatprep.mubr.f32.mxu0 0.0
    %504 = vmatmul.mubr.f32.gmra.mxu0 %v430
    %v505 = vpop.f32.mrf.mxu0
    %v506 = vadd.f32 %v426, %v505
    %v507 = vpop.f32.mrf.mxu0
    %508 = vmatprep.mubr.f32.mxu0 0.0
    %509 = vmatmul.mubr.f32.gmra.mxu0 %v433
    %v510 = vpop.f32.mrf.mxu0
    %v511 = vadd.f32 %v426, %v510
    %v512 = vpop.f32.mrf.mxu0
    %513 = vdwg.mxu0
    %v514 = vmul.f32 %v506, 0.2236068
    %v515 = vmul.f32 %v511, 0.2236068
    %v517 = vlaneseq
    %v518 = vshrl.u32 %v517, 7
    %v519 = vsub.s32 0, %v518
    %v520 = vrot.slane %v107, %v519
    %v523 = vsel %vm435, %v106, 0
    %525 = vmatprep.subr.mxu0 0.0
    %526 = vmatpush1.msra.mxu0 0.0
    %527 = vmatprep.subr.mxu0 0.0
    %528 = vmatpush1.msra.mxu0 0.0
    %529 = vmatprep.subr.mxu0 0.0
    %530 = vmatpush1.msra.mxu0 0.0
    %531 = vmatprep.subr.mxu0 0.0
    %532 = vmatpush1.msra.mxu0 0.0
    %533 = vmatprep.subr.mxu0 0.0
    %534 = vmatpush1.msra.mxu0 0.0
    %535 = vmatprep.subr.mxu0 0.0
    %536 = vmatpush1.msra.mxu0 0.0
    %537 = vmatprep.subr.mxu0 0.0
    %538 = vmatpush1.msra.mxu0 0.0
    %539 = vmatprep.subr.mxu0 0.0
    %540 = vmatpush1.msra.mxu0 0.0
    %541 = vmatprep.subr.mxu0 0.0
    %542 = vmatpush1.msra.mxu0 0.0
    %543 = vmatprep.subr.mxu0 0.0
    %544 = vmatpush1.msra.mxu0 0.0
    %545 = vmatprep.subr.mxu0 0.0
    %546 = vmatpush1.msra.mxu0 0.0
    %547 = vmatprep.subr.mxu0 0.0
    %548 = vmatpush1.msra.mxu0 0.0
    %549 = vmatprep.subr.mxu0 0.0
    %550 = vmatpush1.msra.mxu0 0.0
    %551 = vmatprep.subr.mxu0 0.0
    %552 = vmatpush1.msra.mxu0 %v523
    %553 = vmatprep.subr.mxu0 0.0
    %554 = vmatpush1.msra.mxu0 %v105
    %555 = vmatprep.subr.mxu0 0.0
    %556 = vmatpush1.msra.mxu0 %v104
    %557 = vmatprep.subr.mxu0 0.0
    %558 = vmatpush2.msra.mxu0 0.0
    %559 = vmatprep.subr.mxu0 0.0
    %560 = vmatpush2.msra.mxu0 0.0
    %561 = vmatprep.subr.mxu0 0.0
    %562 = vmatpush2.msra.mxu0 0.0
    %563 = vmatprep.subr.mxu0 0.0
    %564 = vmatpush2.msra.mxu0 0.0
    %565 = vmatprep.subr.mxu0 0.0
    %566 = vmatpush2.msra.mxu0 0.0
    %567 = vmatprep.subr.mxu0 0.0
    %568 = vmatpush2.msra.mxu0 0.0
    %569 = vmatprep.subr.mxu0 0.0
    %570 = vmatpush2.msra.mxu0 0.0
    %571 = vmatprep.subr.mxu0 0.0
    %572 = vmatpush2.msra.mxu0 0.0
    %573 = vmatprep.subr.mxu0 0.0
    %574 = vmatpush2.msra.mxu0 0.0
    %575 = vmatprep.subr.mxu0 0.0
    %576 = vmatpush2.msra.mxu0 0.0
    %577 = vmatprep.subr.mxu0 0.0
    %578 = vmatpush2.msra.mxu0 0.0
    %579 = vmatprep.subr.mxu0 0.0
    %580 = vmatpush2.msra.mxu0 0.0
    %581 = vmatprep.subr.mxu0 0.0
    %582 = vmatpush2.msra.mxu0 0.0
    %583 = vmatprep.subr.mxu0 0.0
    %584 = vmatpush2.msra.mxu0 0.0
    %585 = vmatprep.subr.mxu0 0.0
    %586 = vmatpush2.msra.mxu0 0.0
    %587 = vmatprep.subr.mxu0 0.0
    %588 = vmatpush2.msra.mxu0 0.0
    %589 = vmatprep.mubr.f32.mxu0 0.0
    %590 = vmatmul.mubr.f32.gmra.mxu0 %v430
    %v591 = vpop.f32.mrf.mxu0
    %v592 = vadd.f32 %v520, %v591
    %v593 = vpop.f32.mrf.mxu0
    %594 = vmatprep.mubr.f32.mxu0 0.0
    %595 = vmatmul.mubr.f32.gmra.mxu0 %v433
    %v596 = vpop.f32.mrf.mxu0
    %v597 = vadd.f32 %v520, %v596
    %v598 = vpop.f32.mrf.mxu0
    %599 = vdwg.mxu0
    %v601 = vlaneseq
    %v602 = vshrl.u32 %v601, 7
    %v603 = vsub.s32 0, %v602
    %v604 = vrot.slane %v111, %v603
    %v607 = vsel %vm435, %v110, 0
    %609 = vmatprep.subr.mxu0 0.0
    %610 = vmatpush1.msra.mxu0 0.0
    %611 = vmatprep.subr.mxu0 0.0
    %612 = vmatpush1.msra.mxu0 0.0
    %613 = vmatprep.subr.mxu0 0.0
    %614 = vmatpush1.msra.mxu0 0.0
    %615 = vmatprep.subr.mxu0 0.0
    %616 = vmatpush1.msra.mxu0 0.0
    %617 = vmatprep.subr.mxu0 0.0
    %618 = vmatpush1.msra.mxu0 0.0
    %619 = vmatprep.subr.mxu0 0.0
    %620 = vmatpush1.msra.mxu0 0.0
    %621 = vmatprep.subr.mxu0 0.0
    %622 = vmatpush1.msra.mxu0 0.0
    %623 = vmatprep.subr.mxu0 0.0
    %624 = vmatpush1.msra.mxu0 0.0
    %625 = vmatprep.subr.mxu0 0.0
    %626 = vmatpush1.msra.mxu0 0.0
    %627 = vmatprep.subr.mxu0 0.0
    %628 = vmatpush1.msra.mxu0 0.0
    %629 = vmatprep.subr.mxu0 0.0
    %630 = vmatpush1.msra.mxu0 0.0
    %631 = vmatprep.subr.mxu0 0.0
    %632 = vmatpush1.msra.mxu0 0.0
    %633 = vmatprep.subr.mxu0 0.0
    %634 = vmatpush1.msra.mxu0 0.0
    %635 = vmatprep.subr.mxu0 0.0
    %636 = vmatpush1.msra.mxu0 %v607
    %637 = vmatprep.subr.mxu0 0.0
    %638 = vmatpush1.msra.mxu0 %v109
    %639 = vmatprep.subr.mxu0 0.0
    %640 = vmatpush1.msra.mxu0 %v108
    %641 = vmatprep.subr.mxu0 0.0
    %642 = vmatpush2.msra.mxu0 0.0
    %643 = vmatprep.subr.mxu0 0.0
    %644 = vmatpush2.msra.mxu0 0.0
    %645 = vmatprep.subr.mxu0 0.0
    %646 = vmatpush2.msra.mxu0 0.0
    %647 = vmatprep.subr.mxu0 0.0
    %648 = vmatpush2.msra.mxu0 0.0
    %649 = vmatprep.subr.mxu0 0.0
    %650 = vmatpush2.msra.mxu0 0.0
    %651 = vmatprep.subr.mxu0 0.0
    %652 = vmatpush2.msra.mxu0 0.0
    %653 = vmatprep.subr.mxu0 0.0
    %654 = vmatpush2.msra.mxu0 0.0
    %655 = vmatprep.subr.mxu0 0.0
    %656 = vmatpush2.msra.mxu0 0.0
    %657 = vmatprep.subr.mxu0 0.0
    %658 = vmatpush2.msra.mxu0 0.0
    %659 = vmatprep.subr.mxu0 0.0
    %660 = vmatpush2.msra.mxu0 0.0
    %661 = vmatprep.subr.mxu0 0.0
    %662 = vmatpush2.msra.mxu0 0.0
    %663 = vmatprep.subr.mxu0 0.0
    %664 = vmatpush2.msra.mxu0 0.0
    %665 = vmatprep.subr.mxu0 0.0
    %666 = vmatpush2.msra.mxu0 0.0
    %667 = vmatprep.subr.mxu0 0.0
    %668 = vmatpush2.msra.mxu0 0.0
    %669 = vmatprep.subr.mxu0 0.0
    %670 = vmatpush2.msra.mxu0 0.0
    %671 = vmatprep.subr.mxu0 0.0
    %672 = vmatpush2.msra.mxu0 0.0
    %673 = vmatprep.mubr.f32.mxu0 0.0
    %674 = vmatmul.mubr.f32.gmra.mxu0 %v430
    %v675 = vpop.f32.mrf.mxu0
    %v676 = vadd.f32 %v604, %v675
    %v677 = vpop.f32.mrf.mxu0
    %678 = vmatprep.mubr.f32.mxu0 0.0
    %679 = vmatmul.mubr.f32.gmra.mxu0 %v433
    %v680 = vpop.f32.mrf.mxu0
    %v681 = vadd.f32 %v604, %v680
    %v682 = vpop.f32.mrf.mxu0
    %683 = vdwg.mxu0
    %684 = vxpose.xlu0.b32.start [1/16] %v592, 128
    %685 = vxpose.xlu0.b32.cont [2/16] %v597, 128
    %686 = vxpose.xlu0.b32.cont [3/16] 0.0, 128
    %687 = vxpose.xlu0.b32.cont [4/16] 0.0, 128
    %688 = vxpose.xlu0.b32.cont [5/16] 0.0, 128
    %689 = vxpose.xlu0.b32.cont [6/16] 0.0, 128
    %690 = vxpose.xlu0.b32.cont [7/16] 0.0, 128
    %691 = vxpose.xlu0.b32.cont [8/16] 0.0, 128
    %692 = vxpose.xlu0.b32.cont [9/16] 0.0, 128
    %693 = vxpose.xlu0.b32.cont [10/16] 0.0, 128
    %694 = vxpose.xlu0.b32.cont [11/16] 0.0, 128
    %695 = vxpose.xlu0.b32.cont [12/16] 0.0, 128
    %696 = vxpose.xlu0.b32.cont [13/16] 0.0, 128
    %697 = vxpose.xlu0.b32.cont [14/16] 0.0, 128
    %698 = vxpose.xlu0.b32.cont [15/16] 0.0, 128
    %699 = vxpose.xlu0.b32.end [16/16] 0.0, 128
    %v700 = vpop.trf.xlu0
    %v701 = vpop.trf.xlu0
    %v702 = vpop.trf.xlu0
    %v703 = vpop.trf.xlu0
    %v704 = vpop.trf.xlu0
    %v705 = vpop.trf.xlu0
    %v706 = vpop.trf.xlu0
    %v707 = vpop.trf.xlu0
    %v708 = vpop.trf.xlu0
    %v709 = vpop.trf.xlu0
    %v710 = vpop.trf.xlu0
    %v711 = vpop.trf.xlu0
    %v712 = vpop.trf.xlu0
    %v713 = vpop.trf.xlu0
    %v714 = vpop.trf.xlu0
    %v715 = vpop.trf.xlu0
    %vm718 = vcmask 1042432
    %v719 = vrot.slane %v700, 5
    %v720 = vrot.slane %v701, 5
    %v721 = vsel %vm718, %v719, %v720
    %723 = vrot.lane.b32.xlu0 %v676, 123
    %v724 = vpop.permute.xlu0 %723
    %vm725 = vcmask 31744
    %v726 = vsel %vm725, %v721, 0
    %v728 = vsel %vm435, %v724, 0
    %730 = vmatprep.subr.mxu0 0.0
    %731 = vmatpush1.msra.mxu0 0.0
    %732 = vmatprep.subr.mxu0 0.0
    %733 = vmatpush1.msra.mxu0 0.0
    %734 = vmatprep.subr.mxu0 0.0
    %735 = vmatpush1.msra.mxu0 0.0
    %736 = vmatprep.subr.mxu0 0.0
    %737 = vmatpush1.msra.mxu0 0.0
    %738 = vmatprep.subr.mxu0 0.0
    %739 = vmatpush1.msra.mxu0 0.0
    %740 = vmatprep.subr.mxu0 0.0
    %741 = vmatpush1.msra.mxu0 0.0
    %742 = vmatprep.subr.mxu0 0.0
    %743 = vmatpush1.msra.mxu0 0.0
    %744 = vmatprep.subr.mxu0 0.0
    %745 = vmatpush1.msra.mxu0 0.0
    %746 = vmatprep.subr.mxu0 0.0
    %747 = vmatpush1.msra.mxu0 0.0
    %748 = vmatprep.subr.mxu0 0.0
    %749 = vmatpush1.msra.mxu0 0.0
    %750 = vmatprep.subr.mxu0 0.0
    %751 = vmatpush1.msra.mxu0 0.0
    %752 = vmatprep.subr.mxu0 0.0
    %753 = vmatpush1.msra.mxu0 0.0
    %754 = vmatprep.subr.mxu0 0.0
    %755 = vmatpush1.msra.mxu0 0.0
    %756 = vmatprep.subr.mxu0 0.0
    %757 = vmatpush1.msra.mxu0 0.0
    %758 = vmatprep.subr.mxu0 0.0
    %759 = vmatpush1.msra.mxu0 0.0
    %760 = vmatprep.subr.mxu0 0.0
    %761 = vmatpush1.msra.mxu0 %v728
    %762 = vmatprep.subr.mxu0 0.0
    %763 = vmatpush2.msra.mxu0 0.0
    %764 = vmatprep.subr.mxu0 0.0
    %765 = vmatpush2.msra.mxu0 0.0
    %766 = vmatprep.subr.mxu0 0.0
    %767 = vmatpush2.msra.mxu0 0.0
    %768 = vmatprep.subr.mxu0 0.0
    %769 = vmatpush2.msra.mxu0 0.0
    %770 = vmatprep.subr.mxu0 0.0
    %771 = vmatpush2.msra.mxu0 0.0
    %772 = vmatprep.subr.mxu0 0.0
    %773 = vmatpush2.msra.mxu0 0.0
    %774 = vmatprep.subr.mxu0 0.0
    %775 = vmatpush2.msra.mxu0 0.0
    %776 = vmatprep.subr.mxu0 0.0
    %777 = vmatpush2.msra.mxu0 0.0
    %778 = vmatprep.subr.mxu0 0.0
    %779 = vmatpush2.msra.mxu0 0.0
    %780 = vmatprep.subr.mxu0 0.0
    %781 = vmatpush2.msra.mxu0 0.0
    %782 = vmatprep.subr.mxu0 0.0
    %783 = vmatpush2.msra.mxu0 0.0
    %784 = vmatprep.subr.mxu0 0.0
    %785 = vmatpush2.msra.mxu0 0.0
    %786 = vmatprep.subr.mxu0 0.0
    %787 = vmatpush2.msra.mxu0 0.0
    %788 = vmatprep.subr.mxu0 0.0
    %789 = vmatpush2.msra.mxu0 0.0
    %790 = vmatprep.subr.mxu0 0.0
    %791 = vmatpush2.msra.mxu0 0.0
    %792 = vmatprep.subr.mxu0 0.0
    %793 = vmatpush2.msra.mxu0 0.0
    %794 = vmatprep.mubr.f32.mxu0 0.0
    %795 = vmatmul.mubr.f32.gmra.mxu0 %v726
    %v796 = vpop.f32.mrf.mxu0
    %v797 = vadd.f32 0.0, %v796
    %v798 = vpop.f32.mrf.mxu0
    %799 = vdwg.mxu0
    %v800 = vsel %vm725, %v700, 0
    %v802 = vsel %vm435, %v676, 0
    %804 = vmatprep.subr.mxu0 0.0
    %805 = vmatpush1.msra.mxu0 0.0
    %806 = vmatprep.subr.mxu0 0.0
    %807 = vmatpush1.msra.mxu0 0.0
    %808 = vmatprep.subr.mxu0 0.0
    %809 = vmatpush1.msra.mxu0 0.0
    %810 = vmatprep.subr.mxu0 0.0
    %811 = vmatpush1.msra.mxu0 0.0
    %812 = vmatprep.subr.mxu0 0.0
    %813 = vmatpush1.msra.mxu0 0.0
    %814 = vmatprep.subr.mxu0 0.0
    %815 = vmatpush1.msra.mxu0 0.0
    %816 = vmatprep.subr.mxu0 0.0
    %817 = vmatpush1.msra.mxu0 0.0
    %818 = vmatprep.subr.mxu0 0.0
    %819 = vmatpush1.msra.mxu0 0.0
    %820 = vmatprep.subr.mxu0 0.0
    %821 = vmatpush1.msra.mxu0 0.0
    %822 = vmatprep.subr.mxu0 0.0
    %823 = vmatpush1.msra.mxu0 0.0
    %824 = vmatprep.subr.mxu0 0.0
    %825 = vmatpush1.msra.mxu0 0.0
    %826 = vmatprep.subr.mxu0 0.0
    %827 = vmatpush1.msra.mxu0 0.0
    %828 = vmatprep.subr.mxu0 0.0
    %829 = vmatpush1.msra.mxu0 0.0
    %830 = vmatprep.subr.mxu0 0.0
    %831 = vmatpush1.msra.mxu0 0.0
    %832 = vmatprep.subr.mxu0 0.0
    %833 = vmatpush1.msra.mxu0 0.0
    %834 = vmatprep.subr.mxu0 0.0
    %835 = vmatpush1.msra.mxu0 %v802
    %836 = vmatprep.subr.mxu0 0.0
    %837 = vmatpush2.msra.mxu0 0.0
    %838 = vmatprep.subr.mxu0 0.0
    %839 = vmatpush2.msra.mxu0 0.0
    %840 = vmatprep.subr.mxu0 0.0
    %841 = vmatpush2.msra.mxu0 0.0
    %842 = vmatprep.subr.mxu0 0.0
    %843 = vmatpush2.msra.mxu0 0.0
    %844 = vmatprep.subr.mxu0 0.0
    %845 = vmatpush2.msra.mxu0 0.0
    %846 = vmatprep.subr.mxu0 0.0
    %847 = vmatpush2.msra.mxu0 0.0
    %848 = vmatprep.subr.mxu0 0.0
    %849 = vmatpush2.msra.mxu0 0.0
    %850 = vmatprep.subr.mxu0 0.0
    %851 = vmatpush2.msra.mxu0 0.0
    %852 = vmatprep.subr.mxu0 0.0
    %853 = vmatpush2.msra.mxu0 0.0
    %854 = vmatprep.subr.mxu0 0.0
    %855 = vmatpush2.msra.mxu0 0.0
    %856 = vmatprep.subr.mxu0 0.0
    %857 = vmatpush2.msra.mxu0 0.0
    %858 = vmatprep.subr.mxu0 0.0
    %859 = vmatpush2.msra.mxu0 0.0
    %860 = vmatprep.subr.mxu0 0.0
    %861 = vmatpush2.msra.mxu0 0.0
    %862 = vmatprep.subr.mxu0 0.0
    %863 = vmatpush2.msra.mxu0 0.0
    %864 = vmatprep.subr.mxu0 0.0
    %865 = vmatpush2.msra.mxu0 0.0
    %866 = vmatprep.subr.mxu0 0.0
    %867 = vmatpush2.msra.mxu0 0.0
    %868 = vmatprep.mubr.f32.mxu0 0.0
    %869 = vmatmul.mubr.f32.gmra.mxu0 %v800
    %v870 = vpop.f32.mrf.mxu0
    %v871 = vadd.f32 %v797, %v870
    %v872 = vpop.f32.mrf.mxu0
    %873 = vdwg.mxu0
    %vm874 = vcmask 39936
    %v876 = vsel %vm874, %v871, 0
    %vm878 = vcmask 1044480
    %v880 = vsel %vm878, %v112, 0
    %882 = vmatprep.subr.mxu0 0.0
    %883 = vmatpush1.msra.mxu0 0.0
    %884 = vmatprep.subr.mxu0 0.0
    %885 = vmatpush1.msra.mxu0 0.0
    %886 = vmatprep.subr.mxu0 0.0
    %887 = vmatpush1.msra.mxu0 0.0
    %888 = vmatprep.subr.mxu0 0.0
    %889 = vmatpush1.msra.mxu0 0.0
    %890 = vmatprep.subr.mxu0 0.0
    %891 = vmatpush1.msra.mxu0 0.0
    %892 = vmatprep.subr.mxu0 0.0
    %893 = vmatpush1.msra.mxu0 0.0
    %894 = vmatprep.subr.mxu0 0.0
    %895 = vmatpush1.msra.mxu0 0.0
    %896 = vmatprep.subr.mxu0 0.0
    %897 = vmatpush1.msra.mxu0 0.0
    %898 = vmatprep.subr.mxu0 0.0
    %899 = vmatpush1.msra.mxu0 0.0
    %900 = vmatprep.subr.mxu0 0.0
    %901 = vmatpush1.msra.mxu0 0.0
    %902 = vmatprep.subr.mxu0 0.0
    %903 = vmatpush1.msra.mxu0 0.0
    %904 = vmatprep.subr.mxu0 0.0
    %905 = vmatpush1.msra.mxu0 0.0
    %906 = vmatprep.subr.mxu0 0.0
    %907 = vmatpush1.msra.mxu0 0.0
    %908 = vmatprep.subr.mxu0 0.0
    %909 = vmatpush1.msra.mxu0 0.0
    %910 = vmatprep.subr.mxu0 0.0
    %911 = vmatpush1.msra.mxu0 0.0
    %912 = vmatprep.subr.mxu0 0.0
    %913 = vmatpush1.msra.mxu0 %v880
    %914 = vmatprep.subr.mxu0 0.0
    %915 = vmatpush2.msra.mxu0 0.0
    %916 = vmatprep.subr.mxu0 0.0
    %917 = vmatpush2.msra.mxu0 0.0
    %918 = vmatprep.subr.mxu0 0.0
    %919 = vmatpush2.msra.mxu0 0.0
    %920 = vmatprep.subr.mxu0 0.0
    %921 = vmatpush2.msra.mxu0 0.0
    %922 = vmatprep.subr.mxu0 0.0
    %923 = vmatpush2.msra.mxu0 0.0
    %924 = vmatprep.subr.mxu0 0.0
    %925 = vmatpush2.msra.mxu0 0.0
    %926 = vmatprep.subr.mxu0 0.0
    %927 = vmatpush2.msra.mxu0 0.0
    %928 = vmatprep.subr.mxu0 0.0
    %929 = vmatpush2.msra.mxu0 0.0
    %930 = vmatprep.subr.mxu0 0.0
    %931 = vmatpush2.msra.mxu0 0.0
    %932 = vmatprep.subr.mxu0 0.0
    %933 = vmatpush2.msra.mxu0 0.0
    %934 = vmatprep.subr.mxu0 0.0
    %935 = vmatpush2.msra.mxu0 0.0
    %936 = vmatprep.subr.mxu0 0.0
    %937 = vmatpush2.msra.mxu0 0.0
    %938 = vmatprep.subr.mxu0 0.0
    %939 = vmatpush2.msra.mxu0 0.0
    %940 = vmatprep.subr.mxu0 0.0
    %941 = vmatpush2.msra.mxu0 0.0
    %942 = vmatprep.subr.mxu0 0.0
    %943 = vmatpush2.msra.mxu0 0.0
    %944 = vmatprep.subr.mxu0 0.0
    %945 = vmatpush2.msra.mxu0 0.0
    %946 = vmatprep.mubr.f32.mxu0 0.0
    %947 = vmatmul.mubr.f32.gmra.mxu0 %v876
    %v948 = vpop.f32.mrf.mxu0
    %v949 = vadd.f32 0.0, %v948
    %v950 = vpop.f32.mrf.mxu0
    %951 = vdwg.mxu0
    %v953 = vrot.slane %v112, 5
    %v954 = vrot.slane %v113, 5
    %v955 = vsel %vm718, %v953, %v954
    %v956 = vsel %vm878, %v955, 0
    %958 = vmatprep.subr.mxu0 0.0
    %959 = vmatpush1.msra.mxu0 0.0
    %960 = vmatprep.subr.mxu0 0.0
    %961 = vmatpush1.msra.mxu0 0.0
    %962 = vmatprep.subr.mxu0 0.0
    %963 = vmatpush1.msra.mxu0 0.0
    %964 = vmatprep.subr.mxu0 0.0
    %965 = vmatpush1.msra.mxu0 0.0
    %966 = vmatprep.subr.mxu0 0.0
    %967 = vmatpush1.msra.mxu0 0.0
    %968 = vmatprep.subr.mxu0 0.0
    %969 = vmatpush1.msra.mxu0 0.0
    %970 = vmatprep.subr.mxu0 0.0
    %971 = vmatpush1.msra.mxu0 0.0
    %972 = vmatprep.subr.mxu0 0.0
    %973 = vmatpush1.msra.mxu0 0.0
    %974 = vmatprep.subr.mxu0 0.0
    %975 = vmatpush1.msra.mxu0 0.0
    %976 = vmatprep.subr.mxu0 0.0
    %977 = vmatpush1.msra.mxu0 0.0
    %978 = vmatprep.subr.mxu0 0.0
    %979 = vmatpush1.msra.mxu0 0.0
    %980 = vmatprep.subr.mxu0 0.0
    %981 = vmatpush1.msra.mxu0 0.0
    %982 = vmatprep.subr.mxu0 0.0
    %983 = vmatpush1.msra.mxu0 0.0
    %984 = vmatprep.subr.mxu0 0.0
    %985 = vmatpush1.msra.mxu0 0.0
    %986 = vmatprep.subr.mxu0 0.0
    %987 = vmatpush1.msra.mxu0 0.0
    %988 = vmatprep.subr.mxu0 0.0
    %989 = vmatpush1.msra.mxu0 %v956
    %990 = vmatprep.subr.mxu0 0.0
    %991 = vmatpush2.msra.mxu0 0.0
    %992 = vmatprep.subr.mxu0 0.0
    %993 = vmatpush2.msra.mxu0 0.0
    %994 = vmatprep.subr.mxu0 0.0
    %995 = vmatpush2.msra.mxu0 0.0
    %996 = vmatprep.subr.mxu0 0.0
    %997 = vmatpush2.msra.mxu0 0.0
    %998 = vmatprep.subr.mxu0 0.0
    %999 = vmatpush2.msra.mxu0 0.0
    %1000 = vmatprep.subr.mxu0 0.0
    %1001 = vmatpush2.msra.mxu0 0.0
    %1002 = vmatprep.subr.mxu0 0.0
    %1003 = vmatpush2.msra.mxu0 0.0
    %1004 = vmatprep.subr.mxu0 0.0
    %1005 = vmatpush2.msra.mxu0 0.0
    %1006 = vmatprep.subr.mxu0 0.0
    %1007 = vmatpush2.msra.mxu0 0.0
    %1008 = vmatprep.subr.mxu0 0.0
    %1009 = vmatpush2.msra.mxu0 0.0
    %1010 = vmatprep.subr.mxu0 0.0
    %1011 = vmatpush2.msra.mxu0 0.0
    %1012 = vmatprep.subr.mxu0 0.0
    %1013 = vmatpush2.msra.mxu0 0.0
    %1014 = vmatprep.subr.mxu0 0.0
    %1015 = vmatpush2.msra.mxu0 0.0
    %1016 = vmatprep.subr.mxu0 0.0
    %1017 = vmatpush2.msra.mxu0 0.0
    %1018 = vmatprep.subr.mxu0 0.0
    %1019 = vmatpush2.msra.mxu0 0.0
    %1020 = vmatprep.subr.mxu0 0.0
    %1021 = vmatpush2.msra.mxu0 0.0
    %1022 = vmatprep.mubr.f32.mxu0 0.0
    %1023 = vmatmul.mubr.f32.gmra.mxu0 %v876
    %v1024 = vpop.f32.mrf.mxu0
    %v1025 = vadd.f32 0.0, %v1024
    %v1026 = vpop.f32.mrf.mxu0
    %1027 = vdwg.mxu0
    %1029 = vrot.lane.b32.xlu0 %v514, 123
    %v1030 = vpop.permute.xlu0 %1029
    %v1031 = vsel %vm874, %v1030, 0
    %v1034 = vsel %vm878, %v1025, 0
    %1036 = vmatprep.subr.mxu0 0.0
    %1037 = vmatpush1.msra.mxu0 0.0
    %1038 = vmatprep.subr.mxu0 0.0
    %1039 = vmatpush1.msra.mxu0 0.0
    %1040 = vmatprep.subr.mxu0 0.0
    %1041 = vmatpush1.msra.mxu0 0.0
    %1042 = vmatprep.subr.mxu0 0.0
    %1043 = vmatpush1.msra.mxu0 0.0
    %1044 = vmatprep.subr.mxu0 0.0
    %1045 = vmatpush1.msra.mxu0 0.0
    %1046 = vmatprep.subr.mxu0 0.0
    %1047 = vmatpush1.msra.mxu0 0.0
    %1048 = vmatprep.subr.mxu0 0.0
    %1049 = vmatpush1.msra.mxu0 0.0
    %1050 = vmatprep.subr.mxu0 0.0
    %1051 = vmatpush1.msra.mxu0 0.0
    %1052 = vmatprep.subr.mxu0 0.0
    %1053 = vmatpush1.msra.mxu0 0.0
    %1054 = vmatprep.subr.mxu0 0.0
    %1055 = vmatpush1.msra.mxu0 0.0
    %1056 = vmatprep.subr.mxu0 0.0
    %1057 = vmatpush1.msra.mxu0 0.0
    %1058 = vmatprep.subr.mxu0 0.0
    %1059 = vmatpush1.msra.mxu0 0.0
    %1060 = vmatprep.subr.mxu0 0.0
    %1061 = vmatpush1.msra.mxu0 0.0
    %1062 = vmatprep.subr.mxu0 0.0
    %1063 = vmatpush1.msra.mxu0 0.0
    %1064 = vmatprep.subr.mxu0 0.0
    %1065 = vmatpush1.msra.mxu0 0.0
    %1066 = vmatprep.subr.mxu0 0.0
    %1067 = vmatpush1.msra.mxu0 %v1034
    %1068 = vmatprep.subr.mxu0 0.0
    %1069 = vmatpush2.msra.mxu0 0.0
    %1070 = vmatprep.subr.mxu0 0.0
    %1071 = vmatpush2.msra.mxu0 0.0
    %1072 = vmatprep.subr.mxu0 0.0
    %1073 = vmatpush2.msra.mxu0 0.0
    %1074 = vmatprep.subr.mxu0 0.0
    %1075 = vmatpush2.msra.mxu0 0.0
    %1076 = vmatprep.subr.mxu0 0.0
    %1077 = vmatpush2.msra.mxu0 0.0
    %1078 = vmatprep.subr.mxu0 0.0
    %1079 = vmatpush2.msra.mxu0 0.0
    %1080 = vmatprep.subr.mxu0 0.0
    %1081 = vmatpush2.msra.mxu0 0.0
    %1082 = vmatprep.subr.mxu0 0.0
    %1083 = vmatpush2.msra.mxu0 0.0
    %1084 = vmatprep.subr.mxu0 0.0
    %1085 = vmatpush2.msra.mxu0 0.0
    %1086 = vmatprep.subr.mxu0 0.0
    %1087 = vmatpush2.msra.mxu0 0.0
    %1088 = vmatprep.subr.mxu0 0.0
    %1089 = vmatpush2.msra.mxu0 0.0
    %1090 = vmatprep.subr.mxu0 0.0
    %1091 = vmatpush2.msra.mxu0 0.0
    %1092 = vmatprep.subr.mxu0 0.0
    %1093 = vmatpush2.msra.mxu0 0.0
    %1094 = vmatprep.subr.mxu0 0.0
    %1095 = vmatpush2.msra.mxu0 0.0
    %1096 = vmatprep.subr.mxu0 0.0
    %1097 = vmatpush2.msra.mxu0 0.0
    %1098 = vmatprep.subr.mxu0 0.0
    %1099 = vmatpush2.msra.mxu0 0.0
    %1100 = vmatprep.mubr.f32.mxu0 0.0
    %1101 = vmatmul.mubr.f32.gmra.mxu0 %v1031
    %v1102 = vpop.f32.mrf.mxu0
    %v1103 = vadd.f32 0.0, %v1102
    %v1104 = vpop.f32.mrf.mxu0
    %1105 = vdwg.mxu0
    %v1106 = vsel %vm874, %v514, 0
    %v1109 = vsel %vm878, %v949, 0
    %1111 = vmatprep.subr.mxu0 0.0
    %1112 = vmatpush1.msra.mxu0 0.0
    %1113 = vmatprep.subr.mxu0 0.0
    %1114 = vmatpush1.msra.mxu0 0.0
    %1115 = vmatprep.subr.mxu0 0.0
    %1116 = vmatpush1.msra.mxu0 0.0
    %1117 = vmatprep.subr.mxu0 0.0
    %1118 = vmatpush1.msra.mxu0 0.0
    %1119 = vmatprep.subr.mxu0 0.0
    %1120 = vmatpush1.msra.mxu0 0.0
    %1121 = vmatprep.subr.mxu0 0.0
    %1122 = vmatpush1.msra.mxu0 0.0
    %1123 = vmatprep.subr.mxu0 0.0
    %1124 = vmatpush1.msra.mxu0 0.0
    %1125 = vmatprep.subr.mxu0 0.0
    %1126 = vmatpush1.msra.mxu0 0.0
    %1127 = vmatprep.subr.mxu0 0.0
    %1128 = vmatpush1.msra.mxu0 0.0
    %1129 = vmatprep.subr.mxu0 0.0
    %1130 = vmatpush1.msra.mxu0 0.0
    %1131 = vmatprep.subr.mxu0 0.0
    %1132 = vmatpush1.msra.mxu0 0.0
    %1133 = vmatprep.subr.mxu0 0.0
    %1134 = vmatpush1.msra.mxu0 0.0
    %1135 = vmatprep.subr.mxu0 0.0
    %1136 = vmatpush1.msra.mxu0 0.0
    %1137 = vmatprep.subr.mxu0 0.0
    %1138 = vmatpush1.msra.mxu0 0.0
    %1139 = vmatprep.subr.mxu0 0.0
    %1140 = vmatpush1.msra.mxu0 0.0
    %1141 = vmatprep.subr.mxu0 0.0
    %1142 = vmatpush1.msra.mxu0 %v1109
    %1143 = vmatprep.subr.mxu0 0.0
    %1144 = vmatpush2.msra.mxu0 0.0
    %1145 = vmatprep.subr.mxu0 0.0
    %1146 = vmatpush2.msra.mxu0 0.0
    %1147 = vmatprep.subr.mxu0 0.0
    %1148 = vmatpush2.msra.mxu0 0.0
    %1149 = vmatprep.subr.mxu0 0.0
    %1150 = vmatpush2.msra.mxu0 0.0
    %1151 = vmatprep.subr.mxu0 0.0
    %1152 = vmatpush2.msra.mxu0 0.0
    %1153 = vmatprep.subr.mxu0 0.0
    %1154 = vmatpush2.msra.mxu0 0.0
    %1155 = vmatprep.subr.mxu0 0.0
    %1156 = vmatpush2.msra.mxu0 0.0
    %1157 = vmatprep.subr.mxu0 0.0
    %1158 = vmatpush2.msra.mxu0 0.0
    %1159 = vmatprep.subr.mxu0 0.0
    %1160 = vmatpush2.msra.mxu0 0.0
    %1161 = vmatprep.subr.mxu0 0.0
    %1162 = vmatpush2.msra.mxu0 0.0
    %1163 = vmatprep.subr.mxu0 0.0
    %1164 = vmatpush2.msra.mxu0 0.0
    %1165 = vmatprep.subr.mxu0 0.0
    %1166 = vmatpush2.msra.mxu0 0.0
    %1167 = vmatprep.subr.mxu0 0.0
    %1168 = vmatpush2.msra.mxu0 0.0
    %1169 = vmatprep.subr.mxu0 0.0
    %1170 = vmatpush2.msra.mxu0 0.0
    %1171 = vmatprep.subr.mxu0 0.0
    %1172 = vmatpush2.msra.mxu0 0.0
    %1173 = vmatprep.subr.mxu0 0.0
    %1174 = vmatpush2.msra.mxu0 0.0
    %1175 = vmatprep.mubr.f32.mxu0 0.0
    %1176 = vmatmul.mubr.f32.gmra.mxu0 %v1106
    %v1177 = vpop.f32.mrf.mxu0
    %v1178 = vadd.f32 %v1103, %v1177
    %v1179 = vpop.f32.mrf.mxu0
    %1180 = vdwg.mxu0
    %1181 = vrot.lane.b32.xlu0 %v721, 124
    %v1182 = vpop.permute.xlu0 %1181
    %v1183 = vrot.slane %v676, 4
    %1184 = vrot.lane.b32.xlu0 %v1183, 123
    %v1185 = vpop.permute.xlu0 %1184
    %v1186 = vsel %vm725, %v1182, 0
    %v1188 = vsel %vm435, %v1185, 0
    %1190 = vmatprep.subr.mxu0 0.0
    %1191 = vmatpush1.msra.mxu0 0.0
    %1192 = vmatprep.subr.mxu0 0.0
    %1193 = vmatpush1.msra.mxu0 0.0
    %1194 = vmatprep.subr.mxu0 0.0
    %1195 = vmatpush1.msra.mxu0 0.0
    %1196 = vmatprep.subr.mxu0 0.0
    %1197 = vmatpush1.msra.mxu0 0.0
    %1198 = vmatprep.subr.mxu0 0.0
    %1199 = vmatpush1.msra.mxu0 0.0
    %1200 = vmatprep.subr.mxu0 0.0
    %1201 = vmatpush1.msra.mxu0 0.0
    %1202 = vmatprep.subr.mxu0 0.0
    %1203 = vmatpush1.msra.mxu0 0.0
    %1204 = vmatprep.subr.mxu0 0.0
    %1205 = vmatpush1.msra.mxu0 0.0
    %1206 = vmatprep.subr.mxu0 0.0
    %1207 = vmatpush1.msra.mxu0 0.0
    %1208 = vmatprep.subr.mxu0 0.0
    %1209 = vmatpush1.msra.mxu0 0.0
    %1210 = vmatprep.subr.mxu0 0.0
    %1211 = vmatpush1.msra.mxu0 0.0
    %1212 = vmatprep.subr.mxu0 0.0
    %1213 = vmatpush1.msra.mxu0 0.0
    %1214 = vmatprep.subr.mxu0 0.0
    %1215 = vmatpush1.msra.mxu0 0.0
    %1216 = vmatprep.subr.mxu0 0.0
    %1217 = vmatpush1.msra.mxu0 0.0
    %1218 = vmatprep.subr.mxu0 0.0
    %1219 = vmatpush1.msra.mxu0 0.0
    %1220 = vmatprep.subr.mxu0 0.0
    %1221 = vmatpush1.msra.mxu0 %v1188
    %1222 = vmatprep.subr.mxu0 0.0
    %1223 = vmatpush2.msra.mxu0 0.0
    %1224 = vmatprep.subr.mxu0 0.0
    %1225 = vmatpush2.msra.mxu0 0.0
    %1226 = vmatprep.subr.mxu0 0.0
    %1227 = vmatpush2.msra.mxu0 0.0
    %1228 = vmatprep.subr.mxu0 0.0
    %1229 = vmatpush2.msra.mxu0 0.0
    %1230 = vmatprep.subr.mxu0 0.0
    %1231 = vmatpush2.msra.mxu0 0.0
    %1232 = vmatprep.subr.mxu0 0.0
    %1233 = vmatpush2.msra.mxu0 0.0
    %1234 = vmatprep.subr.mxu0 0.0
    %1235 = vmatpush2.msra.mxu0 0.0
    %1236 = vmatprep.subr.mxu0 0.0
    %1237 = vmatpush2.msra.mxu0 0.0
    %1238 = vmatprep.subr.mxu0 0.0
    %1239 = vmatpush2.msra.mxu0 0.0
    %1240 = vmatprep.subr.mxu0 0.0
    %1241 = vmatpush2.msra.mxu0 0.0
    %1242 = vmatprep.subr.mxu0 0.0
    %1243 = vmatpush2.msra.mxu0 0.0
    %1244 = vmatprep.subr.mxu0 0.0
    %1245 = vmatpush2.msra.mxu0 0.0
    %1246 = vmatprep.subr.mxu0 0.0
    %1247 = vmatpush2.msra.mxu0 0.0
    %1248 = vmatprep.subr.mxu0 0.0
    %1249 = vmatpush2.msra.mxu0 0.0
    %1250 = vmatprep.subr.mxu0 0.0
    %1251 = vmatpush2.msra.mxu0 0.0
    %1252 = vmatprep.subr.mxu0 0.0
    %1253 = vmatpush2.msra.mxu0 0.0
    %1254 = vmatprep.mubr.f32.mxu0 0.0
    %1255 = vmatmul.mubr.f32.gmra.mxu0 %v1186
    %v1256 = vpop.f32.mrf.mxu0
    %v1257 = vadd.f32 0.0, %v1256
    %v1258 = vpop.f32.mrf.mxu0
    %1259 = vdwg.mxu0
    %1260 = vrot.lane.b32.xlu0 %v700, 124
    %v1261 = vpop.permute.xlu0 %1260
    %v1262 = vsel %vm725, %v1261, 0
    %v1264 = vsel %vm435, %v1183, 0
    %1266 = vmatprep.subr.mxu0 0.0
    %1267 = vmatpush1.msra.mxu0 0.0
    %1268 = vmatprep.subr.mxu0 0.0
    %1269 = vmatpush1.msra.mxu0 0.0
    %1270 = vmatprep.subr.mxu0 0.0
    %1271 = vmatpush1.msra.mxu0 0.0
    %1272 = vmatprep.subr.mxu0 0.0
    %1273 = vmatpush1.msra.mxu0 0.0
    %1274 = vmatprep.subr.mxu0 0.0
    %1275 = vmatpush1.msra.mxu0 0.0
    %1276 = vmatprep.subr.mxu0 0.0
    %1277 = vmatpush1.msra.mxu0 0.0
    %1278 = vmatprep.subr.mxu0 0.0
    %1279 = vmatpush1.msra.mxu0 0.0
    %1280 = vmatprep.subr.mxu0 0.0
    %1281 = vmatpush1.msra.mxu0 0.0
    %1282 = vmatprep.subr.mxu0 0.0
    %1283 = vmatpush1.msra.mxu0 0.0
    %1284 = vmatprep.subr.mxu0 0.0
    %1285 = vmatpush1.msra.mxu0 0.0
    %1286 = vmatprep.subr.mxu0 0.0
    %1287 = vmatpush1.msra.mxu0 0.0
    %1288 = vmatprep.subr.mxu0 0.0
    %1289 = vmatpush1.msra.mxu0 0.0
    %1290 = vmatprep.subr.mxu0 0.0
    %1291 = vmatpush1.msra.mxu0 0.0
    %1292 = vmatprep.subr.mxu0 0.0
    %1293 = vmatpush1.msra.mxu0 0.0
    %1294 = vmatprep.subr.mxu0 0.0
    %1295 = vmatpush1.msra.mxu0 0.0
    %1296 = vmatprep.subr.mxu0 0.0
    %1297 = vmatpush1.msra.mxu0 %v1264
    %1298 = vmatprep.subr.mxu0 0.0
    %1299 = vmatpush2.msra.mxu0 0.0
    %1300 = vmatprep.subr.mxu0 0.0
    %1301 = vmatpush2.msra.mxu0 0.0
    %1302 = vmatprep.subr.mxu0 0.0
    %1303 = vmatpush2.msra.mxu0 0.0
    %1304 = vmatprep.subr.mxu0 0.0
    %1305 = vmatpush2.msra.mxu0 0.0
    %1306 = vmatprep.subr.mxu0 0.0
    %1307 = vmatpush2.msra.mxu0 0.0
    %1308 = vmatprep.subr.mxu0 0.0
    %1309 = vmatpush2.msra.mxu0 0.0
    %1310 = vmatprep.subr.mxu0 0.0
    %1311 = vmatpush2.msra.mxu0 0.0
    %1312 = vmatprep.subr.mxu0 0.0
    %1313 = vmatpush2.msra.mxu0 0.0
    %1314 = vmatprep.subr.mxu0 0.0
    %1315 = vmatpush2.msra.mxu0 0.0
    %1316 = vmatprep.subr.mxu0 0.0
    %1317 = vmatpush2.msra.mxu0 0.0
    %1318 = vmatprep.subr.mxu0 0.0
    %1319 = vmatpush2.msra.mxu0 0.0
    %1320 = vmatprep.subr.mxu0 0.0
    %1321 = vmatpush2.msra.mxu0 0.0
    %1322 = vmatprep.subr.mxu0 0.0
    %1323 = vmatpush2.msra.mxu0 0.0
    %1324 = vmatprep.subr.mxu0 0.0
    %1325 = vmatpush2.msra.mxu0 0.0
    %1326 = vmatprep.subr.mxu0 0.0
    %1327 = vmatpush2.msra.mxu0 0.0
    %1328 = vmatprep.subr.mxu0 0.0
    %1329 = vmatpush2.msra.mxu0 0.0
    %1330 = vmatprep.mubr.f32.mxu0 0.0
    %1331 = vmatmul.mubr.f32.gmra.mxu0 %v1262
    %v1332 = vpop.f32.mrf.mxu0
    %v1333 = vadd.f32 %v1257, %v1332
    %v1334 = vpop.f32.mrf.mxu0
    %1335 = vdwg.mxu0
    %v1337 = vsel %vm874, %v1333, 0
    %1339 = vmatprep.subr.mxu0 0.0
    %1340 = vmatpush1.msra.mxu0 0.0
    %1341 = vmatprep.subr.mxu0 0.0
    %1342 = vmatpush1.msra.mxu0 0.0
    %1343 = vmatprep.subr.mxu0 0.0
    %1344 = vmatpush1.msra.mxu0 0.0
    %1345 = vmatprep.subr.mxu0 0.0
    %1346 = vmatpush1.msra.mxu0 0.0
    %1347 = vmatprep.subr.mxu0 0.0
    %1348 = vmatpush1.msra.mxu0 0.0
    %1349 = vmatprep.subr.mxu0 0.0
    %1350 = vmatpush1.msra.mxu0 0.0
    %1351 = vmatprep.subr.mxu0 0.0
    %1352 = vmatpush1.msra.mxu0 0.0
    %1353 = vmatprep.subr.mxu0 0.0
    %1354 = vmatpush1.msra.mxu0 0.0
    %1355 = vmatprep.subr.mxu0 0.0
    %1356 = vmatpush1.msra.mxu0 0.0
    %1357 = vmatprep.subr.mxu0 0.0
    %1358 = vmatpush1.msra.mxu0 0.0
    %1359 = vmatprep.subr.mxu0 0.0
    %1360 = vmatpush1.msra.mxu0 0.0
    %1361 = vmatprep.subr.mxu0 0.0
    %1362 = vmatpush1.msra.mxu0 0.0
    %1363 = vmatprep.subr.mxu0 0.0
    %1364 = vmatpush1.msra.mxu0 0.0
    %1365 = vmatprep.subr.mxu0 0.0
    %1366 = vmatpush1.msra.mxu0 0.0
    %1367 = vmatprep.subr.mxu0 0.0
    %1368 = vmatpush1.msra.mxu0 0.0
    %1369 = vmatprep.subr.mxu0 0.0
    %1370 = vmatpush1.msra.mxu0 %v880
    %1371 = vmatprep.subr.mxu0 0.0
    %1372 = vmatpush2.msra.mxu0 0.0
    %1373 = vmatprep.subr.mxu0 0.0
    %1374 = vmatpush2.msra.mxu0 0.0
    %1375 = vmatprep.subr.mxu0 0.0
    %1376 = vmatpush2.msra.mxu0 0.0
    %1377 = vmatprep.subr.mxu0 0.0
    %1378 = vmatpush2.msra.mxu0 0.0
    %1379 = vmatprep.subr.mxu0 0.0
    %1380 = vmatpush2.msra.mxu0 0.0
    %1381 = vmatprep.subr.mxu0 0.0
    %1382 = vmatpush2.msra.mxu0 0.0
    %1383 = vmatprep.subr.mxu0 0.0
    %1384 = vmatpush2.msra.mxu0 0.0
    %1385 = vmatprep.subr.mxu0 0.0
    %1386 = vmatpush2.msra.mxu0 0.0
    %1387 = vmatprep.subr.mxu0 0.0
    %1388 = vmatpush2.msra.mxu0 0.0
    %1389 = vmatprep.subr.mxu0 0.0
    %1390 = vmatpush2.msra.mxu0 0.0
    %1391 = vmatprep.subr.mxu0 0.0
    %1392 = vmatpush2.msra.mxu0 0.0
    %1393 = vmatprep.subr.mxu0 0.0
    %1394 = vmatpush2.msra.mxu0 0.0
    %1395 = vmatprep.subr.mxu0 0.0
    %1396 = vmatpush2.msra.mxu0 0.0
    %1397 = vmatprep.subr.mxu0 0.0
    %1398 = vmatpush2.msra.mxu0 0.0
    %1399 = vmatprep.subr.mxu0 0.0
    %1400 = vmatpush2.msra.mxu0 0.0
    %1401 = vmatprep.subr.mxu0 0.0
    %1402 = vmatpush2.msra.mxu0 0.0
    %1403 = vmatprep.mubr.f32.mxu0 0.0
    %1404 = vmatmul.mubr.f32.gmra.mxu0 %v1337
    %v1405 = vpop.f32.mrf.mxu0
    %v1406 = vadd.f32 0.0, %v1405
    %v1407 = vpop.f32.mrf.mxu0
    %1408 = vdwg.mxu0
    %1409 = vmatprep.subr.mxu0 0.0
    %1410 = vmatpush1.msra.mxu0 0.0
    %1411 = vmatprep.subr.mxu0 0.0
    %1412 = vmatpush1.msra.mxu0 0.0
    %1413 = vmatprep.subr.mxu0 0.0
    %1414 = vmatpush1.msra.mxu0 0.0
    %1415 = vmatprep.subr.mxu0 0.0
    %1416 = vmatpush1.msra.mxu0 0.0
    %1417 = vmatprep.subr.mxu0 0.0
    %1418 = vmatpush1.msra.mxu0 0.0
    %1419 = vmatprep.subr.mxu0 0.0
    %1420 = vmatpush1.msra.mxu0 0.0
    %1421 = vmatprep.subr.mxu0 0.0
    %1422 = vmatpush1.msra.mxu0 0.0
    %1423 = vmatprep.subr.mxu0 0.0
    %1424 = vmatpush1.msra.mxu0 0.0
    %1425 = vmatprep.subr.mxu0 0.0
    %1426 = vmatpush1.msra.mxu0 0.0
    %1427 = vmatprep.subr.mxu0 0.0
    %1428 = vmatpush1.msra.mxu0 0.0
    %1429 = vmatprep.subr.mxu0 0.0
    %1430 = vmatpush1.msra.mxu0 0.0
    %1431 = vmatprep.subr.mxu0 0.0
    %1432 = vmatpush1.msra.mxu0 0.0
    %1433 = vmatprep.subr.mxu0 0.0
    %1434 = vmatpush1.msra.mxu0 0.0
    %1435 = vmatprep.subr.mxu0 0.0
    %1436 = vmatpush1.msra.mxu0 0.0
    %1437 = vmatprep.subr.mxu0 0.0
    %1438 = vmatpush1.msra.mxu0 0.0
    %1439 = vmatprep.subr.mxu0 0.0
    %1440 = vmatpush1.msra.mxu0 %v956
    %1441 = vmatprep.subr.mxu0 0.0
    %1442 = vmatpush2.msra.mxu0 0.0
    %1443 = vmatprep.subr.mxu0 0.0
    %1444 = vmatpush2.msra.mxu0 0.0
    %1445 = vmatprep.subr.mxu0 0.0
    %1446 = vmatpush2.msra.mxu0 0.0
    %1447 = vmatprep.subr.mxu0 0.0
    %1448 = vmatpush2.msra.mxu0 0.0
    %1449 = vmatprep.subr.mxu0 0.0
    %1450 = vmatpush2.msra.mxu0 0.0
    %1451 = vmatprep.subr.mxu0 0.0
    %1452 = vmatpush2.msra.mxu0 0.0
    %1453 = vmatprep.subr.mxu0 0.0
    %1454 = vmatpush2.msra.mxu0 0.0
    %1455 = vmatprep.subr.mxu0 0.0
    %1456 = vmatpush2.msra.mxu0 0.0
    %1457 = vmatprep.subr.mxu0 0.0
    %1458 = vmatpush2.msra.mxu0 0.0
    %1459 = vmatprep.subr.mxu0 0.0
    %1460 = vmatpush2.msra.mxu0 0.0
    %1461 = vmatprep.subr.mxu0 0.0
    %1462 = vmatpush2.msra.mxu0 0.0
    %1463 = vmatprep.subr.mxu0 0.0
    %1464 = vmatpush2.msra.mxu0 0.0
    %1465 = vmatprep.subr.mxu0 0.0
    %1466 = vmatpush2.msra.mxu0 0.0
    %1467 = vmatprep.subr.mxu0 0.0
    %1468 = vmatpush2.msra.mxu0 0.0
    %1469 = vmatprep.subr.mxu0 0.0
    %1470 = vmatpush2.msra.mxu0 0.0
    %1471 = vmatprep.subr.mxu0 0.0
    %1472 = vmatpush2.msra.mxu0 0.0
    %1473 = vmatprep.mubr.f32.mxu0 0.0
    %1474 = vmatmul.mubr.f32.gmra.mxu0 %v1337
    %v1475 = vpop.f32.mrf.mxu0
    %v1476 = vadd.f32 0.0, %v1475
    %v1477 = vpop.f32.mrf.mxu0
    %1478 = vdwg.mxu0
    %v1479 = vrot.slane %v514, 4
    %1480 = vrot.lane.b32.xlu0 %v1479, 123
    %v1481 = vpop.permute.xlu0 %1480
    %v1482 = vsel %vm874, %v1481, 0
    %v1485 = vsel %vm878, %v1476, 0
    %1487 = vmatprep.subr.mxu0 0.0
    %1488 = vmatpush1.msra.mxu0 0.0
    %1489 = vmatprep.subr.mxu0 0.0
    %1490 = vmatpush1.msra.mxu0 0.0
    %1491 = vmatprep.subr.mxu0 0.0
    %1492 = vmatpush1.msra.mxu0 0.0
    %1493 = vmatprep.subr.mxu0 0.0
    %1494 = vmatpush1.msra.mxu0 0.0
    %1495 = vmatprep.subr.mxu0 0.0
    %1496 = vmatpush1.msra.mxu0 0.0
    %1497 = vmatprep.subr.mxu0 0.0
    %1498 = vmatpush1.msra.mxu0 0.0
    %1499 = vmatprep.subr.mxu0 0.0
    %1500 = vmatpush1.msra.mxu0 0.0
    %1501 = vmatprep.subr.mxu0 0.0
    %1502 = vmatpush1.msra.mxu0 0.0
    %1503 = vmatprep.subr.mxu0 0.0
    %1504 = vmatpush1.msra.mxu0 0.0
    %1505 = vmatprep.subr.mxu0 0.0
    %1506 = vmatpush1.msra.mxu0 0.0
    %1507 = vmatprep.subr.mxu0 0.0
    %1508 = vmatpush1.msra.mxu0 0.0
    %1509 = vmatprep.subr.mxu0 0.0
    %1510 = vmatpush1.msra.mxu0 0.0
    %1511 = vmatprep.subr.mxu0 0.0
    %1512 = vmatpush1.msra.mxu0 0.0
    %1513 = vmatprep.subr.mxu0 0.0
    %1514 = vmatpush1.msra.mxu0 0.0
    %1515 = vmatprep.subr.mxu0 0.0
    %1516 = vmatpush1.msra.mxu0 0.0
    %1517 = vmatprep.subr.mxu0 0.0
    %1518 = vmatpush1.msra.mxu0 %v1485
    %1519 = vmatprep.subr.mxu0 0.0
    %1520 = vmatpush2.msra.mxu0 0.0
    %1521 = vmatprep.subr.mxu0 0.0
    %1522 = vmatpush2.msra.mxu0 0.0
    %1523 = vmatprep.subr.mxu0 0.0
    %1524 = vmatpush2.msra.mxu0 0.0
    %1525 = vmatprep.subr.mxu0 0.0
    %1526 = vmatpush2.msra.mxu0 0.0
    %1527 = vmatprep.subr.mxu0 0.0
    %1528 = vmatpush2.msra.mxu0 0.0
    %1529 = vmatprep.subr.mxu0 0.0
    %1530 = vmatpush2.msra.mxu0 0.0
    %1531 = vmatprep.subr.mxu0 0.0
    %1532 = vmatpush2.msra.mxu0 0.0
    %1533 = vmatprep.subr.mxu0 0.0
    %1534 = vmatpush2.msra.mxu0 0.0
    %1535 = vmatprep.subr.mxu0 0.0
    %1536 = vmatpush2.msra.mxu0 0.0
    %1537 = vmatprep.subr.mxu0 0.0
    %1538 = vmatpush2.msra.mxu0 0.0
    %1539 = vmatprep.subr.mxu0 0.0
    %1540 = vmatpush2.msra.mxu0 0.0
    %1541 = vmatprep.subr.mxu0 0.0
    %1542 = vmatpush2.msra.mxu0 0.0
    %1543 = vmatprep.subr.mxu0 0.0
    %1544 = vmatpush2.msra.mxu0 0.0
    %1545 = vmatprep.subr.mxu0 0.0
    %1546 = vmatpush2.msra.mxu0 0.0
    %1547 = vmatprep.subr.mxu0 0.0
    %1548 = vmatpush2.msra.mxu0 0.0
    %1549 = vmatprep.subr.mxu0 0.0
    %1550 = vmatpush2.msra.mxu0 0.0
    %1551 = vmatprep.mubr.f32.mxu0 0.0
    %1552 = vmatmul.mubr.f32.gmra.mxu0 %v1482
    %v1553 = vpop.f32.mrf.mxu0
    %v1554 = vadd.f32 0.0, %v1553
    %v1555 = vpop.f32.mrf.mxu0
    %1556 = vdwg.mxu0
    %v1557 = vsel %vm874, %v1479, 0
    %v1560 = vsel %vm878, %v1406, 0
    %1562 = vmatprep.subr.mxu0 0.0
    %1563 = vmatpush1.msra.mxu0 0.0
    %1564 = vmatprep.subr.mxu0 0.0
    %1565 = vmatpush1.msra.mxu0 0.0
    %1566 = vmatprep.subr.mxu0 0.0
    %1567 = vmatpush1.msra.mxu0 0.0
    %1568 = vmatprep.subr.mxu0 0.0
    %1569 = vmatpush1.msra.mxu0 0.0
    %1570 = vmatprep.subr.mxu0 0.0
    %1571 = vmatpush1.msra.mxu0 0.0
    %1572 = vmatprep.subr.mxu0 0.0
    %1573 = vmatpush1.msra.mxu0 0.0
    %1574 = vmatprep.subr.mxu0 0.0
    %1575 = vmatpush1.msra.mxu0 0.0
    %1576 = vmatprep.subr.mxu0 0.0
    %1577 = vmatpush1.msra.mxu0 0.0
    %1578 = vmatprep.subr.mxu0 0.0
    %1579 = vmatpush1.msra.mxu0 0.0
    %1580 = vmatprep.subr.mxu0 0.0
    %1581 = vmatpush1.msra.mxu0 0.0
    %1582 = vmatprep.subr.mxu0 0.0
    %1583 = vmatpush1.msra.mxu0 0.0
    %1584 = vmatprep.subr.mxu0 0.0
    %1585 = vmatpush1.msra.mxu0 0.0
    %1586 = vmatprep.subr.mxu0 0.0
    %1587 = vmatpush1.msra.mxu0 0.0
    %1588 = vmatprep.subr.mxu0 0.0
    %1589 = vmatpush1.msra.mxu0 0.0
    %1590 = vmatprep.subr.mxu0 0.0
    %1591 = vmatpush1.msra.mxu0 0.0
    %1592 = vmatprep.subr.mxu0 0.0
    %1593 = vmatpush1.msra.mxu0 %v1560
    %1594 = vmatprep.subr.mxu0 0.0
    %1595 = vmatpush2.msra.mxu0 0.0
    %1596 = vmatprep.subr.mxu0 0.0
    %1597 = vmatpush2.msra.mxu0 0.0
    %1598 = vmatprep.subr.mxu0 0.0
    %1599 = vmatpush2.msra.mxu0 0.0
    %1600 = vmatprep.subr.mxu0 0.0
    %1601 = vmatpush2.msra.mxu0 0.0
    %1602 = vmatprep.subr.mxu0 0.0
    %1603 = vmatpush2.msra.mxu0 0.0
    %1604 = vmatprep.subr.mxu0 0.0
    %1605 = vmatpush2.msra.mxu0 0.0
    %1606 = vmatprep.subr.mxu0 0.0
    %1607 = vmatpush2.msra.mxu0 0.0
    %1608 = vmatprep.subr.mxu0 0.0
    %1609 = vmatpush2.msra.mxu0 0.0
    %1610 = vmatprep.subr.mxu0 0.0
    %1611 = vmatpush2.msra.mxu0 0.0
    %1612 = vmatprep.subr.mxu0 0.0
    %1613 = vmatpush2.msra.mxu0 0.0
    %1614 = vmatprep.subr.mxu0 0.0
    %1615 = vmatpush2.msra.mxu0 0.0
    %1616 = vmatprep.subr.mxu0 0.0
    %1617 = vmatpush2.msra.mxu0 0.0
    %1618 = vmatprep.subr.mxu0 0.0
    %1619 = vmatpush2.msra.mxu0 0.0
    %1620 = vmatprep.subr.mxu0 0.0
    %1621 = vmatpush2.msra.mxu0 0.0
    %1622 = vmatprep.subr.mxu0 0.0
    %1623 = vmatpush2.msra.mxu0 0.0
    %1624 = vmatprep.subr.mxu0 0.0
    %1625 = vmatpush2.msra.mxu0 0.0
    %1626 = vmatprep.mubr.f32.mxu0 0.0
    %1627 = vmatmul.mubr.f32.gmra.mxu0 %v1557
    %v1628 = vpop.f32.mrf.mxu0
    %v1629 = vadd.f32 %v1554, %v1628
    %v1630 = vpop.f32.mrf.mxu0
    %1631 = vdwg.mxu0
    %1632 = vrot.lane.b32.xlu0 %v721, 120
    %v1633 = vpop.permute.xlu0 %1632
    %1635 = vrot.lane.b32.xlu0 %v681, 123
    %v1636 = vpop.permute.xlu0 %1635
    %v1637 = vsel %vm725, %v1633, 0
    %v1639 = vsel %vm435, %v1636, 0
    %1641 = vmatprep.subr.mxu0 0.0
    %1642 = vmatpush1.msra.mxu0 0.0
    %1643 = vmatprep.subr.mxu0 0.0
    %1644 = vmatpush1.msra.mxu0 0.0
    %1645 = vmatprep.subr.mxu0 0.0
    %1646 = vmatpush1.msra.mxu0 0.0
    %1647 = vmatprep.subr.mxu0 0.0
    %1648 = vmatpush1.msra.mxu0 0.0
    %1649 = vmatprep.subr.mxu0 0.0
    %1650 = vmatpush1.msra.mxu0 0.0
    %1651 = vmatprep.subr.mxu0 0.0
    %1652 = vmatpush1.msra.mxu0 0.0
    %1653 = vmatprep.subr.mxu0 0.0
    %1654 = vmatpush1.msra.mxu0 0.0
    %1655 = vmatprep.subr.mxu0 0.0
    %1656 = vmatpush1.msra.mxu0 0.0
    %1657 = vmatprep.subr.mxu0 0.0
    %1658 = vmatpush1.msra.mxu0 0.0
    %1659 = vmatprep.subr.mxu0 0.0
    %1660 = vmatpush1.msra.mxu0 0.0
    %1661 = vmatprep.subr.mxu0 0.0
    %1662 = vmatpush1.msra.mxu0 0.0
    %1663 = vmatprep.subr.mxu0 0.0
    %1664 = vmatpush1.msra.mxu0 0.0
    %1665 = vmatprep.subr.mxu0 0.0
    %1666 = vmatpush1.msra.mxu0 0.0
    %1667 = vmatprep.subr.mxu0 0.0
    %1668 = vmatpush1.msra.mxu0 0.0
    %1669 = vmatprep.subr.mxu0 0.0
    %1670 = vmatpush1.msra.mxu0 0.0
    %1671 = vmatprep.subr.mxu0 0.0
    %1672 = vmatpush1.msra.mxu0 %v1639
    %1673 = vmatprep.subr.mxu0 0.0
    %1674 = vmatpush2.msra.mxu0 0.0
    %1675 = vmatprep.subr.mxu0 0.0
    %1676 = vmatpush2.msra.mxu0 0.0
    %1677 = vmatprep.subr.mxu0 0.0
    %1678 = vmatpush2.msra.mxu0 0.0
    %1679 = vmatprep.subr.mxu0 0.0
    %1680 = vmatpush2.msra.mxu0 0.0
    %1681 = vmatprep.subr.mxu0 0.0
    %1682 = vmatpush2.msra.mxu0 0.0
    %1683 = vmatprep.subr.mxu0 0.0
    %1684 = vmatpush2.msra.mxu0 0.0
    %1685 = vmatprep.subr.mxu0 0.0
    %1686 = vmatpush2.msra.mxu0 0.0
    %1687 = vmatprep.subr.mxu0 0.0
    %1688 = vmatpush2.msra.mxu0 0.0
    %1689 = vmatprep.subr.mxu0 0.0
    %1690 = vmatpush2.msra.mxu0 0.0
    %1691 = vmatprep.subr.mxu0 0.0
    %1692 = vmatpush2.msra.mxu0 0.0
    %1693 = vmatprep.subr.mxu0 0.0
    %1694 = vmatpush2.msra.mxu0 0.0
    %1695 = vmatprep.subr.mxu0 0.0
    %1696 = vmatpush2.msra.mxu0 0.0
    %1697 = vmatprep.subr.mxu0 0.0
    %1698 = vmatpush2.msra.mxu0 0.0
    %1699 = vmatprep.subr.mxu0 0.0
    %1700 = vmatpush2.msra.mxu0 0.0
    %1701 = vmatprep.subr.mxu0 0.0
    %1702 = vmatpush2.msra.mxu0 0.0
    %1703 = vmatprep.subr.mxu0 0.0
    %1704 = vmatpush2.msra.mxu0 0.0
    %1705 = vmatprep.mubr.f32.mxu0 0.0
    %1706 = vmatmul.mubr.f32.gmra.mxu0 %v1637
    %v1707 = vpop.f32.mrf.mxu0
    %v1708 = vadd.f32 0.0, %v1707
    %v1709 = vpop.f32.mrf.mxu0
    %1710 = vdwg.mxu0
    %1711 = vrot.lane.b32.xlu0 %v700, 120
    %v1712 = vpop.permute.xlu0 %1711
    %v1713 = vsel %vm725, %v1712, 0
    %v1715 = vsel %vm435, %v681, 0
    %1717 = vmatprep.subr.mxu0 0.0
    %1718 = vmatpush1.msra.mxu0 0.0
    %1719 = vmatprep.subr.mxu0 0.0
    %1720 = vmatpush1.msra.mxu0 0.0
    %1721 = vmatprep.subr.mxu0 0.0
    %1722 = vmatpush1.msra.mxu0 0.0
    %1723 = vmatprep.subr.mxu0 0.0
    %1724 = vmatpush1.msra.mxu0 0.0
    %1725 = vmatprep.subr.mxu0 0.0
    %1726 = vmatpush1.msra.mxu0 0.0
    %1727 = vmatprep.subr.mxu0 0.0
    %1728 = vmatpush1.msra.mxu0 0.0
    %1729 = vmatprep.subr.mxu0 0.0
    %1730 = vmatpush1.msra.mxu0 0.0
    %1731 = vmatprep.subr.mxu0 0.0
    %1732 = vmatpush1.msra.mxu0 0.0
    %1733 = vmatprep.subr.mxu0 0.0
    %1734 = vmatpush1.msra.mxu0 0.0
    %1735 = vmatprep.subr.mxu0 0.0
    %1736 = vmatpush1.msra.mxu0 0.0
    %1737 = vmatprep.subr.mxu0 0.0
    %1738 = vmatpush1.msra.mxu0 0.0
    %1739 = vmatprep.subr.mxu0 0.0
    %1740 = vmatpush1.msra.mxu0 0.0
    %1741 = vmatprep.subr.mxu0 0.0
    %1742 = vmatpush1.msra.mxu0 0.0
    %1743 = vmatprep.subr.mxu0 0.0
    %1744 = vmatpush1.msra.mxu0 0.0
    %1745 = vmatprep.subr.mxu0 0.0
    %1746 = vmatpush1.msra.mxu0 0.0
    %1747 = vmatprep.subr.mxu0 0.0
    %1748 = vmatpush1.msra.mxu0 %v1715
    %1749 = vmatprep.subr.mxu0 0.0
    %1750 = vmatpush2.msra.mxu0 0.0
    %1751 = vmatprep.subr.mxu0 0.0
    %1752 = vmatpush2.msra.mxu0 0.0
    %1753 = vmatprep.subr.mxu0 0.0
    %1754 = vmatpush2.msra.mxu0 0.0
    %1755 = vmatprep.subr.mxu0 0.0
    %1756 = vmatpush2.msra.mxu0 0.0
    %1757 = vmatprep.subr.mxu0 0.0
    %1758 = vmatpush2.msra.mxu0 0.0
    %1759 = vmatprep.subr.mxu0 0.0
    %1760 = vmatpush2.msra.mxu0 0.0
    %1761 = vmatprep.subr.mxu0 0.0
    %1762 = vmatpush2.msra.mxu0 0.0
    %1763 = vmatprep.subr.mxu0 0.0
    %1764 = vmatpush2.msra.mxu0 0.0
    %1765 = vmatprep.subr.mxu0 0.0
    %1766 = vmatpush2.msra.mxu0 0.0
    %1767 = vmatprep.subr.mxu0 0.0
    %1768 = vmatpush2.msra.mxu0 0.0
    %1769 = vmatprep.subr.mxu0 0.0
    %1770 = vmatpush2.msra.mxu0 0.0
    %1771 = vmatprep.subr.mxu0 0.0
    %1772 = vmatpush2.msra.mxu0 0.0
    %1773 = vmatprep.subr.mxu0 0.0
    %1774 = vmatpush2.msra.mxu0 0.0
    %1775 = vmatprep.subr.mxu0 0.0
    %1776 = vmatpush2.msra.mxu0 0.0
    %1777 = vmatprep.subr.mxu0 0.0
    %1778 = vmatpush2.msra.mxu0 0.0
    %1779 = vmatprep.subr.mxu0 0.0
    %1780 = vmatpush2.msra.mxu0 0.0
    %1781 = vmatprep.mubr.f32.mxu0 0.0
    %1782 = vmatmul.mubr.f32.gmra.mxu0 %v1713
    %v1783 = vpop.f32.mrf.mxu0
    %v1784 = vadd.f32 %v1708, %v1783
    %v1785 = vpop.f32.mrf.mxu0
    %1786 = vdwg.mxu0
    %v1788 = vsel %vm874, %v1784, 0
    %1790 = vmatprep.subr.mxu0 0.0
    %1791 = vmatpush1.msra.mxu0 0.0
    %1792 = vmatprep.subr.mxu0 0.0
    %1793 = vmatpush1.msra.mxu0 0.0
    %1794 = vmatprep.subr.mxu0 0.0
    %1795 = vmatpush1.msra.mxu0 0.0
    %1796 = vmatprep.subr.mxu0 0.0
    %1797 = vmatpush1.msra.mxu0 0.0
    %1798 = vmatprep.subr.mxu0 0.0
    %1799 = vmatpush1.msra.mxu0 0.0
    %1800 = vmatprep.subr.mxu0 0.0
    %1801 = vmatpush1.msra.mxu0 0.0
    %1802 = vmatprep.subr.mxu0 0.0
    %1803 = vmatpush1.msra.mxu0 0.0
    %1804 = vmatprep.subr.mxu0 0.0
    %1805 = vmatpush1.msra.mxu0 0.0
    %1806 = vmatprep.subr.mxu0 0.0
    %1807 = vmatpush1.msra.mxu0 0.0
    %1808 = vmatprep.subr.mxu0 0.0
    %1809 = vmatpush1.msra.mxu0 0.0
    %1810 = vmatprep.subr.mxu0 0.0
    %1811 = vmatpush1.msra.mxu0 0.0
    %1812 = vmatprep.subr.mxu0 0.0
    %1813 = vmatpush1.msra.mxu0 0.0
    %1814 = vmatprep.subr.mxu0 0.0
    %1815 = vmatpush1.msra.mxu0 0.0
    %1816 = vmatprep.subr.mxu0 0.0
    %1817 = vmatpush1.msra.mxu0 0.0
    %1818 = vmatprep.subr.mxu0 0.0
    %1819 = vmatpush1.msra.mxu0 0.0
    %1820 = vmatprep.subr.mxu0 0.0
    %1821 = vmatpush1.msra.mxu0 %v880
    %1822 = vmatprep.subr.mxu0 0.0
    %1823 = vmatpush2.msra.mxu0 0.0
    %1824 = vmatprep.subr.mxu0 0.0
    %1825 = vmatpush2.msra.mxu0 0.0
    %1826 = vmatprep.subr.mxu0 0.0
    %1827 = vmatpush2.msra.mxu0 0.0
    %1828 = vmatprep.subr.mxu0 0.0
    %1829 = vmatpush2.msra.mxu0 0.0
    %1830 = vmatprep.subr.mxu0 0.0
    %1831 = vmatpush2.msra.mxu0 0.0
    %1832 = vmatprep.subr.mxu0 0.0
    %1833 = vmatpush2.msra.mxu0 0.0
    %1834 = vmatprep.subr.mxu0 0.0
    %1835 = vmatpush2.msra.mxu0 0.0
    %1836 = vmatprep.subr.mxu0 0.0
    %1837 = vmatpush2.msra.mxu0 0.0
    %1838 = vmatprep.subr.mxu0 0.0
    %1839 = vmatpush2.msra.mxu0 0.0
    %1840 = vmatprep.subr.mxu0 0.0
    %1841 = vmatpush2.msra.mxu0 0.0
    %1842 = vmatprep.subr.mxu0 0.0
    %1843 = vmatpush2.msra.mxu0 0.0
    %1844 = vmatprep.subr.mxu0 0.0
    %1845 = vmatpush2.msra.mxu0 0.0
    %1846 = vmatprep.subr.mxu0 0.0
    %1847 = vmatpush2.msra.mxu0 0.0
    %1848 = vmatprep.subr.mxu0 0.0
    %1849 = vmatpush2.msra.mxu0 0.0
    %1850 = vmatprep.subr.mxu0 0.0
    %1851 = vmatpush2.msra.mxu0 0.0
    %1852 = vmatprep.subr.mxu0 0.0
    %1853 = vmatpush2.msra.mxu0 0.0
    %1854 = vmatprep.mubr.f32.mxu0 0.0
    %1855 = vmatmul.mubr.f32.gmra.mxu0 %v1788
    %v1856 = vpop.f32.mrf.mxu0
    %v1857 = vadd.f32 0.0, %v1856
    %v1858 = vpop.f32.mrf.mxu0
    %1859 = vdwg.mxu0
    %1860 = vmatprep.subr.mxu0 0.0
    %1861 = vmatpush1.msra.mxu0 0.0
    %1862 = vmatprep.subr.mxu0 0.0
    %1863 = vmatpush1.msra.mxu0 0.0
    %1864 = vmatprep.subr.mxu0 0.0
    %1865 = vmatpush1.msra.mxu0 0.0
    %1866 = vmatprep.subr.mxu0 0.0
    %1867 = vmatpush1.msra.mxu0 0.0
    %1868 = vmatprep.subr.mxu0 0.0
    %1869 = vmatpush1.msra.mxu0 0.0
    %1870 = vmatprep.subr.mxu0 0.0
    %1871 = vmatpush1.msra.mxu0 0.0
    %1872 = vmatprep.subr.mxu0 0.0
    %1873 = vmatpush1.msra.mxu0 0.0
    %1874 = vmatprep.subr.mxu0 0.0
    %1875 = vmatpush1.msra.mxu0 0.0
    %1876 = vmatprep.subr.mxu0 0.0
    %1877 = vmatpush1.msra.mxu0 0.0
    %1878 = vmatprep.subr.mxu0 0.0
    %1879 = vmatpush1.msra.mxu0 0.0
    %1880 = vmatprep.subr.mxu0 0.0
    %1881 = vmatpush1.msra.mxu0 0.0
    %1882 = vmatprep.subr.mxu0 0.0
    %1883 = vmatpush1.msra.mxu0 0.0
    %1884 = vmatprep.subr.mxu0 0.0
    %1885 = vmatpush1.msra.mxu0 0.0
    %1886 = vmatprep.subr.mxu0 0.0
    %1887 = vmatpush1.msra.mxu0 0.0
    %1888 = vmatprep.subr.mxu0 0.0
    %1889 = vmatpush1.msra.mxu0 0.0
    %1890 = vmatprep.subr.mxu0 0.0
    %1891 = vmatpush1.msra.mxu0 %v956
    %1892 = vmatprep.subr.mxu0 0.0
    %1893 = vmatpush2.msra.mxu0 0.0
    %1894 = vmatprep.subr.mxu0 0.0
    %1895 = vmatpush2.msra.mxu0 0.0
    %1896 = vmatprep.subr.mxu0 0.0
    %1897 = vmatpush2.msra.mxu0 0.0
    %1898 = vmatprep.subr.mxu0 0.0
    %1899 = vmatpush2.msra.mxu0 0.0
    %1900 = vmatprep.subr.mxu0 0.0
    %1901 = vmatpush2.msra.mxu0 0.0
    %1902 = vmatprep.subr.mxu0 0.0
    %1903 = vmatpush2.msra.mxu0 0.0
    %1904 = vmatprep.subr.mxu0 0.0
    %1905 = vmatpush2.msra.mxu0 0.0
    %1906 = vmatprep.subr.mxu0 0.0
    %1907 = vmatpush2.msra.mxu0 0.0
    %1908 = vmatprep.subr.mxu0 0.0
    %1909 = vmatpush2.msra.mxu0 0.0
    %1910 = vmatprep.subr.mxu0 0.0
    %1911 = vmatpush2.msra.mxu0 0.0
    %1912 = vmatprep.subr.mxu0 0.0
    %1913 = vmatpush2.msra.mxu0 0.0
    %1914 = vmatprep.subr.mxu0 0.0
    %1915 = vmatpush2.msra.mxu0 0.0
    %1916 = vmatprep.subr.mxu0 0.0
    %1917 = vmatpush2.msra.mxu0 0.0
    %1918 = vmatprep.subr.mxu0 0.0
    %1919 = vmatpush2.msra.mxu0 0.0
    %1920 = vmatprep.subr.mxu0 0.0
    %1921 = vmatpush2.msra.mxu0 0.0
    %1922 = vmatprep.subr.mxu0 0.0
    %1923 = vmatpush2.msra.mxu0 0.0
    %1924 = vmatprep.mubr.f32.mxu0 0.0
    %1925 = vmatmul.mubr.f32.gmra.mxu0 %v1788
    %v1926 = vpop.f32.mrf.mxu0
    %v1927 = vadd.f32 0.0, %v1926
    %v1928 = vpop.f32.mrf.mxu0
    %1929 = vdwg.mxu0
    %1931 = vrot.lane.b32.xlu0 %v515, 123
    %v1932 = vpop.permute.xlu0 %1931
    %v1933 = vsel %vm874, %v1932, 0
    %v1936 = vsel %vm878, %v1927, 0
    %1938 = vmatprep.subr.mxu0 0.0
    %1939 = vmatpush1.msra.mxu0 0.0
    %1940 = vmatprep.subr.mxu0 0.0
    %1941 = vmatpush1.msra.mxu0 0.0
    %1942 = vmatprep.subr.mxu0 0.0
    %1943 = vmatpush1.msra.mxu0 0.0
    %1944 = vmatprep.subr.mxu0 0.0
    %1945 = vmatpush1.msra.mxu0 0.0
    %1946 = vmatprep.subr.mxu0 0.0
    %1947 = vmatpush1.msra.mxu0 0.0
    %1948 = vmatprep.subr.mxu0 0.0
    %1949 = vmatpush1.msra.mxu0 0.0
    %1950 = vmatprep.subr.mxu0 0.0
    %1951 = vmatpush1.msra.mxu0 0.0
    %1952 = vmatprep.subr.mxu0 0.0
    %1953 = vmatpush1.msra.mxu0 0.0
    %1954 = vmatprep.subr.mxu0 0.0
    %1955 = vmatpush1.msra.mxu0 0.0
    %1956 = vmatprep.subr.mxu0 0.0
    %1957 = vmatpush1.msra.mxu0 0.0
    %1958 = vmatprep.subr.mxu0 0.0
    %1959 = vmatpush1.msra.mxu0 0.0
    %1960 = vmatprep.subr.mxu0 0.0
    %1961 = vmatpush1.msra.mxu0 0.0
    %1962 = vmatprep.subr.mxu0 0.0
    %1963 = vmatpush1.msra.mxu0 0.0
    %1964 = vmatprep.subr.mxu0 0.0
    %1965 = vmatpush1.msra.mxu0 0.0
    %1966 = vmatprep.subr.mxu0 0.0
    %1967 = vmatpush1.msra.mxu0 0.0
    %1968 = vmatprep.subr.mxu0 0.0
    %1969 = vmatpush1.msra.mxu0 %v1936
    %1970 = vmatprep.subr.mxu0 0.0
    %1971 = vmatpush2.msra.mxu0 0.0
    %1972 = vmatprep.subr.mxu0 0.0
    %1973 = vmatpush2.msra.mxu0 0.0
    %1974 = vmatprep.subr.mxu0 0.0
    %1975 = vmatpush2.msra.mxu0 0.0
    %1976 = vmatprep.subr.mxu0 0.0
    %1977 = vmatpush2.msra.mxu0 0.0
    %1978 = vmatprep.subr.mxu0 0.0
    %1979 = vmatpush2.msra.mxu0 0.0
    %1980 = vmatprep.subr.mxu0 0.0
    %1981 = vmatpush2.msra.mxu0 0.0
    %1982 = vmatprep.subr.mxu0 0.0
    %1983 = vmatpush2.msra.mxu0 0.0
    %1984 = vmatprep.subr.mxu0 0.0
    %1985 = vmatpush2.msra.mxu0 0.0
    %1986 = vmatprep.subr.mxu0 0.0
    %1987 = vmatpush2.msra.mxu0 0.0
    %1988 = vmatprep.subr.mxu0 0.0
    %1989 = vmatpush2.msra.mxu0 0.0
    %1990 = vmatprep.subr.mxu0 0.0
    %1991 = vmatpush2.msra.mxu0 0.0
    %1992 = vmatprep.subr.mxu0 0.0
    %1993 = vmatpush2.msra.mxu0 0.0
    %1994 = vmatprep.subr.mxu0 0.0
    %1995 = vmatpush2.msra.mxu0 0.0
    %1996 = vmatprep.subr.mxu0 0.0
    %1997 = vmatpush2.msra.mxu0 0.0
    %1998 = vmatprep.subr.mxu0 0.0
    %1999 = vmatpush2.msra.mxu0 0.0
    %2000 = vmatprep.subr.mxu0 0.0
    %2001 = vmatpush2.msra.mxu0 0.0
    %2002 = vmatprep.mubr.f32.mxu0 0.0
    %2003 = vmatmul.mubr.f32.gmra.mxu0 %v1933
    %v2004 = vpop.f32.mrf.mxu0
    %v2005 = vadd.f32 0.0, %v2004
    %v2006 = vpop.f32.mrf.mxu0
    %2007 = vdwg.mxu0
    %v2008 = vsel %vm874, %v515, 0
    %v2011 = vsel %vm878, %v1857, 0
    %2013 = vmatprep.subr.mxu0 0.0
    %2014 = vmatpush1.msra.mxu0 0.0
    %2015 = vmatprep.subr.mxu0 0.0
    %2016 = vmatpush1.msra.mxu0 0.0
    %2017 = vmatprep.subr.mxu0 0.0
    %2018 = vmatpush1.msra.mxu0 0.0
    %2019 = vmatprep.subr.mxu0 0.0
    %2020 = vmatpush1.msra.mxu0 0.0
    %2021 = vmatprep.subr.mxu0 0.0
    %2022 = vmatpush1.msra.mxu0 0.0
    %2023 = vmatprep.subr.mxu0 0.0
    %2024 = vmatpush1.msra.mxu0 0.0
    %2025 = vmatprep.subr.mxu0 0.0
    %2026 = vmatpush1.msra.mxu0 0.0
    %2027 = vmatprep.subr.mxu0 0.0
    %2028 = vmatpush1.msra.mxu0 0.0
    %2029 = vmatprep.subr.mxu0 0.0
    %2030 = vmatpush1.msra.mxu0 0.0
    %2031 = vmatprep.subr.mxu0 0.0
    %2032 = vmatpush1.msra.mxu0 0.0
    %2033 = vmatprep.subr.mxu0 0.0
    %2034 = vmatpush1.msra.mxu0 0.0
    %2035 = vmatprep.subr.mxu0 0.0
    %2036 = vmatpush1.msra.mxu0 0.0
    %2037 = vmatprep.subr.mxu0 0.0
    %2038 = vmatpush1.msra.mxu0 0.0
    %2039 = vmatprep.subr.mxu0 0.0
    %2040 = vmatpush1.msra.mxu0 0.0
    %2041 = vmatprep.subr.mxu0 0.0
    %2042 = vmatpush1.msra.mxu0 0.0
    %2043 = vmatprep.subr.mxu0 0.0
    %2044 = vmatpush1.msra.mxu0 %v2011
    %2045 = vmatprep.subr.mxu0 0.0
    %2046 = vmatpush2.msra.mxu0 0.0
    %2047 = vmatprep.subr.mxu0 0.0
    %2048 = vmatpush2.msra.mxu0 0.0
    %2049 = vmatprep.subr.mxu0 0.0
    %2050 = vmatpush2.msra.mxu0 0.0
    %2051 = vmatprep.subr.mxu0 0.0
    %2052 = vmatpush2.msra.mxu0 0.0
    %2053 = vmatprep.subr.mxu0 0.0
    %2054 = vmatpush2.msra.mxu0 0.0
    %2055 = vmatprep.subr.mxu0 0.0
    %2056 = vmatpush2.msra.mxu0 0.0
    %2057 = vmatprep.subr.mxu0 0.0
    %2058 = vmatpush2.msra.mxu0 0.0
    %2059 = vmatprep.subr.mxu0 0.0
    %2060 = vmatpush2.msra.mxu0 0.0
    %2061 = vmatprep.subr.mxu0 0.0
    %2062 = vmatpush2.msra.mxu0 0.0
    %2063 = vmatprep.subr.mxu0 0.0
    %2064 = vmatpush2.msra.mxu0 0.0
    %2065 = vmatprep.subr.mxu0 0.0
    %2066 = vmatpush2.msra.mxu0 0.0
    %2067 = vmatprep.subr.mxu0 0.0
    %2068 = vmatpush2.msra.mxu0 0.0
    %2069 = vmatprep.subr.mxu0 0.0
    %2070 = vmatpush2.msra.mxu0 0.0
    %2071 = vmatprep.subr.mxu0 0.0
    %2072 = vmatpush2.msra.mxu0 0.0
    %2073 = vmatprep.subr.mxu0 0.0
    %2074 = vmatpush2.msra.mxu0 0.0
    %2075 = vmatprep.subr.mxu0 0.0
    %2076 = vmatpush2.msra.mxu0 0.0
    %2077 = vmatprep.mubr.f32.mxu0 0.0
    %2078 = vmatmul.mubr.f32.gmra.mxu0 %v2008
    %v2079 = vpop.f32.mrf.mxu0
    %v2080 = vadd.f32 %v2005, %v2079
    %v2081 = vpop.f32.mrf.mxu0
    %2082 = vdwg.mxu0
    %2083 = vrot.lane.b32.xlu0 %v721, 116
    %v2084 = vpop.permute.xlu0 %2083
    %v2085 = vrot.slane %v681, 4
    %2086 = vrot.lane.b32.xlu0 %v2085, 123
    %v2087 = vpop.permute.xlu0 %2086
    %v2088 = vsel %vm725, %v2084, 0
    %v2090 = vsel %vm435, %v2087, 0
    %2092 = vmatprep.subr.mxu0 0.0
    %2093 = vmatpush1.msra.mxu0 0.0
    %2094 = vmatprep.subr.mxu0 0.0
    %2095 = vmatpush1.msra.mxu0 0.0
    %2096 = vmatprep.subr.mxu0 0.0
    %2097 = vmatpush1.msra.mxu0 0.0
    %2098 = vmatprep.subr.mxu0 0.0
    %2099 = vmatpush1.msra.mxu0 0.0
    %2100 = vmatprep.subr.mxu0 0.0
    %2101 = vmatpush1.msra.mxu0 0.0
    %2102 = vmatprep.subr.mxu0 0.0
    %2103 = vmatpush1.msra.mxu0 0.0
    %2104 = vmatprep.subr.mxu0 0.0
    %2105 = vmatpush1.msra.mxu0 0.0
    %2106 = vmatprep.subr.mxu0 0.0
    %2107 = vmatpush1.msra.mxu0 0.0
    %2108 = vmatprep.subr.mxu0 0.0
    %2109 = vmatpush1.msra.mxu0 0.0
    %2110 = vmatprep.subr.mxu0 0.0
    %2111 = vmatpush1.msra.mxu0 0.0
    %2112 = vmatprep.subr.mxu0 0.0
    %2113 = vmatpush1.msra.mxu0 0.0
    %2114 = vmatprep.subr.mxu0 0.0
    %2115 = vmatpush1.msra.mxu0 0.0
    %2116 = vmatprep.subr.mxu0 0.0
    %2117 = vmatpush1.msra.mxu0 0.0
    %2118 = vmatprep.subr.mxu0 0.0
    %2119 = vmatpush1.msra.mxu0 0.0
    %2120 = vmatprep.subr.mxu0 0.0
    %2121 = vmatpush1.msra.mxu0 0.0
    %2122 = vmatprep.subr.mxu0 0.0
    %2123 = vmatpush1.msra.mxu0 %v2090
    %2124 = vmatprep.subr.mxu0 0.0
    %2125 = vmatpush2.msra.mxu0 0.0
    %2126 = vmatprep.subr.mxu0 0.0
    %2127 = vmatpush2.msra.mxu0 0.0
    %2128 = vmatprep.subr.mxu0 0.0
    %2129 = vmatpush2.msra.mxu0 0.0
    %2130 = vmatprep.subr.mxu0 0.0
    %2131 = vmatpush2.msra.mxu0 0.0
    %2132 = vmatprep.subr.mxu0 0.0
    %2133 = vmatpush2.msra.mxu0 0.0
    %2134 = vmatprep.subr.mxu0 0.0
    %2135 = vmatpush2.msra.mxu0 0.0
    %2136 = vmatprep.subr.mxu0 0.0
    %2137 = vmatpush2.msra.mxu0 0.0
    %2138 = vmatprep.subr.mxu0 0.0
    %2139 = vmatpush2.msra.mxu0 0.0
    %2140 = vmatprep.subr.mxu0 0.0
    %2141 = vmatpush2.msra.mxu0 0.0
    %2142 = vmatprep.subr.mxu0 0.0
    %2143 = vmatpush2.msra.mxu0 0.0
    %2144 = vmatprep.subr.mxu0 0.0
    %2145 = vmatpush2.msra.mxu0 0.0
    %2146 = vmatprep.subr.mxu0 0.0
    %2147 = vmatpush2.msra.mxu0 0.0
    %2148 = vmatprep.subr.mxu0 0.0
    %2149 = vmatpush2.msra.mxu0 0.0
    %2150 = vmatprep.subr.mxu0 0.0
    %2151 = vmatpush2.msra.mxu0 0.0
    %2152 = vmatprep.subr.mxu0 0.0
    %2153 = vmatpush2.msra.mxu0 0.0
    %2154 = vmatprep.subr.mxu0 0.0
    %2155 = vmatpush2.msra.mxu0 0.0
    %2156 = vmatprep.mubr.f32.mxu0 0.0
    %2157 = vmatmul.mubr.f32.gmra.mxu0 %v2088
    %v2158 = vpop.f32.mrf.mxu0
    %v2159 = vadd.f32 0.0, %v2158
    %v2160 = vpop.f32.mrf.mxu0
    %2161 = vdwg.mxu0
    %2162 = vrot.lane.b32.xlu0 %v700, 116
    %v2163 = vpop.permute.xlu0 %2162
    %v2164 = vsel %vm725, %v2163, 0
    %v2166 = vsel %vm435, %v2085, 0
    %2168 = vmatprep.subr.mxu0 0.0
    %2169 = vmatpush1.msra.mxu0 0.0
    %2170 = vmatprep.subr.mxu0 0.0
    %2171 = vmatpush1.msra.mxu0 0.0
    %2172 = vmatprep.subr.mxu0 0.0
    %2173 = vmatpush1.msra.mxu0 0.0
    %2174 = vmatprep.subr.mxu0 0.0
    %2175 = vmatpush1.msra.mxu0 0.0
    %2176 = vmatprep.subr.mxu0 0.0
    %2177 = vmatpush1.msra.mxu0 0.0
    %2178 = vmatprep.subr.mxu0 0.0
    %2179 = vmatpush1.msra.mxu0 0.0
    %2180 = vmatprep.subr.mxu0 0.0
    %2181 = vmatpush1.msra.mxu0 0.0
    %2182 = vmatprep.subr.mxu0 0.0
    %2183 = vmatpush1.msra.mxu0 0.0
    %2184 = vmatprep.subr.mxu0 0.0
    %2185 = vmatpush1.msra.mxu0 0.0
    %2186 = vmatprep.subr.mxu0 0.0
    %2187 = vmatpush1.msra.mxu0 0.0
    %2188 = vmatprep.subr.mxu0 0.0
    %2189 = vmatpush1.msra.mxu0 0.0
    %2190 = vmatprep.subr.mxu0 0.0
    %2191 = vmatpush1.msra.mxu0 0.0
    %2192 = vmatprep.subr.mxu0 0.0
    %2193 = vmatpush1.msra.mxu0 0.0
    %2194 = vmatprep.subr.mxu0 0.0
    %2195 = vmatpush1.msra.mxu0 0.0
    %2196 = vmatprep.subr.mxu0 0.0
    %2197 = vmatpush1.msra.mxu0 0.0
    %2198 = vmatprep.subr.mxu0 0.0
    %2199 = vmatpush1.msra.mxu0 %v2166
    %2200 = vmatprep.subr.mxu0 0.0
    %2201 = vmatpush2.msra.mxu0 0.0
    %2202 = vmatprep.subr.mxu0 0.0
    %2203 = vmatpush2.msra.mxu0 0.0
    %2204 = vmatprep.subr.mxu0 0.0
    %2205 = vmatpush2.msra.mxu0 0.0
    %2206 = vmatprep.subr.mxu0 0.0
    %2207 = vmatpush2.msra.mxu0 0.0
    %2208 = vmatprep.subr.mxu0 0.0
    %2209 = vmatpush2.msra.mxu0 0.0
    %2210 = vmatprep.subr.mxu0 0.0
    %2211 = vmatpush2.msra.mxu0 0.0
    %2212 = vmatprep.subr.mxu0 0.0
    %2213 = vmatpush2.msra.mxu0 0.0
    %2214 = vmatprep.subr.mxu0 0.0
    %2215 = vmatpush2.msra.mxu0 0.0
    %2216 = vmatprep.subr.mxu0 0.0
    %2217 = vmatpush2.msra.mxu0 0.0
    %2218 = vmatprep.subr.mxu0 0.0
    %2219 = vmatpush2.msra.mxu0 0.0
    %2220 = vmatprep.subr.mxu0 0.0
    %2221 = vmatpush2.msra.mxu0 0.0
    %2222 = vmatprep.subr.mxu0 0.0
    %2223 = vmatpush2.msra.mxu0 0.0
    %2224 = vmatprep.subr.mxu0 0.0
    %2225 = vmatpush2.msra.mxu0 0.0
    %2226 = vmatprep.subr.mxu0 0.0
    %2227 = vmatpush2.msra.mxu0 0.0
    %2228 = vmatprep.subr.mxu0 0.0
    %2229 = vmatpush2.msra.mxu0 0.0
    %2230 = vmatprep.subr.mxu0 0.0
    %2231 = vmatpush2.msra.mxu0 0.0
    %2232 = vmatprep.mubr.f32.mxu0 0.0
    %2233 = vmatmul.mubr.f32.gmra.mxu0 %v2164
    %v2234 = vpop.f32.mrf.mxu0
    %v2235 = vadd.f32 %v2159, %v2234
    %v2236 = vpop.f32.mrf.mxu0
    %2237 = vdwg.mxu0
    %v2239 = vsel %vm874, %v2235, 0
    %2241 = vmatprep.subr.mxu0 0.0
    %2242 = vmatpush1.msra.mxu0 0.0
    %2243 = vmatprep.subr.mxu0 0.0
    %2244 = vmatpush1.msra.mxu0 0.0
    %2245 = vmatprep.subr.mxu0 0.0
    %2246 = vmatpush1.msra.mxu0 0.0
    %2247 = vmatprep.subr.mxu0 0.0
    %2248 = vmatpush1.msra.mxu0 0.0
    %2249 = vmatprep.subr.mxu0 0.0
    %2250 = vmatpush1.msra.mxu0 0.0
    %2251 = vmatprep.subr.mxu0 0.0
    %2252 = vmatpush1.msra.mxu0 0.0
    %2253 = vmatprep.subr.mxu0 0.0
    %2254 = vmatpush1.msra.mxu0 0.0
    %2255 = vmatprep.subr.mxu0 0.0
    %2256 = vmatpush1.msra.mxu0 0.0
    %2257 = vmatprep.subr.mxu0 0.0
    %2258 = vmatpush1.msra.mxu0 0.0
    %2259 = vmatprep.subr.mxu0 0.0
    %2260 = vmatpush1.msra.mxu0 0.0
    %2261 = vmatprep.subr.mxu0 0.0
    %2262 = vmatpush1.msra.mxu0 0.0
    %2263 = vmatprep.subr.mxu0 0.0
    %2264 = vmatpush1.msra.mxu0 0.0
    %2265 = vmatprep.subr.mxu0 0.0
    %2266 = vmatpush1.msra.mxu0 0.0
    %2267 = vmatprep.subr.mxu0 0.0
    %2268 = vmatpush1.msra.mxu0 0.0
    %2269 = vmatprep.subr.mxu0 0.0
    %2270 = vmatpush1.msra.mxu0 0.0
    %2271 = vmatprep.subr.mxu0 0.0
    %2272 = vmatpush1.msra.mxu0 %v880
    %2273 = vmatprep.subr.mxu0 0.0
    %2274 = vmatpush2.msra.mxu0 0.0
    %2275 = vmatprep.subr.mxu0 0.0
    %2276 = vmatpush2.msra.mxu0 0.0
    %2277 = vmatprep.subr.mxu0 0.0
    %2278 = vmatpush2.msra.mxu0 0.0
    %2279 = vmatprep.subr.mxu0 0.0
    %2280 = vmatpush2.msra.mxu0 0.0
    %2281 = vmatprep.subr.mxu0 0.0
    %2282 = vmatpush2.msra.mxu0 0.0
    %2283 = vmatprep.subr.mxu0 0.0
    %2284 = vmatpush2.msra.mxu0 0.0
    %2285 = vmatprep.subr.mxu0 0.0
    %2286 = vmatpush2.msra.mxu0 0.0
    %2287 = vmatprep.subr.mxu0 0.0
    %2288 = vmatpush2.msra.mxu0 0.0
    %2289 = vmatprep.subr.mxu0 0.0
    %2290 = vmatpush2.msra.mxu0 0.0
    %2291 = vmatprep.subr.mxu0 0.0
    %2292 = vmatpush2.msra.mxu0 0.0
    %2293 = vmatprep.subr.mxu0 0.0
    %2294 = vmatpush2.msra.mxu0 0.0
    %2295 = vmatprep.subr.mxu0 0.0
    %2296 = vmatpush2.msra.mxu0 0.0
    %2297 = vmatprep.subr.mxu0 0.0
    %2298 = vmatpush2.msra.mxu0 0.0
    %2299 = vmatprep.subr.mxu0 0.0
    %2300 = vmatpush2.msra.mxu0 0.0
    %2301 = vmatprep.subr.mxu0 0.0
    %2302 = vmatpush2.msra.mxu0 0.0
    %2303 = vmatprep.subr.mxu0 0.0
    %2304 = vmatpush2.msra.mxu0 0.0
    %2305 = vmatprep.mubr.f32.mxu0 0.0
    %2306 = vmatmul.mubr.f32.gmra.mxu0 %v2239
    %v2307 = vpop.f32.mrf.mxu0
    %v2308 = vadd.f32 0.0, %v2307
    %v2309 = vpop.f32.mrf.mxu0
    %2310 = vdwg.mxu0
    %2311 = vmatprep.subr.mxu0 0.0
    %2312 = vmatpush1.msra.mxu0 0.0
    %2313 = vmatprep.subr.mxu0 0.0
    %2314 = vmatpush1.msra.mxu0 0.0
    %2315 = vmatprep.subr.mxu0 0.0
    %2316 = vmatpush1.msra.mxu0 0.0
    %2317 = vmatprep.subr.mxu0 0.0
    %2318 = vmatpush1.msra.mxu0 0.0
    %2319 = vmatprep.subr.mxu0 0.0
    %2320 = vmatpush1.msra.mxu0 0.0
    %2321 = vmatprep.subr.mxu0 0.0
    %2322 = vmatpush1.msra.mxu0 0.0
    %2323 = vmatprep.subr.mxu0 0.0
    %2324 = vmatpush1.msra.mxu0 0.0
    %2325 = vmatprep.subr.mxu0 0.0
    %2326 = vmatpush1.msra.mxu0 0.0
    %2327 = vmatprep.subr.mxu0 0.0
    %2328 = vmatpush1.msra.mxu0 0.0
    %2329 = vmatprep.subr.mxu0 0.0
    %2330 = vmatpush1.msra.mxu0 0.0
    %2331 = vmatprep.subr.mxu0 0.0
    %2332 = vmatpush1.msra.mxu0 0.0
    %2333 = vmatprep.subr.mxu0 0.0
    %2334 = vmatpush1.msra.mxu0 0.0
    %2335 = vmatprep.subr.mxu0 0.0
    %2336 = vmatpush1.msra.mxu0 0.0
    %2337 = vmatprep.subr.mxu0 0.0
    %2338 = vmatpush1.msra.mxu0 0.0
    %2339 = vmatprep.subr.mxu0 0.0
    %2340 = vmatpush1.msra.mxu0 0.0
    %2341 = vmatprep.subr.mxu0 0.0
    %2342 = vmatpush1.msra.mxu0 %v956
    %2343 = vmatprep.subr.mxu0 0.0
    %2344 = vmatpush2.msra.mxu0 0.0
    %2345 = vmatprep.subr.mxu0 0.0
    %2346 = vmatpush2.msra.mxu0 0.0
    %2347 = vmatprep.subr.mxu0 0.0
    %2348 = vmatpush2.msra.mxu0 0.0
    %2349 = vmatprep.subr.mxu0 0.0
    %2350 = vmatpush2.msra.mxu0 0.0
    %2351 = vmatprep.subr.mxu0 0.0
    %2352 = vmatpush2.msra.mxu0 0.0
    %2353 = vmatprep.subr.mxu0 0.0
    %2354 = vmatpush2.msra.mxu0 0.0
    %2355 = vmatprep.subr.mxu0 0.0
    %2356 = vmatpush2.msra.mxu0 0.0
    %2357 = vmatprep.subr.mxu0 0.0
    %2358 = vmatpush2.msra.mxu0 0.0
    %2359 = vmatprep.subr.mxu0 0.0
    %2360 = vmatpush2.msra.mxu0 0.0
    %2361 = vmatprep.subr.mxu0 0.0
    %2362 = vmatpush2.msra.mxu0 0.0
    %2363 = vmatprep.subr.mxu0 0.0
    %2364 = vmatpush2.msra.mxu0 0.0
    %2365 = vmatprep.subr.mxu0 0.0
    %2366 = vmatpush2.msra.mxu0 0.0
    %2367 = vmatprep.subr.mxu0 0.0
    %2368 = vmatpush2.msra.mxu0 0.0
    %2369 = vmatprep.subr.mxu0 0.0
    %2370 = vmatpush2.msra.mxu0 0.0
    %2371 = vmatprep.subr.mxu0 0.0
    %2372 = vmatpush2.msra.mxu0 0.0
    %2373 = vmatprep.subr.mxu0 0.0
    %2374 = vmatpush2.msra.mxu0 0.0
    %2375 = vmatprep.mubr.f32.mxu0 0.0
    %2376 = vmatmul.mubr.f32.gmra.mxu0 %v2239
    %v2377 = vpop.f32.mrf.mxu0
    %v2378 = vadd.f32 0.0, %v2377
    %v2379 = vpop.f32.mrf.mxu0
    %2380 = vdwg.mxu0
    %v2381 = vrot.slane %v515, 4
    %2382 = vrot.lane.b32.xlu0 %v2381, 123
    %v2383 = vpop.permute.xlu0 %2382
    %v2384 = vsel %vm874, %v2383, 0
    %v2387 = vsel %vm878, %v2378, 0
    %2389 = vmatprep.subr.mxu0 0.0
    %2390 = vmatpush1.msra.mxu0 0.0
    %2391 = vmatprep.subr.mxu0 0.0
    %2392 = vmatpush1.msra.mxu0 0.0
    %2393 = vmatprep.subr.mxu0 0.0
    %2394 = vmatpush1.msra.mxu0 0.0
    %2395 = vmatprep.subr.mxu0 0.0
    %2396 = vmatpush1.msra.mxu0 0.0
    %2397 = vmatprep.subr.mxu0 0.0
    %2398 = vmatpush1.msra.mxu0 0.0
    %2399 = vmatprep.subr.mxu0 0.0
    %2400 = vmatpush1.msra.mxu0 0.0
    %2401 = vmatprep.subr.mxu0 0.0
    %2402 = vmatpush1.msra.mxu0 0.0
    %2403 = vmatprep.subr.mxu0 0.0
    %2404 = vmatpush1.msra.mxu0 0.0
    %2405 = vmatprep.subr.mxu0 0.0
    %2406 = vmatpush1.msra.mxu0 0.0
    %2407 = vmatprep.subr.mxu0 0.0
    %2408 = vmatpush1.msra.mxu0 0.0
    %2409 = vmatprep.subr.mxu0 0.0
    %2410 = vmatpush1.msra.mxu0 0.0
    %2411 = vmatprep.subr.mxu0 0.0
    %2412 = vmatpush1.msra.mxu0 0.0
    %2413 = vmatprep.subr.mxu0 0.0
    %2414 = vmatpush1.msra.mxu0 0.0
    %2415 = vmatprep.subr.mxu0 0.0
    %2416 = vmatpush1.msra.mxu0 0.0
    %2417 = vmatprep.subr.mxu0 0.0
    %2418 = vmatpush1.msra.mxu0 0.0
    %2419 = vmatprep.subr.mxu0 0.0
    %2420 = vmatpush1.msra.mxu0 %v2387
    %2421 = vmatprep.subr.mxu0 0.0
    %2422 = vmatpush2.msra.mxu0 0.0
    %2423 = vmatprep.subr.mxu0 0.0
    %2424 = vmatpush2.msra.mxu0 0.0
    %2425 = vmatprep.subr.mxu0 0.0
    %2426 = vmatpush2.msra.mxu0 0.0
    %2427 = vmatprep.subr.mxu0 0.0
    %2428 = vmatpush2.msra.mxu0 0.0
    %2429 = vmatprep.subr.mxu0 0.0
    %2430 = vmatpush2.msra.mxu0 0.0
    %2431 = vmatprep.subr.mxu0 0.0
    %2432 = vmatpush2.msra.mxu0 0.0
    %2433 = vmatprep.subr.mxu0 0.0
    %2434 = vmatpush2.msra.mxu0 0.0
    %2435 = vmatprep.subr.mxu0 0.0
    %2436 = vmatpush2.msra.mxu0 0.0
    %2437 = vmatprep.subr.mxu0 0.0
    %2438 = vmatpush2.msra.mxu0 0.0
    %2439 = vmatprep.subr.mxu0 0.0
    %2440 = vmatpush2.msra.mxu0 0.0
    %2441 = vmatprep.subr.mxu0 0.0
    %2442 = vmatpush2.msra.mxu0 0.0
    %2443 = vmatprep.subr.mxu0 0.0
    %2444 = vmatpush2.msra.mxu0 0.0
    %2445 = vmatprep.subr.mxu0 0.0
    %2446 = vmatpush2.msra.mxu0 0.0
    %2447 = vmatprep.subr.mxu0 0.0
    %2448 = vmatpush2.msra.mxu0 0.0
    %2449 = vmatprep.subr.mxu0 0.0
    %2450 = vmatpush2.msra.mxu0 0.0
    %2451 = vmatprep.subr.mxu0 0.0
    %2452 = vmatpush2.msra.mxu0 0.0
    %2453 = vmatprep.mubr.f32.mxu0 0.0
    %2454 = vmatmul.mubr.f32.gmra.mxu0 %v2384
    %v2455 = vpop.f32.mrf.mxu0
    %v2456 = vadd.f32 0.0, %v2455
    %v2457 = vpop.f32.mrf.mxu0
    %2458 = vdwg.mxu0
    %v2459 = vsel %vm874, %v2381, 0
    %v2462 = vsel %vm878, %v2308, 0
    %2464 = vmatprep.subr.mxu0 0.0
    %2465 = vmatpush1.msra.mxu0 0.0
    %2466 = vmatprep.subr.mxu0 0.0
    %2467 = vmatpush1.msra.mxu0 0.0
    %2468 = vmatprep.subr.mxu0 0.0
    %2469 = vmatpush1.msra.mxu0 0.0
    %2470 = vmatprep.subr.mxu0 0.0
    %2471 = vmatpush1.msra.mxu0 0.0
    %2472 = vmatprep.subr.mxu0 0.0
    %2473 = vmatpush1.msra.mxu0 0.0
    %2474 = vmatprep.subr.mxu0 0.0
    %2475 = vmatpush1.msra.mxu0 0.0
    %2476 = vmatprep.subr.mxu0 0.0
    %2477 = vmatpush1.msra.mxu0 0.0
    %2478 = vmatprep.subr.mxu0 0.0
    %2479 = vmatpush1.msra.mxu0 0.0
    %2480 = vmatprep.subr.mxu0 0.0
    %2481 = vmatpush1.msra.mxu0 0.0
    %2482 = vmatprep.subr.mxu0 0.0
    %2483 = vmatpush1.msra.mxu0 0.0
    %2484 = vmatprep.subr.mxu0 0.0
    %2485 = vmatpush1.msra.mxu0 0.0
    %2486 = vmatprep.subr.mxu0 0.0
    %2487 = vmatpush1.msra.mxu0 0.0
    %2488 = vmatprep.subr.mxu0 0.0
    %2489 = vmatpush1.msra.mxu0 0.0
    %2490 = vmatprep.subr.mxu0 0.0
    %2491 = vmatpush1.msra.mxu0 0.0
    %2492 = vmatprep.subr.mxu0 0.0
    %2493 = vmatpush1.msra.mxu0 0.0
    %2494 = vmatprep.subr.mxu0 0.0
    %2495 = vmatpush1.msra.mxu0 %v2462
    %2496 = vmatprep.subr.mxu0 0.0
    %2497 = vmatpush2.msra.mxu0 0.0
    %2498 = vmatprep.subr.mxu0 0.0
    %2499 = vmatpush2.msra.mxu0 0.0
    %2500 = vmatprep.subr.mxu0 0.0
    %2501 = vmatpush2.msra.mxu0 0.0
    %2502 = vmatprep.subr.mxu0 0.0
    %2503 = vmatpush2.msra.mxu0 0.0
    %2504 = vmatprep.subr.mxu0 0.0
    %2505 = vmatpush2.msra.mxu0 0.0
    %2506 = vmatprep.subr.mxu0 0.0
    %2507 = vmatpush2.msra.mxu0 0.0
    %2508 = vmatprep.subr.mxu0 0.0
    %2509 = vmatpush2.msra.mxu0 0.0
    %2510 = vmatprep.subr.mxu0 0.0
    %2511 = vmatpush2.msra.mxu0 0.0
    %2512 = vmatprep.subr.mxu0 0.0
    %2513 = vmatpush2.msra.mxu0 0.0
    %2514 = vmatprep.subr.mxu0 0.0
    %2515 = vmatpush2.msra.mxu0 0.0
    %2516 = vmatprep.subr.mxu0 0.0
    %2517 = vmatpush2.msra.mxu0 0.0
    %2518 = vmatprep.subr.mxu0 0.0
    %2519 = vmatpush2.msra.mxu0 0.0
    %2520 = vmatprep.subr.mxu0 0.0
    %2521 = vmatpush2.msra.mxu0 0.0
    %2522 = vmatprep.subr.mxu0 0.0
    %2523 = vmatpush2.msra.mxu0 0.0
    %2524 = vmatprep.subr.mxu0 0.0
    %2525 = vmatpush2.msra.mxu0 0.0
    %2526 = vmatprep.subr.mxu0 0.0
    %2527 = vmatpush2.msra.mxu0 0.0
    %2528 = vmatprep.mubr.f32.mxu0 0.0
    %2529 = vmatmul.mubr.f32.gmra.mxu0 %v2459
    %v2530 = vpop.f32.mrf.mxu0
    %v2531 = vadd.f32 %v2456, %v2530
    %v2532 = vpop.f32.mrf.mxu0
    %2533 = vdwg.mxu0
    %v2535 = vrot.slane %v1629, 4
    %v2538 = vrot.slane %v2531, 4
    %v2540 = vsel %vm435, %v1178, %v2535
    %v2541 = vsel %vm435, %v2080, %v2538
    %v2543 = vlaneseq
    %v2544 = vshrl.u32 %v2543, 7
    %v2545 = vsub.s32 0, %v2544
    %v2546 = vrot.slane %v114, %v2545
    %v2548 = vadd.f32 %v2540, %v2546
    %v2549 = vadd.f32 %v2541, %v2546
    %v2550 = vadd.f32 %v94, %v2548
    %v2551 = vadd.f32 %v95, %v2549
    %v2552 = vsel %vm428, %v2550, 0.0
    %2553 = vadd.xlane.f32.xlu0 %v2552
    %v2554 = vpop.xlane.xlu0 %2553
    %v2555 = vrot.slane %v2554, 4
    %v2556 = vadd.f32 %v2554, %v2555
    %v2557 = vrot.slane %v2556, 2
    %v2558 = vadd.f32 %v2556, %v2557
    %v2559 = vrot.slane %v2558, 1
    %v2560 = vadd.f32 %v2558, %v2559
    %s2561 = vtos %v2560
    %v2562 = vrcp.pop 160.0
    %s2563 = vtos %v2562
    %s2564 = smul.f32 %s2561, %s2563
    %v2565 = vstv %s2564
    %v2566 = vsub.f32 %v2550, %v2565
    %v2567 = vmul.f32 %v2566, %v2566
    %v2568 = vsel %vm428, %v2567, 0.0
    %2569 = vadd.xlane.f32.xlu0 %v2568
    %v2570 = vpop.xlane.xlu0 %2569
    %v2571 = vrot.slane %v2570, 4
    %v2572 = vadd.f32 %v2570, %v2571
    %v2573 = vrot.slane %v2572, 2
    %v2574 = vadd.f32 %v2572, %v2573
    %v2575 = vrot.slane %v2574, 1
    %v2576 = vadd.f32 %v2574, %v2575
    %s2577 = vtos %v2576
    %v2578 = vrcp.pop 160.0
    %s2579 = vtos %v2578
    %s2580 = smul.f32 %s2577, %s2579
    %s2581 = sadd.f32 %s2580, 1e-05
    %v2582 = vstv %s2581
    %v2583 = vrsqrt.pop %v2582
    %s2584 = vtos %v2583
    %v2585 = vstv %s2584
    %v2586 = vmul.f32 %v2566, %v2585
    %v2587 = vsel %vm428, %v2551, 0.0
    %2588 = vadd.xlane.f32.xlu0 %v2587
    %v2589 = vpop.xlane.xlu0 %2588
    %v2590 = vrot.slane %v2589, 4
    %v2591 = vadd.f32 %v2589, %v2590
    %v2592 = vrot.slane %v2591, 2
    %v2593 = vadd.f32 %v2591, %v2592
    %v2594 = vrot.slane %v2593, 1
    %v2595 = vadd.f32 %v2593, %v2594
    %s2596 = vtos %v2595
    %v2597 = vrcp.pop 160.0
    %s2598 = vtos %v2597
    %s2599 = smul.f32 %s2596, %s2598
    %v2600 = vstv %s2599
    %v2601 = vsub.f32 %v2551, %v2600
    %v2602 = vmul.f32 %v2601, %v2601
    %v2603 = vsel %vm428, %v2602, 0.0
    %2604 = vadd.xlane.f32.xlu0 %v2603
    %v2605 = vpop.xlane.xlu0 %2604
    %v2606 = vrot.slane %v2605, 4
    %v2607 = vadd.f32 %v2605, %v2606
    %v2608 = vrot.slane %v2607, 2
    %v2609 = vadd.f32 %v2607, %v2608
    %v2610 = vrot.slane %v2609, 1
    %v2611 = vadd.f32 %v2609, %v2610
    %s2612 = vtos %v2611
    %v2613 = vrcp.pop 160.0
    %s2614 = vtos %v2613
    %s2615 = smul.f32 %s2612, %s2614
    %s2616 = sadd.f32 %s2615, 1e-05
    %v2617 = vstv %s2616
    %v2618 = vrsqrt.pop %v2617
    %s2619 = vtos %v2618
    %v2620 = vstv %s2619
    %v2621 = vmul.f32 %v2601, %v2620
    %v2624 = vlaneseq
    %v2625 = vshrl.u32 %v2624, 7
    %v2626 = vsub.s32 0, %v2625
    %v2627 = vrot.slane %v163, %v2626
    %v2628 = vlaneseq
    %v2629 = vshrl.u32 %v2628, 7
    %v2630 = vsub.s32 1, %v2629
    %v2631 = vrot.slane %v163, %v2630
    %v2632 = vlaneseq
    %v2633 = vshrl.u32 %v2632, 7
    %v2634 = vsub.s32 2, %v2633
    %v2635 = vrot.slane %v163, %v2634
    %v2636 = vlaneseq
    %v2637 = vshrl.u32 %v2636, 7
    %v2638 = vsub.s32 3, %v2637
    %v2639 = vrot.slane %v163, %v2638
    %v2640 = vlaneseq
    %v2641 = vshrl.u32 %v2640, 7
    %v2642 = vsub.s32 4, %v2641
    %v2643 = vrot.slane %v163, %v2642
    %v2644 = vlaneseq
    %v2645 = vshrl.u32 %v2644, 7
    %v2646 = vsub.s32 5, %v2645
    %v2647 = vrot.slane %v163, %v2646
    %v2648 = vlaneseq
    %v2649 = vshrl.u32 %v2648, 7
    %v2650 = vsub.s32 6, %v2649
    %v2651 = vrot.slane %v163, %v2650
    %v2652 = vlaneseq
    %v2653 = vshrl.u32 %v2652, 7
    %v2654 = vsub.s32 7, %v2653
    %v2655 = vrot.slane %v163, %v2654
    %v2656 = vlaneseq
    %v2657 = vshrl.u32 %v2656, 7
    %v2658 = vsub.s32 0, %v2657
    %v2659 = vrot.slane %v164, %v2658
    %v2660 = vlaneseq
    %v2661 = vshrl.u32 %v2660, 7
    %v2662 = vsub.s32 1, %v2661
    %v2663 = vrot.slane %v164, %v2662
    %v2664 = vlaneseq
    %v2665 = vshrl.u32 %v2664, 7
    %v2666 = vsub.s32 2, %v2665
    %v2667 = vrot.slane %v164, %v2666
    %v2668 = vlaneseq
    %v2669 = vshrl.u32 %v2668, 7
    %v2670 = vsub.s32 3, %v2669
    %v2671 = vrot.slane %v164, %v2670
    %v2672 = vlaneseq
    %v2673 = vshrl.u32 %v2672, 7
    %v2674 = vsub.s32 4, %v2673
    %v2675 = vrot.slane %v164, %v2674
    %v2676 = vlaneseq
    %v2677 = vshrl.u32 %v2676, 7
    %v2678 = vsub.s32 5, %v2677
    %v2679 = vrot.slane %v164, %v2678
    %v2680 = vlaneseq
    %v2681 = vshrl.u32 %v2680, 7
    %v2682 = vsub.s32 6, %v2681
    %v2683 = vrot.slane %v164, %v2682
    %v2684 = vlaneseq
    %v2685 = vshrl.u32 %v2684, 7
    %v2686 = vsub.s32 7, %v2685
    %v2687 = vrot.slane %v164, %v2686
    %v2705 = vsel %vm428, %v2586, 0
    %v2708 = vsel %vm428, %v2621, 0
    %v2711 = vsel %vm435, %v147, 0
    %v2714 = vsel %vm435, %v148, 0
    %v2717 = vsel %vm435, %v149, 0
    %v2720 = vsel %vm435, %v150, 0
    %v2723 = vsel %vm435, %v151, 0
    %v2726 = vsel %vm435, %v152, 0
    %v2729 = vsel %vm435, %v153, 0
    %v2732 = vsel %vm435, %v154, 0
    %v2735 = vsel %vm435, %v155, 0
    %v2738 = vsel %vm435, %v156, 0
    %v2741 = vsel %vm435, %v157, 0
    %v2744 = vsel %vm435, %v158, 0
    %v2747 = vsel %vm435, %v159, 0
    %v2750 = vsel %vm435, %v160, 0
    %v2753 = vsel %vm435, %v161, 0
    %v2756 = vsel %vm435, %v162, 0
    %2758 = vmatprep.subr.mxu0 0.0
    %2759 = vmatpush1.msra.mxu0 0.0
    %2760 = vmatprep.subr.mxu0 0.0
    %2761 = vmatpush1.msra.mxu0 0.0
    %2762 = vmatprep.subr.mxu0 0.0
    %2763 = vmatpush1.msra.mxu0 0.0
    %2764 = vmatprep.subr.mxu0 0.0
    %2765 = vmatpush1.msra.mxu0 0.0
    %2766 = vmatprep.subr.mxu0 0.0
    %2767 = vmatpush1.msra.mxu0 0.0
    %2768 = vmatprep.subr.mxu0 0.0
    %2769 = vmatpush1.msra.mxu0 0.0
    %2770 = vmatprep.subr.mxu0 0.0
    %2771 = vmatpush1.msra.mxu0 0.0
    %2772 = vmatprep.subr.mxu0 0.0
    %2773 = vmatpush1.msra.mxu0 0.0
    %2774 = vmatprep.subr.mxu0 0.0
    %2775 = vmatpush1.msra.mxu0 0.0
    %2776 = vmatprep.subr.mxu0 0.0
    %2777 = vmatpush1.msra.mxu0 0.0
    %2778 = vmatprep.subr.mxu0 0.0
    %2779 = vmatpush1.msra.mxu0 0.0
    %2780 = vmatprep.subr.mxu0 0.0
    %2781 = vmatpush1.msra.mxu0 0.0
    %2782 = vmatprep.subr.mxu0 0.0
    %2783 = vmatpush1.msra.mxu0 0.0
    %2784 = vmatprep.subr.mxu0 %v2714
    %2785 = vmatpush1.msra.mxu0 %v2711
    %2786 = vmatprep.subr.mxu0 %v132
    %2787 = vmatpush1.msra.mxu0 %v131
    %2788 = vmatprep.subr.mxu0 %v116
    %2789 = vmatpush1.msra.mxu0 %v115
    %2790 = vmatprep.subr.mxu0 0.0
    %2791 = vmatpush2.msra.mxu0 0.0
    %2792 = vmatprep.subr.mxu0 0.0
    %2793 = vmatpush2.msra.mxu0 0.0
    %2794 = vmatprep.subr.mxu0 0.0
    %2795 = vmatpush2.msra.mxu0 0.0
    %2796 = vmatprep.subr.mxu0 0.0
    %2797 = vmatpush2.msra.mxu0 0.0
    %2798 = vmatprep.subr.mxu0 0.0
    %2799 = vmatpush2.msra.mxu0 0.0
    %2800 = vmatprep.subr.mxu0 0.0
    %2801 = vmatpush2.msra.mxu0 0.0
    %2802 = vmatprep.subr.mxu0 0.0
    %2803 = vmatpush2.msra.mxu0 0.0
    %2804 = vmatprep.subr.mxu0 0.0
    %2805 = vmatpush2.msra.mxu0 0.0
    %2806 = vmatprep.subr.mxu0 0.0
    %2807 = vmatpush2.msra.mxu0 0.0
    %2808 = vmatprep.subr.mxu0 0.0
    %2809 = vmatpush2.msra.mxu0 0.0
    %2810 = vmatprep.subr.mxu0 0.0
    %2811 = vmatpush2.msra.mxu0 0.0
    %2812 = vmatprep.subr.mxu0 0.0
    %2813 = vmatpush2.msra.mxu0 0.0
    %2814 = vmatprep.subr.mxu0 0.0
    %2815 = vmatpush2.msra.mxu0 0.0
    %2816 = vmatprep.subr.mxu0 0.0
    %2817 = vmatpush2.msra.mxu0 0.0
    %2818 = vmatprep.subr.mxu0 0.0
    %2819 = vmatpush2.msra.mxu0 0.0
    %2820 = vmatprep.subr.mxu0 0.0
    %2821 = vmatpush2.msra.mxu0 0.0
    %2822 = vmatprep.mubr.f32.mxu0 0.0
    %2823 = vmatmul.mubr.f32.gmra.mxu0 %v2705
    %v2824 = vpop.f32.mrf.mxu0
    %v2825 = vadd.f32 %v2627, %v2824
    %v2826 = vpop.f32.mrf.mxu0
    %v2827 = vadd.f32 %v2631, %v2826
    %2828 = vmatprep.mubr.f32.mxu0 0.0
    %2829 = vmatmul.mubr.f32.gmra.mxu0 %v2708
    %v2830 = vpop.f32.mrf.mxu0
    %v2831 = vadd.f32 %v2627, %v2830
    %v2832 = vpop.f32.mrf.mxu0
    %v2833 = vadd.f32 %v2631, %v2832
    %2834 = vdwg.mxu0
    %2835 = vmatprep.subr.mxu0 0.0
    %2836 = vmatpush1.msra.mxu0 0.0
    %2837 = vmatprep.subr.mxu0 0.0
    %2838 = vmatpush1.msra.mxu0 0.0
    %2839 = vmatprep.subr.mxu0 0.0
    %2840 = vmatpush1.msra.mxu0 0.0
    %2841 = vmatprep.subr.mxu0 0.0
    %2842 = vmatpush1.msra.mxu0 0.0
    %2843 = vmatprep.subr.mxu0 0.0
    %2844 = vmatpush1.msra.mxu0 0.0
    %2845 = vmatprep.subr.mxu0 0.0
    %2846 = vmatpush1.msra.mxu0 0.0
    %2847 = vmatprep.subr.mxu0 0.0
    %2848 = vmatpush1.msra.mxu0 0.0
    %2849 = vmatprep.subr.mxu0 0.0
    %2850 = vmatpush1.msra.mxu0 0.0
    %2851 = vmatprep.subr.mxu0 0.0
    %2852 = vmatpush1.msra.mxu0 0.0
    %2853 = vmatprep.subr.mxu0 0.0
    %2854 = vmatpush1.msra.mxu0 0.0
    %2855 = vmatprep.subr.mxu0 0.0
    %2856 = vmatpush1.msra.mxu0 0.0
    %2857 = vmatprep.subr.mxu0 0.0
    %2858 = vmatpush1.msra.mxu0 0.0
    %2859 = vmatprep.subr.mxu0 0.0
    %2860 = vmatpush1.msra.mxu0 0.0
    %2861 = vmatprep.subr.mxu0 %v2720
    %2862 = vmatpush1.msra.mxu0 %v2717
    %2863 = vmatprep.subr.mxu0 %v134
    %2864 = vmatpush1.msra.mxu0 %v133
    %2865 = vmatprep.subr.mxu0 %v118
    %2866 = vmatpush1.msra.mxu0 %v117
    %2867 = vmatprep.subr.mxu0 0.0
    %2868 = vmatpush2.msra.mxu0 0.0
    %2869 = vmatprep.subr.mxu0 0.0
    %2870 = vmatpush2.msra.mxu0 0.0
    %2871 = vmatprep.subr.mxu0 0.0
    %2872 = vmatpush2.msra.mxu0 0.0
    %2873 = vmatprep.subr.mxu0 0.0
    %2874 = vmatpush2.msra.mxu0 0.0
    %2875 = vmatprep.subr.mxu0 0.0
    %2876 = vmatpush2.msra.mxu0 0.0
    %2877 = vmatprep.subr.mxu0 0.0
    %2878 = vmatpush2.msra.mxu0 0.0
    %2879 = vmatprep.subr.mxu0 0.0
    %2880 = vmatpush2.msra.mxu0 0.0
    %2881 = vmatprep.subr.mxu0 0.0
    %2882 = vmatpush2.msra.mxu0 0.0
    %2883 = vmatprep.subr.mxu0 0.0
    %2884 = vmatpush2.msra.mxu0 0.0
    %2885 = vmatprep.subr.mxu0 0.0
    %2886 = vmatpush2.msra.mxu0 0.0
    %2887 = vmatprep.subr.mxu0 0.0
    %2888 = vmatpush2.msra.mxu0 0.0
    %2889 = vmatprep.subr.mxu0 0.0
    %2890 = vmatpush2.msra.mxu0 0.0
    %2891 = vmatprep.subr.mxu0 0.0
    %2892 = vmatpush2.msra.mxu0 0.0
    %2893 = vmatprep.subr.mxu0 0.0
    %2894 = vmatpush2.msra.mxu0 0.0
    %2895 = vmatprep.subr.mxu0 0.0
    %2896 = vmatpush2.msra.mxu0 0.0
    %2897 = vmatprep.subr.mxu0 0.0
    %2898 = vmatpush2.msra.mxu0 0.0
    %2899 = vmatprep.mubr.f32.mxu0 0.0
    %2900 = vmatmul.mubr.f32.gmra.mxu0 %v2705
    %v2901 = vpop.f32.mrf.mxu0
    %v2902 = vadd.f32 %v2635, %v2901
    %v2903 = vpop.f32.mrf.mxu0
    %v2904 = vadd.f32 %v2639, %v2903
    %2905 = vmatprep.mubr.f32.mxu0 0.0
    %2906 = vmatmul.mubr.f32.gmra.mxu0 %v2708
    %v2907 = vpop.f32.mrf.mxu0
    %v2908 = vadd.f32 %v2635, %v2907
    %v2909 = vpop.f32.mrf.mxu0
    %v2910 = vadd.f32 %v2639, %v2909
    %2911 = vdwg.mxu0
    %2912 = vmatprep.subr.mxu0 0.0
    %2913 = vmatpush1.msra.mxu0 0.0
    %2914 = vmatprep.subr.mxu0 0.0
    %2915 = vmatpush1.msra.mxu0 0.0
    %2916 = vmatprep.subr.mxu0 0.0
    %2917 = vmatpush1.msra.mxu0 0.0
    %2918 = vmatprep.subr.mxu0 0.0
    %2919 = vmatpush1.msra.mxu0 0.0
    %2920 = vmatprep.subr.mxu0 0.0
    %2921 = vmatpush1.msra.mxu0 0.0
    %2922 = vmatprep.subr.mxu0 0.0
    %2923 = vmatpush1.msra.mxu0 0.0
    %2924 = vmatprep.subr.mxu0 0.0
    %2925 = vmatpush1.msra.mxu0 0.0
    %2926 = vmatprep.subr.mxu0 0.0
    %2927 = vmatpush1.msra.mxu0 0.0
    %2928 = vmatprep.subr.mxu0 0.0
    %2929 = vmatpush1.msra.mxu0 0.0
    %2930 = vmatprep.subr.mxu0 0.0
    %2931 = vmatpush1.msra.mxu0 0.0
    %2932 = vmatprep.subr.mxu0 0.0
    %2933 = vmatpush1.msra.mxu0 0.0
    %2934 = vmatprep.subr.mxu0 0.0
    %2935 = vmatpush1.msra.mxu0 0.0
    %2936 = vmatprep.subr.mxu0 0.0
    %2937 = vmatpush1.msra.mxu0 0.0
    %2938 = vmatprep.subr.mxu0 %v2726
    %2939 = vmatpush1.msra.mxu0 %v2723
    %2940 = vmatprep.subr.mxu0 %v136
    %2941 = vmatpush1.msra.mxu0 %v135
    %2942 = vmatprep.subr.mxu0 %v120
    %2943 = vmatpush1.msra.mxu0 %v119
    %2944 = vmatprep.subr.mxu0 0.0
    %2945 = vmatpush2.msra.mxu0 0.0
    %2946 = vmatprep.subr.mxu0 0.0
    %2947 = vmatpush2.msra.mxu0 0.0
    %2948 = vmatprep.subr.mxu0 0.0
    %2949 = vmatpush2.msra.mxu0 0.0
    %2950 = vmatprep.subr.mxu0 0.0
    %2951 = vmatpush2.msra.mxu0 0.0
    %2952 = vmatprep.subr.mxu0 0.0
    %2953 = vmatpush2.msra.mxu0 0.0
    %2954 = vmatprep.subr.mxu0 0.0
    %2955 = vmatpush2.msra.mxu0 0.0
    %2956 = vmatprep.subr.mxu0 0.0
    %2957 = vmatpush2.msra.mxu0 0.0
    %2958 = vmatprep.subr.mxu0 0.0
    %2959 = vmatpush2.msra.mxu0 0.0
    %2960 = vmatprep.subr.mxu0 0.0
    %2961 = vmatpush2.msra.mxu0 0.0
    %2962 = vmatprep.subr.mxu0 0.0
    %2963 = vmatpush2.msra.mxu0 0.0
    %2964 = vmatprep.subr.mxu0 0.0
    %2965 = vmatpush2.msra.mxu0 0.0
    %2966 = vmatprep.subr.mxu0 0.0
    %2967 = vmatpush2.msra.mxu0 0.0
    %2968 = vmatprep.subr.mxu0 0.0
    %2969 = vmatpush2.msra.mxu0 0.0
    %2970 = vmatprep.subr.mxu0 0.0
    %2971 = vmatpush2.msra.mxu0 0.0
    %2972 = vmatprep.subr.mxu0 0.0
    %2973 = vmatpush2.msra.mxu0 0.0
    %2974 = vmatprep.subr.mxu0 0.0
    %2975 = vmatpush2.msra.mxu0 0.0
    %2976 = vmatprep.mubr.f32.mxu0 0.0
    %2977 = vmatmul.mubr.f32.gmra.mxu0 %v2705
    %v2978 = vpop.f32.mrf.mxu0
    %v2979 = vadd.f32 %v2643, %v2978
    %v2980 = vpop.f32.mrf.mxu0
    %v2981 = vadd.f32 %v2647, %v2980
    %2982 = vmatprep.mubr.f32.mxu0 0.0
    %2983 = vmatmul.mubr.f32.gmra.mxu0 %v2708
    %v2984 = vpop.f32.mrf.mxu0
    %v2985 = vadd.f32 %v2643, %v2984
    %v2986 = vpop.f32.mrf.mxu0
    %v2987 = vadd.f32 %v2647, %v2986
    %2988 = vdwg.mxu0
    %2989 = vmatprep.subr.mxu0 0.0
    %2990 = vmatpush1.msra.mxu0 0.0
    %2991 = vmatprep.subr.mxu0 0.0
    %2992 = vmatpush1.msra.mxu0 0.0
    %2993 = vmatprep.subr.mxu0 0.0
    %2994 = vmatpush1.msra.mxu0 0.0
    %2995 = vmatprep.subr.mxu0 0.0
    %2996 = vmatpush1.msra.mxu0 0.0
    %2997 = vmatprep.subr.mxu0 0.0
    %2998 = vmatpush1.msra.mxu0 0.0
    %2999 = vmatprep.subr.mxu0 0.0
    %3000 = vmatpush1.msra.mxu0 0.0
    %3001 = vmatprep.subr.mxu0 0.0
    %3002 = vmatpush1.msra.mxu0 0.0
    %3003 = vmatprep.subr.mxu0 0.0
    %3004 = vmatpush1.msra.mxu0 0.0
    %3005 = vmatprep.subr.mxu0 0.0
    %3006 = vmatpush1.msra.mxu0 0.0
    %3007 = vmatprep.subr.mxu0 0.0
    %3008 = vmatpush1.msra.mxu0 0.0
    %3009 = vmatprep.subr.mxu0 0.0
    %3010 = vmatpush1.msra.mxu0 0.0
    %3011 = vmatprep.subr.mxu0 0.0
    %3012 = vmatpush1.msra.mxu0 0.0
    %3013 = vmatprep.subr.mxu0 0.0
    %3014 = vmatpush1.msra.mxu0 0.0
    %3015 = vmatprep.subr.mxu0 %v2732
    %3016 = vmatpush1.msra.mxu0 %v2729
    %3017 = vmatprep.subr.mxu0 %v138
    %3018 = vmatpush1.msra.mxu0 %v137
    %3019 = vmatprep.subr.mxu0 %v122
    %3020 = vmatpush1.msra.mxu0 %v121
    %3021 = vmatprep.subr.mxu0 0.0
    %3022 = vmatpush2.msra.mxu0 0.0
    %3023 = vmatprep.subr.mxu0 0.0
    %3024 = vmatpush2.msra.mxu0 0.0
    %3025 = vmatprep.subr.mxu0 0.0
    %3026 = vmatpush2.msra.mxu0 0.0
    %3027 = vmatprep.subr.mxu0 0.0
    %3028 = vmatpush2.msra.mxu0 0.0
    %3029 = vmatprep.subr.mxu0 0.0
    %3030 = vmatpush2.msra.mxu0 0.0
    %3031 = vmatprep.subr.mxu0 0.0
    %3032 = vmatpush2.msra.mxu0 0.0
    %3033 = vmatprep.subr.mxu0 0.0
    %3034 = vmatpush2.msra.mxu0 0.0
    %3035 = vmatprep.subr.mxu0 0.0
    %3036 = vmatpush2.msra.mxu0 0.0
    %3037 = vmatprep.subr.mxu0 0.0
    %3038 = vmatpush2.msra.mxu0 0.0
    %3039 = vmatprep.subr.mxu0 0.0
    %3040 = vmatpush2.msra.mxu0 0.0
    %3041 = vmatprep.subr.mxu0 0.0
    %3042 = vmatpush2.msra.mxu0 0.0
    %3043 = vmatprep.subr.mxu0 0.0
    %3044 = vmatpush2.msra.mxu0 0.0
    %3045 = vmatprep.subr.mxu0 0.0
    %3046 = vmatpush2.msra.mxu0 0.0
    %3047 = vmatprep.subr.mxu0 0.0
    %3048 = vmatpush2.msra.mxu0 0.0
    %3049 = vmatprep.subr.mxu0 0.0
    %3050 = vmatpush2.msra.mxu0 0.0
    %3051 = vmatprep.subr.mxu0 0.0
    %3052 = vmatpush2.msra.mxu0 0.0
    %3053 = vmatprep.mubr.f32.mxu0 0.0
    %3054 = vmatmul.mubr.f32.gmra.mxu0 %v2705
    %v3055 = vpop.f32.mrf.mxu0
    %v3056 = vadd.f32 %v2651, %v3055
    %v3057 = vpop.f32.mrf.mxu0
    %v3058 = vadd.f32 %v2655, %v3057
    %3059 = vmatprep.mubr.f32.mxu0 0.0
    %3060 = vmatmul.mubr.f32.gmra.mxu0 %v2708
    %v3061 = vpop.f32.mrf.mxu0
    %v3062 = vadd.f32 %v2651, %v3061
    %v3063 = vpop.f32.mrf.mxu0
    %v3064 = vadd.f32 %v2655, %v3063
    %3065 = vdwg.mxu0
    %3066 = vmatprep.subr.mxu0 0.0
    %3067 = vmatpush1.msra.mxu0 0.0
    %3068 = vmatprep.subr.mxu0 0.0
    %3069 = vmatpush1.msra.mxu0 0.0
    %3070 = vmatprep.subr.mxu0 0.0
    %3071 = vmatpush1.msra.mxu0 0.0
    %3072 = vmatprep.subr.mxu0 0.0
    %3073 = vmatpush1.msra.mxu0 0.0
    %3074 = vmatprep.subr.mxu0 0.0
    %3075 = vmatpush1.msra.mxu0 0.0
    %3076 = vmatprep.subr.mxu0 0.0
    %3077 = vmatpush1.msra.mxu0 0.0
    %3078 = vmatprep.subr.mxu0 0.0
    %3079 = vmatpush1.msra.mxu0 0.0
    %3080 = vmatprep.subr.mxu0 0.0
    %3081 = vmatpush1.msra.mxu0 0.0
    %3082 = vmatprep.subr.mxu0 0.0
    %3083 = vmatpush1.msra.mxu0 0.0
    %3084 = vmatprep.subr.mxu0 0.0
    %3085 = vmatpush1.msra.mxu0 0.0
    %3086 = vmatprep.subr.mxu0 0.0
    %3087 = vmatpush1.msra.mxu0 0.0
    %3088 = vmatprep.subr.mxu0 0.0
    %3089 = vmatpush1.msra.mxu0 0.0
    %3090 = vmatprep.subr.mxu0 0.0
    %3091 = vmatpush1.msra.mxu0 0.0
    %3092 = vmatprep.subr.mxu0 %v2738
    %3093 = vmatpush1.msra.mxu0 %v2735
    %3094 = vmatprep.subr.mxu0 %v140
    %3095 = vmatpush1.msra.mxu0 %v139
    %3096 = vmatprep.subr.mxu0 %v124
    %3097 = vmatpush1.msra.mxu0 %v123
    %3098 = vmatprep.subr.mxu0 0.0
    %3099 = vmatpush2.msra.mxu0 0.0
    %3100 = vmatprep.subr.mxu0 0.0
    %3101 = vmatpush2.msra.mxu0 0.0
    %3102 = vmatprep.subr.mxu0 0.0
    %3103 = vmatpush2.msra.mxu0 0.0
    %3104 = vmatprep.subr.mxu0 0.0
    %3105 = vmatpush2.msra.mxu0 0.0
    %3106 = vmatprep.subr.mxu0 0.0
    %3107 = vmatpush2.msra.mxu0 0.0
    %3108 = vmatprep.subr.mxu0 0.0
    %3109 = vmatpush2.msra.mxu0 0.0
    %3110 = vmatprep.subr.mxu0 0.0
    %3111 = vmatpush2.msra.mxu0 0.0
    %3112 = vmatprep.subr.mxu0 0.0
    %3113 = vmatpush2.msra.mxu0 0.0
    %3114 = vmatprep.subr.mxu0 0.0
    %3115 = vmatpush2.msra.mxu0 0.0
    %3116 = vmatprep.subr.mxu0 0.0
    %3117 = vmatpush2.msra.mxu0 0.0
    %3118 = vmatprep.subr.mxu0 0.0
    %3119 = vmatpush2.msra.mxu0 0.0
    %3120 = vmatprep.subr.mxu0 0.0
    %3121 = vmatpush2.msra.mxu0 0.0
    %3122 = vmatprep.subr.mxu0 0.0
    %3123 = vmatpush2.msra.mxu0 0.0
    %3124 = vmatprep.subr.mxu0 0.0
    %3125 = vmatpush2.msra.mxu0 0.0
    %3126 = vmatprep.subr.mxu0 0.0
    %3127 = vmatpush2.msra.mxu0 0.0
    %3128 = vmatprep.subr.mxu0 0.0
    %3129 = vmatpush2.msra.mxu0 0.0
    %3130 = vmatprep.mubr.f32.mxu0 0.0
    %3131 = vmatmul.mubr.f32.gmra.mxu0 %v2705
    %v3132 = vpop.f32.mrf.mxu0
    %v3133 = vadd.f32 %v2659, %v3132
    %v3134 = vpop.f32.mrf.mxu0
    %v3135 = vadd.f32 %v2663, %v3134
    %3136 = vmatprep.mubr.f32.mxu0 0.0
    %3137 = vmatmul.mubr.f32.gmra.mxu0 %v2708
    %v3138 = vpop.f32.mrf.mxu0
    %v3139 = vadd.f32 %v2659, %v3138
    %v3140 = vpop.f32.mrf.mxu0
    %v3141 = vadd.f32 %v2663, %v3140
    %3142 = vdwg.mxu0
    %3143 = vmatprep.subr.mxu0 0.0
    %3144 = vmatpush1.msra.mxu0 0.0
    %3145 = vmatprep.subr.mxu0 0.0
    %3146 = vmatpush1.msra.mxu0 0.0
    %3147 = vmatprep.subr.mxu0 0.0
    %3148 = vmatpush1.msra.mxu0 0.0
    %3149 = vmatprep.subr.mxu0 0.0
    %3150 = vmatpush1.msra.mxu0 0.0
    %3151 = vmatprep.subr.mxu0 0.0
    %3152 = vmatpush1.msra.mxu0 0.0
    %3153 = vmatprep.subr.mxu0 0.0
    %3154 = vmatpush1.msra.mxu0 0.0
    %3155 = vmatprep.subr.mxu0 0.0
    %3156 = vmatpush1.msra.mxu0 0.0
    %3157 = vmatprep.subr.mxu0 0.0
    %3158 = vmatpush1.msra.mxu0 0.0
    %3159 = vmatprep.subr.mxu0 0.0
    %3160 = vmatpush1.msra.mxu0 0.0
    %3161 = vmatprep.subr.mxu0 0.0
    %3162 = vmatpush1.msra.mxu0 0.0
    %3163 = vmatprep.subr.mxu0 0.0
    %3164 = vmatpush1.msra.mxu0 0.0
    %3165 = vmatprep.subr.mxu0 0.0
    %3166 = vmatpush1.msra.mxu0 0.0
    %3167 = vmatprep.subr.mxu0 0.0
    %3168 = vmatpush1.msra.mxu0 0.0
    %3169 = vmatprep.subr.mxu0 %v2744
    %3170 = vmatpush1.msra.mxu0 %v2741
    %3171 = vmatprep.subr.mxu0 %v142
    %3172 = vmatpush1.msra.mxu0 %v141
    %3173 = vmatprep.subr.mxu0 %v126
    %3174 = vmatpush1.msra.mxu0 %v125
    %3175 = vmatprep.subr.mxu0 0.0
    %3176 = vmatpush2.msra.mxu0 0.0
    %3177 = vmatprep.subr.mxu0 0.0
    %3178 = vmatpush2.msra.mxu0 0.0
    %3179 = vmatprep.subr.mxu0 0.0
    %3180 = vmatpush2.msra.mxu0 0.0
    %3181 = vmatprep.subr.mxu0 0.0
    %3182 = vmatpush2.msra.mxu0 0.0
    %3183 = vmatprep.subr.mxu0 0.0
    %3184 = vmatpush2.msra.mxu0 0.0
    %3185 = vmatprep.subr.mxu0 0.0
    %3186 = vmatpush2.msra.mxu0 0.0
    %3187 = vmatprep.subr.mxu0 0.0
    %3188 = vmatpush2.msra.mxu0 0.0
    %3189 = vmatprep.subr.mxu0 0.0
    %3190 = vmatpush2.msra.mxu0 0.0
    %3191 = vmatprep.subr.mxu0 0.0
    %3192 = vmatpush2.msra.mxu0 0.0
    %3193 = vmatprep.subr.mxu0 0.0
    %3194 = vmatpush2.msra.mxu0 0.0
    %3195 = vmatprep.subr.mxu0 0.0
    %3196 = vmatpush2.msra.mxu0 0.0
    %3197 = vmatprep.subr.mxu0 0.0
    %3198 = vmatpush2.msra.mxu0 0.0
    %3199 = vmatprep.subr.mxu0 0.0
    %3200 = vmatpush2.msra.mxu0 0.0
    %3201 = vmatprep.subr.mxu0 0.0
    %3202 = vmatpush2.msra.mxu0 0.0
    %3203 = vmatprep.subr.mxu0 0.0
    %3204 = vmatpush2.msra.mxu0 0.0
    %3205 = vmatprep.subr.mxu0 0.0
    %3206 = vmatpush2.msra.mxu0 0.0
    %3207 = vmatprep.mubr.f32.mxu0 0.0
    %3208 = vmatmul.mubr.f32.gmra.mxu0 %v2705
    %v3209 = vpop.f32.mrf.mxu0
    %v3210 = vadd.f32 %v2667, %v3209
    %v3211 = vpop.f32.mrf.mxu0
    %v3212 = vadd.f32 %v2671, %v3211
    %3213 = vmatprep.mubr.f32.mxu0 0.0
    %3214 = vmatmul.mubr.f32.gmra.mxu0 %v2708
    %v3215 = vpop.f32.mrf.mxu0
    %v3216 = vadd.f32 %v2667, %v3215
    %v3217 = vpop.f32.mrf.mxu0
    %v3218 = vadd.f32 %v2671, %v3217
    %3219 = vdwg.mxu0
    %3220 = vmatprep.subr.mxu0 0.0
    %3221 = vmatpush1.msra.mxu0 0.0
    %3222 = vmatprep.subr.mxu0 0.0
    %3223 = vmatpush1.msra.mxu0 0.0
    %3224 = vmatprep.subr.mxu0 0.0
    %3225 = vmatpush1.msra.mxu0 0.0
    %3226 = vmatprep.subr.mxu0 0.0
    %3227 = vmatpush1.msra.mxu0 0.0
    %3228 = vmatprep.subr.mxu0 0.0
    %3229 = vmatpush1.msra.mxu0 0.0
    %3230 = vmatprep.subr.mxu0 0.0
    %3231 = vmatpush1.msra.mxu0 0.0
    %3232 = vmatprep.subr.mxu0 0.0
    %3233 = vmatpush1.msra.mxu0 0.0
    %3234 = vmatprep.subr.mxu0 0.0
    %3235 = vmatpush1.msra.mxu0 0.0
    %3236 = vmatprep.subr.mxu0 0.0
    %3237 = vmatpush1.msra.mxu0 0.0
    %3238 = vmatprep.subr.mxu0 0.0
    %3239 = vmatpush1.msra.mxu0 0.0
    %3240 = vmatprep.subr.mxu0 0.0
    %3241 = vmatpush1.msra.mxu0 0.0
    %3242 = vmatprep.subr.mxu0 0.0
    %3243 = vmatpush1.msra.mxu0 0.0
    %3244 = vmatprep.subr.mxu0 0.0
    %3245 = vmatpush1.msra.mxu0 0.0
    %3246 = vmatprep.subr.mxu0 %v2750
    %3247 = vmatpush1.msra.mxu0 %v2747
    %3248 = vmatprep.subr.mxu0 %v144
    %3249 = vmatpush1.msra.mxu0 %v143
    %3250 = vmatprep.subr.mxu0 %v128
    %3251 = vmatpush1.msra.mxu0 %v127
    %3252 = vmatprep.subr.mxu0 0.0
    %3253 = vmatpush2.msra.mxu0 0.0
    %3254 = vmatprep.subr.mxu0 0.0
    %3255 = vmatpush2.msra.mxu0 0.0
    %3256 = vmatprep.subr.mxu0 0.0
    %3257 = vmatpush2.msra.mxu0 0.0
    %3258 = vmatprep.subr.mxu0 0.0
    %3259 = vmatpush2.msra.mxu0 0.0
    %3260 = vmatprep.subr.mxu0 0.0
    %3261 = vmatpush2.msra.mxu0 0.0
    %3262 = vmatprep.subr.mxu0 0.0
    %3263 = vmatpush2.msra.mxu0 0.0
    %3264 = vmatprep.subr.mxu0 0.0
    %3265 = vmatpush2.msra.mxu0 0.0
    %3266 = vmatprep.subr.mxu0 0.0
    %3267 = vmatpush2.msra.mxu0 0.0
    %3268 = vmatprep.subr.mxu0 0.0
    %3269 = vmatpush2.msra.mxu0 0.0
    %3270 = vmatprep.subr.mxu0 0.0
    %3271 = vmatpush2.msra.mxu0 0.0
    %3272 = vmatprep.subr.mxu0 0.0
    %3273 = vmatpush2.msra.mxu0 0.0
    %3274 = vmatprep.subr.mxu0 0.0
    %3275 = vmatpush2.msra.mxu0 0.0
    %3276 = vmatprep.subr.mxu0 0.0
    %3277 = vmatpush2.msra.mxu0 0.0
    %3278 = vmatprep.subr.mxu0 0.0
    %3279 = vmatpush2.msra.mxu0 0.0
    %3280 = vmatprep.subr.mxu0 0.0
    %3281 = vmatpush2.msra.mxu0 0.0
    %3282 = vmatprep.subr.mxu0 0.0
    %3283 = vmatpush2.msra.mxu0 0.0
    %3284 = vmatprep.mubr.f32.mxu0 0.0
    %3285 = vmatmul.mubr.f32.gmra.mxu0 %v2705
    %v3286 = vpop.f32.mrf.mxu0
    %v3287 = vadd.f32 %v2675, %v3286
    %v3288 = vpop.f32.mrf.mxu0
    %v3289 = vadd.f32 %v2679, %v3288
    %3290 = vmatprep.mubr.f32.mxu0 0.0
    %3291 = vmatmul.mubr.f32.gmra.mxu0 %v2708
    %v3292 = vpop.f32.mrf.mxu0
    %v3293 = vadd.f32 %v2675, %v3292
    %v3294 = vpop.f32.mrf.mxu0
    %v3295 = vadd.f32 %v2679, %v3294
    %3296 = vdwg.mxu0
    %3297 = vmatprep.subr.mxu0 0.0
    %3298 = vmatpush1.msra.mxu0 0.0
    %3299 = vmatprep.subr.mxu0 0.0
    %3300 = vmatpush1.msra.mxu0 0.0
    %3301 = vmatprep.subr.mxu0 0.0
    %3302 = vmatpush1.msra.mxu0 0.0
    %3303 = vmatprep.subr.mxu0 0.0
    %3304 = vmatpush1.msra.mxu0 0.0
    %3305 = vmatprep.subr.mxu0 0.0
    %3306 = vmatpush1.msra.mxu0 0.0
    %3307 = vmatprep.subr.mxu0 0.0
    %3308 = vmatpush1.msra.mxu0 0.0
    %3309 = vmatprep.subr.mxu0 0.0
    %3310 = vmatpush1.msra.mxu0 0.0
    %3311 = vmatprep.subr.mxu0 0.0
    %3312 = vmatpush1.msra.mxu0 0.0
    %3313 = vmatprep.subr.mxu0 0.0
    %3314 = vmatpush1.msra.mxu0 0.0
    %3315 = vmatprep.subr.mxu0 0.0
    %3316 = vmatpush1.msra.mxu0 0.0
    %3317 = vmatprep.subr.mxu0 0.0
    %3318 = vmatpush1.msra.mxu0 0.0
    %3319 = vmatprep.subr.mxu0 0.0
    %3320 = vmatpush1.msra.mxu0 0.0
    %3321 = vmatprep.subr.mxu0 0.0
    %3322 = vmatpush1.msra.mxu0 0.0
    %3323 = vmatprep.subr.mxu0 %v2756
    %3324 = vmatpush1.msra.mxu0 %v2753
    %3325 = vmatprep.subr.mxu0 %v146
    %3326 = vmatpush1.msra.mxu0 %v145
    %3327 = vmatprep.subr.mxu0 %v130
    %3328 = vmatpush1.msra.mxu0 %v129
    %3329 = vmatprep.subr.mxu0 0.0
    %3330 = vmatpush2.msra.mxu0 0.0
    %3331 = vmatprep.subr.mxu0 0.0
    %3332 = vmatpush2.msra.mxu0 0.0
    %3333 = vmatprep.subr.mxu0 0.0
    %3334 = vmatpush2.msra.mxu0 0.0
    %3335 = vmatprep.subr.mxu0 0.0
    %3336 = vmatpush2.msra.mxu0 0.0
    %3337 = vmatprep.subr.mxu0 0.0
    %3338 = vmatpush2.msra.mxu0 0.0
    %3339 = vmatprep.subr.mxu0 0.0
    %3340 = vmatpush2.msra.mxu0 0.0
    %3341 = vmatprep.subr.mxu0 0.0
    %3342 = vmatpush2.msra.mxu0 0.0
    %3343 = vmatprep.subr.mxu0 0.0
    %3344 = vmatpush2.msra.mxu0 0.0
    %3345 = vmatprep.subr.mxu0 0.0
    %3346 = vmatpush2.msra.mxu0 0.0
    %3347 = vmatprep.subr.mxu0 0.0
    %3348 = vmatpush2.msra.mxu0 0.0
    %3349 = vmatprep.subr.mxu0 0.0
    %3350 = vmatpush2.msra.mxu0 0.0
    %3351 = vmatprep.subr.mxu0 0.0
    %3352 = vmatpush2.msra.mxu0 0.0
    %3353 = vmatprep.subr.mxu0 0.0
    %3354 = vmatpush2.msra.mxu0 0.0
    %3355 = vmatprep.subr.mxu0 0.0
    %3356 = vmatpush2.msra.mxu0 0.0
    %3357 = vmatprep.subr.mxu0 0.0
    %3358 = vmatpush2.msra.mxu0 0.0
    %3359 = vmatprep.subr.mxu0 0.0
    %3360 = vmatpush2.msra.mxu0 0.0
    %3361 = vmatprep.mubr.f32.mxu0 0.0
    %3362 = vmatmul.mubr.f32.gmra.mxu0 %v2705
    %v3363 = vpop.f32.mrf.mxu0
    %v3364 = vadd.f32 %v2683, %v3363
    %v3365 = vpop.f32.mrf.mxu0
    %v3366 = vadd.f32 %v2687, %v3365
    %3367 = vmatprep.mubr.f32.mxu0 0.0
    %3368 = vmatmul.mubr.f32.gmra.mxu0 %v2708
    %v3369 = vpop.f32.mrf.mxu0
    %v3370 = vadd.f32 %v2683, %v3369
    %v3371 = vpop.f32.mrf.mxu0
    %v3372 = vadd.f32 %v2687, %v3371
    %3373 = vdwg.mxu0
    %v3374 = vmax.f32 %v2825, 0.0
    %v3375 = vmax.f32 %v2827, 0.0
    %v3376 = vmax.f32 %v2902, 0.0
    %v3377 = vmax.f32 %v2904, 0.0
    %v3378 = vmax.f32 %v2979, 0.0
    %v3379 = vmax.f32 %v2981, 0.0
    %v3380 = vmax.f32 %v3056, 0.0
    %v3381 = vmax.f32 %v3058, 0.0
    %v3382 = vmax.f32 %v3133, 0.0
    %v3383 = vmax.f32 %v3135, 0.0
    %v3384 = vmax.f32 %v3210, 0.0
    %v3385 = vmax.f32 %v3212, 0.0
    %v3386 = vmax.f32 %v3287, 0.0
    %v3387 = vmax.f32 %v3289, 0.0
    %v3388 = vmax.f32 %v3364, 0.0
    %v3389 = vmax.f32 %v3366, 0.0
    %v3390 = vmax.f32 %v2831, 0.0
    %v3391 = vmax.f32 %v2833, 0.0
    %v3392 = vmax.f32 %v2908, 0.0
    %v3393 = vmax.f32 %v2910, 0.0
    %v3394 = vmax.f32 %v2985, 0.0
    %v3395 = vmax.f32 %v2987, 0.0
    %v3396 = vmax.f32 %v3062, 0.0
    %v3397 = vmax.f32 %v3064, 0.0
    %v3398 = vmax.f32 %v3139, 0.0
    %v3399 = vmax.f32 %v3141, 0.0
    %v3400 = vmax.f32 %v3216, 0.0
    %v3401 = vmax.f32 %v3218, 0.0
    %v3402 = vmax.f32 %v3293, 0.0
    %v3403 = vmax.f32 %v3295, 0.0
    %v3404 = vmax.f32 %v3370, 0.0
    %v3405 = vmax.f32 %v3372, 0.0
    %v3407 = vlaneseq
    %v3408 = vshrl.u32 %v3407, 7
    %v3409 = vsub.s32 0, %v3408
    %v3410 = vrot.slane %v421, %v3409
    %3412 = vmatprep.subr.mxu0 0.0
    %3413 = vmatpush1.msra.mxu0 %v180
    %3414 = vmatprep.subr.mxu0 0.0
    %3415 = vmatpush1.msra.mxu0 %v179
    %3416 = vmatprep.subr.mxu0 0.0
    %3417 = vmatpush1.msra.mxu0 %v178
    %3418 = vmatprep.subr.mxu0 0.0
    %3419 = vmatpush1.msra.mxu0 %v177
    %3420 = vmatprep.subr.mxu0 0.0
    %3421 = vmatpush1.msra.mxu0 %v176
    %3422 = vmatprep.subr.mxu0 0.0
    %3423 = vmatpush1.msra.mxu0 %v175
    %3424 = vmatprep.subr.mxu0 0.0
    %3425 = vmatpush1.msra.mxu0 %v174
    %3426 = vmatprep.subr.mxu0 0.0
    %3427 = vmatpush1.msra.mxu0 %v173
    %3428 = vmatprep.subr.mxu0 0.0
    %3429 = vmatpush1.msra.mxu0 %v172
    %3430 = vmatprep.subr.mxu0 0.0
    %3431 = vmatpush1.msra.mxu0 %v171
    %3432 = vmatprep.subr.mxu0 0.0
    %3433 = vmatpush1.msra.mxu0 %v170
    %3434 = vmatprep.subr.mxu0 0.0
    %3435 = vmatpush1.msra.mxu0 %v169
    %3436 = vmatprep.subr.mxu0 0.0
    %3437 = vmatpush1.msra.mxu0 %v168
    %3438 = vmatprep.subr.mxu0 0.0
    %3439 = vmatpush1.msra.mxu0 %v167
    %3440 = vmatprep.subr.mxu0 0.0
    %3441 = vmatpush1.msra.mxu0 %v166
    %3442 = vmatprep.subr.mxu0 0.0
    %3443 = vmatpush1.msra.mxu0 %v165
    %3444 = vmatprep.subr.mxu0 0.0
    %3445 = vmatpush2.msra.mxu0 %v196
    %3446 = vmatprep.subr.mxu0 0.0
    %3447 = vmatpush2.msra.mxu0 %v195
    %3448 = vmatprep.subr.mxu0 0.0
    %3449 = vmatpush2.msra.mxu0 %v194
    %3450 = vmatprep.subr.mxu0 0.0
    %3451 = vmatpush2.msra.mxu0 %v193
    %3452 = vmatprep.subr.mxu0 0.0
    %3453 = vmatpush2.msra.mxu0 %v192
    %3454 = vmatprep.subr.mxu0 0.0
    %3455 = vmatpush2.msra.mxu0 %v191
    %3456 = vmatprep.subr.mxu0 0.0
    %3457 = vmatpush2.msra.mxu0 %v190
    %3458 = vmatprep.subr.mxu0 0.0
    %3459 = vmatpush2.msra.mxu0 %v189
    %3460 = vmatprep.subr.mxu0 0.0
    %3461 = vmatpush2.msra.mxu0 %v188
    %3462 = vmatprep.subr.mxu0 0.0
    %3463 = vmatpush2.msra.mxu0 %v187
    %3464 = vmatprep.subr.mxu0 0.0
    %3465 = vmatpush2.msra.mxu0 %v186
    %3466 = vmatprep.subr.mxu0 0.0
    %3467 = vmatpush2.msra.mxu0 %v185
    %3468 = vmatprep.subr.mxu0 0.0
    %3469 = vmatpush2.msra.mxu0 %v184
    %3470 = vmatprep.subr.mxu0 0.0
    %3471 = vmatpush2.msra.mxu0 %v183
    %3472 = vmatprep.subr.mxu0 0.0
    %3473 = vmatpush2.msra.mxu0 %v182
    %3474 = vmatprep.subr.mxu0 0.0
    %3475 = vmatpush2.msra.mxu0 %v181
    %3476 = vmatprep.mubr.f32.mxu0 %v3375
    %3477 = vmatmul.mubr.f32.gmra.mxu0 %v3374
    %v3478 = vpop.f32.mrf.mxu0
    %v3479 = vadd.f32 %v3410, %v3478
    %v3480 = vpop.f32.mrf.mxu0
    %3481 = vmatprep.mubr.f32.mxu0 %v3391
    %3482 = vmatmul.mubr.f32.gmra.mxu0 %v3390
    %v3483 = vpop.f32.mrf.mxu0
    %v3484 = vadd.f32 %v3410, %v3483
    %v3485 = vpop.f32.mrf.mxu0
    %3486 = vdwg.mxu0
    %3487 = vmatprep.subr.mxu0 0.0
    %3488 = vmatpush1.msra.mxu0 %v212
    %3489 = vmatprep.subr.mxu0 0.0
    %3490 = vmatpush1.msra.mxu0 %v211
    %3491 = vmatprep.subr.mxu0 0.0
    %3492 = vmatpush1.msra.mxu0 %v210
    %3493 = vmatprep.subr.mxu0 0.0
    %3494 = vmatpush1.msra.mxu0 %v209
    %3495 = vmatprep.subr.mxu0 0.0
    %3496 = vmatpush1.msra.mxu0 %v208
    %3497 = vmatprep.subr.mxu0 0.0
    %3498 = vmatpush1.msra.mxu0 %v207
    %3499 = vmatprep.subr.mxu0 0.0
    %3500 = vmatpush1.msra.mxu0 %v206
    %3501 = vmatprep.subr.mxu0 0.0
    %3502 = vmatpush1.msra.mxu0 %v205
    %3503 = vmatprep.subr.mxu0 0.0
    %3504 = vmatpush1.msra.mxu0 %v204
    %3505 = vmatprep.subr.mxu0 0.0
    %3506 = vmatpush1.msra.mxu0 %v203
    %3507 = vmatprep.subr.mxu0 0.0
    %3508 = vmatpush1.msra.mxu0 %v202
    %3509 = vmatprep.subr.mxu0 0.0
    %3510 = vmatpush1.msra.mxu0 %v201
    %3511 = vmatprep.subr.mxu0 0.0
    %3512 = vmatpush1.msra.mxu0 %v200
    %3513 = vmatprep.subr.mxu0 0.0
    %3514 = vmatpush1.msra.mxu0 %v199
    %3515 = vmatprep.subr.mxu0 0.0
    %3516 = vmatpush1.msra.mxu0 %v198
    %3517 = vmatprep.subr.mxu0 0.0
    %3518 = vmatpush1.msra.mxu0 %v197
    %3519 = vmatprep.subr.mxu0 0.0
    %3520 = vmatpush2.msra.mxu0 %v228
    %3521 = vmatprep.subr.mxu0 0.0
    %3522 = vmatpush2.msra.mxu0 %v227
    %3523 = vmatprep.subr.mxu0 0.0
    %3524 = vmatpush2.msra.mxu0 %v226
    %3525 = vmatprep.subr.mxu0 0.0
    %3526 = vmatpush2.msra.mxu0 %v225
    %3527 = vmatprep.subr.mxu0 0.0
    %3528 = vmatpush2.msra.mxu0 %v224
    %3529 = vmatprep.subr.mxu0 0.0
    %3530 = vmatpush2.msra.mxu0 %v223
    %3531 = vmatprep.subr.mxu0 0.0
    %3532 = vmatpush2.msra.mxu0 %v222
    %3533 = vmatprep.subr.mxu0 0.0
    %3534 = vmatpush2.msra.mxu0 %v221
    %3535 = vmatprep.subr.mxu0 0.0
    %3536 = vmatpush2.msra.mxu0 %v220
    %3537 = vmatprep.subr.mxu0 0.0
    %3538 = vmatpush2.msra.mxu0 %v219
    %3539 = vmatprep.subr.mxu0 0.0
    %3540 = vmatpush2.msra.mxu0 %v218
    %3541 = vmatprep.subr.mxu0 0.0
    %3542 = vmatpush2.msra.mxu0 %v217
    %3543 = vmatprep.subr.mxu0 0.0
    %3544 = vmatpush2.msra.mxu0 %v216
    %3545 = vmatprep.subr.mxu0 0.0
    %3546 = vmatpush2.msra.mxu0 %v215
    %3547 = vmatprep.subr.mxu0 0.0
    %3548 = vmatpush2.msra.mxu0 %v214
    %3549 = vmatprep.subr.mxu0 0.0
    %3550 = vmatpush2.msra.mxu0 %v213
    %3551 = vmatprep.mubr.f32.mxu0 %v3377
    %3552 = vmatmul.mubr.f32.gmra.mxu0 %v3376
    %v3553 = vpop.f32.mrf.mxu0
    %v3554 = vadd.f32 %v3479, %v3553
    %v3555 = vpop.f32.mrf.mxu0
    %3556 = vmatprep.mubr.f32.mxu0 %v3393
    %3557 = vmatmul.mubr.f32.gmra.mxu0 %v3392
    %v3558 = vpop.f32.mrf.mxu0
    %v3559 = vadd.f32 %v3484, %v3558
    %v3560 = vpop.f32.mrf.mxu0
    %3561 = vdwg.mxu0
    %3562 = vmatprep.subr.mxu0 0.0
    %3563 = vmatpush1.msra.mxu0 %v244
    %3564 = vmatprep.subr.mxu0 0.0
    %3565 = vmatpush1.msra.mxu0 %v243
    %3566 = vmatprep.subr.mxu0 0.0
    %3567 = vmatpush1.msra.mxu0 %v242
    %3568 = vmatprep.subr.mxu0 0.0
    %3569 = vmatpush1.msra.mxu0 %v241
    %3570 = vmatprep.subr.mxu0 0.0
    %3571 = vmatpush1.msra.mxu0 %v240
    %3572 = vmatprep.subr.mxu0 0.0
    %3573 = vmatpush1.msra.mxu0 %v239
    %3574 = vmatprep.subr.mxu0 0.0
    %3575 = vmatpush1.msra.mxu0 %v238
    %3576 = vmatprep.subr.mxu0 0.0
    %3577 = vmatpush1.msra.mxu0 %v237
    %3578 = vmatprep.subr.mxu0 0.0
    %3579 = vmatpush1.msra.mxu0 %v236
    %3580 = vmatprep.subr.mxu0 0.0
    %3581 = vmatpush1.msra.mxu0 %v235
    %3582 = vmatprep.subr.mxu0 0.0
    %3583 = vmatpush1.msra.mxu0 %v234
    %3584 = vmatprep.subr.mxu0 0.0
    %3585 = vmatpush1.msra.mxu0 %v233
    %3586 = vmatprep.subr.mxu0 0.0
    %3587 = vmatpush1.msra.mxu0 %v232
    %3588 = vmatprep.subr.mxu0 0.0
    %3589 = vmatpush1.msra.mxu0 %v231
    %3590 = vmatprep.subr.mxu0 0.0
    %3591 = vmatpush1.msra.mxu0 %v230
    %3592 = vmatprep.subr.mxu0 0.0
    %3593 = vmatpush1.msra.mxu0 %v229
    %3594 = vmatprep.subr.mxu0 0.0
    %3595 = vmatpush2.msra.mxu0 %v260
    %3596 = vmatprep.subr.mxu0 0.0
    %3597 = vmatpush2.msra.mxu0 %v259
    %3598 = vmatprep.subr.mxu0 0.0
    %3599 = vmatpush2.msra.mxu0 %v258
    %3600 = vmatprep.subr.mxu0 0.0
    %3601 = vmatpush2.msra.mxu0 %v257
    %3602 = vmatprep.subr.mxu0 0.0
    %3603 = vmatpush2.msra.mxu0 %v256
    %3604 = vmatprep.subr.mxu0 0.0
    %3605 = vmatpush2.msra.mxu0 %v255
    %3606 = vmatprep.subr.mxu0 0.0
    %3607 = vmatpush2.msra.mxu0 %v254
    %3608 = vmatprep.subr.mxu0 0.0
    %3609 = vmatpush2.msra.mxu0 %v253
    %3610 = vmatprep.subr.mxu0 0.0
    %3611 = vmatpush2.msra.mxu0 %v252
    %3612 = vmatprep.subr.mxu0 0.0
    %3613 = vmatpush2.msra.mxu0 %v251
    %3614 = vmatprep.subr.mxu0 0.0
    %3615 = vmatpush2.msra.mxu0 %v250
    %3616 = vmatprep.subr.mxu0 0.0
    %3617 = vmatpush2.msra.mxu0 %v249
    %3618 = vmatprep.subr.mxu0 0.0
    %3619 = vmatpush2.msra.mxu0 %v248
    %3620 = vmatprep.subr.mxu0 0.0
    %3621 = vmatpush2.msra.mxu0 %v247
    %3622 = vmatprep.subr.mxu0 0.0
    %3623 = vmatpush2.msra.mxu0 %v246
    %3624 = vmatprep.subr.mxu0 0.0
    %3625 = vmatpush2.msra.mxu0 %v245
    %3626 = vmatprep.mubr.f32.mxu0 %v3379
    %3627 = vmatmul.mubr.f32.gmra.mxu0 %v3378
    %v3628 = vpop.f32.mrf.mxu0
    %v3629 = vadd.f32 %v3554, %v3628
    %v3630 = vpop.f32.mrf.mxu0
    %3631 = vmatprep.mubr.f32.mxu0 %v3395
    %3632 = vmatmul.mubr.f32.gmra.mxu0 %v3394
    %v3633 = vpop.f32.mrf.mxu0
    %v3634 = vadd.f32 %v3559, %v3633
    %v3635 = vpop.f32.mrf.mxu0
    %3636 = vdwg.mxu0
    %3637 = vmatprep.subr.mxu0 0.0
    %3638 = vmatpush1.msra.mxu0 %v276
    %3639 = vmatprep.subr.mxu0 0.0
    %3640 = vmatpush1.msra.mxu0 %v275
    %3641 = vmatprep.subr.mxu0 0.0
    %3642 = vmatpush1.msra.mxu0 %v274
    %3643 = vmatprep.subr.mxu0 0.0
    %3644 = vmatpush1.msra.mxu0 %v273
    %3645 = vmatprep.subr.mxu0 0.0
    %3646 = vmatpush1.msra.mxu0 %v272
    %3647 = vmatprep.subr.mxu0 0.0
    %3648 = vmatpush1.msra.mxu0 %v271
    %3649 = vmatprep.subr.mxu0 0.0
    %3650 = vmatpush1.msra.mxu0 %v270
    %3651 = vmatprep.subr.mxu0 0.0
    %3652 = vmatpush1.msra.mxu0 %v269
    %3653 = vmatprep.subr.mxu0 0.0
    %3654 = vmatpush1.msra.mxu0 %v268
    %3655 = vmatprep.subr.mxu0 0.0
    %3656 = vmatpush1.msra.mxu0 %v267
    %3657 = vmatprep.subr.mxu0 0.0
    %3658 = vmatpush1.msra.mxu0 %v266
    %3659 = vmatprep.subr.mxu0 0.0
    %3660 = vmatpush1.msra.mxu0 %v265
    %3661 = vmatprep.subr.mxu0 0.0
    %3662 = vmatpush1.msra.mxu0 %v264
    %3663 = vmatprep.subr.mxu0 0.0
    %3664 = vmatpush1.msra.mxu0 %v263
    %3665 = vmatprep.subr.mxu0 0.0
    %3666 = vmatpush1.msra.mxu0 %v262
    %3667 = vmatprep.subr.mxu0 0.0
    %3668 = vmatpush1.msra.mxu0 %v261
    %3669 = vmatprep.subr.mxu0 0.0
    %3670 = vmatpush2.msra.mxu0 %v292
    %3671 = vmatprep.subr.mxu0 0.0
    %3672 = vmatpush2.msra.mxu0 %v291
    %3673 = vmatprep.subr.mxu0 0.0
    %3674 = vmatpush2.msra.mxu0 %v290
    %3675 = vmatprep.subr.mxu0 0.0
    %3676 = vmatpush2.msra.mxu0 %v289
    %3677 = vmatprep.subr.mxu0 0.0
    %3678 = vmatpush2.msra.mxu0 %v288
    %3679 = vmatprep.subr.mxu0 0.0
    %3680 = vmatpush2.msra.mxu0 %v287
    %3681 = vmatprep.subr.mxu0 0.0
    %3682 = vmatpush2.msra.mxu0 %v286
    %3683 = vmatprep.subr.mxu0 0.0
    %3684 = vmatpush2.msra.mxu0 %v285
    %3685 = vmatprep.subr.mxu0 0.0
    %3686 = vmatpush2.msra.mxu0 %v284
    %3687 = vmatprep.subr.mxu0 0.0
    %3688 = vmatpush2.msra.mxu0 %v283
    %3689 = vmatprep.subr.mxu0 0.0
    %3690 = vmatpush2.msra.mxu0 %v282
    %3691 = vmatprep.subr.mxu0 0.0
    %3692 = vmatpush2.msra.mxu0 %v281
    %3693 = vmatprep.subr.mxu0 0.0
    %3694 = vmatpush2.msra.mxu0 %v280
    %3695 = vmatprep.subr.mxu0 0.0
    %3696 = vmatpush2.msra.mxu0 %v279
    %3697 = vmatprep.subr.mxu0 0.0
    %3698 = vmatpush2.msra.mxu0 %v278
    %3699 = vmatprep.subr.mxu0 0.0
    %3700 = vmatpush2.msra.mxu0 %v277
    %3701 = vmatprep.mubr.f32.mxu0 %v3381
    %3702 = vmatmul.mubr.f32.gmra.mxu0 %v3380
    %v3703 = vpop.f32.mrf.mxu0
    %v3704 = vadd.f32 %v3629, %v3703
    %v3705 = vpop.f32.mrf.mxu0
    %3706 = vmatprep.mubr.f32.mxu0 %v3397
    %3707 = vmatmul.mubr.f32.gmra.mxu0 %v3396
    %v3708 = vpop.f32.mrf.mxu0
    %v3709 = vadd.f32 %v3634, %v3708
    %v3710 = vpop.f32.mrf.mxu0
    %3711 = vdwg.mxu0
    %3712 = vmatprep.subr.mxu0 0.0
    %3713 = vmatpush1.msra.mxu0 %v308
    %3714 = vmatprep.subr.mxu0 0.0
    %3715 = vmatpush1.msra.mxu0 %v307
    %3716 = vmatprep.subr.mxu0 0.0
    %3717 = vmatpush1.msra.mxu0 %v306
    %3718 = vmatprep.subr.mxu0 0.0
    %3719 = vmatpush1.msra.mxu0 %v305
    %3720 = vmatprep.subr.mxu0 0.0
    %3721 = vmatpush1.msra.mxu0 %v304
    %3722 = vmatprep.subr.mxu0 0.0
    %3723 = vmatpush1.msra.mxu0 %v303
    %3724 = vmatprep.subr.mxu0 0.0
    %3725 = vmatpush1.msra.mxu0 %v302
    %3726 = vmatprep.subr.mxu0 0.0
    %3727 = vmatpush1.msra.mxu0 %v301
    %3728 = vmatprep.subr.mxu0 0.0
    %3729 = vmatpush1.msra.mxu0 %v300
    %3730 = vmatprep.subr.mxu0 0.0
    %3731 = vmatpush1.msra.mxu0 %v299
    %3732 = vmatprep.subr.mxu0 0.0
    %3733 = vmatpush1.msra.mxu0 %v298
    %3734 = vmatprep.subr.mxu0 0.0
    %3735 = vmatpush1.msra.mxu0 %v297
    %3736 = vmatprep.subr.mxu0 0.0
    %3737 = vmatpush1.msra.mxu0 %v296
    %3738 = vmatprep.subr.mxu0 0.0
    %3739 = vmatpush1.msra.mxu0 %v295
    %3740 = vmatprep.subr.mxu0 0.0
    %3741 = vmatpush1.msra.mxu0 %v294
    %3742 = vmatprep.subr.mxu0 0.0
    %3743 = vmatpush1.msra.mxu0 %v293
    %3744 = vmatprep.subr.mxu0 0.0
    %3745 = vmatpush2.msra.mxu0 %v324
    %3746 = vmatprep.subr.mxu0 0.0
    %3747 = vmatpush2.msra.mxu0 %v323
    %3748 = vmatprep.subr.mxu0 0.0
    %3749 = vmatpush2.msra.mxu0 %v322
    %3750 = vmatprep.subr.mxu0 0.0
    %3751 = vmatpush2.msra.mxu0 %v321
    %3752 = vmatprep.subr.mxu0 0.0
    %3753 = vmatpush2.msra.mxu0 %v320
    %3754 = vmatprep.subr.mxu0 0.0
    %3755 = vmatpush2.msra.mxu0 %v319
    %3756 = vmatprep.subr.mxu0 0.0
    %3757 = vmatpush2.msra.mxu0 %v318
    %3758 = vmatprep.subr.mxu0 0.0
    %3759 = vmatpush2.msra.mxu0 %v317
    %3760 = vmatprep.subr.mxu0 0.0
    %3761 = vmatpush2.msra.mxu0 %v316
    %3762 = vmatprep.subr.mxu0 0.0
    %3763 = vmatpush2.msra.mxu0 %v315
    %3764 = vmatprep.subr.mxu0 0.0
    %3765 = vmatpush2.msra.mxu0 %v314
    %3766 = vmatprep.subr.mxu0 0.0
    %3767 = vmatpush2.msra.mxu0 %v313
    %3768 = vmatprep.subr.mxu0 0.0
    %3769 = vmatpush2.msra.mxu0 %v312
    %3770 = vmatprep.subr.mxu0 0.0
    %3771 = vmatpush2.msra.mxu0 %v311
    %3772 = vmatprep.subr.mxu0 0.0
    %3773 = vmatpush2.msra.mxu0 %v310
    %3774 = vmatprep.subr.mxu0 0.0
    %3775 = vmatpush2.msra.mxu0 %v309
    %3776 = vmatprep.mubr.f32.mxu0 %v3383
    %3777 = vmatmul.mubr.f32.gmra.mxu0 %v3382
    %v3778 = vpop.f32.mrf.mxu0
    %v3779 = vadd.f32 %v3704, %v3778
    %v3780 = vpop.f32.mrf.mxu0
    %3781 = vmatprep.mubr.f32.mxu0 %v3399
    %3782 = vmatmul.mubr.f32.gmra.mxu0 %v3398
    %v3783 = vpop.f32.mrf.mxu0
    %v3784 = vadd.f32 %v3709, %v3783
    %v3785 = vpop.f32.mrf.mxu0
    %3786 = vdwg.mxu0
    %3787 = vmatprep.subr.mxu0 0.0
    %3788 = vmatpush1.msra.mxu0 %v340
    %3789 = vmatprep.subr.mxu0 0.0
    %3790 = vmatpush1.msra.mxu0 %v339
    %3791 = vmatprep.subr.mxu0 0.0
    %3792 = vmatpush1.msra.mxu0 %v338
    %3793 = vmatprep.subr.mxu0 0.0
    %3794 = vmatpush1.msra.mxu0 %v337
    %3795 = vmatprep.subr.mxu0 0.0
    %3796 = vmatpush1.msra.mxu0 %v336
    %3797 = vmatprep.subr.mxu0 0.0
    %3798 = vmatpush1.msra.mxu0 %v335
    %3799 = vmatprep.subr.mxu0 0.0
    %3800 = vmatpush1.msra.mxu0 %v334
    %3801 = vmatprep.subr.mxu0 0.0
    %3802 = vmatpush1.msra.mxu0 %v333
    %3803 = vmatprep.subr.mxu0 0.0
    %3804 = vmatpush1.msra.mxu0 %v332
    %3805 = vmatprep.subr.mxu0 0.0
    %3806 = vmatpush1.msra.mxu0 %v331
    %3807 = vmatprep.subr.mxu0 0.0
    %3808 = vmatpush1.msra.mxu0 %v330
    %3809 = vmatprep.subr.mxu0 0.0
    %3810 = vmatpush1.msra.mxu0 %v329
    %3811 = vmatprep.subr.mxu0 0.0
    %3812 = vmatpush1.msra.mxu0 %v328
    %3813 = vmatprep.subr.mxu0 0.0
    %3814 = vmatpush1.msra.mxu0 %v327
    %3815 = vmatprep.subr.mxu0 0.0
    %3816 = vmatpush1.msra.mxu0 %v326
    %3817 = vmatprep.subr.mxu0 0.0
    %3818 = vmatpush1.msra.mxu0 %v325
    %3819 = vmatprep.subr.mxu0 0.0
    %3820 = vmatpush2.msra.mxu0 %v356
    %3821 = vmatprep.subr.mxu0 0.0
    %3822 = vmatpush2.msra.mxu0 %v355
    %3823 = vmatprep.subr.mxu0 0.0
    %3824 = vmatpush2.msra.mxu0 %v354
    %3825 = vmatprep.subr.mxu0 0.0
    %3826 = vmatpush2.msra.mxu0 %v353
    %3827 = vmatprep.subr.mxu0 0.0
    %3828 = vmatpush2.msra.mxu0 %v352
    %3829 = vmatprep.subr.mxu0 0.0
    %3830 = vmatpush2.msra.mxu0 %v351
    %3831 = vmatprep.subr.mxu0 0.0
    %3832 = vmatpush2.msra.mxu0 %v350
    %3833 = vmatprep.subr.mxu0 0.0
    %3834 = vmatpush2.msra.mxu0 %v349
    %3835 = vmatprep.subr.mxu0 0.0
    %3836 = vmatpush2.msra.mxu0 %v348
    %3837 = vmatprep.subr.mxu0 0.0
    %3838 = vmatpush2.msra.mxu0 %v347
    %3839 = vmatprep.subr.mxu0 0.0
    %3840 = vmatpush2.msra.mxu0 %v346
    %3841 = vmatprep.subr.mxu0 0.0
    %3842 = vmatpush2.msra.mxu0 %v345
    %3843 = vmatprep.subr.mxu0 0.0
    %3844 = vmatpush2.msra.mxu0 %v344
    %3845 = vmatprep.subr.mxu0 0.0
    %3846 = vmatpush2.msra.mxu0 %v343
    %3847 = vmatprep.subr.mxu0 0.0
    %3848 = vmatpush2.msra.mxu0 %v342
    %3849 = vmatprep.subr.mxu0 0.0
    %3850 = vmatpush2.msra.mxu0 %v341
    %3851 = vmatprep.mubr.f32.mxu0 %v3385
    %3852 = vmatmul.mubr.f32.gmra.mxu0 %v3384
    %v3853 = vpop.f32.mrf.mxu0
    %v3854 = vadd.f32 %v3779, %v3853
    %v3855 = vpop.f32.mrf.mxu0
    %3856 = vmatprep.mubr.f32.mxu0 %v3401
    %3857 = vmatmul.mubr.f32.gmra.mxu0 %v3400
    %v3858 = vpop.f32.mrf.mxu0
    %v3859 = vadd.f32 %v3784, %v3858
    %v3860 = vpop.f32.mrf.mxu0
    %3861 = vdwg.mxu0
    %3862 = vmatprep.subr.mxu0 0.0
    %3863 = vmatpush1.msra.mxu0 %v372
    %3864 = vmatprep.subr.mxu0 0.0
    %3865 = vmatpush1.msra.mxu0 %v371
    %3866 = vmatprep.subr.mxu0 0.0
    %3867 = vmatpush1.msra.mxu0 %v370
    %3868 = vmatprep.subr.mxu0 0.0
    %3869 = vmatpush1.msra.mxu0 %v369
    %3870 = vmatprep.subr.mxu0 0.0
    %3871 = vmatpush1.msra.mxu0 %v368
    %3872 = vmatprep.subr.mxu0 0.0
    %3873 = vmatpush1.msra.mxu0 %v367
    %3874 = vmatprep.subr.mxu0 0.0
    %3875 = vmatpush1.msra.mxu0 %v366
    %3876 = vmatprep.subr.mxu0 0.0
    %3877 = vmatpush1.msra.mxu0 %v365
    %3878 = vmatprep.subr.mxu0 0.0
    %3879 = vmatpush1.msra.mxu0 %v364
    %3880 = vmatprep.subr.mxu0 0.0
    %3881 = vmatpush1.msra.mxu0 %v363
    %3882 = vmatprep.subr.mxu0 0.0
    %3883 = vmatpush1.msra.mxu0 %v362
    %3884 = vmatprep.subr.mxu0 0.0
    %3885 = vmatpush1.msra.mxu0 %v361
    %3886 = vmatprep.subr.mxu0 0.0
    %3887 = vmatpush1.msra.mxu0 %v360
    %3888 = vmatprep.subr.mxu0 0.0
    %3889 = vmatpush1.msra.mxu0 %v359
    %3890 = vmatprep.subr.mxu0 0.0
    %3891 = vmatpush1.msra.mxu0 %v358
    %3892 = vmatprep.subr.mxu0 0.0
    %3893 = vmatpush1.msra.mxu0 %v357
    %3894 = vmatprep.subr.mxu0 0.0
    %3895 = vmatpush2.msra.mxu0 %v388
    %3896 = vmatprep.subr.mxu0 0.0
    %3897 = vmatpush2.msra.mxu0 %v387
    %3898 = vmatprep.subr.mxu0 0.0
    %3899 = vmatpush2.msra.mxu0 %v386
    %3900 = vmatprep.subr.mxu0 0.0
    %3901 = vmatpush2.msra.mxu0 %v385
    %3902 = vmatprep.subr.mxu0 0.0
    %3903 = vmatpush2.msra.mxu0 %v384
    %3904 = vmatprep.subr.mxu0 0.0
    %3905 = vmatpush2.msra.mxu0 %v383
    %3906 = vmatprep.subr.mxu0 0.0
    %3907 = vmatpush2.msra.mxu0 %v382
    %3908 = vmatprep.subr.mxu0 0.0
    %3909 = vmatpush2.msra.mxu0 %v381
    %3910 = vmatprep.subr.mxu0 0.0
    %3911 = vmatpush2.msra.mxu0 %v380
    %3912 = vmatprep.subr.mxu0 0.0
    %3913 = vmatpush2.msra.mxu0 %v379
    %3914 = vmatprep.subr.mxu0 0.0
    %3915 = vmatpush2.msra.mxu0 %v378
    %3916 = vmatprep.subr.mxu0 0.0
    %3917 = vmatpush2.msra.mxu0 %v377
    %3918 = vmatprep.subr.mxu0 0.0
    %3919 = vmatpush2.msra.mxu0 %v376
    %3920 = vmatprep.subr.mxu0 0.0
    %3921 = vmatpush2.msra.mxu0 %v375
    %3922 = vmatprep.subr.mxu0 0.0
    %3923 = vmatpush2.msra.mxu0 %v374
    %3924 = vmatprep.subr.mxu0 0.0
    %3925 = vmatpush2.msra.mxu0 %v373
    %3926 = vmatprep.mubr.f32.mxu0 %v3387
    %3927 = vmatmul.mubr.f32.gmra.mxu0 %v3386
    %v3928 = vpop.f32.mrf.mxu0
    %v3929 = vadd.f32 %v3854, %v3928
    %v3930 = vpop.f32.mrf.mxu0
    %3931 = vmatprep.mubr.f32.mxu0 %v3403
    %3932 = vmatmul.mubr.f32.gmra.mxu0 %v3402
    %v3933 = vpop.f32.mrf.mxu0
    %v3934 = vadd.f32 %v3859, %v3933
    %v3935 = vpop.f32.mrf.mxu0
    %3936 = vdwg.mxu0
    %3937 = vmatprep.subr.mxu0 0.0
    %3938 = vmatpush1.msra.mxu0 %v404
    %3939 = vmatprep.subr.mxu0 0.0
    %3940 = vmatpush1.msra.mxu0 %v403
    %3941 = vmatprep.subr.mxu0 0.0
    %3942 = vmatpush1.msra.mxu0 %v402
    %3943 = vmatprep.subr.mxu0 0.0
    %3944 = vmatpush1.msra.mxu0 %v401
    %3945 = vmatprep.subr.mxu0 0.0
    %3946 = vmatpush1.msra.mxu0 %v400
    %3947 = vmatprep.subr.mxu0 0.0
    %3948 = vmatpush1.msra.mxu0 %v399
    %3949 = vmatprep.subr.mxu0 0.0
    %3950 = vmatpush1.msra.mxu0 %v398
    %3951 = vmatprep.subr.mxu0 0.0
    %3952 = vmatpush1.msra.mxu0 %v397
    %3953 = vmatprep.subr.mxu0 0.0
    %3954 = vmatpush1.msra.mxu0 %v396
    %3955 = vmatprep.subr.mxu0 0.0
    %3956 = vmatpush1.msra.mxu0 %v395
    %3957 = vmatprep.subr.mxu0 0.0
    %3958 = vmatpush1.msra.mxu0 %v394
    %3959 = vmatprep.subr.mxu0 0.0
    %3960 = vmatpush1.msra.mxu0 %v393
    %3961 = vmatprep.subr.mxu0 0.0
    %3962 = vmatpush1.msra.mxu0 %v392
    %3963 = vmatprep.subr.mxu0 0.0
    %3964 = vmatpush1.msra.mxu0 %v391
    %3965 = vmatprep.subr.mxu0 0.0
    %3966 = vmatpush1.msra.mxu0 %v390
    %3967 = vmatprep.subr.mxu0 0.0
    %3968 = vmatpush1.msra.mxu0 %v389
    %3969 = vmatprep.subr.mxu0 0.0
    %3970 = vmatpush2.msra.mxu0 %v420
    %3971 = vmatprep.subr.mxu0 0.0
    %3972 = vmatpush2.msra.mxu0 %v419
    %3973 = vmatprep.subr.mxu0 0.0
    %3974 = vmatpush2.msra.mxu0 %v418
    %3975 = vmatprep.subr.mxu0 0.0
    %3976 = vmatpush2.msra.mxu0 %v417
    %3977 = vmatprep.subr.mxu0 0.0
    %3978 = vmatpush2.msra.mxu0 %v416
    %3979 = vmatprep.subr.mxu0 0.0
    %3980 = vmatpush2.msra.mxu0 %v415
    %3981 = vmatprep.subr.mxu0 0.0
    %3982 = vmatpush2.msra.mxu0 %v414
    %3983 = vmatprep.subr.mxu0 0.0
    %3984 = vmatpush2.msra.mxu0 %v413
    %3985 = vmatprep.subr.mxu0 0.0
    %3986 = vmatpush2.msra.mxu0 %v412
    %3987 = vmatprep.subr.mxu0 0.0
    %3988 = vmatpush2.msra.mxu0 %v411
    %3989 = vmatprep.subr.mxu0 0.0
    %3990 = vmatpush2.msra.mxu0 %v410
    %3991 = vmatprep.subr.mxu0 0.0
    %3992 = vmatpush2.msra.mxu0 %v409
    %3993 = vmatprep.subr.mxu0 0.0
    %3994 = vmatpush2.msra.mxu0 %v408
    %3995 = vmatprep.subr.mxu0 0.0
    %3996 = vmatpush2.msra.mxu0 %v407
    %3997 = vmatprep.subr.mxu0 0.0
    %3998 = vmatpush2.msra.mxu0 %v406
    %3999 = vmatprep.subr.mxu0 0.0
    %4000 = vmatpush2.msra.mxu0 %v405
    %4001 = vmatprep.mubr.f32.mxu0 %v3389
    %4002 = vmatmul.mubr.f32.gmra.mxu0 %v3388
    %v4003 = vpop.f32.mrf.mxu0
    %v4004 = vadd.f32 %v3929, %v4003
    %v4005 = vpop.f32.mrf.mxu0
    %4006 = vmatprep.mubr.f32.mxu0 %v3405
    %4007 = vmatmul.mubr.f32.gmra.mxu0 %v3404
    %v4008 = vpop.f32.mrf.mxu0
    %v4009 = vadd.f32 %v3934, %v4008
    %v4010 = vpop.f32.mrf.mxu0
    %4011 = vdwg.mxu0
    %v4012 = vadd.f32 %v2586, %v4004
    %v4013 = vadd.f32 %v2621, %v4009
    %v4014 = vsel %vm428, %v4012, 0.0
    %4015 = vadd.xlane.f32.xlu0 %v4014
    %v4016 = vpop.xlane.xlu0 %4015
    %v4017 = vrot.slane %v4016, 4
    %v4018 = vadd.f32 %v4016, %v4017
    %v4019 = vrot.slane %v4018, 2
    %v4020 = vadd.f32 %v4018, %v4019
    %v4021 = vrot.slane %v4020, 1
    %v4022 = vadd.f32 %v4020, %v4021
    %s4023 = vtos %v4022
    %v4024 = vrcp.pop 160.0
    %s4025 = vtos %v4024
    %s4026 = smul.f32 %s4023, %s4025
    %v4027 = vstv %s4026
    %v4028 = vsub.f32 %v4012, %v4027
    %v4029 = vmul.f32 %v4028, %v4028
    %v4030 = vsel %vm428, %v4029, 0.0
    %4031 = vadd.xlane.f32.xlu0 %v4030
    %v4032 = vpop.xlane.xlu0 %4031
    %v4033 = vrot.slane %v4032, 4
    %v4034 = vadd.f32 %v4032, %v4033
    %v4035 = vrot.slane %v4034, 2
    %v4036 = vadd.f32 %v4034, %v4035
    %v4037 = vrot.slane %v4036, 1
    %v4038 = vadd.f32 %v4036, %v4037
    %s4039 = vtos %v4038
    %v4040 = vrcp.pop 160.0
    %s4041 = vtos %v4040
    %s4042 = smul.f32 %s4039, %s4041
    %s4043 = sadd.f32 %s4042, 1e-05
    %v4044 = vstv %s4043
    %v4045 = vrsqrt.pop %v4044
    %s4046 = vtos %v4045
    %v4047 = vstv %s4046
    %v4048 = vmul.f32 %v4028, %v4047
    %v4049 = vsel %vm428, %v4013, 0.0
    %4050 = vadd.xlane.f32.xlu0 %v4049
    %v4051 = vpop.xlane.xlu0 %4050
    %v4052 = vrot.slane %v4051, 4
    %v4053 = vadd.f32 %v4051, %v4052
    %v4054 = vrot.slane %v4053, 2
    %v4055 = vadd.f32 %v4053, %v4054
    %v4056 = vrot.slane %v4055, 1
    %v4057 = vadd.f32 %v4055, %v4056
    %s4058 = vtos %v4057
    %v4059 = vrcp.pop 160.0
    %s4060 = vtos %v4059
    %s4061 = smul.f32 %s4058, %s4060
    %v4062 = vstv %s4061
    %v4063 = vsub.f32 %v4013, %v4062
    %v4064 = vmul.f32 %v4063, %v4063
    %v4065 = vsel %vm428, %v4064, 0.0
    %4066 = vadd.xlane.f32.xlu0 %v4065
    %v4067 = vpop.xlane.xlu0 %4066
    %v4068 = vrot.slane %v4067, 4
    %v4069 = vadd.f32 %v4067, %v4068
    %v4070 = vrot.slane %v4069, 2
    %v4071 = vadd.f32 %v4069, %v4070
    %v4072 = vrot.slane %v4071, 1
    %v4073 = vadd.f32 %v4071, %v4072
    %s4074 = vtos %v4073
    %v4075 = vrcp.pop 160.0
    %s4076 = vtos %v4075
    %s4077 = smul.f32 %s4074, %s4076
    %s4078 = sadd.f32 %s4077, 1e-05
    %v4079 = vstv %s4078
    %v4080 = vrsqrt.pop %v4079
    %s4081 = vtos %v4080
    %v4082 = vstv %s4081
    %v4083 = vmul.f32 %v4063, %v4082
    %4084 = vst.msk [vmem:[#allocation2] sm:$0xff] %vm428, %v4048
    %4085 = vst.msk [vmem:[#allocation2 + $0x8] sm:$0xff] %vm428, %v4083
    %v4086 = vld [vmem:[%s15] sm:$0xff]
    %v4087 = vld [vmem:[%s15 + $0x8] sm:$0xff]
    %v4088 = vld [vmem:[%s15 + $0x10] sm:$0xf]
    %v4089 = vld [vmem:[%s16] sm:$0x1]
    %v4090 = vld [vmem:[%s17] sm:$0xff]
    %v4091 = vld [vmem:[%s17 + $0x8] sm:$0xff]
    %v4092 = vld [vmem:[%s17 + $0x10] sm:$0xf]
    %v4093 = vld [vmem:[%s18] sm:$0x1]
    %v4094 = vld [vmem:[%s19] sm:$0xff]
    %v4095 = vld [vmem:[%s19 + $0x8] sm:$0xff]
    %v4096 = vld [vmem:[%s19 + $0x10] sm:$0xf]
    %v4097 = vld [vmem:[%s20] sm:$0x1]
    %v4098 = vld [vmem:[%s21] sm:$0xff]
    %v4099 = vld [vmem:[%s21 + $0x8] sm:$0x3]
    %v4100 = vld [vmem:[%s22] sm:$0x1]
    %v4101 = vld [vmem:[%s23] sm:$0xff]
    %v4102 = vld [vmem:[%s23 + $0x8] sm:$0xff]
    %v4103 = vld [vmem:[%s23 + $0x10] sm:$0xff]
    %v4104 = vld [vmem:[%s23 + $0x18] sm:$0xff]
    %v4105 = vld [vmem:[%s23 + $0x20] sm:$0xff]
    %v4106 = vld [vmem:[%s23 + $0x28] sm:$0xff]
    %v4107 = vld [vmem:[%s23 + $0x30] sm:$0xff]
    %v4108 = vld [vmem:[%s23 + $0x38] sm:$0xff]
    %v4109 = vld [vmem:[%s23 + $0x40] sm:$0xff]
    %v4110 = vld [vmem:[%s23 + $0x48] sm:$0xff]
    %v4111 = vld [vmem:[%s23 + $0x50] sm:$0xff]
    %v4112 = vld [vmem:[%s23 + $0x58] sm:$0xff]
    %v4113 = vld [vmem:[%s23 + $0x60] sm:$0xff]
    %v4114 = vld [vmem:[%s23 + $0x68] sm:$0xff]
    %v4115 = vld [vmem:[%s23 + $0x70] sm:$0xff]
    %v4116 = vld [vmem:[%s23 + $0x78] sm:$0xff]
    %v4117 = vld [vmem:[%s23 + $0x80] sm:$0xff]
    %v4118 = vld [vmem:[%s23 + $0x88] sm:$0xff]
    %v4119 = vld [vmem:[%s23 + $0x90] sm:$0xff]
    %v4120 = vld [vmem:[%s23 + $0x98] sm:$0xff]
    %v4121 = vld [vmem:[%s23 + $0xa0] sm:$0xff]
    %v4122 = vld [vmem:[%s23 + $0xa8] sm:$0xff]
    %v4123 = vld [vmem:[%s23 + $0xb0] sm:$0xff]
    %v4124 = vld [vmem:[%s23 + $0xb8] sm:$0xff]
    %v4125 = vld [vmem:[%s23 + $0xc0] sm:$0xff]
    %v4126 = vld [vmem:[%s23 + $0xc8] sm:$0xff]
    %v4127 = vld [vmem:[%s23 + $0xd0] sm:$0xff]
    %v4128 = vld [vmem:[%s23 + $0xd8] sm:$0xff]
    %v4129 = vld [vmem:[%s23 + $0xe0] sm:$0xff]
    %v4130 = vld [vmem:[%s23 + $0xe8] sm:$0xff]
    %v4131 = vld [vmem:[%s23 + $0xf0] sm:$0xff]
    %v4132 = vld [vmem:[%s23 + $0xf8] sm:$0xff]
    %v4133 = vld [vmem:[%s23 + $0x100] sm:$0xf]
    %v4134 = vld [vmem:[%s23 + $0x108] sm:$0xf]
    %v4135 = vld [vmem:[%s23 + $0x110] sm:$0xf]
    %v4136 = vld [vmem:[%s23 + $0x118] sm:$0xf]
    %v4137 = vld [vmem:[%s23 + $0x120] sm:$0xf]
    %v4138 = vld [vmem:[%s23 + $0x128] sm:$0xf]
    %v4139 = vld [vmem:[%s23 + $0x130] sm:$0xf]
    %v4140 = vld [vmem:[%s23 + $0x138] sm:$0xf]
    %v4141 = vld [vmem:[%s23 + $0x140] sm:$0xf]
    %v4142 = vld [vmem:[%s23 + $0x148] sm:$0xf]
    %v4143 = vld [vmem:[%s23 + $0x150] sm:$0xf]
    %v4144 = vld [vmem:[%s23 + $0x158] sm:$0xf]
    %v4145 = vld [vmem:[%s23 + $0x160] sm:$0xf]
    %v4146 = vld [vmem:[%s23 + $0x168] sm:$0xf]
    %v4147 = vld [vmem:[%s23 + $0x170] sm:$0xf]
    %v4148 = vld [vmem:[%s23 + $0x178] sm:$0xf]
    %v4149 = vld [vmem:[%s24] sm:$0xff]
    %v4150 = vld [vmem:[%s24 + $0x8] sm:$0xff]
    %v4151 = vld [vmem:[%s25] sm:$0xff]
    %v4152 = vld [vmem:[%s25 + $0x8] sm:$0xff]
    %v4153 = vld [vmem:[%s25 + $0x10] sm:$0xff]
    %v4154 = vld [vmem:[%s25 + $0x18] sm:$0xff]
    %v4155 = vld [vmem:[%s25 + $0x20] sm:$0xff]
    %v4156 = vld [vmem:[%s25 + $0x28] sm:$0xff]
    %v4157 = vld [vmem:[%s25 + $0x30] sm:$0xff]
    %v4158 = vld [vmem:[%s25 + $0x38] sm:$0xff]
    %v4159 = vld [vmem:[%s25 + $0x40] sm:$0xff]
    %v4160 = vld [vmem:[%s25 + $0x48] sm:$0xff]
    %v4161 = vld [vmem:[%s25 + $0x50] sm:$0xff]
    %v4162 = vld [vmem:[%s25 + $0x58] sm:$0xff]
    %v4163 = vld [vmem:[%s25 + $0x60] sm:$0xff]
    %v4164 = vld [vmem:[%s25 + $0x68] sm:$0xff]
    %v4165 = vld [vmem:[%s25 + $0x70] sm:$0xff]
    %v4166 = vld [vmem:[%s25 + $0x78] sm:$0xff]
    %v4167 = vld [vmem:[%s25 + $0x80] sm:$0xff]
    %v4168 = vld [vmem:[%s25 + $0x88] sm:$0xff]
    %v4169 = vld [vmem:[%s25 + $0x90] sm:$0xff]
    %v4170 = vld [vmem:[%s25 + $0x98] sm:$0xff]
    %v4171 = vld [vmem:[%s25 + $0xa0] sm:$0xff]
    %v4172 = vld [vmem:[%s25 + $0xa8] sm:$0xff]
    %v4173 = vld [vmem:[%s25 + $0xb0] sm:$0xff]
    %v4174 = vld [vmem:[%s25 + $0xb8] sm:$0xff]
    %v4175 = vld [vmem:[%s25 + $0xc0] sm:$0xff]
    %v4176 = vld [vmem:[%s25 + $0xc8] sm:$0xff]
    %v4177 = vld [vmem:[%s25 + $0xd0] sm:$0xff]
    %v4178 = vld [vmem:[%s25 + $0xd8] sm:$0xff]
    %v4179 = vld [vmem:[%s25 + $0xe0] sm:$0xff]
    %v4180 = vld [vmem:[%s25 + $0xe8] sm:$0xff]
    %v4181 = vld [vmem:[%s25 + $0xf0] sm:$0xff]
    %v4182 = vld [vmem:[%s25 + $0xf8] sm:$0xff]
    %v4183 = vld [vmem:[%s25 + $0x100] sm:$0xff]
    %v4184 = vld [vmem:[%s25 + $0x108] sm:$0xff]
    %v4185 = vld [vmem:[%s25 + $0x110] sm:$0xff]
    %v4186 = vld [vmem:[%s25 + $0x118] sm:$0xff]
    %v4187 = vld [vmem:[%s25 + $0x120] sm:$0xff]
    %v4188 = vld [vmem:[%s25 + $0x128] sm:$0xff]
    %v4189 = vld [vmem:[%s25 + $0x130] sm:$0xff]
    %v4190 = vld [vmem:[%s25 + $0x138] sm:$0xff]
    %v4191 = vld [vmem:[%s25 + $0x140] sm:$0xff]
    %v4192 = vld [vmem:[%s25 + $0x148] sm:$0xff]
    %v4193 = vld [vmem:[%s25 + $0x150] sm:$0xff]
    %v4194 = vld [vmem:[%s25 + $0x158] sm:$0xff]
    %v4195 = vld [vmem:[%s25 + $0x160] sm:$0xff]
    %v4196 = vld [vmem:[%s25 + $0x168] sm:$0xff]
    %v4197 = vld [vmem:[%s25 + $0x170] sm:$0xff]
    %v4198 = vld [vmem:[%s25 + $0x178] sm:$0xff]
    %v4199 = vld [vmem:[%s25 + $0x180] sm:$0xff]
    %v4200 = vld [vmem:[%s25 + $0x188] sm:$0xff]
    %v4201 = vld [vmem:[%s25 + $0x190] sm:$0xff]
    %v4202 = vld [vmem:[%s25 + $0x198] sm:$0xff]
    %v4203 = vld [vmem:[%s25 + $0x1a0] sm:$0xff]
    %v4204 = vld [vmem:[%s25 + $0x1a8] sm:$0xff]
    %v4205 = vld [vmem:[%s25 + $0x1b0] sm:$0xff]
    %v4206 = vld [vmem:[%s25 + $0x1b8] sm:$0xff]
    %v4207 = vld [vmem:[%s25 + $0x1c0] sm:$0xff]
    %v4208 = vld [vmem:[%s25 + $0x1c8] sm:$0xff]
    %v4209 = vld [vmem:[%s25 + $0x1d0] sm:$0xff]
    %v4210 = vld [vmem:[%s25 + $0x1d8] sm:$0xff]
    %v4211 = vld [vmem:[%s25 + $0x1e0] sm:$0xff]
    %v4212 = vld [vmem:[%s25 + $0x1e8] sm:$0xff]
    %v4213 = vld [vmem:[%s25 + $0x1f0] sm:$0xff]
    %v4214 = vld [vmem:[%s25 + $0x1f8] sm:$0xff]
    %v4215 = vld [vmem:[%s25 + $0x200] sm:$0xff]
    %v4216 = vld [vmem:[%s25 + $0x208] sm:$0xff]
    %v4217 = vld [vmem:[%s25 + $0x210] sm:$0xff]
    %v4218 = vld [vmem:[%s25 + $0x218] sm:$0xff]
    %v4219 = vld [vmem:[%s25 + $0x220] sm:$0xff]
    %v4220 = vld [vmem:[%s25 + $0x228] sm:$0xff]
    %v4221 = vld [vmem:[%s25 + $0x230] sm:$0xff]
    %v4222 = vld [vmem:[%s25 + $0x238] sm:$0xff]
    %v4223 = vld [vmem:[%s25 + $0x240] sm:$0xff]
    %v4224 = vld [vmem:[%s25 + $0x248] sm:$0xff]
    %v4225 = vld [vmem:[%s25 + $0x250] sm:$0xff]
    %v4226 = vld [vmem:[%s25 + $0x258] sm:$0xff]
    %v4227 = vld [vmem:[%s25 + $0x260] sm:$0xff]
    %v4228 = vld [vmem:[%s25 + $0x268] sm:$0xff]
    %v4229 = vld [vmem:[%s25 + $0x270] sm:$0xff]
    %v4230 = vld [vmem:[%s25 + $0x278] sm:$0xff]
    %v4231 = vld [vmem:[%s25 + $0x280] sm:$0xff]
    %v4232 = vld [vmem:[%s25 + $0x288] sm:$0xff]
    %v4233 = vld [vmem:[%s25 + $0x290] sm:$0xff]
    %v4234 = vld [vmem:[%s25 + $0x298] sm:$0xff]
    %v4235 = vld [vmem:[%s25 + $0x2a0] sm:$0xff]
    %v4236 = vld [vmem:[%s25 + $0x2a8] sm:$0xff]
    %v4237 = vld [vmem:[%s25 + $0x2b0] sm:$0xff]
    %v4238 = vld [vmem:[%s25 + $0x2b8] sm:$0xff]
    %v4239 = vld [vmem:[%s25 + $0x2c0] sm:$0xff]
    %v4240 = vld [vmem:[%s25 + $0x2c8] sm:$0xff]
    %v4241 = vld [vmem:[%s25 + $0x2d0] sm:$0xff]
    %v4242 = vld [vmem:[%s25 + $0x2d8] sm:$0xff]
    %v4243 = vld [vmem:[%s25 + $0x2e0] sm:$0xff]
    %v4244 = vld [vmem:[%s25 + $0x2e8] sm:$0xff]
    %v4245 = vld [vmem:[%s25 + $0x2f0] sm:$0xff]
    %v4246 = vld [vmem:[%s25 + $0x2f8] sm:$0xff]
    %v4247 = vld [vmem:[%s25 + $0x300] sm:$0xff]
    %v4248 = vld [vmem:[%s25 + $0x308] sm:$0xff]
    %v4249 = vld [vmem:[%s25 + $0x310] sm:$0xff]
    %v4250 = vld [vmem:[%s25 + $0x318] sm:$0xff]
    %v4251 = vld [vmem:[%s25 + $0x320] sm:$0xff]
    %v4252 = vld [vmem:[%s25 + $0x328] sm:$0xff]
    %v4253 = vld [vmem:[%s25 + $0x330] sm:$0xff]
    %v4254 = vld [vmem:[%s25 + $0x338] sm:$0xff]
    %v4255 = vld [vmem:[%s25 + $0x340] sm:$0xff]
    %v4256 = vld [vmem:[%s25 + $0x348] sm:$0xff]
    %v4257 = vld [vmem:[%s25 + $0x350] sm:$0xff]
    %v4258 = vld [vmem:[%s25 + $0x358] sm:$0xff]
    %v4259 = vld [vmem:[%s25 + $0x360] sm:$0xff]
    %v4260 = vld [vmem:[%s25 + $0x368] sm:$0xff]
    %v4261 = vld [vmem:[%s25 + $0x370] sm:$0xff]
    %v4262 = vld [vmem:[%s25 + $0x378] sm:$0xff]
    %v4263 = vld [vmem:[%s25 + $0x380] sm:$0xff]
    %v4264 = vld [vmem:[%s25 + $0x388] sm:$0xff]
    %v4265 = vld [vmem:[%s25 + $0x390] sm:$0xff]
    %v4266 = vld [vmem:[%s25 + $0x398] sm:$0xff]
    %v4267 = vld [vmem:[%s25 + $0x3a0] sm:$0xff]
    %v4268 = vld [vmem:[%s25 + $0x3a8] sm:$0xff]
    %v4269 = vld [vmem:[%s25 + $0x3b0] sm:$0xff]
    %v4270 = vld [vmem:[%s25 + $0x3b8] sm:$0xff]
    %v4271 = vld [vmem:[%s25 + $0x3c0] sm:$0xff]
    %v4272 = vld [vmem:[%s25 + $0x3c8] sm:$0xff]
    %v4273 = vld [vmem:[%s25 + $0x3d0] sm:$0xff]
    %v4274 = vld [vmem:[%s25 + $0x3d8] sm:$0xff]
    %v4275 = vld [vmem:[%s25 + $0x3e0] sm:$0xff]
    %v4276 = vld [vmem:[%s25 + $0x3e8] sm:$0xff]
    %v4277 = vld [vmem:[%s25 + $0x3f0] sm:$0xff]
    %v4278 = vld [vmem:[%s25 + $0x3f8] sm:$0xff]
    %v4279 = vld [vmem:[%s25 + $0x400] sm:$0xff]
    %v4280 = vld [vmem:[%s25 + $0x408] sm:$0xff]
    %v4281 = vld [vmem:[%s25 + $0x410] sm:$0xff]
    %v4282 = vld [vmem:[%s25 + $0x418] sm:$0xff]
    %v4283 = vld [vmem:[%s25 + $0x420] sm:$0xff]
    %v4284 = vld [vmem:[%s25 + $0x428] sm:$0xff]
    %v4285 = vld [vmem:[%s25 + $0x430] sm:$0xff]
    %v4286 = vld [vmem:[%s25 + $0x438] sm:$0xff]
    %v4287 = vld [vmem:[%s25 + $0x440] sm:$0xff]
    %v4288 = vld [vmem:[%s25 + $0x448] sm:$0xff]
    %v4289 = vld [vmem:[%s25 + $0x450] sm:$0xff]
    %v4290 = vld [vmem:[%s25 + $0x458] sm:$0xff]
    %v4291 = vld [vmem:[%s25 + $0x460] sm:$0xff]
    %v4292 = vld [vmem:[%s25 + $0x468] sm:$0xff]
    %v4293 = vld [vmem:[%s25 + $0x470] sm:$0xff]
    %v4294 = vld [vmem:[%s25 + $0x478] sm:$0xff]
    %v4295 = vld [vmem:[%s25 + $0x480] sm:$0xff]
    %v4296 = vld [vmem:[%s25 + $0x488] sm:$0xff]
    %v4297 = vld [vmem:[%s25 + $0x490] sm:$0xff]
    %v4298 = vld [vmem:[%s25 + $0x498] sm:$0xff]
    %v4299 = vld [vmem:[%s25 + $0x4a0] sm:$0xff]
    %v4300 = vld [vmem:[%s25 + $0x4a8] sm:$0xff]
    %v4301 = vld [vmem:[%s25 + $0x4b0] sm:$0xff]
    %v4302 = vld [vmem:[%s25 + $0x4b8] sm:$0xff]
    %v4303 = vld [vmem:[%s25 + $0x4c0] sm:$0xff]
    %v4304 = vld [vmem:[%s25 + $0x4c8] sm:$0xff]
    %v4305 = vld [vmem:[%s25 + $0x4d0] sm:$0xff]
    %v4306 = vld [vmem:[%s25 + $0x4d8] sm:$0xff]
    %v4307 = vld [vmem:[%s25 + $0x4e0] sm:$0xff]
    %v4308 = vld [vmem:[%s25 + $0x4e8] sm:$0xff]
    %v4309 = vld [vmem:[%s25 + $0x4f0] sm:$0xff]
    %v4310 = vld [vmem:[%s25 + $0x4f8] sm:$0xff]
    %v4311 = vld [vmem:[%s25 + $0x500] sm:$0xff]
    %v4312 = vld [vmem:[%s25 + $0x508] sm:$0xff]
    %v4313 = vld [vmem:[%s25 + $0x510] sm:$0xff]
    %v4314 = vld [vmem:[%s25 + $0x518] sm:$0xff]
    %v4315 = vld [vmem:[%s25 + $0x520] sm:$0xff]
    %v4316 = vld [vmem:[%s25 + $0x528] sm:$0xff]
    %v4317 = vld [vmem:[%s25 + $0x530] sm:$0xff]
    %v4318 = vld [vmem:[%s25 + $0x538] sm:$0xff]
    %v4319 = vld [vmem:[%s25 + $0x540] sm:$0xff]
    %v4320 = vld [vmem:[%s25 + $0x548] sm:$0xff]
    %v4321 = vld [vmem:[%s25 + $0x550] sm:$0xff]
    %v4322 = vld [vmem:[%s25 + $0x558] sm:$0xff]
    %v4323 = vld [vmem:[%s25 + $0x560] sm:$0xff]
    %v4324 = vld [vmem:[%s25 + $0x568] sm:$0xff]
    %v4325 = vld [vmem:[%s25 + $0x570] sm:$0xff]
    %v4326 = vld [vmem:[%s25 + $0x578] sm:$0xff]
    %v4327 = vld [vmem:[%s25 + $0x580] sm:$0xff]
    %v4328 = vld [vmem:[%s25 + $0x588] sm:$0xff]
    %v4329 = vld [vmem:[%s25 + $0x590] sm:$0xff]
    %v4330 = vld [vmem:[%s25 + $0x598] sm:$0xff]
    %v4331 = vld [vmem:[%s25 + $0x5a0] sm:$0xff]
    %v4332 = vld [vmem:[%s25 + $0x5a8] sm:$0xff]
    %v4333 = vld [vmem:[%s25 + $0x5b0] sm:$0xff]
    %v4334 = vld [vmem:[%s25 + $0x5b8] sm:$0xff]
    %v4335 = vld [vmem:[%s25 + $0x5c0] sm:$0xff]
    %v4336 = vld [vmem:[%s25 + $0x5c8] sm:$0xff]
    %v4337 = vld [vmem:[%s25 + $0x5d0] sm:$0xff]
    %v4338 = vld [vmem:[%s25 + $0x5d8] sm:$0xff]
    %v4339 = vld [vmem:[%s25 + $0x5e0] sm:$0xff]
    %v4340 = vld [vmem:[%s25 + $0x5e8] sm:$0xff]
    %v4341 = vld [vmem:[%s25 + $0x5f0] sm:$0xff]
    %v4342 = vld [vmem:[%s25 + $0x5f8] sm:$0xff]
    %v4343 = vld [vmem:[%s25 + $0x600] sm:$0xff]
    %v4344 = vld [vmem:[%s25 + $0x608] sm:$0xff]
    %v4345 = vld [vmem:[%s25 + $0x610] sm:$0xff]
    %v4346 = vld [vmem:[%s25 + $0x618] sm:$0xff]
    %v4347 = vld [vmem:[%s25 + $0x620] sm:$0xff]
    %v4348 = vld [vmem:[%s25 + $0x628] sm:$0xff]
    %v4349 = vld [vmem:[%s25 + $0x630] sm:$0xff]
    %v4350 = vld [vmem:[%s25 + $0x638] sm:$0xff]
    %v4351 = vld [vmem:[%s25 + $0x640] sm:$0xff]
    %v4352 = vld [vmem:[%s25 + $0x648] sm:$0xff]
    %v4353 = vld [vmem:[%s25 + $0x650] sm:$0xff]
    %v4354 = vld [vmem:[%s25 + $0x658] sm:$0xff]
    %v4355 = vld [vmem:[%s25 + $0x660] sm:$0xff]
    %v4356 = vld [vmem:[%s25 + $0x668] sm:$0xff]
    %v4357 = vld [vmem:[%s25 + $0x670] sm:$0xff]
    %v4358 = vld [vmem:[%s25 + $0x678] sm:$0xff]
    %v4359 = vld [vmem:[%s25 + $0x680] sm:$0xff]
    %v4360 = vld [vmem:[%s25 + $0x688] sm:$0xff]
    %v4361 = vld [vmem:[%s25 + $0x690] sm:$0xff]
    %v4362 = vld [vmem:[%s25 + $0x698] sm:$0xff]
    %v4363 = vld [vmem:[%s25 + $0x6a0] sm:$0xff]
    %v4364 = vld [vmem:[%s25 + $0x6a8] sm:$0xff]
    %v4365 = vld [vmem:[%s25 + $0x6b0] sm:$0xff]
    %v4366 = vld [vmem:[%s25 + $0x6b8] sm:$0xff]
    %v4367 = vld [vmem:[%s25 + $0x6c0] sm:$0xff]
    %v4368 = vld [vmem:[%s25 + $0x6c8] sm:$0xff]
    %v4369 = vld [vmem:[%s25 + $0x6d0] sm:$0xff]
    %v4370 = vld [vmem:[%s25 + $0x6d8] sm:$0xff]
    %v4371 = vld [vmem:[%s25 + $0x6e0] sm:$0xff]
    %v4372 = vld [vmem:[%s25 + $0x6e8] sm:$0xff]
    %v4373 = vld [vmem:[%s25 + $0x6f0] sm:$0xff]
    %v4374 = vld [vmem:[%s25 + $0x6f8] sm:$0xff]
    %v4375 = vld [vmem:[%s25 + $0x700] sm:$0xff]
    %v4376 = vld [vmem:[%s25 + $0x708] sm:$0xff]
    %v4377 = vld [vmem:[%s25 + $0x710] sm:$0xff]
    %v4378 = vld [vmem:[%s25 + $0x718] sm:$0xff]
    %v4379 = vld [vmem:[%s25 + $0x720] sm:$0xff]
    %v4380 = vld [vmem:[%s25 + $0x728] sm:$0xff]
    %v4381 = vld [vmem:[%s25 + $0x730] sm:$0xff]
    %v4382 = vld [vmem:[%s25 + $0x738] sm:$0xff]
    %v4383 = vld [vmem:[%s25 + $0x740] sm:$0xff]
    %v4384 = vld [vmem:[%s25 + $0x748] sm:$0xff]
    %v4385 = vld [vmem:[%s25 + $0x750] sm:$0xff]
    %v4386 = vld [vmem:[%s25 + $0x758] sm:$0xff]
    %v4387 = vld [vmem:[%s25 + $0x760] sm:$0xff]
    %v4388 = vld [vmem:[%s25 + $0x768] sm:$0xff]
    %v4389 = vld [vmem:[%s25 + $0x770] sm:$0xff]
    %v4390 = vld [vmem:[%s25 + $0x778] sm:$0xff]
    %v4391 = vld [vmem:[%s25 + $0x780] sm:$0xff]
    %v4392 = vld [vmem:[%s25 + $0x788] sm:$0xff]
    %v4393 = vld [vmem:[%s25 + $0x790] sm:$0xff]
    %v4394 = vld [vmem:[%s25 + $0x798] sm:$0xff]
    %v4395 = vld [vmem:[%s25 + $0x7a0] sm:$0xff]
    %v4396 = vld [vmem:[%s25 + $0x7a8] sm:$0xff]
    %v4397 = vld [vmem:[%s25 + $0x7b0] sm:$0xff]
    %v4398 = vld [vmem:[%s25 + $0x7b8] sm:$0xff]
    %v4399 = vld [vmem:[%s25 + $0x7c0] sm:$0xff]
    %v4400 = vld [vmem:[%s25 + $0x7c8] sm:$0xff]
    %v4401 = vld [vmem:[%s25 + $0x7d0] sm:$0xff]
    %v4402 = vld [vmem:[%s25 + $0x7d8] sm:$0xff]
    %v4403 = vld [vmem:[%s25 + $0x7e0] sm:$0xff]
    %v4404 = vld [vmem:[%s25 + $0x7e8] sm:$0xff]
    %v4405 = vld [vmem:[%s25 + $0x7f0] sm:$0xff]
    %v4406 = vld [vmem:[%s25 + $0x7f8] sm:$0xff]
    %v4407 = vld [vmem:[%s26] sm:$0x1]
    %v4409 = vlaneseq
    %v4410 = vshrl.u32 %v4409, 7
    %v4411 = vsub.s32 0, %v4410
    %v4412 = vrot.slane %v4089, %v4411
    %v4415 = vsel %vm428, %v98, 0
    %v4418 = vsel %vm428, %v99, 0
    %v4421 = vsel %vm435, %v4088, 0
    %4423 = vmatprep.subr.mxu0 0.0
    %4424 = vmatpush1.msra.mxu0 0.0
    %4425 = vmatprep.subr.mxu0 0.0
    %4426 = vmatpush1.msra.mxu0 0.0
    %4427 = vmatprep.subr.mxu0 0.0
    %4428 = vmatpush1.msra.mxu0 0.0
    %4429 = vmatprep.subr.mxu0 0.0
    %4430 = vmatpush1.msra.mxu0 0.0
    %4431 = vmatprep.subr.mxu0 0.0
    %4432 = vmatpush1.msra.mxu0 0.0
    %4433 = vmatprep.subr.mxu0 0.0
    %4434 = vmatpush1.msra.mxu0 0.0
    %4435 = vmatprep.subr.mxu0 0.0
    %4436 = vmatpush1.msra.mxu0 0.0
    %4437 = vmatprep.subr.mxu0 0.0
    %4438 = vmatpush1.msra.mxu0 0.0
    %4439 = vmatprep.subr.mxu0 0.0
    %4440 = vmatpush1.msra.mxu0 0.0
    %4441 = vmatprep.subr.mxu0 0.0
    %4442 = vmatpush1.msra.mxu0 0.0
    %4443 = vmatprep.subr.mxu0 0.0
    %4444 = vmatpush1.msra.mxu0 0.0
    %4445 = vmatprep.subr.mxu0 0.0
    %4446 = vmatpush1.msra.mxu0 0.0
    %4447 = vmatprep.subr.mxu0 0.0
    %4448 = vmatpush1.msra.mxu0 0.0
    %4449 = vmatprep.subr.mxu0 0.0
    %4450 = vmatpush1.msra.mxu0 %v4421
    %4451 = vmatprep.subr.mxu0 0.0
    %4452 = vmatpush1.msra.mxu0 %v4087
    %4453 = vmatprep.subr.mxu0 0.0
    %4454 = vmatpush1.msra.mxu0 %v4086
    %4455 = vmatprep.subr.mxu0 0.0
    %4456 = vmatpush2.msra.mxu0 0.0
    %4457 = vmatprep.subr.mxu0 0.0
    %4458 = vmatpush2.msra.mxu0 0.0
    %4459 = vmatprep.subr.mxu0 0.0
    %4460 = vmatpush2.msra.mxu0 0.0
    %4461 = vmatprep.subr.mxu0 0.0
    %4462 = vmatpush2.msra.mxu0 0.0
    %4463 = vmatprep.subr.mxu0 0.0
    %4464 = vmatpush2.msra.mxu0 0.0
    %4465 = vmatprep.subr.mxu0 0.0
    %4466 = vmatpush2.msra.mxu0 0.0
    %4467 = vmatprep.subr.mxu0 0.0
    %4468 = vmatpush2.msra.mxu0 0.0
    %4469 = vmatprep.subr.mxu0 0.0
    %4470 = vmatpush2.msra.mxu0 0.0
    %4471 = vmatprep.subr.mxu0 0.0
    %4472 = vmatpush2.msra.mxu0 0.0
    %4473 = vmatprep.subr.mxu0 0.0
    %4474 = vmatpush2.msra.mxu0 0.0
    %4475 = vmatprep.subr.mxu0 0.0
    %4476 = vmatpush2.msra.mxu0 0.0
    %4477 = vmatprep.subr.mxu0 0.0
    %4478 = vmatpush2.msra.mxu0 0.0
    %4479 = vmatprep.subr.mxu0 0.0
    %4480 = vmatpush2.msra.mxu0 0.0
    %4481 = vmatprep.subr.mxu0 0.0
    %4482 = vmatpush2.msra.mxu0 0.0
    %4483 = vmatprep.subr.mxu0 0.0
    %4484 = vmatpush2.msra.mxu0 0.0
    %4485 = vmatprep.subr.mxu0 0.0
    %4486 = vmatpush2.msra.mxu0 0.0
    %4487 = vmatprep.mubr.f32.mxu0 0.0
    %4488 = vmatmul.mubr.f32.gmra.mxu0 %v4415
    %v4489 = vpop.f32.mrf.mxu0
    %v4490 = vadd.f32 %v4412, %v4489
    %v4491 = vpop.f32.mrf.mxu0
    %4492 = vmatprep.mubr.f32.mxu0 0.0
    %4493 = vmatmul.mubr.f32.gmra.mxu0 %v4418
    %v4494 = vpop.f32.mrf.mxu0
    %v4495 = vadd.f32 %v4412, %v4494
    %v4496 = vpop.f32.mrf.mxu0
    %4497 = vdwg.mxu0
    %v4498 = vmul.f32 %v4490, 0.2236068
    %v4499 = vmul.f32 %v4495, 0.2236068
    %v4501 = vlaneseq
    %v4502 = vshrl.u32 %v4501, 7
    %v4503 = vsub.s32 0, %v4502
    %v4504 = vrot.slane %v4093, %v4503
    %v4507 = vsel %vm435, %v4092, 0
    %4509 = vmatprep.subr.mxu0 0.0
    %4510 = vmatpush1.msra.mxu0 0.0
    %4511 = vmatprep.subr.mxu0 0.0
    %4512 = vmatpush1.msra.mxu0 0.0
    %4513 = vmatprep.subr.mxu0 0.0
    %4514 = vmatpush1.msra.mxu0 0.0
    %4515 = vmatprep.subr.mxu0 0.0
    %4516 = vmatpush1.msra.mxu0 0.0
    %4517 = vmatprep.subr.mxu0 0.0
    %4518 = vmatpush1.msra.mxu0 0.0
    %4519 = vmatprep.subr.mxu0 0.0
    %4520 = vmatpush1.msra.mxu0 0.0
    %4521 = vmatprep.subr.mxu0 0.0
    %4522 = vmatpush1.msra.mxu0 0.0
    %4523 = vmatprep.subr.mxu0 0.0
    %4524 = vmatpush1.msra.mxu0 0.0
    %4525 = vmatprep.subr.mxu0 0.0
    %4526 = vmatpush1.msra.mxu0 0.0
    %4527 = vmatprep.subr.mxu0 0.0
    %4528 = vmatpush1.msra.mxu0 0.0
    %4529 = vmatprep.subr.mxu0 0.0
    %4530 = vmatpush1.msra.mxu0 0.0
    %4531 = vmatprep.subr.mxu0 0.0
    %4532 = vmatpush1.msra.mxu0 0.0
    %4533 = vmatprep.subr.mxu0 0.0
    %4534 = vmatpush1.msra.mxu0 0.0
    %4535 = vmatprep.subr.mxu0 0.0
    %4536 = vmatpush1.msra.mxu0 %v4507
    %4537 = vmatprep.subr.mxu0 0.0
    %4538 = vmatpush1.msra.mxu0 %v4091
    %4539 = vmatprep.subr.mxu0 0.0
    %4540 = vmatpush1.msra.mxu0 %v4090
    %4541 = vmatprep.subr.mxu0 0.0
    %4542 = vmatpush2.msra.mxu0 0.0
    %4543 = vmatprep.subr.mxu0 0.0
    %4544 = vmatpush2.msra.mxu0 0.0
    %4545 = vmatprep.subr.mxu0 0.0
    %4546 = vmatpush2.msra.mxu0 0.0
    %4547 = vmatprep.subr.mxu0 0.0
    %4548 = vmatpush2.msra.mxu0 0.0
    %4549 = vmatprep.subr.mxu0 0.0
    %4550 = vmatpush2.msra.mxu0 0.0
    %4551 = vmatprep.subr.mxu0 0.0
    %4552 = vmatpush2.msra.mxu0 0.0
    %4553 = vmatprep.subr.mxu0 0.0
    %4554 = vmatpush2.msra.mxu0 0.0
    %4555 = vmatprep.subr.mxu0 0.0
    %4556 = vmatpush2.msra.mxu0 0.0
    %4557 = vmatprep.subr.mxu0 0.0
    %4558 = vmatpush2.msra.mxu0 0.0
    %4559 = vmatprep.subr.mxu0 0.0
    %4560 = vmatpush2.msra.mxu0 0.0
    %4561 = vmatprep.subr.mxu0 0.0
    %4562 = vmatpush2.msra.mxu0 0.0
    %4563 = vmatprep.subr.mxu0 0.0
    %4564 = vmatpush2.msra.mxu0 0.0
    %4565 = vmatprep.subr.mxu0 0.0
    %4566 = vmatpush2.msra.mxu0 0.0
    %4567 = vmatprep.subr.mxu0 0.0
    %4568 = vmatpush2.msra.mxu0 0.0
    %4569 = vmatprep.subr.mxu0 0.0
    %4570 = vmatpush2.msra.mxu0 0.0
    %4571 = vmatprep.subr.mxu0 0.0
    %4572 = vmatpush2.msra.mxu0 0.0
    %4573 = vmatprep.mubr.f32.mxu0 0.0
    %4574 = vmatmul.mubr.f32.gmra.mxu0 %v4415
    %v4575 = vpop.f32.mrf.mxu0
    %v4576 = vadd.f32 %v4504, %v4575
    %v4577 = vpop.f32.mrf.mxu0
    %4578 = vmatprep.mubr.f32.mxu0 0.0
    %4579 = vmatmul.mubr.f32.gmra.mxu0 %v4418
    %v4580 = vpop.f32.mrf.mxu0
    %v4581 = vadd.f32 %v4504, %v4580
    %v4582 = vpop.f32.mrf.mxu0
    %4583 = vdwg.mxu0
    %v4585 = vlaneseq
    %v4586 = vshrl.u32 %v4585, 7
    %v4587 = vsub.s32 0, %v4586
    %v4588 = vrot.slane %v4097, %v4587
    %v4591 = vsel %vm428, %v4048, 0
    %v4594 = vsel %vm428, %v4083, 0
    %v4597 = vsel %vm435, %v4096, 0
    %4599 = vmatprep.subr.mxu0 0.0
    %4600 = vmatpush1.msra.mxu0 0.0
    %4601 = vmatprep.subr.mxu0 0.0
    %4602 = vmatpush1.msra.mxu0 0.0
    %4603 = vmatprep.subr.mxu0 0.0
    %4604 = vmatpush1.msra.mxu0 0.0
    %4605 = vmatprep.subr.mxu0 0.0
    %4606 = vmatpush1.msra.mxu0 0.0
    %4607 = vmatprep.subr.mxu0 0.0
    %4608 = vmatpush1.msra.mxu0 0.0
    %4609 = vmatprep.subr.mxu0 0.0
    %4610 = vmatpush1.msra.mxu0 0.0
    %4611 = vmatprep.subr.mxu0 0.0
    %4612 = vmatpush1.msra.mxu0 0.0
    %4613 = vmatprep.subr.mxu0 0.0
    %4614 = vmatpush1.msra.mxu0 0.0
    %4615 = vmatprep.subr.mxu0 0.0
    %4616 = vmatpush1.msra.mxu0 0.0
    %4617 = vmatprep.subr.mxu0 0.0
    %4618 = vmatpush1.msra.mxu0 0.0
    %4619 = vmatprep.subr.mxu0 0.0
    %4620 = vmatpush1.msra.mxu0 0.0
    %4621 = vmatprep.subr.mxu0 0.0
    %4622 = vmatpush1.msra.mxu0 0.0
    %4623 = vmatprep.subr.mxu0 0.0
    %4624 = vmatpush1.msra.mxu0 0.0
    %4625 = vmatprep.subr.mxu0 0.0
    %4626 = vmatpush1.msra.mxu0 %v4597
    %4627 = vmatprep.subr.mxu0 0.0
    %4628 = vmatpush1.msra.mxu0 %v4095
    %4629 = vmatprep.subr.mxu0 0.0
    %4630 = vmatpush1.msra.mxu0 %v4094
    %4631 = vmatprep.subr.mxu0 0.0
    %4632 = vmatpush2.msra.mxu0 0.0
    %4633 = vmatprep.subr.mxu0 0.0
    %4634 = vmatpush2.msra.mxu0 0.0
    %4635 = vmatprep.subr.mxu0 0.0
    %4636 = vmatpush2.msra.mxu0 0.0
    %4637 = vmatprep.subr.mxu0 0.0
    %4638 = vmatpush2.msra.mxu0 0.0
    %4639 = vmatprep.subr.mxu0 0.0
    %4640 = vmatpush2.msra.mxu0 0.0
    %4641 = vmatprep.subr.mxu0 0.0
    %4642 = vmatpush2.msra.mxu0 0.0
    %4643 = vmatprep.subr.mxu0 0.0
    %4644 = vmatpush2.msra.mxu0 0.0
    %4645 = vmatprep.subr.mxu0 0.0
    %4646 = vmatpush2.msra.mxu0 0.0
    %4647 = vmatprep.subr.mxu0 0.0
    %4648 = vmatpush2.msra.mxu0 0.0
    %4649 = vmatprep.subr.mxu0 0.0
    %4650 = vmatpush2.msra.mxu0 0.0
    %4651 = vmatprep.subr.mxu0 0.0
    %4652 = vmatpush2.msra.mxu0 0.0
    %4653 = vmatprep.subr.mxu0 0.0
    %4654 = vmatpush2.msra.mxu0 0.0
    %4655 = vmatprep.subr.mxu0 0.0
    %4656 = vmatpush2.msra.mxu0 0.0
    %4657 = vmatprep.subr.mxu0 0.0
    %4658 = vmatpush2.msra.mxu0 0.0
    %4659 = vmatprep.subr.mxu0 0.0
    %4660 = vmatpush2.msra.mxu0 0.0
    %4661 = vmatprep.subr.mxu0 0.0
    %4662 = vmatpush2.msra.mxu0 0.0
    %4663 = vmatprep.mubr.f32.mxu0 0.0
    %4664 = vmatmul.mubr.f32.gmra.mxu0 %v4591
    %v4665 = vpop.f32.mrf.mxu0
    %v4666 = vadd.f32 %v4588, %v4665
    %v4667 = vpop.f32.mrf.mxu0
    %4668 = vmatprep.mubr.f32.mxu0 0.0
    %4669 = vmatmul.mubr.f32.gmra.mxu0 %v4594
    %v4670 = vpop.f32.mrf.mxu0
    %v4671 = vadd.f32 %v4588, %v4670
    %v4672 = vpop.f32.mrf.mxu0
    %4673 = vdwg.mxu0
    %4674 = vxpose.xlu0.b32.start [1/16] %v4576, 128
    %4675 = vxpose.xlu0.b32.cont [2/16] %v4581, 128
    %4676 = vxpose.xlu0.b32.cont [3/16] 0.0, 128
    %4677 = vxpose.xlu0.b32.cont [4/16] 0.0, 128
    %4678 = vxpose.xlu0.b32.cont [5/16] 0.0, 128
    %4679 = vxpose.xlu0.b32.cont [6/16] 0.0, 128
    %4680 = vxpose.xlu0.b32.cont [7/16] 0.0, 128
    %4681 = vxpose.xlu0.b32.cont [8/16] 0.0, 128
    %4682 = vxpose.xlu0.b32.cont [9/16] 0.0, 128
    %4683 = vxpose.xlu0.b32.cont [10/16] 0.0, 128
    %4684 = vxpose.xlu0.b32.cont [11/16] 0.0, 128
    %4685 = vxpose.xlu0.b32.cont [12/16] 0.0, 128
    %4686 = vxpose.xlu0.b32.cont [13/16] 0.0, 128
    %4687 = vxpose.xlu0.b32.cont [14/16] 0.0, 128
    %4688 = vxpose.xlu0.b32.cont [15/16] 0.0, 128
    %4689 = vxpose.xlu0.b32.end [16/16] 0.0, 128
    %v4690 = vpop.trf.xlu0
    %v4691 = vpop.trf.xlu0
    %v4692 = vpop.trf.xlu0
    %v4693 = vpop.trf.xlu0
    %v4694 = vpop.trf.xlu0
    %v4695 = vpop.trf.xlu0
    %v4696 = vpop.trf.xlu0
    %v4697 = vpop.trf.xlu0
    %v4698 = vpop.trf.xlu0
    %v4699 = vpop.trf.xlu0
    %v4700 = vpop.trf.xlu0
    %v4701 = vpop.trf.xlu0
    %v4702 = vpop.trf.xlu0
    %v4703 = vpop.trf.xlu0
    %v4704 = vpop.trf.xlu0
    %v4705 = vpop.trf.xlu0
    %v4708 = vrot.slane %v4690, 5
    %v4709 = vrot.slane %v4691, 5
    %v4710 = vsel %vm718, %v4708, %v4709
    %4712 = vrot.lane.b32.xlu0 %v4666, 123
    %v4713 = vpop.permute.xlu0 %4712
    %v4714 = vsel %vm725, %v4710, 0
    %v4716 = vsel %vm435, %v4713, 0
    %4718 = vmatprep.subr.mxu0 0.0
    %4719 = vmatpush1.msra.mxu0 0.0
    %4720 = vmatprep.subr.mxu0 0.0
    %4721 = vmatpush1.msra.mxu0 0.0
    %4722 = vmatprep.subr.mxu0 0.0
    %4723 = vmatpush1.msra.mxu0 0.0
    %4724 = vmatprep.subr.mxu0 0.0
    %4725 = vmatpush1.msra.mxu0 0.0
    %4726 = vmatprep.subr.mxu0 0.0
    %4727 = vmatpush1.msra.mxu0 0.0
    %4728 = vmatprep.subr.mxu0 0.0
    %4729 = vmatpush1.msra.mxu0 0.0
    %4730 = vmatprep.subr.mxu0 0.0
    %4731 = vmatpush1.msra.mxu0 0.0
    %4732 = vmatprep.subr.mxu0 0.0
    %4733 = vmatpush1.msra.mxu0 0.0
    %4734 = vmatprep.subr.mxu0 0.0
    %4735 = vmatpush1.msra.mxu0 0.0
    %4736 = vmatprep.subr.mxu0 0.0
    %4737 = vmatpush1.msra.mxu0 0.0
    %4738 = vmatprep.subr.mxu0 0.0
    %4739 = vmatpush1.msra.mxu0 0.0
    %4740 = vmatprep.subr.mxu0 0.0
    %4741 = vmatpush1.msra.mxu0 0.0
    %4742 = vmatprep.subr.mxu0 0.0
    %4743 = vmatpush1.msra.mxu0 0.0
    %4744 = vmatprep.subr.mxu0 0.0
    %4745 = vmatpush1.msra.mxu0 0.0
    %4746 = vmatprep.subr.mxu0 0.0
    %4747 = vmatpush1.msra.mxu0 0.0
    %4748 = vmatprep.subr.mxu0 0.0
    %4749 = vmatpush1.msra.mxu0 %v4716
    %4750 = vmatprep.subr.mxu0 0.0
    %4751 = vmatpush2.msra.mxu0 0.0
    %4752 = vmatprep.subr.mxu0 0.0
    %4753 = vmatpush2.msra.mxu0 0.0
    %4754 = vmatprep.subr.mxu0 0.0
    %4755 = vmatpush2.msra.mxu0 0.0
    %4756 = vmatprep.subr.mxu0 0.0
    %4757 = vmatpush2.msra.mxu0 0.0
    %4758 = vmatprep.subr.mxu0 0.0
    %4759 = vmatpush2.msra.mxu0 0.0
    %4760 = vmatprep.subr.mxu0 0.0
    %4761 = vmatpush2.msra.mxu0 0.0
    %4762 = vmatprep.subr.mxu0 0.0
    %4763 = vmatpush2.msra.mxu0 0.0
    %4764 = vmatprep.subr.mxu0 0.0
    %4765 = vmatpush2.msra.mxu0 0.0
    %4766 = vmatprep.subr.mxu0 0.0
    %4767 = vmatpush2.msra.mxu0 0.0
    %4768 = vmatprep.subr.mxu0 0.0
    %4769 = vmatpush2.msra.mxu0 0.0
    %4770 = vmatprep.subr.mxu0 0.0
    %4771 = vmatpush2.msra.mxu0 0.0
    %4772 = vmatprep.subr.mxu0 0.0
    %4773 = vmatpush2.msra.mxu0 0.0
    %4774 = vmatprep.subr.mxu0 0.0
    %4775 = vmatpush2.msra.mxu0 0.0
    %4776 = vmatprep.subr.mxu0 0.0
    %4777 = vmatpush2.msra.mxu0 0.0
    %4778 = vmatprep.subr.mxu0 0.0
    %4779 = vmatpush2.msra.mxu0 0.0
    %4780 = vmatprep.subr.mxu0 0.0
    %4781 = vmatpush2.msra.mxu0 0.0
    %4782 = vmatprep.mubr.f32.mxu0 0.0
    %4783 = vmatmul.mubr.f32.gmra.mxu0 %v4714
    %v4784 = vpop.f32.mrf.mxu0
    %v4785 = vadd.f32 0.0, %v4784
    %v4786 = vpop.f32.mrf.mxu0
    %4787 = vdwg.mxu0
    %v4788 = vsel %vm725, %v4690, 0
    %v4790 = vsel %vm435, %v4666, 0
    %4792 = vmatprep.subr.mxu0 0.0
    %4793 = vmatpush1.msra.mxu0 0.0
    %4794 = vmatprep.subr.mxu0 0.0
    %4795 = vmatpush1.msra.mxu0 0.0
    %4796 = vmatprep.subr.mxu0 0.0
    %4797 = vmatpush1.msra.mxu0 0.0
    %4798 = vmatprep.subr.mxu0 0.0
    %4799 = vmatpush1.msra.mxu0 0.0
    %4800 = vmatprep.subr.mxu0 0.0
    %4801 = vmatpush1.msra.mxu0 0.0
    %4802 = vmatprep.subr.mxu0 0.0
    %4803 = vmatpush1.msra.mxu0 0.0
    %4804 = vmatprep.subr.mxu0 0.0
    %4805 = vmatpush1.msra.mxu0 0.0
    %4806 = vmatprep.subr.mxu0 0.0
    %4807 = vmatpush1.msra.mxu0 0.0
    %4808 = vmatprep.subr.mxu0 0.0
    %4809 = vmatpush1.msra.mxu0 0.0
    %4810 = vmatprep.subr.mxu0 0.0
    %4811 = vmatpush1.msra.mxu0 0.0
    %4812 = vmatprep.subr.mxu0 0.0
    %4813 = vmatpush1.msra.mxu0 0.0
    %4814 = vmatprep.subr.mxu0 0.0
    %4815 = vmatpush1.msra.mxu0 0.0
    %4816 = vmatprep.subr.mxu0 0.0
    %4817 = vmatpush1.msra.mxu0 0.0
    %4818 = vmatprep.subr.mxu0 0.0
    %4819 = vmatpush1.msra.mxu0 0.0
    %4820 = vmatprep.subr.mxu0 0.0
    %4821 = vmatpush1.msra.mxu0 0.0
    %4822 = vmatprep.subr.mxu0 0.0
    %4823 = vmatpush1.msra.mxu0 %v4790
    %4824 = vmatprep.subr.mxu0 0.0
    %4825 = vmatpush2.msra.mxu0 0.0
    %4826 = vmatprep.subr.mxu0 0.0
    %4827 = vmatpush2.msra.mxu0 0.0
    %4828 = vmatprep.subr.mxu0 0.0
    %4829 = vmatpush2.msra.mxu0 0.0
    %4830 = vmatprep.subr.mxu0 0.0
    %4831 = vmatpush2.msra.mxu0 0.0
    %4832 = vmatprep.subr.mxu0 0.0
    %4833 = vmatpush2.msra.mxu0 0.0
    %4834 = vmatprep.subr.mxu0 0.0
    %4835 = vmatpush2.msra.mxu0 0.0
    %4836 = vmatprep.subr.mxu0 0.0
    %4837 = vmatpush2.msra.mxu0 0.0
    %4838 = vmatprep.subr.mxu0 0.0
    %4839 = vmatpush2.msra.mxu0 0.0
    %4840 = vmatprep.subr.mxu0 0.0
    %4841 = vmatpush2.msra.mxu0 0.0
    %4842 = vmatprep.subr.mxu0 0.0
    %4843 = vmatpush2.msra.mxu0 0.0
    %4844 = vmatprep.subr.mxu0 0.0
    %4845 = vmatpush2.msra.mxu0 0.0
    %4846 = vmatprep.subr.mxu0 0.0
    %4847 = vmatpush2.msra.mxu0 0.0
    %4848 = vmatprep.subr.mxu0 0.0
    %4849 = vmatpush2.msra.mxu0 0.0
    %4850 = vmatprep.subr.mxu0 0.0
    %4851 = vmatpush2.msra.mxu0 0.0
    %4852 = vmatprep.subr.mxu0 0.0
    %4853 = vmatpush2.msra.mxu0 0.0
    %4854 = vmatprep.subr.mxu0 0.0
    %4855 = vmatpush2.msra.mxu0 0.0
    %4856 = vmatprep.mubr.f32.mxu0 0.0
    %4857 = vmatmul.mubr.f32.gmra.mxu0 %v4788
    %v4858 = vpop.f32.mrf.mxu0
    %v4859 = vadd.f32 %v4785, %v4858
    %v4860 = vpop.f32.mrf.mxu0
    %4861 = vdwg.mxu0
    %v4863 = vsel %vm874, %v4859, 0
    %v4866 = vsel %vm878, %v4098, 0
    %4868 = vmatprep.subr.mxu0 0.0
    %4869 = vmatpush1.msra.mxu0 0.0
    %4870 = vmatprep.subr.mxu0 0.0
    %4871 = vmatpush1.msra.mxu0 0.0
    %4872 = vmatprep.subr.mxu0 0.0
    %4873 = vmatpush1.msra.mxu0 0.0
    %4874 = vmatprep.subr.mxu0 0.0
    %4875 = vmatpush1.msra.mxu0 0.0
    %4876 = vmatprep.subr.mxu0 0.0
    %4877 = vmatpush1.msra.mxu0 0.0
    %4878 = vmatprep.subr.mxu0 0.0
    %4879 = vmatpush1.msra.mxu0 0.0
    %4880 = vmatprep.subr.mxu0 0.0
    %4881 = vmatpush1.msra.mxu0 0.0
    %4882 = vmatprep.subr.mxu0 0.0
    %4883 = vmatpush1.msra.mxu0 0.0
    %4884 = vmatprep.subr.mxu0 0.0
    %4885 = vmatpush1.msra.mxu0 0.0
    %4886 = vmatprep.subr.mxu0 0.0
    %4887 = vmatpush1.msra.mxu0 0.0
    %4888 = vmatprep.subr.mxu0 0.0
    %4889 = vmatpush1.msra.mxu0 0.0
    %4890 = vmatprep.subr.mxu0 0.0
    %4891 = vmatpush1.msra.mxu0 0.0
    %4892 = vmatprep.subr.mxu0 0.0
    %4893 = vmatpush1.msra.mxu0 0.0
    %4894 = vmatprep.subr.mxu0 0.0
    %4895 = vmatpush1.msra.mxu0 0.0
    %4896 = vmatprep.subr.mxu0 0.0
    %4897 = vmatpush1.msra.mxu0 0.0
    %4898 = vmatprep.subr.mxu0 0.0
    %4899 = vmatpush1.msra.mxu0 %v4866
    %4900 = vmatprep.subr.mxu0 0.0
    %4901 = vmatpush2.msra.mxu0 0.0
    %4902 = vmatprep.subr.mxu0 0.0
    %4903 = vmatpush2.msra.mxu0 0.0
    %4904 = vmatprep.subr.mxu0 0.0
    %4905 = vmatpush2.msra.mxu0 0.0
    %4906 = vmatprep.subr.mxu0 0.0
    %4907 = vmatpush2.msra.mxu0 0.0
    %4908 = vmatprep.subr.mxu0 0.0
    %4909 = vmatpush2.msra.mxu0 0.0
    %4910 = vmatprep.subr.mxu0 0.0
    %4911 = vmatpush2.msra.mxu0 0.0
    %4912 = vmatprep.subr.mxu0 0.0
    %4913 = vmatpush2.msra.mxu0 0.0
    %4914 = vmatprep.subr.mxu0 0.0
    %4915 = vmatpush2.msra.mxu0 0.0
    %4916 = vmatprep.subr.mxu0 0.0
    %4917 = vmatpush2.msra.mxu0 0.0
    %4918 = vmatprep.subr.mxu0 0.0
    %4919 = vmatpush2.msra.mxu0 0.0
    %4920 = vmatprep.subr.mxu0 0.0
    %4921 = vmatpush2.msra.mxu0 0.0
    %4922 = vmatprep.subr.mxu0 0.0
    %4923 = vmatpush2.msra.mxu0 0.0
    %4924 = vmatprep.subr.mxu0 0.0
    %4925 = vmatpush2.msra.mxu0 0.0
    %4926 = vmatprep.subr.mxu0 0.0
    %4927 = vmatpush2.msra.mxu0 0.0
    %4928 = vmatprep.subr.mxu0 0.0
    %4929 = vmatpush2.msra.mxu0 0.0
    %4930 = vmatprep.subr.mxu0 0.0
    %4931 = vmatpush2.msra.mxu0 0.0
    %4932 = vmatprep.mubr.f32.mxu0 0.0
    %4933 = vmatmul.mubr.f32.gmra.mxu0 %v4863
    %v4934 = vpop.f32.mrf.mxu0
    %v4935 = vadd.f32 0.0, %v4934
    %v4936 = vpop.f32.mrf.mxu0
    %4937 = vdwg.mxu0
    %v4939 = vrot.slane %v4098, 5
    %v4940 = vrot.slane %v4099, 5
    %v4941 = vsel %vm718, %v4939, %v4940
    %v4942 = vsel %vm878, %v4941, 0
    %4944 = vmatprep.subr.mxu0 0.0
    %4945 = vmatpush1.msra.mxu0 0.0
    %4946 = vmatprep.subr.mxu0 0.0
    %4947 = vmatpush1.msra.mxu0 0.0
    %4948 = vmatprep.subr.mxu0 0.0
    %4949 = vmatpush1.msra.mxu0 0.0
    %4950 = vmatprep.subr.mxu0 0.0
    %4951 = vmatpush1.msra.mxu0 0.0
    %4952 = vmatprep.subr.mxu0 0.0
    %4953 = vmatpush1.msra.mxu0 0.0
    %4954 = vmatprep.subr.mxu0 0.0
    %4955 = vmatpush1.msra.mxu0 0.0
    %4956 = vmatprep.subr.mxu0 0.0
    %4957 = vmatpush1.msra.mxu0 0.0
    %4958 = vmatprep.subr.mxu0 0.0
    %4959 = vmatpush1.msra.mxu0 0.0
    %4960 = vmatprep.subr.mxu0 0.0
    %4961 = vmatpush1.msra.mxu0 0.0
    %4962 = vmatprep.subr.mxu0 0.0
    %4963 = vmatpush1.msra.mxu0 0.0
    %4964 = vmatprep.subr.mxu0 0.0
    %4965 = vmatpush1.msra.mxu0 0.0
    %4966 = vmatprep.subr.mxu0 0.0
    %4967 = vmatpush1.msra.mxu0 0.0
    %4968 = vmatprep.subr.mxu0 0.0
    %4969 = vmatpush1.msra.mxu0 0.0
    %4970 = vmatprep.subr.mxu0 0.0
    %4971 = vmatpush1.msra.mxu0 0.0
    %4972 = vmatprep.subr.mxu0 0.0
    %4973 = vmatpush1.msra.mxu0 0.0
    %4974 = vmatprep.subr.mxu0 0.0
    %4975 = vmatpush1.msra.mxu0 %v4942
    %4976 = vmatprep.subr.mxu0 0.0
    %4977 = vmatpush2.msra.mxu0 0.0
    %4978 = vmatprep.subr.mxu0 0.0
    %4979 = vmatpush2.msra.mxu0 0.0
    %4980 = vmatprep.subr.mxu0 0.0
    %4981 = vmatpush2.msra.mxu0 0.0
    %4982 = vmatprep.subr.mxu0 0.0
    %4983 = vmatpush2.msra.mxu0 0.0
    %4984 = vmatprep.subr.mxu0 0.0
    %4985 = vmatpush2.msra.mxu0 0.0
    %4986 = vmatprep.subr.mxu0 0.0
    %4987 = vmatpush2.msra.mxu0 0.0
    %4988 = vmatprep.subr.mxu0 0.0
    %4989 = vmatpush2.msra.mxu0 0.0
    %4990 = vmatprep.subr.mxu0 0.0
    %4991 = vmatpush2.msra.mxu0 0.0
    %4992 = vmatprep.subr.mxu0 0.0
    %4993 = vmatpush2.msra.mxu0 0.0
    %4994 = vmatprep.subr.mxu0 0.0
    %4995 = vmatpush2.msra.mxu0 0.0
    %4996 = vmatprep.subr.mxu0 0.0
    %4997 = vmatpush2.msra.mxu0 0.0
    %4998 = vmatprep.subr.mxu0 0.0
    %4999 = vmatpush2.msra.mxu0 0.0
    %5000 = vmatprep.subr.mxu0 0.0
    %5001 = vmatpush2.msra.mxu0 0.0
    %5002 = vmatprep.subr.mxu0 0.0
    %5003 = vmatpush2.msra.mxu0 0.0
    %5004 = vmatprep.subr.mxu0 0.0
    %5005 = vmatpush2.msra.mxu0 0.0
    %5006 = vmatprep.subr.mxu0 0.0
    %5007 = vmatpush2.msra.mxu0 0.0
    %5008 = vmatprep.mubr.f32.mxu0 0.0
    %5009 = vmatmul.mubr.f32.gmra.mxu0 %v4863
    %v5010 = vpop.f32.mrf.mxu0
    %v5011 = vadd.f32 0.0, %v5010
    %v5012 = vpop.f32.mrf.mxu0
    %5013 = vdwg.mxu0
    %5015 = vrot.lane.b32.xlu0 %v4498, 123
    %v5016 = vpop.permute.xlu0 %5015
    %v5017 = vsel %vm874, %v5016, 0
    %v5020 = vsel %vm878, %v5011, 0
    %5022 = vmatprep.subr.mxu0 0.0
    %5023 = vmatpush1.msra.mxu0 0.0
    %5024 = vmatprep.subr.mxu0 0.0
    %5025 = vmatpush1.msra.mxu0 0.0
    %5026 = vmatprep.subr.mxu0 0.0
    %5027 = vmatpush1.msra.mxu0 0.0
    %5028 = vmatprep.subr.mxu0 0.0
    %5029 = vmatpush1.msra.mxu0 0.0
    %5030 = vmatprep.subr.mxu0 0.0
    %5031 = vmatpush1.msra.mxu0 0.0
    %5032 = vmatprep.subr.mxu0 0.0
    %5033 = vmatpush1.msra.mxu0 0.0
    %5034 = vmatprep.subr.mxu0 0.0
    %5035 = vmatpush1.msra.mxu0 0.0
    %5036 = vmatprep.subr.mxu0 0.0
    %5037 = vmatpush1.msra.mxu0 0.0
    %5038 = vmatprep.subr.mxu0 0.0
    %5039 = vmatpush1.msra.mxu0 0.0
    %5040 = vmatprep.subr.mxu0 0.0
    %5041 = vmatpush1.msra.mxu0 0.0
    %5042 = vmatprep.subr.mxu0 0.0
    %5043 = vmatpush1.msra.mxu0 0.0
    %5044 = vmatprep.subr.mxu0 0.0
    %5045 = vmatpush1.msra.mxu0 0.0
    %5046 = vmatprep.subr.mxu0 0.0
    %5047 = vmatpush1.msra.mxu0 0.0
    %5048 = vmatprep.subr.mxu0 0.0
    %5049 = vmatpush1.msra.mxu0 0.0
    %5050 = vmatprep.subr.mxu0 0.0
    %5051 = vmatpush1.msra.mxu0 0.0
    %5052 = vmatprep.subr.mxu0 0.0
    %5053 = vmatpush1.msra.mxu0 %v5020
    %5054 = vmatprep.subr.mxu0 0.0
    %5055 = vmatpush2.msra.mxu0 0.0
    %5056 = vmatprep.subr.mxu0 0.0
    %5057 = vmatpush2.msra.mxu0 0.0
    %5058 = vmatprep.subr.mxu0 0.0
    %5059 = vmatpush2.msra.mxu0 0.0
    %5060 = vmatprep.subr.mxu0 0.0
    %5061 = vmatpush2.msra.mxu0 0.0
    %5062 = vmatprep.subr.mxu0 0.0
    %5063 = vmatpush2.msra.mxu0 0.0
    %5064 = vmatprep.subr.mxu0 0.0
    %5065 = vmatpush2.msra.mxu0 0.0
    %5066 = vmatprep.subr.mxu0 0.0
    %5067 = vmatpush2.msra.mxu0 0.0
    %5068 = vmatprep.subr.mxu0 0.0
    %5069 = vmatpush2.msra.mxu0 0.0
    %5070 = vmatprep.subr.mxu0 0.0
    %5071 = vmatpush2.msra.mxu0 0.0
    %5072 = vmatprep.subr.mxu0 0.0
    %5073 = vmatpush2.msra.mxu0 0.0
    %5074 = vmatprep.subr.mxu0 0.0
    %5075 = vmatpush2.msra.mxu0 0.0
    %5076 = vmatprep.subr.mxu0 0.0
    %5077 = vmatpush2.msra.mxu0 0.0
    %5078 = vmatprep.subr.mxu0 0.0
    %5079 = vmatpush2.msra.mxu0 0.0
    %5080 = vmatprep.subr.mxu0 0.0
    %5081 = vmatpush2.msra.mxu0 0.0
    %5082 = vmatprep.subr.mxu0 0.0
    %5083 = vmatpush2.msra.mxu0 0.0
    %5084 = vmatprep.subr.mxu0 0.0
    %5085 = vmatpush2.msra.mxu0 0.0
    %5086 = vmatprep.mubr.f32.mxu0 0.0
    %5087 = vmatmul.mubr.f32.gmra.mxu0 %v5017
    %v5088 = vpop.f32.mrf.mxu0
    %v5089 = vadd.f32 0.0, %v5088
    %v5090 = vpop.f32.mrf.mxu0
    %5091 = vdwg.mxu0
    %v5092 = vsel %vm874, %v4498, 0
    %v5095 = vsel %vm878, %v4935, 0
    %5097 = vmatprep.subr.mxu0 0.0
    %5098 = vmatpush1.msra.mxu0 0.0
    %5099 = vmatprep.subr.mxu0 0.0
    %5100 = vmatpush1.msra.mxu0 0.0
    %5101 = vmatprep.subr.mxu0 0.0
    %5102 = vmatpush1.msra.mxu0 0.0
    %5103 = vmatprep.subr.mxu0 0.0
    %5104 = vmatpush1.msra.mxu0 0.0
    %5105 = vmatprep.subr.mxu0 0.0
    %5106 = vmatpush1.msra.mxu0 0.0
    %5107 = vmatprep.subr.mxu0 0.0
    %5108 = vmatpush1.msra.mxu0 0.0
    %5109 = vmatprep.subr.mxu0 0.0
    %5110 = vmatpush1.msra.mxu0 0.0
    %5111 = vmatprep.subr.mxu0 0.0
    %5112 = vmatpush1.msra.mxu0 0.0
    %5113 = vmatprep.subr.mxu0 0.0
    %5114 = vmatpush1.msra.mxu0 0.0
    %5115 = vmatprep.subr.mxu0 0.0
    %5116 = vmatpush1.msra.mxu0 0.0
    %5117 = vmatprep.subr.mxu0 0.0
    %5118 = vmatpush1.msra.mxu0 0.0
    %5119 = vmatprep.subr.mxu0 0.0
    %5120 = vmatpush1.msra.mxu0 0.0
    %5121 = vmatprep.subr.mxu0 0.0
    %5122 = vmatpush1.msra.mxu0 0.0
    %5123 = vmatprep.subr.mxu0 0.0
    %5124 = vmatpush1.msra.mxu0 0.0
    %5125 = vmatprep.subr.mxu0 0.0
    %5126 = vmatpush1.msra.mxu0 0.0
    %5127 = vmatprep.subr.mxu0 0.0
    %5128 = vmatpush1.msra.mxu0 %v5095
    %5129 = vmatprep.subr.mxu0 0.0
    %5130 = vmatpush2.msra.mxu0 0.0
    %5131 = vmatprep.subr.mxu0 0.0
    %5132 = vmatpush2.msra.mxu0 0.0
    %5133 = vmatprep.subr.mxu0 0.0
    %5134 = vmatpush2.msra.mxu0 0.0
    %5135 = vmatprep.subr.mxu0 0.0
    %5136 = vmatpush2.msra.mxu0 0.0
    %5137 = vmatprep.subr.mxu0 0.0
    %5138 = vmatpush2.msra.mxu0 0.0
    %5139 = vmatprep.subr.mxu0 0.0
    %5140 = vmatpush2.msra.mxu0 0.0
    %5141 = vmatprep.subr.mxu0 0.0
    %5142 = vmatpush2.msra.mxu0 0.0
    %5143 = vmatprep.subr.mxu0 0.0
    %5144 = vmatpush2.msra.mxu0 0.0
    %5145 = vmatprep.subr.mxu0 0.0
    %5146 = vmatpush2.msra.mxu0 0.0
    %5147 = vmatprep.subr.mxu0 0.0
    %5148 = vmatpush2.msra.mxu0 0.0
    %5149 = vmatprep.subr.mxu0 0.0
    %5150 = vmatpush2.msra.mxu0 0.0
    %5151 = vmatprep.subr.mxu0 0.0
    %5152 = vmatpush2.msra.mxu0 0.0
    %5153 = vmatprep.subr.mxu0 0.0
    %5154 = vmatpush2.msra.mxu0 0.0
    %5155 = vmatprep.subr.mxu0 0.0
    %5156 = vmatpush2.msra.mxu0 0.0
    %5157 = vmatprep.subr.mxu0 0.0
    %5158 = vmatpush2.msra.mxu0 0.0
    %5159 = vmatprep.subr.mxu0 0.0
    %5160 = vmatpush2.msra.mxu0 0.0
    %5161 = vmatprep.mubr.f32.mxu0 0.0
    %5162 = vmatmul.mubr.f32.gmra.mxu0 %v5092
    %v5163 = vpop.f32.mrf.mxu0
    %v5164 = vadd.f32 %v5089, %v5163
    %v5165 = vpop.f32.mrf.mxu0
    %5166 = vdwg.mxu0
    %5167 = vrot.lane.b32.xlu0 %v4710, 124
    %v5168 = vpop.permute.xlu0 %5167
    %v5169 = vrot.slane %v4666, 4
    %5170 = vrot.lane.b32.xlu0 %v5169, 123
    %v5171 = vpop.permute.xlu0 %5170
    %v5172 = vsel %vm725, %v5168, 0
    %v5174 = vsel %vm435, %v5171, 0
    %5176 = vmatprep.subr.mxu0 0.0
    %5177 = vmatpush1.msra.mxu0 0.0
    %5178 = vmatprep.subr.mxu0 0.0
    %5179 = vmatpush1.msra.mxu0 0.0
    %5180 = vmatprep.subr.mxu0 0.0
    %5181 = vmatpush1.msra.mxu0 0.0
    %5182 = vmatprep.subr.mxu0 0.0
    %5183 = vmatpush1.msra.mxu0 0.0
    %5184 = vmatprep.subr.mxu0 0.0
    %5185 = vmatpush1.msra.mxu0 0.0
    %5186 = vmatprep.subr.mxu0 0.0
    %5187 = vmatpush1.msra.mxu0 0.0
    %5188 = vmatprep.subr.mxu0 0.0
    %5189 = vmatpush1.msra.mxu0 0.0
    %5190 = vmatprep.subr.mxu0 0.0
    %5191 = vmatpush1.msra.mxu0 0.0
    %5192 = vmatprep.subr.mxu0 0.0
    %5193 = vmatpush1.msra.mxu0 0.0
    %5194 = vmatprep.subr.mxu0 0.0
    %5195 = vmatpush1.msra.mxu0 0.0
    %5196 = vmatprep.subr.mxu0 0.0
    %5197 = vmatpush1.msra.mxu0 0.0
    %5198 = vmatprep.subr.mxu0 0.0
    %5199 = vmatpush1.msra.mxu0 0.0
    %5200 = vmatprep.subr.mxu0 0.0
    %5201 = vmatpush1.msra.mxu0 0.0
    %5202 = vmatprep.subr.mxu0 0.0
    %5203 = vmatpush1.msra.mxu0 0.0
    %5204 = vmatprep.subr.mxu0 0.0
    %5205 = vmatpush1.msra.mxu0 0.0
    %5206 = vmatprep.subr.mxu0 0.0
    %5207 = vmatpush1.msra.mxu0 %v5174
    %5208 = vmatprep.subr.mxu0 0.0
    %5209 = vmatpush2.msra.mxu0 0.0
    %5210 = vmatprep.subr.mxu0 0.0
    %5211 = vmatpush2.msra.mxu0 0.0
    %5212 = vmatprep.subr.mxu0 0.0
    %5213 = vmatpush2.msra.mxu0 0.0
    %5214 = vmatprep.subr.mxu0 0.0
    %5215 = vmatpush2.msra.mxu0 0.0
    %5216 = vmatprep.subr.mxu0 0.0
    %5217 = vmatpush2.msra.mxu0 0.0
    %5218 = vmatprep.subr.mxu0 0.0
    %5219 = vmatpush2.msra.mxu0 0.0
    %5220 = vmatprep.subr.mxu0 0.0
    %5221 = vmatpush2.msra.mxu0 0.0
    %5222 = vmatprep.subr.mxu0 0.0
    %5223 = vmatpush2.msra.mxu0 0.0
    %5224 = vmatprep.subr.mxu0 0.0
    %5225 = vmatpush2.msra.mxu0 0.0
    %5226 = vmatprep.subr.mxu0 0.0
    %5227 = vmatpush2.msra.mxu0 0.0
    %5228 = vmatprep.subr.mxu0 0.0
    %5229 = vmatpush2.msra.mxu0 0.0
    %5230 = vmatprep.subr.mxu0 0.0
    %5231 = vmatpush2.msra.mxu0 0.0
    %5232 = vmatprep.subr.mxu0 0.0
    %5233 = vmatpush2.msra.mxu0 0.0
    %5234 = vmatprep.subr.mxu0 0.0
    %5235 = vmatpush2.msra.mxu0 0.0
    %5236 = vmatprep.subr.mxu0 0.0
    %5237 = vmatpush2.msra.mxu0 0.0
    %5238 = vmatprep.subr.mxu0 0.0
    %5239 = vmatpush2.msra.mxu0 0.0
    %5240 = vmatprep.mubr.f32.mxu0 0.0
    %5241 = vmatmul.mubr.f32.gmra.mxu0 %v5172
    %v5242 = vpop.f32.mrf.mxu0
    %v5243 = vadd.f32 0.0, %v5242
    %v5244 = vpop.f32.mrf.mxu0
    %5245 = vdwg.mxu0
    %5246 = vrot.lane.b32.xlu0 %v4690, 124
    %v5247 = vpop.permute.xlu0 %5246
    %v5248 = vsel %vm725, %v5247, 0
    %v5250 = vsel %vm435, %v5169, 0
    %5252 = vmatprep.subr.mxu0 0.0
    %5253 = vmatpush1.msra.mxu0 0.0
    %5254 = vmatprep.subr.mxu0 0.0
    %5255 = vmatpush1.msra.mxu0 0.0
    %5256 = vmatprep.subr.mxu0 0.0
    %5257 = vmatpush1.msra.mxu0 0.0
    %5258 = vmatprep.subr.mxu0 0.0
    %5259 = vmatpush1.msra.mxu0 0.0
    %5260 = vmatprep.subr.mxu0 0.0
    %5261 = vmatpush1.msra.mxu0 0.0
    %5262 = vmatprep.subr.mxu0 0.0
    %5263 = vmatpush1.msra.mxu0 0.0
    %5264 = vmatprep.subr.mxu0 0.0
    %5265 = vmatpush1.msra.mxu0 0.0
    %5266 = vmatprep.subr.mxu0 0.0
    %5267 = vmatpush1.msra.mxu0 0.0
    %5268 = vmatprep.subr.mxu0 0.0
    %5269 = vmatpush1.msra.mxu0 0.0
    %5270 = vmatprep.subr.mxu0 0.0
    %5271 = vmatpush1.msra.mxu0 0.0
    %5272 = vmatprep.subr.mxu0 0.0
    %5273 = vmatpush1.msra.mxu0 0.0
    %5274 = vmatprep.subr.mxu0 0.0
    %5275 = vmatpush1.msra.mxu0 0.0
    %5276 = vmatprep.subr.mxu0 0.0
    %5277 = vmatpush1.msra.mxu0 0.0
    %5278 = vmatprep.subr.mxu0 0.0
    %5279 = vmatpush1.msra.mxu0 0.0
    %5280 = vmatprep.subr.mxu0 0.0
    %5281 = vmatpush1.msra.mxu0 0.0
    %5282 = vmatprep.subr.mxu0 0.0
    %5283 = vmatpush1.msra.mxu0 %v5250
    %5284 = vmatprep.subr.mxu0 0.0
    %5285 = vmatpush2.msra.mxu0 0.0
    %5286 = vmatprep.subr.mxu0 0.0
    %5287 = vmatpush2.msra.mxu0 0.0
    %5288 = vmatprep.subr.mxu0 0.0
    %5289 = vmatpush2.msra.mxu0 0.0
    %5290 = vmatprep.subr.mxu0 0.0
    %5291 = vmatpush2.msra.mxu0 0.0
    %5292 = vmatprep.subr.mxu0 0.0
    %5293 = vmatpush2.msra.mxu0 0.0
    %5294 = vmatprep.subr.mxu0 0.0
    %5295 = vmatpush2.msra.mxu0 0.0
    %5296 = vmatprep.subr.mxu0 0.0
    %5297 = vmatpush2.msra.mxu0 0.0
    %5298 = vmatprep.subr.mxu0 0.0
    %5299 = vmatpush2.msra.mxu0 0.0
    %5300 = vmatprep.subr.mxu0 0.0
    %5301 = vmatpush2.msra.mxu0 0.0
    %5302 = vmatprep.subr.mxu0 0.0
    %5303 = vmatpush2.msra.mxu0 0.0
    %5304 = vmatprep.subr.mxu0 0.0
    %5305 = vmatpush2.msra.mxu0 0.0
    %5306 = vmatprep.subr.mxu0 0.0
    %5307 = vmatpush2.msra.mxu0 0.0
    %5308 = vmatprep.subr.mxu0 0.0
    %5309 = vmatpush2.msra.mxu0 0.0
    %5310 = vmatprep.subr.mxu0 0.0
    %5311 = vmatpush2.msra.mxu0 0.0
    %5312 = vmatprep.subr.mxu0 0.0
    %5313 = vmatpush2.msra.mxu0 0.0
    %5314 = vmatprep.subr.mxu0 0.0
    %5315 = vmatpush2.msra.mxu0 0.0
    %5316 = vmatprep.mubr.f32.mxu0 0.0
    %5317 = vmatmul.mubr.f32.gmra.mxu0 %v5248
    %v5318 = vpop.f32.mrf.mxu0
    %v5319 = vadd.f32 %v5243, %v5318
    %v5320 = vpop.f32.mrf.mxu0
    %5321 = vdwg.mxu0
    %v5323 = vsel %vm874, %v5319, 0
    %5325 = vmatprep.subr.mxu0 0.0
    %5326 = vmatpush1.msra.mxu0 0.0
    %5327 = vmatprep.subr.mxu0 0.0
    %5328 = vmatpush1.msra.mxu0 0.0
    %5329 = vmatprep.subr.mxu0 0.0
    %5330 = vmatpush1.msra.mxu0 0.0
    %5331 = vmatprep.subr.mxu0 0.0
    %5332 = vmatpush1.msra.mxu0 0.0
    %5333 = vmatprep.subr.mxu0 0.0
    %5334 = vmatpush1.msra.mxu0 0.0
    %5335 = vmatprep.subr.mxu0 0.0
    %5336 = vmatpush1.msra.mxu0 0.0
    %5337 = vmatprep.subr.mxu0 0.0
    %5338 = vmatpush1.msra.mxu0 0.0
    %5339 = vmatprep.subr.mxu0 0.0
    %5340 = vmatpush1.msra.mxu0 0.0
    %5341 = vmatprep.subr.mxu0 0.0
    %5342 = vmatpush1.msra.mxu0 0.0
    %5343 = vmatprep.subr.mxu0 0.0
    %5344 = vmatpush1.msra.mxu0 0.0
    %5345 = vmatprep.subr.mxu0 0.0
    %5346 = vmatpush1.msra.mxu0 0.0
    %5347 = vmatprep.subr.mxu0 0.0
    %5348 = vmatpush1.msra.mxu0 0.0
    %5349 = vmatprep.subr.mxu0 0.0
    %5350 = vmatpush1.msra.mxu0 0.0
    %5351 = vmatprep.subr.mxu0 0.0
    %5352 = vmatpush1.msra.mxu0 0.0
    %5353 = vmatprep.subr.mxu0 0.0
    %5354 = vmatpush1.msra.mxu0 0.0
    %5355 = vmatprep.subr.mxu0 0.0
    %5356 = vmatpush1.msra.mxu0 %v4866
    %5357 = vmatprep.subr.mxu0 0.0
    %5358 = vmatpush2.msra.mxu0 0.0
    %5359 = vmatprep.subr.mxu0 0.0
    %5360 = vmatpush2.msra.mxu0 0.0
    %5361 = vmatprep.subr.mxu0 0.0
    %5362 = vmatpush2.msra.mxu0 0.0
    %5363 = vmatprep.subr.mxu0 0.0
    %5364 = vmatpush2.msra.mxu0 0.0
    %5365 = vmatprep.subr.mxu0 0.0
    %5366 = vmatpush2.msra.mxu0 0.0
    %5367 = vmatprep.subr.mxu0 0.0
    %5368 = vmatpush2.msra.mxu0 0.0
    %5369 = vmatprep.subr.mxu0 0.0
    %5370 = vmatpush2.msra.mxu0 0.0
    %5371 = vmatprep.subr.mxu0 0.0
    %5372 = vmatpush2.msra.mxu0 0.0
    %5373 = vmatprep.subr.mxu0 0.0
    %5374 = vmatpush2.msra.mxu0 0.0
    %5375 = vmatprep.subr.mxu0 0.0
    %5376 = vmatpush2.msra.mxu0 0.0
    %5377 = vmatprep.subr.mxu0 0.0
    %5378 = vmatpush2.msra.mxu0 0.0
    %5379 = vmatprep.subr.mxu0 0.0
    %5380 = vmatpush2.msra.mxu0 0.0
    %5381 = vmatprep.subr.mxu0 0.0
    %5382 = vmatpush2.msra.mxu0 0.0
    %5383 = vmatprep.subr.mxu0 0.0
    %5384 = vmatpush2.msra.mxu0 0.0
    %5385 = vmatprep.subr.mxu0 0.0
    %5386 = vmatpush2.msra.mxu0 0.0
    %5387 = vmatprep.subr.mxu0 0.0
    %5388 = vmatpush2.msra.mxu0 0.0
    %5389 = vmatprep.mubr.f32.mxu0 0.0
    %5390 = vmatmul.mubr.f32.gmra.mxu0 %v5323
    %v5391 = vpop.f32.mrf.mxu0
    %v5392 = vadd.f32 0.0, %v5391
    %v5393 = vpop.f32.mrf.mxu0
    %5394 = vdwg.mxu0
    %5395 = vmatprep.subr.mxu0 0.0
    %5396 = vmatpush1.msra.mxu0 0.0
    %5397 = vmatprep.subr.mxu0 0.0
    %5398 = vmatpush1.msra.mxu0 0.0
    %5399 = vmatprep.subr.mxu0 0.0
    %5400 = vmatpush1.msra.mxu0 0.0
    %5401 = vmatprep.subr.mxu0 0.0
    %5402 = vmatpush1.msra.mxu0 0.0
    %5403 = vmatprep.subr.mxu0 0.0
    %5404 = vmatpush1.msra.mxu0 0.0
    %5405 = vmatprep.subr.mxu0 0.0
    %5406 = vmatpush1.msra.mxu0 0.0
    %5407 = vmatprep.subr.mxu0 0.0
    %5408 = vmatpush1.msra.mxu0 0.0
    %5409 = vmatprep.subr.mxu0 0.0
    %5410 = vmatpush1.msra.mxu0 0.0
    %5411 = vmatprep.subr.mxu0 0.0
    %5412 = vmatpush1.msra.mxu0 0.0
    %5413 = vmatprep.subr.mxu0 0.0
    %5414 = vmatpush1.msra.mxu0 0.0
    %5415 = vmatprep.subr.mxu0 0.0
    %5416 = vmatpush1.msra.mxu0 0.0
    %5417 = vmatprep.subr.mxu0 0.0
    %5418 = vmatpush1.msra.mxu0 0.0
    %5419 = vmatprep.subr.mxu0 0.0
    %5420 = vmatpush1.msra.mxu0 0.0
    %5421 = vmatprep.subr.mxu0 0.0
    %5422 = vmatpush1.msra.mxu0 0.0
    %5423 = vmatprep.subr.mxu0 0.0
    %5424 = vmatpush1.msra.mxu0 0.0
    %5425 = vmatprep.subr.mxu0 0.0
    %5426 = vmatpush1.msra.mxu0 %v4942
    %5427 = vmatprep.subr.mxu0 0.0
    %5428 = vmatpush2.msra.mxu0 0.0
    %5429 = vmatprep.subr.mxu0 0.0
    %5430 = vmatpush2.msra.mxu0 0.0
    %5431 = vmatprep.subr.mxu0 0.0
    %5432 = vmatpush2.msra.mxu0 0.0
    %5433 = vmatprep.subr.mxu0 0.0
    %5434 = vmatpush2.msra.mxu0 0.0
    %5435 = vmatprep.subr.mxu0 0.0
    %5436 = vmatpush2.msra.mxu0 0.0
    %5437 = vmatprep.subr.mxu0 0.0
    %5438 = vmatpush2.msra.mxu0 0.0
    %5439 = vmatprep.subr.mxu0 0.0
    %5440 = vmatpush2.msra.mxu0 0.0
    %5441 = vmatprep.subr.mxu0 0.0
    %5442 = vmatpush2.msra.mxu0 0.0
    %5443 = vmatprep.subr.mxu0 0.0
    %5444 = vmatpush2.msra.mxu0 0.0
    %5445 = vmatprep.subr.mxu0 0.0
    %5446 = vmatpush2.msra.mxu0 0.0
    %5447 = vmatprep.subr.mxu0 0.0
    %5448 = vmatpush2.msra.mxu0 0.0
    %5449 = vmatprep.subr.mxu0 0.0
    %5450 = vmatpush2.msra.mxu0 0.0
    %5451 = vmatprep.subr.mxu0 0.0
    %5452 = vmatpush2.msra.mxu0 0.0
    %5453 = vmatprep.subr.mxu0 0.0
    %5454 = vmatpush2.msra.mxu0 0.0
    %5455 = vmatprep.subr.mxu0 0.0
    %5456 = vmatpush2.msra.mxu0 0.0
    %5457 = vmatprep.subr.mxu0 0.0
    %5458 = vmatpush2.msra.mxu0 0.0
    %5459 = vmatprep.mubr.f32.mxu0 0.0
    %5460 = vmatmul.mubr.f32.gmra.mxu0 %v5323
    %v5461 = vpop.f32.mrf.mxu0
    %v5462 = vadd.f32 0.0, %v5461
    %v5463 = vpop.f32.mrf.mxu0
    %5464 = vdwg.mxu0
    %v5465 = vrot.slane %v4498, 4
    %5466 = vrot.lane.b32.xlu0 %v5465, 123
    %v5467 = vpop.permute.xlu0 %5466
    %v5468 = vsel %vm874, %v5467, 0
    %v5471 = vsel %vm878, %v5462, 0
    %5473 = vmatprep.subr.mxu0 0.0
    %5474 = vmatpush1.msra.mxu0 0.0
    %5475 = vmatprep.subr.mxu0 0.0
    %5476 = vmatpush1.msra.mxu0 0.0
    %5477 = vmatprep.subr.mxu0 0.0
    %5478 = vmatpush1.msra.mxu0 0.0
    %5479 = vmatprep.subr.mxu0 0.0
    %5480 = vmatpush1.msra.mxu0 0.0
    %5481 = vmatprep.subr.mxu0 0.0
    %5482 = vmatpush1.msra.mxu0 0.0
    %5483 = vmatprep.subr.mxu0 0.0
    %5484 = vmatpush1.msra.mxu0 0.0
    %5485 = vmatprep.subr.mxu0 0.0
    %5486 = vmatpush1.msra.mxu0 0.0
    %5487 = vmatprep.subr.mxu0 0.0
    %5488 = vmatpush1.msra.mxu0 0.0
    %5489 = vmatprep.subr.mxu0 0.0
    %5490 = vmatpush1.msra.mxu0 0.0
    %5491 = vmatprep.subr.mxu0 0.0
    %5492 = vmatpush1.msra.mxu0 0.0
    %5493 = vmatprep.subr.mxu0 0.0
    %5494 = vmatpush1.msra.mxu0 0.0
    %5495 = vmatprep.subr.mxu0 0.0
    %5496 = vmatpush1.msra.mxu0 0.0
    %5497 = vmatprep.subr.mxu0 0.0
    %5498 = vmatpush1.msra.mxu0 0.0
    %5499 = vmatprep.subr.mxu0 0.0
    %5500 = vmatpush1.msra.mxu0 0.0
    %5501 = vmatprep.subr.mxu0 0.0
    %5502 = vmatpush1.msra.mxu0 0.0
    %5503 = vmatprep.subr.mxu0 0.0
    %5504 = vmatpush1.msra.mxu0 %v5471
    %5505 = vmatprep.subr.mxu0 0.0
    %5506 = vmatpush2.msra.mxu0 0.0
    %5507 = vmatprep.subr.mxu0 0.0
    %5508 = vmatpush2.msra.mxu0 0.0
    %5509 = vmatprep.subr.mxu0 0.0
    %5510 = vmatpush2.msra.mxu0 0.0
    %5511 = vmatprep.subr.mxu0 0.0
    %5512 = vmatpush2.msra.mxu0 0.0
    %5513 = vmatprep.subr.mxu0 0.0
    %5514 = vmatpush2.msra.mxu0 0.0
    %5515 = vmatprep.subr.mxu0 0.0
    %5516 = vmatpush2.msra.mxu0 0.0
    %5517 = vmatprep.subr.mxu0 0.0
    %5518 = vmatpush2.msra.mxu0 0.0
    %5519 = vmatprep.subr.mxu0 0.0
    %5520 = vmatpush2.msra.mxu0 0.0
    %5521 = vmatprep.subr.mxu0 0.0
    %5522 = vmatpush2.msra.mxu0 0.0
    %5523 = vmatprep.subr.mxu0 0.0
    %5524 = vmatpush2.msra.mxu0 0.0
    %5525 = vmatprep.subr.mxu0 0.0
    %5526 = vmatpush2.msra.mxu0 0.0
    %5527 = vmatprep.subr.mxu0 0.0
    %5528 = vmatpush2.msra.mxu0 0.0
    %5529 = vmatprep.subr.mxu0 0.0
    %5530 = vmatpush2.msra.mxu0 0.0
    %5531 = vmatprep.subr.mxu0 0.0
    %5532 = vmatpush2.msra.mxu0 0.0
    %5533 = vmatprep.subr.mxu0 0.0
    %5534 = vmatpush2.msra.mxu0 0.0
    %5535 = vmatprep.subr.mxu0 0.0
    %5536 = vmatpush2.msra.mxu0 0.0
    %5537 = vmatprep.mubr.f32.mxu0 0.0
    %5538 = vmatmul.mubr.f32.gmra.mxu0 %v5468
    %v5539 = vpop.f32.mrf.mxu0
    %v5540 = vadd.f32 0.0, %v5539
    %v5541 = vpop.f32.mrf.mxu0
    %5542 = vdwg.mxu0
    %v5543 = vsel %vm874, %v5465, 0
    %v5546 = vsel %vm878, %v5392, 0
    %5548 = vmatprep.subr.mxu0 0.0
    %5549 = vmatpush1.msra.mxu0 0.0
    %5550 = vmatprep.subr.mxu0 0.0
    %5551 = vmatpush1.msra.mxu0 0.0
    %5552 = vmatprep.subr.mxu0 0.0
    %5553 = vmatpush1.msra.mxu0 0.0
    %5554 = vmatprep.subr.mxu0 0.0
    %5555 = vmatpush1.msra.mxu0 0.0
    %5556 = vmatprep.subr.mxu0 0.0
    %5557 = vmatpush1.msra.mxu0 0.0
    %5558 = vmatprep.subr.mxu0 0.0
    %5559 = vmatpush1.msra.mxu0 0.0
    %5560 = vmatprep.subr.mxu0 0.0
    %5561 = vmatpush1.msra.mxu0 0.0
    %5562 = vmatprep.subr.mxu0 0.0
    %5563 = vmatpush1.msra.mxu0 0.0
    %5564 = vmatprep.subr.mxu0 0.0
    %5565 = vmatpush1.msra.mxu0 0.0
    %5566 = vmatprep.subr.mxu0 0.0
    %5567 = vmatpush1.msra.mxu0 0.0
    %5568 = vmatprep.subr.mxu0 0.0
    %5569 = vmatpush1.msra.mxu0 0.0
    %5570 = vmatprep.subr.mxu0 0.0
    %5571 = vmatpush1.msra.mxu0 0.0
    %5572 = vmatprep.subr.mxu0 0.0
    %5573 = vmatpush1.msra.mxu0 0.0
    %5574 = vmatprep.subr.mxu0 0.0
    %5575 = vmatpush1.msra.mxu0 0.0
    %5576 = vmatprep.subr.mxu0 0.0
    %5577 = vmatpush1.msra.mxu0 0.0
    %5578 = vmatprep.subr.mxu0 0.0
    %5579 = vmatpush1.msra.mxu0 %v5546
    %5580 = vmatprep.subr.mxu0 0.0
    %5581 = vmatpush2.msra.mxu0 0.0
    %5582 = vmatprep.subr.mxu0 0.0
    %5583 = vmatpush2.msra.mxu0 0.0
    %5584 = vmatprep.subr.mxu0 0.0
    %5585 = vmatpush2.msra.mxu0 0.0
    %5586 = vmatprep.subr.mxu0 0.0
    %5587 = vmatpush2.msra.mxu0 0.0
    %5588 = vmatprep.subr.mxu0 0.0
    %5589 = vmatpush2.msra.mxu0 0.0
    %5590 = vmatprep.subr.mxu0 0.0
    %5591 = vmatpush2.msra.mxu0 0.0
    %5592 = vmatprep.subr.mxu0 0.0
    %5593 = vmatpush2.msra.mxu0 0.0
    %5594 = vmatprep.subr.mxu0 0.0
    %5595 = vmatpush2.msra.mxu0 0.0
    %5596 = vmatprep.subr.mxu0 0.0
    %5597 = vmatpush2.msra.mxu0 0.0
    %5598 = vmatprep.subr.mxu0 0.0
    %5599 = vmatpush2.msra.mxu0 0.0
    %5600 = vmatprep.subr.mxu0 0.0
    %5601 = vmatpush2.msra.mxu0 0.0
    %5602 = vmatprep.subr.mxu0 0.0
    %5603 = vmatpush2.msra.mxu0 0.0
    %5604 = vmatprep.subr.mxu0 0.0
    %5605 = vmatpush2.msra.mxu0 0.0
    %5606 = vmatprep.subr.mxu0 0.0
    %5607 = vmatpush2.msra.mxu0 0.0
    %5608 = vmatprep.subr.mxu0 0.0
    %5609 = vmatpush2.msra.mxu0 0.0
    %5610 = vmatprep.subr.mxu0 0.0
    %5611 = vmatpush2.msra.mxu0 0.0
    %5612 = vmatprep.mubr.f32.mxu0 0.0
    %5613 = vmatmul.mubr.f32.gmra.mxu0 %v5543
    %v5614 = vpop.f32.mrf.mxu0
    %v5615 = vadd.f32 %v5540, %v5614
    %v5616 = vpop.f32.mrf.mxu0
    %5617 = vdwg.mxu0
    %5618 = vrot.lane.b32.xlu0 %v4710, 120
    %v5619 = vpop.permute.xlu0 %5618
    %5621 = vrot.lane.b32.xlu0 %v4671, 123
    %v5622 = vpop.permute.xlu0 %5621
    %v5623 = vsel %vm725, %v5619, 0
    %v5625 = vsel %vm435, %v5622, 0
    %5627 = vmatprep.subr.mxu0 0.0
    %5628 = vmatpush1.msra.mxu0 0.0
    %5629 = vmatprep.subr.mxu0 0.0
    %5630 = vmatpush1.msra.mxu0 0.0
    %5631 = vmatprep.subr.mxu0 0.0
    %5632 = vmatpush1.msra.mxu0 0.0
    %5633 = vmatprep.subr.mxu0 0.0
    %5634 = vmatpush1.msra.mxu0 0.0
    %5635 = vmatprep.subr.mxu0 0.0
    %5636 = vmatpush1.msra.mxu0 0.0
    %5637 = vmatprep.subr.mxu0 0.0
    %5638 = vmatpush1.msra.mxu0 0.0
    %5639 = vmatprep.subr.mxu0 0.0
    %5640 = vmatpush1.msra.mxu0 0.0
    %5641 = vmatprep.subr.mxu0 0.0
    %5642 = vmatpush1.msra.mxu0 0.0
    %5643 = vmatprep.subr.mxu0 0.0
    %5644 = vmatpush1.msra.mxu0 0.0
    %5645 = vmatprep.subr.mxu0 0.0
    %5646 = vmatpush1.msra.mxu0 0.0
    %5647 = vmatprep.subr.mxu0 0.0
    %5648 = vmatpush1.msra.mxu0 0.0
    %5649 = vmatprep.subr.mxu0 0.0
    %5650 = vmatpush1.msra.mxu0 0.0
    %5651 = vmatprep.subr.mxu0 0.0
    %5652 = vmatpush1.msra.mxu0 0.0
    %5653 = vmatprep.subr.mxu0 0.0
    %5654 = vmatpush1.msra.mxu0 0.0
    %5655 = vmatprep.subr.mxu0 0.0
    %5656 = vmatpush1.msra.mxu0 0.0
    %5657 = vmatprep.subr.mxu0 0.0
    %5658 = vmatpush1.msra.mxu0 %v5625
    %5659 = vmatprep.subr.mxu0 0.0
    %5660 = vmatpush2.msra.mxu0 0.0
    %5661 = vmatprep.subr.mxu0 0.0
    %5662 = vmatpush2.msra.mxu0 0.0
    %5663 = vmatprep.subr.mxu0 0.0
    %5664 = vmatpush2.msra.mxu0 0.0
    %5665 = vmatprep.subr.mxu0 0.0
    %5666 = vmatpush2.msra.mxu0 0.0
    %5667 = vmatprep.subr.mxu0 0.0
    %5668 = vmatpush2.msra.mxu0 0.0
    %5669 = vmatprep.subr.mxu0 0.0
    %5670 = vmatpush2.msra.mxu0 0.0
    %5671 = vmatprep.subr.mxu0 0.0
    %5672 = vmatpush2.msra.mxu0 0.0
    %5673 = vmatprep.subr.mxu0 0.0
    %5674 = vmatpush2.msra.mxu0 0.0
    %5675 = vmatprep.subr.mxu0 0.0
    %5676 = vmatpush2.msra.mxu0 0.0
    %5677 = vmatprep.subr.mxu0 0.0
    %5678 = vmatpush2.msra.mxu0 0.0
    %5679 = vmatprep.subr.mxu0 0.0
    %5680 = vmatpush2.msra.mxu0 0.0
    %5681 = vmatprep.subr.mxu0 0.0
    %5682 = vmatpush2.msra.mxu0 0.0
    %5683 = vmatprep.subr.mxu0 0.0
    %5684 = vmatpush2.msra.mxu0 0.0
    %5685 = vmatprep.subr.mxu0 0.0
    %5686 = vmatpush2.msra.mxu0 0.0
    %5687 = vmatprep.subr.mxu0 0.0
    %5688 = vmatpush2.msra.mxu0 0.0
    %5689 = vmatprep.subr.mxu0 0.0
    %5690 = vmatpush2.msra.mxu0 0.0
    %5691 = vmatprep.mubr.f32.mxu0 0.0
    %5692 = vmatmul.mubr.f32.gmra.mxu0 %v5623
    %v5693 = vpop.f32.mrf.mxu0
    %v5694 = vadd.f32 0.0, %v5693
    %v5695 = vpop.f32.mrf.mxu0
    %5696 = vdwg.mxu0
    %5697 = vrot.lane.b32.xlu0 %v4690, 120
    %v5698 = vpop.permute.xlu0 %5697
    %v5699 = vsel %vm725, %v5698, 0
    %v5701 = vsel %vm435, %v4671, 0
    %5703 = vmatprep.subr.mxu0 0.0
    %5704 = vmatpush1.msra.mxu0 0.0
    %5705 = vmatprep.subr.mxu0 0.0
    %5706 = vmatpush1.msra.mxu0 0.0
    %5707 = vmatprep.subr.mxu0 0.0
    %5708 = vmatpush1.msra.mxu0 0.0
    %5709 = vmatprep.subr.mxu0 0.0
    %5710 = vmatpush1.msra.mxu0 0.0
    %5711 = vmatprep.subr.mxu0 0.0
    %5712 = vmatpush1.msra.mxu0 0.0
    %5713 = vmatprep.subr.mxu0 0.0
    %5714 = vmatpush1.msra.mxu0 0.0
    %5715 = vmatprep.subr.mxu0 0.0
    %5716 = vmatpush1.msra.mxu0 0.0
    %5717 = vmatprep.subr.mxu0 0.0
    %5718 = vmatpush1.msra.mxu0 0.0
    %5719 = vmatprep.subr.mxu0 0.0
    %5720 = vmatpush1.msra.mxu0 0.0
    %5721 = vmatprep.subr.mxu0 0.0
    %5722 = vmatpush1.msra.mxu0 0.0
    %5723 = vmatprep.subr.mxu0 0.0
    %5724 = vmatpush1.msra.mxu0 0.0
    %5725 = vmatprep.subr.mxu0 0.0
    %5726 = vmatpush1.msra.mxu0 0.0
    %5727 = vmatprep.subr.mxu0 0.0
    %5728 = vmatpush1.msra.mxu0 0.0
    %5729 = vmatprep.subr.mxu0 0.0
    %5730 = vmatpush1.msra.mxu0 0.0
    %5731 = vmatprep.subr.mxu0 0.0
    %5732 = vmatpush1.msra.mxu0 0.0
    %5733 = vmatprep.subr.mxu0 0.0
    %5734 = vmatpush1.msra.mxu0 %v5701
    %5735 = vmatprep.subr.mxu0 0.0
    %5736 = vmatpush2.msra.mxu0 0.0
    %5737 = vmatprep.subr.mxu0 0.0
    %5738 = vmatpush2.msra.mxu0 0.0
    %5739 = vmatprep.subr.mxu0 0.0
    %5740 = vmatpush2.msra.mxu0 0.0
    %5741 = vmatprep.subr.mxu0 0.0
    %5742 = vmatpush2.msra.mxu0 0.0
    %5743 = vmatprep.subr.mxu0 0.0
    %5744 = vmatpush2.msra.mxu0 0.0
    %5745 = vmatprep.subr.mxu0 0.0
    %5746 = vmatpush2.msra.mxu0 0.0
    %5747 = vmatprep.subr.mxu0 0.0
    %5748 = vmatpush2.msra.mxu0 0.0
    %5749 = vmatprep.subr.mxu0 0.0
    %5750 = vmatpush2.msra.mxu0 0.0
    %5751 = vmatprep.subr.mxu0 0.0
    %5752 = vmatpush2.msra.mxu0 0.0
    %5753 = vmatprep.subr.mxu0 0.0
    %5754 = vmatpush2.msra.mxu0 0.0
    %5755 = vmatprep.subr.mxu0 0.0
    %5756 = vmatpush2.msra.mxu0 0.0
    %5757 = vmatprep.subr.mxu0 0.0
    %5758 = vmatpush2.msra.mxu0 0.0
    %5759 = vmatprep.subr.mxu0 0.0
    %5760 = vmatpush2.msra.mxu0 0.0
    %5761 = vmatprep.subr.mxu0 0.0
    %5762 = vmatpush2.msra.mxu0 0.0
    %5763 = vmatprep.subr.mxu0 0.0
    %5764 = vmatpush2.msra.mxu0 0.0
    %5765 = vmatprep.subr.mxu0 0.0
    %5766 = vmatpush2.msra.mxu0 0.0
    %5767 = vmatprep.mubr.f32.mxu0 0.0
    %5768 = vmatmul.mubr.f32.gmra.mxu0 %v5699
    %v5769 = vpop.f32.mrf.mxu0
    %v5770 = vadd.f32 %v5694, %v5769
    %v5771 = vpop.f32.mrf.mxu0
    %5772 = vdwg.mxu0
    %v5774 = vsel %vm874, %v5770, 0
    %5776 = vmatprep.subr.mxu0 0.0
    %5777 = vmatpush1.msra.mxu0 0.0
    %5778 = vmatprep.subr.mxu0 0.0
    %5779 = vmatpush1.msra.mxu0 0.0
    %5780 = vmatprep.subr.mxu0 0.0
    %5781 = vmatpush1.msra.mxu0 0.0
    %5782 = vmatprep.subr.mxu0 0.0
    %5783 = vmatpush1.msra.mxu0 0.0
    %5784 = vmatprep.subr.mxu0 0.0
    %5785 = vmatpush1.msra.mxu0 0.0
    %5786 = vmatprep.subr.mxu0 0.0
    %5787 = vmatpush1.msra.mxu0 0.0
    %5788 = vmatprep.subr.mxu0 0.0
    %5789 = vmatpush1.msra.mxu0 0.0
    %5790 = vmatprep.subr.mxu0 0.0
    %5791 = vmatpush1.msra.mxu0 0.0
    %5792 = vmatprep.subr.mxu0 0.0
    %5793 = vmatpush1.msra.mxu0 0.0
    %5794 = vmatprep.subr.mxu0 0.0
    %5795 = vmatpush1.msra.mxu0 0.0
    %5796 = vmatprep.subr.mxu0 0.0
    %5797 = vmatpush1.msra.mxu0 0.0
    %5798 = vmatprep.subr.mxu0 0.0
    %5799 = vmatpush1.msra.mxu0 0.0
    %5800 = vmatprep.subr.mxu0 0.0
    %5801 = vmatpush1.msra.mxu0 0.0
    %5802 = vmatprep.subr.mxu0 0.0
    %5803 = vmatpush1.msra.mxu0 0.0
    %5804 = vmatprep.subr.mxu0 0.0
    %5805 = vmatpush1.msra.mxu0 0.0
    %5806 = vmatprep.subr.mxu0 0.0
    %5807 = vmatpush1.msra.mxu0 %v4866
    %5808 = vmatprep.subr.mxu0 0.0
    %5809 = vmatpush2.msra.mxu0 0.0
    %5810 = vmatprep.subr.mxu0 0.0
    %5811 = vmatpush2.msra.mxu0 0.0
    %5812 = vmatprep.subr.mxu0 0.0
    %5813 = vmatpush2.msra.mxu0 0.0
    %5814 = vmatprep.subr.mxu0 0.0
    %5815 = vmatpush2.msra.mxu0 0.0
    %5816 = vmatprep.subr.mxu0 0.0
    %5817 = vmatpush2.msra.mxu0 0.0
    %5818 = vmatprep.subr.mxu0 0.0
    %5819 = vmatpush2.msra.mxu0 0.0
    %5820 = vmatprep.subr.mxu0 0.0
    %5821 = vmatpush2.msra.mxu0 0.0
    %5822 = vmatprep.subr.mxu0 0.0
    %5823 = vmatpush2.msra.mxu0 0.0
    %5824 = vmatprep.subr.mxu0 0.0
    %5825 = vmatpush2.msra.mxu0 0.0
    %5826 = vmatprep.subr.mxu0 0.0
    %5827 = vmatpush2.msra.mxu0 0.0
    %5828 = vmatprep.subr.mxu0 0.0
    %5829 = vmatpush2.msra.mxu0 0.0
    %5830 = vmatprep.subr.mxu0 0.0
    %5831 = vmatpush2.msra.mxu0 0.0
    %5832 = vmatprep.subr.mxu0 0.0
    %5833 = vmatpush2.msra.mxu0 0.0
    %5834 = vmatprep.subr.mxu0 0.0
    %5835 = vmatpush2.msra.mxu0 0.0
    %5836 = vmatprep.subr.mxu0 0.0
    %5837 = vmatpush2.msra.mxu0 0.0
    %5838 = vmatprep.subr.mxu0 0.0
    %5839 = vmatpush2.msra.mxu0 0.0
    %5840 = vmatprep.mubr.f32.mxu0 0.0
    %5841 = vmatmul.mubr.f32.gmra.mxu0 %v5774
    %v5842 = vpop.f32.mrf.mxu0
    %v5843 = vadd.f32 0.0, %v5842
    %v5844 = vpop.f32.mrf.mxu0
    %5845 = vdwg.mxu0
    %5846 = vmatprep.subr.mxu0 0.0
    %5847 = vmatpush1.msra.mxu0 0.0
    %5848 = vmatprep.subr.mxu0 0.0
    %5849 = vmatpush1.msra.mxu0 0.0
    %5850 = vmatprep.subr.mxu0 0.0
    %5851 = vmatpush1.msra.mxu0 0.0
    %5852 = vmatprep.subr.mxu0 0.0
    %5853 = vmatpush1.msra.mxu0 0.0
    %5854 = vmatprep.subr.mxu0 0.0
    %5855 = vmatpush1.msra.mxu0 0.0
    %5856 = vmatprep.subr.mxu0 0.0
    %5857 = vmatpush1.msra.mxu0 0.0
    %5858 = vmatprep.subr.mxu0 0.0
    %5859 = vmatpush1.msra.mxu0 0.0
    %5860 = vmatprep.subr.mxu0 0.0
    %5861 = vmatpush1.msra.mxu0 0.0
    %5862 = vmatprep.subr.mxu0 0.0
    %5863 = vmatpush1.msra.mxu0 0.0
    %5864 = vmatprep.subr.mxu0 0.0
    %5865 = vmatpush1.msra.mxu0 0.0
    %5866 = vmatprep.subr.mxu0 0.0
    %5867 = vmatpush1.msra.mxu0 0.0
    %5868 = vmatprep.subr.mxu0 0.0
    %5869 = vmatpush1.msra.mxu0 0.0
    %5870 = vmatprep.subr.mxu0 0.0
    %5871 = vmatpush1.msra.mxu0 0.0
    %5872 = vmatprep.subr.mxu0 0.0
    %5873 = vmatpush1.msra.mxu0 0.0
    %5874 = vmatprep.subr.mxu0 0.0
    %5875 = vmatpush1.msra.mxu0 0.0
    %5876 = vmatprep.subr.mxu0 0.0
    %5877 = vmatpush1.msra.mxu0 %v4942
    %5878 = vmatprep.subr.mxu0 0.0
    %5879 = vmatpush2.msra.mxu0 0.0
    %5880 = vmatprep.subr.mxu0 0.0
    %5881 = vmatpush2.msra.mxu0 0.0
    %5882 = vmatprep.subr.mxu0 0.0
    %5883 = vmatpush2.msra.mxu0 0.0
    %5884 = vmatprep.subr.mxu0 0.0
    %5885 = vmatpush2.msra.mxu0 0.0
    %5886 = vmatprep.subr.mxu0 0.0
    %5887 = vmatpush2.msra.mxu0 0.0
    %5888 = vmatprep.subr.mxu0 0.0
    %5889 = vmatpush2.msra.mxu0 0.0
    %5890 = vmatprep.subr.mxu0 0.0
    %5891 = vmatpush2.msra.mxu0 0.0
    %5892 = vmatprep.subr.mxu0 0.0
    %5893 = vmatpush2.msra.mxu0 0.0
    %5894 = vmatprep.subr.mxu0 0.0
    %5895 = vmatpush2.msra.mxu0 0.0
    %5896 = vmatprep.subr.mxu0 0.0
    %5897 = vmatpush2.msra.mxu0 0.0
    %5898 = vmatprep.subr.mxu0 0.0
    %5899 = vmatpush2.msra.mxu0 0.0
    %5900 = vmatprep.subr.mxu0 0.0
    %5901 = vmatpush2.msra.mxu0 0.0
    %5902 = vmatprep.subr.mxu0 0.0
    %5903 = vmatpush2.msra.mxu0 0.0
    %5904 = vmatprep.subr.mxu0 0.0
    %5905 = vmatpush2.msra.mxu0 0.0
    %5906 = vmatprep.subr.mxu0 0.0
    %5907 = vmatpush2.msra.mxu0 0.0
    %5908 = vmatprep.subr.mxu0 0.0
    %5909 = vmatpush2.msra.mxu0 0.0
    %5910 = vmatprep.mubr.f32.mxu0 0.0
    %5911 = vmatmul.mubr.f32.gmra.mxu0 %v5774
    %v5912 = vpop.f32.mrf.mxu0
    %v5913 = vadd.f32 0.0, %v5912
    %v5914 = vpop.f32.mrf.mxu0
    %5915 = vdwg.mxu0
    %5917 = vrot.lane.b32.xlu0 %v4499, 123
    %v5918 = vpop.permute.xlu0 %5917
    %v5919 = vsel %vm874, %v5918, 0
    %v5922 = vsel %vm878, %v5913, 0
    %5924 = vmatprep.subr.mxu0 0.0
    %5925 = vmatpush1.msra.mxu0 0.0
    %5926 = vmatprep.subr.mxu0 0.0
    %5927 = vmatpush1.msra.mxu0 0.0
    %5928 = vmatprep.subr.mxu0 0.0
    %5929 = vmatpush1.msra.mxu0 0.0
    %5930 = vmatprep.subr.mxu0 0.0
    %5931 = vmatpush1.msra.mxu0 0.0
    %5932 = vmatprep.subr.mxu0 0.0
    %5933 = vmatpush1.msra.mxu0 0.0
    %5934 = vmatprep.subr.mxu0 0.0
    %5935 = vmatpush1.msra.mxu0 0.0
    %5936 = vmatprep.subr.mxu0 0.0
    %5937 = vmatpush1.msra.mxu0 0.0
    %5938 = vmatprep.subr.mxu0 0.0
    %5939 = vmatpush1.msra.mxu0 0.0
    %5940 = vmatprep.subr.mxu0 0.0
    %5941 = vmatpush1.msra.mxu0 0.0
    %5942 = vmatprep.subr.mxu0 0.0
    %5943 = vmatpush1.msra.mxu0 0.0
    %5944 = vmatprep.subr.mxu0 0.0
    %5945 = vmatpush1.msra.mxu0 0.0
    %5946 = vmatprep.subr.mxu0 0.0
    %5947 = vmatpush1.msra.mxu0 0.0
    %5948 = vmatprep.subr.mxu0 0.0
    %5949 = vmatpush1.msra.mxu0 0.0
    %5950 = vmatprep.subr.mxu0 0.0
    %5951 = vmatpush1.msra.mxu0 0.0
    %5952 = vmatprep.subr.mxu0 0.0
    %5953 = vmatpush1.msra.mxu0 0.0
    %5954 = vmatprep.subr.mxu0 0.0
    %5955 = vmatpush1.msra.mxu0 %v5922
    %5956 = vmatprep.subr.mxu0 0.0
    %5957 = vmatpush2.msra.mxu0 0.0
    %5958 = vmatprep.subr.mxu0 0.0
    %5959 = vmatpush2.msra.mxu0 0.0
    %5960 = vmatprep.subr.mxu0 0.0
    %5961 = vmatpush2.msra.mxu0 0.0
    %5962 = vmatprep.subr.mxu0 0.0
    %5963 = vmatpush2.msra.mxu0 0.0
    %5964 = vmatprep.subr.mxu0 0.0
    %5965 = vmatpush2.msra.mxu0 0.0
    %5966 = vmatprep.subr.mxu0 0.0
    %5967 = vmatpush2.msra.mxu0 0.0
    %5968 = vmatprep.subr.mxu0 0.0
    %5969 = vmatpush2.msra.mxu0 0.0
    %5970 = vmatprep.subr.mxu0 0.0
    %5971 = vmatpush2.msra.mxu0 0.0
    %5972 = vmatprep.subr.mxu0 0.0
    %5973 = vmatpush2.msra.mxu0 0.0
    %5974 = vmatprep.subr.mxu0 0.0
    %5975 = vmatpush2.msra.mxu0 0.0
    %5976 = vmatprep.subr.mxu0 0.0
    %5977 = vmatpush2.msra.mxu0 0.0
    %5978 = vmatprep.subr.mxu0 0.0
    %5979 = vmatpush2.msra.mxu0 0.0
    %5980 = vmatprep.subr.mxu0 0.0
    %5981 = vmatpush2.msra.mxu0 0.0
    %5982 = vmatprep.subr.mxu0 0.0
    %5983 = vmatpush2.msra.mxu0 0.0
    %5984 = vmatprep.subr.mxu0 0.0
    %5985 = vmatpush2.msra.mxu0 0.0
    %5986 = vmatprep.subr.mxu0 0.0
    %5987 = vmatpush2.msra.mxu0 0.0
    %5988 = vmatprep.mubr.f32.mxu0 0.0
    %5989 = vmatmul.mubr.f32.gmra.mxu0 %v5919
    %v5990 = vpop.f32.mrf.mxu0
    %v5991 = vadd.f32 0.0, %v5990
    %v5992 = vpop.f32.mrf.mxu0
    %5993 = vdwg.mxu0
    %v5994 = vsel %vm874, %v4499, 0
    %v5997 = vsel %vm878, %v5843, 0
    %5999 = vmatprep.subr.mxu0 0.0
    %6000 = vmatpush1.msra.mxu0 0.0
    %6001 = vmatprep.subr.mxu0 0.0
    %6002 = vmatpush1.msra.mxu0 0.0
    %6003 = vmatprep.subr.mxu0 0.0
    %6004 = vmatpush1.msra.mxu0 0.0
    %6005 = vmatprep.subr.mxu0 0.0
    %6006 = vmatpush1.msra.mxu0 0.0
    %6007 = vmatprep.subr.mxu0 0.0
    %6008 = vmatpush1.msra.mxu0 0.0
    %6009 = vmatprep.subr.mxu0 0.0
    %6010 = vmatpush1.msra.mxu0 0.0
    %6011 = vmatprep.subr.mxu0 0.0
    %6012 = vmatpush1.msra.mxu0 0.0
    %6013 = vmatprep.subr.mxu0 0.0
    %6014 = vmatpush1.msra.mxu0 0.0
    %6015 = vmatprep.subr.mxu0 0.0
    %6016 = vmatpush1.msra.mxu0 0.0
    %6017 = vmatprep.subr.mxu0 0.0
    %6018 = vmatpush1.msra.mxu0 0.0
    %6019 = vmatprep.subr.mxu0 0.0
    %6020 = vmatpush1.msra.mxu0 0.0
    %6021 = vmatprep.subr.mxu0 0.0
    %6022 = vmatpush1.msra.mxu0 0.0
    %6023 = vmatprep.subr.mxu0 0.0
    %6024 = vmatpush1.msra.mxu0 0.0
    %6025 = vmatprep.subr.mxu0 0.0
    %6026 = vmatpush1.msra.mxu0 0.0
    %6027 = vmatprep.subr.mxu0 0.0
    %6028 = vmatpush1.msra.mxu0 0.0
    %6029 = vmatprep.subr.mxu0 0.0
    %6030 = vmatpush1.msra.mxu0 %v5997
    %6031 = vmatprep.subr.mxu0 0.0
    %6032 = vmatpush2.msra.mxu0 0.0
    %6033 = vmatprep.subr.mxu0 0.0
    %6034 = vmatpush2.msra.mxu0 0.0
    %6035 = vmatprep.subr.mxu0 0.0
    %6036 = vmatpush2.msra.mxu0 0.0
    %6037 = vmatprep.subr.mxu0 0.0
    %6038 = vmatpush2.msra.mxu0 0.0
    %6039 = vmatprep.subr.mxu0 0.0
    %6040 = vmatpush2.msra.mxu0 0.0
    %6041 = vmatprep.subr.mxu0 0.0
    %6042 = vmatpush2.msra.mxu0 0.0
    %6043 = vmatprep.subr.mxu0 0.0
    %6044 = vmatpush2.msra.mxu0 0.0
    %6045 = vmatprep.subr.mxu0 0.0
    %6046 = vmatpush2.msra.mxu0 0.0
    %6047 = vmatprep.subr.mxu0 0.0
    %6048 = vmatpush2.msra.mxu0 0.0
    %6049 = vmatprep.subr.mxu0 0.0
    %6050 = vmatpush2.msra.mxu0 0.0
    %6051 = vmatprep.subr.mxu0 0.0
    %6052 = vmatpush2.msra.mxu0 0.0
    %6053 = vmatprep.subr.mxu0 0.0
    %6054 = vmatpush2.msra.mxu0 0.0
    %6055 = vmatprep.subr.mxu0 0.0
    %6056 = vmatpush2.msra.mxu0 0.0
    %6057 = vmatprep.subr.mxu0 0.0
    %6058 = vmatpush2.msra.mxu0 0.0
    %6059 = vmatprep.subr.mxu0 0.0
    %6060 = vmatpush2.msra.mxu0 0.0
    %6061 = vmatprep.subr.mxu0 0.0
    %6062 = vmatpush2.msra.mxu0 0.0
    %6063 = vmatprep.mubr.f32.mxu0 0.0
    %6064 = vmatmul.mubr.f32.gmra.mxu0 %v5994
    %v6065 = vpop.f32.mrf.mxu0
    %v6066 = vadd.f32 %v5991, %v6065
    %v6067 = vpop.f32.mrf.mxu0
    %6068 = vdwg.mxu0
    %6069 = vrot.lane.b32.xlu0 %v4710, 116
    %v6070 = vpop.permute.xlu0 %6069
    %v6071 = vrot.slane %v4671, 4
    %6072 = vrot.lane.b32.xlu0 %v6071, 123
    %v6073 = vpop.permute.xlu0 %6072
    %v6074 = vsel %vm725, %v6070, 0
    %v6076 = vsel %vm435, %v6073, 0
    %6078 = vmatprep.subr.mxu0 0.0
    %6079 = vmatpush1.msra.mxu0 0.0
    %6080 = vmatprep.subr.mxu0 0.0
    %6081 = vmatpush1.msra.mxu0 0.0
    %6082 = vmatprep.subr.mxu0 0.0
    %6083 = vmatpush1.msra.mxu0 0.0
    %6084 = vmatprep.subr.mxu0 0.0
    %6085 = vmatpush1.msra.mxu0 0.0
    %6086 = vmatprep.subr.mxu0 0.0
    %6087 = vmatpush1.msra.mxu0 0.0
    %6088 = vmatprep.subr.mxu0 0.0
    %6089 = vmatpush1.msra.mxu0 0.0
    %6090 = vmatprep.subr.mxu0 0.0
    %6091 = vmatpush1.msra.mxu0 0.0
    %6092 = vmatprep.subr.mxu0 0.0
    %6093 = vmatpush1.msra.mxu0 0.0
    %6094 = vmatprep.subr.mxu0 0.0
    %6095 = vmatpush1.msra.mxu0 0.0
    %6096 = vmatprep.subr.mxu0 0.0
    %6097 = vmatpush1.msra.mxu0 0.0
    %6098 = vmatprep.subr.mxu0 0.0
    %6099 = vmatpush1.msra.mxu0 0.0
    %6100 = vmatprep.subr.mxu0 0.0
    %6101 = vmatpush1.msra.mxu0 0.0
    %6102 = vmatprep.subr.mxu0 0.0
    %6103 = vmatpush1.msra.mxu0 0.0
    %6104 = vmatprep.subr.mxu0 0.0
    %6105 = vmatpush1.msra.mxu0 0.0
    %6106 = vmatprep.subr.mxu0 0.0
    %6107 = vmatpush1.msra.mxu0 0.0
    %6108 = vmatprep.subr.mxu0 0.0
    %6109 = vmatpush1.msra.mxu0 %v6076
    %6110 = vmatprep.subr.mxu0 0.0
    %6111 = vmatpush2.msra.mxu0 0.0
    %6112 = vmatprep.subr.mxu0 0.0
    %6113 = vmatpush2.msra.mxu0 0.0
    %6114 = vmatprep.subr.mxu0 0.0
    %6115 = vmatpush2.msra.mxu0 0.0
    %6116 = vmatprep.subr.mxu0 0.0
    %6117 = vmatpush2.msra.mxu0 0.0
    %6118 = vmatprep.subr.mxu0 0.0
    %6119 = vmatpush2.msra.mxu0 0.0
    %6120 = vmatprep.subr.mxu0 0.0
    %6121 = vmatpush2.msra.mxu0 0.0
    %6122 = vmatprep.subr.mxu0 0.0
    %6123 = vmatpush2.msra.mxu0 0.0
    %6124 = vmatprep.subr.mxu0 0.0
    %6125 = vmatpush2.msra.mxu0 0.0
    %6126 = vmatprep.subr.mxu0 0.0
    %6127 = vmatpush2.msra.mxu0 0.0
    %6128 = vmatprep.subr.mxu0 0.0
    %6129 = vmatpush2.msra.mxu0 0.0
    %6130 = vmatprep.subr.mxu0 0.0
    %6131 = vmatpush2.msra.mxu0 0.0
    %6132 = vmatprep.subr.mxu0 0.0
    %6133 = vmatpush2.msra.mxu0 0.0
    %6134 = vmatprep.subr.mxu0 0.0
    %6135 = vmatpush2.msra.mxu0 0.0
    %6136 = vmatprep.subr.mxu0 0.0
    %6137 = vmatpush2.msra.mxu0 0.0
    %6138 = vmatprep.subr.mxu0 0.0
    %6139 = vmatpush2.msra.mxu0 0.0
    %6140 = vmatprep.subr.mxu0 0.0
    %6141 = vmatpush2.msra.mxu0 0.0
    %6142 = vmatprep.mubr.f32.mxu0 0.0
    %6143 = vmatmul.mubr.f32.gmra.mxu0 %v6074
    %v6144 = vpop.f32.mrf.mxu0
    %v6145 = vadd.f32 0.0, %v6144
    %v6146 = vpop.f32.mrf.mxu0
    %6147 = vdwg.mxu0
    %6148 = vrot.lane.b32.xlu0 %v4690, 116
    %v6149 = vpop.permute.xlu0 %6148
    %v6150 = vsel %vm725, %v6149, 0
    %v6152 = vsel %vm435, %v6071, 0
    %6154 = vmatprep.subr.mxu0 0.0
    %6155 = vmatpush1.msra.mxu0 0.0
    %6156 = vmatprep.subr.mxu0 0.0
    %6157 = vmatpush1.msra.mxu0 0.0
    %6158 = vmatprep.subr.mxu0 0.0
    %6159 = vmatpush1.msra.mxu0 0.0
    %6160 = vmatprep.subr.mxu0 0.0
    %6161 = vmatpush1.msra.mxu0 0.0
    %6162 = vmatprep.subr.mxu0 0.0
    %6163 = vmatpush1.msra.mxu0 0.0
    %6164 = vmatprep.subr.mxu0 0.0
    %6165 = vmatpush1.msra.mxu0 0.0
    %6166 = vmatprep.subr.mxu0 0.0
    %6167 = vmatpush1.msra.mxu0 0.0
    %6168 = vmatprep.subr.mxu0 0.0
    %6169 = vmatpush1.msra.mxu0 0.0
    %6170 = vmatprep.subr.mxu0 0.0
    %6171 = vmatpush1.msra.mxu0 0.0
    %6172 = vmatprep.subr.mxu0 0.0
    %6173 = vmatpush1.msra.mxu0 0.0
    %6174 = vmatprep.subr.mxu0 0.0
    %6175 = vmatpush1.msra.mxu0 0.0
    %6176 = vmatprep.subr.mxu0 0.0
    %6177 = vmatpush1.msra.mxu0 0.0
    %6178 = vmatprep.subr.mxu0 0.0
    %6179 = vmatpush1.msra.mxu0 0.0
    %6180 = vmatprep.subr.mxu0 0.0
    %6181 = vmatpush1.msra.mxu0 0.0
    %6182 = vmatprep.subr.mxu0 0.0
    %6183 = vmatpush1.msra.mxu0 0.0
    %6184 = vmatprep.subr.mxu0 0.0
    %6185 = vmatpush1.msra.mxu0 %v6152
    %6186 = vmatprep.subr.mxu0 0.0
    %6187 = vmatpush2.msra.mxu0 0.0
    %6188 = vmatprep.subr.mxu0 0.0
    %6189 = vmatpush2.msra.mxu0 0.0
    %6190 = vmatprep.subr.mxu0 0.0
    %6191 = vmatpush2.msra.mxu0 0.0
    %6192 = vmatprep.subr.mxu0 0.0
    %6193 = vmatpush2.msra.mxu0 0.0
    %6194 = vmatprep.subr.mxu0 0.0
    %6195 = vmatpush2.msra.mxu0 0.0
    %6196 = vmatprep.subr.mxu0 0.0
    %6197 = vmatpush2.msra.mxu0 0.0
    %6198 = vmatprep.subr.mxu0 0.0
    %6199 = vmatpush2.msra.mxu0 0.0
    %6200 = vmatprep.subr.mxu0 0.0
    %6201 = vmatpush2.msra.mxu0 0.0
    %6202 = vmatprep.subr.mxu0 0.0
    %6203 = vmatpush2.msra.mxu0 0.0
    %6204 = vmatprep.subr.mxu0 0.0
    %6205 = vmatpush2.msra.mxu0 0.0
    %6206 = vmatprep.subr.mxu0 0.0
    %6207 = vmatpush2.msra.mxu0 0.0
    %6208 = vmatprep.subr.mxu0 0.0
    %6209 = vmatpush2.msra.mxu0 0.0
    %6210 = vmatprep.subr.mxu0 0.0
    %6211 = vmatpush2.msra.mxu0 0.0
    %6212 = vmatprep.subr.mxu0 0.0
    %6213 = vmatpush2.msra.mxu0 0.0
    %6214 = vmatprep.subr.mxu0 0.0
    %6215 = vmatpush2.msra.mxu0 0.0
    %6216 = vmatprep.subr.mxu0 0.0
    %6217 = vmatpush2.msra.mxu0 0.0
    %6218 = vmatprep.mubr.f32.mxu0 0.0
    %6219 = vmatmul.mubr.f32.gmra.mxu0 %v6150
    %v6220 = vpop.f32.mrf.mxu0
    %v6221 = vadd.f32 %v6145, %v6220
    %v6222 = vpop.f32.mrf.mxu0
    %6223 = vdwg.mxu0
    %v6225 = vsel %vm874, %v6221, 0
    %6227 = vmatprep.subr.mxu0 0.0
    %6228 = vmatpush1.msra.mxu0 0.0
    %6229 = vmatprep.subr.mxu0 0.0
    %6230 = vmatpush1.msra.mxu0 0.0
    %6231 = vmatprep.subr.mxu0 0.0
    %6232 = vmatpush1.msra.mxu0 0.0
    %6233 = vmatprep.subr.mxu0 0.0
    %6234 = vmatpush1.msra.mxu0 0.0
    %6235 = vmatprep.subr.mxu0 0.0
    %6236 = vmatpush1.msra.mxu0 0.0
    %6237 = vmatprep.subr.mxu0 0.0
    %6238 = vmatpush1.msra.mxu0 0.0
    %6239 = vmatprep.subr.mxu0 0.0
    %6240 = vmatpush1.msra.mxu0 0.0
    %6241 = vmatprep.subr.mxu0 0.0
    %6242 = vmatpush1.msra.mxu0 0.0
    %6243 = vmatprep.subr.mxu0 0.0
    %6244 = vmatpush1.msra.mxu0 0.0
    %6245 = vmatprep.subr.mxu0 0.0
    %6246 = vmatpush1.msra.mxu0 0.0
    %6247 = vmatprep.subr.mxu0 0.0
    %6248 = vmatpush1.msra.mxu0 0.0
    %6249 = vmatprep.subr.mxu0 0.0
    %6250 = vmatpush1.msra.mxu0 0.0
    %6251 = vmatprep.subr.mxu0 0.0
    %6252 = vmatpush1.msra.mxu0 0.0
    %6253 = vmatprep.subr.mxu0 0.0
    %6254 = vmatpush1.msra.mxu0 0.0
    %6255 = vmatprep.subr.mxu0 0.0
    %6256 = vmatpush1.msra.mxu0 0.0
    %6257 = vmatprep.subr.mxu0 0.0
    %6258 = vmatpush1.msra.mxu0 %v4866
    %6259 = vmatprep.subr.mxu0 0.0
    %6260 = vmatpush2.msra.mxu0 0.0
    %6261 = vmatprep.subr.mxu0 0.0
    %6262 = vmatpush2.msra.mxu0 0.0
    %6263 = vmatprep.subr.mxu0 0.0
    %6264 = vmatpush2.msra.mxu0 0.0
    %6265 = vmatprep.subr.mxu0 0.0
    %6266 = vmatpush2.msra.mxu0 0.0
    %6267 = vmatprep.subr.mxu0 0.0
    %6268 = vmatpush2.msra.mxu0 0.0
    %6269 = vmatprep.subr.mxu0 0.0
    %6270 = vmatpush2.msra.mxu0 0.0
    %6271 = vmatprep.subr.mxu0 0.0
    %6272 = vmatpush2.msra.mxu0 0.0
    %6273 = vmatprep.subr.mxu0 0.0
    %6274 = vmatpush2.msra.mxu0 0.0
    %6275 = vmatprep.subr.mxu0 0.0
    %6276 = vmatpush2.msra.mxu0 0.0
    %6277 = vmatprep.subr.mxu0 0.0
    %6278 = vmatpush2.msra.mxu0 0.0
    %6279 = vmatprep.subr.mxu0 0.0
    %6280 = vmatpush2.msra.mxu0 0.0
    %6281 = vmatprep.subr.mxu0 0.0
    %6282 = vmatpush2.msra.mxu0 0.0
    %6283 = vmatprep.subr.mxu0 0.0
    %6284 = vmatpush2.msra.mxu0 0.0
    %6285 = vmatprep.subr.mxu0 0.0
    %6286 = vmatpush2.msra.mxu0 0.0
    %6287 = vmatprep.subr.mxu0 0.0
    %6288 = vmatpush2.msra.mxu0 0.0
    %6289 = vmatprep.subr.mxu0 0.0
    %6290 = vmatpush2.msra.mxu0 0.0
    %6291 = vmatprep.mubr.f32.mxu0 0.0
    %6292 = vmatmul.mubr.f32.gmra.mxu0 %v6225
    %v6293 = vpop.f32.mrf.mxu0
    %v6294 = vadd.f32 0.0, %v6293
    %v6295 = vpop.f32.mrf.mxu0
    %6296 = vdwg.mxu0
    %6297 = vmatprep.subr.mxu0 0.0
    %6298 = vmatpush1.msra.mxu0 0.0
    %6299 = vmatprep.subr.mxu0 0.0
    %6300 = vmatpush1.msra.mxu0 0.0
    %6301 = vmatprep.subr.mxu0 0.0
    %6302 = vmatpush1.msra.mxu0 0.0
    %6303 = vmatprep.subr.mxu0 0.0
    %6304 = vmatpush1.msra.mxu0 0.0
    %6305 = vmatprep.subr.mxu0 0.0
    %6306 = vmatpush1.msra.mxu0 0.0
    %6307 = vmatprep.subr.mxu0 0.0
    %6308 = vmatpush1.msra.mxu0 0.0
    %6309 = vmatprep.subr.mxu0 0.0
    %6310 = vmatpush1.msra.mxu0 0.0
    %6311 = vmatprep.subr.mxu0 0.0
    %6312 = vmatpush1.msra.mxu0 0.0
    %6313 = vmatprep.subr.mxu0 0.0
    %6314 = vmatpush1.msra.mxu0 0.0
    %6315 = vmatprep.subr.mxu0 0.0
    %6316 = vmatpush1.msra.mxu0 0.0
    %6317 = vmatprep.subr.mxu0 0.0
    %6318 = vmatpush1.msra.mxu0 0.0
    %6319 = vmatprep.subr.mxu0 0.0
    %6320 = vmatpush1.msra.mxu0 0.0
    %6321 = vmatprep.subr.mxu0 0.0
    %6322 = vmatpush1.msra.mxu0 0.0
    %6323 = vmatprep.subr.mxu0 0.0
    %6324 = vmatpush1.msra.mxu0 0.0
    %6325 = vmatprep.subr.mxu0 0.0
    %6326 = vmatpush1.msra.mxu0 0.0
    %6327 = vmatprep.subr.mxu0 0.0
    %6328 = vmatpush1.msra.mxu0 %v4942
    %6329 = vmatprep.subr.mxu0 0.0
    %6330 = vmatpush2.msra.mxu0 0.0
    %6331 = vmatprep.subr.mxu0 0.0
    %6332 = vmatpush2.msra.mxu0 0.0
    %6333 = vmatprep.subr.mxu0 0.0
    %6334 = vmatpush2.msra.mxu0 0.0
    %6335 = vmatprep.subr.mxu0 0.0
    %6336 = vmatpush2.msra.mxu0 0.0
    %6337 = vmatprep.subr.mxu0 0.0
    %6338 = vmatpush2.msra.mxu0 0.0
    %6339 = vmatprep.subr.mxu0 0.0
    %6340 = vmatpush2.msra.mxu0 0.0
    %6341 = vmatprep.subr.mxu0 0.0
    %6342 = vmatpush2.msra.mxu0 0.0
    %6343 = vmatprep.subr.mxu0 0.0
    %6344 = vmatpush2.msra.mxu0 0.0
    %6345 = vmatprep.subr.mxu0 0.0
    %6346 = vmatpush2.msra.mxu0 0.0
    %6347 = vmatprep.subr.mxu0 0.0
    %6348 = vmatpush2.msra.mxu0 0.0
    %6349 = vmatprep.subr.mxu0 0.0
    %6350 = vmatpush2.msra.mxu0 0.0
    %6351 = vmatprep.subr.mxu0 0.0
    %6352 = vmatpush2.msra.mxu0 0.0
    %6353 = vmatprep.subr.mxu0 0.0
    %6354 = vmatpush2.msra.mxu0 0.0
    %6355 = vmatprep.subr.mxu0 0.0
    %6356 = vmatpush2.msra.mxu0 0.0
    %6357 = vmatprep.subr.mxu0 0.0
    %6358 = vmatpush2.msra.mxu0 0.0
    %6359 = vmatprep.subr.mxu0 0.0
    %6360 = vmatpush2.msra.mxu0 0.0
    %6361 = vmatprep.mubr.f32.mxu0 0.0
    %6362 = vmatmul.mubr.f32.gmra.mxu0 %v6225
    %v6363 = vpop.f32.mrf.mxu0
    %v6364 = vadd.f32 0.0, %v6363
    %v6365 = vpop.f32.mrf.mxu0
    %6366 = vdwg.mxu0
    %v6367 = vrot.slane %v4499, 4
    %6368 = vrot.lane.b32.xlu0 %v6367, 123
    %v6369 = vpop.permute.xlu0 %6368
    %v6370 = vsel %vm874, %v6369, 0
    %v6373 = vsel %vm878, %v6364, 0
    %6375 = vmatprep.subr.mxu0 0.0
    %6376 = vmatpush1.msra.mxu0 0.0
    %6377 = vmatprep.subr.mxu0 0.0
    %6378 = vmatpush1.msra.mxu0 0.0
    %6379 = vmatprep.subr.mxu0 0.0
    %6380 = vmatpush1.msra.mxu0 0.0
    %6381 = vmatprep.subr.mxu0 0.0
    %6382 = vmatpush1.msra.mxu0 0.0
    %6383 = vmatprep.subr.mxu0 0.0
    %6384 = vmatpush1.msra.mxu0 0.0
    %6385 = vmatprep.subr.mxu0 0.0
    %6386 = vmatpush1.msra.mxu0 0.0
    %6387 = vmatprep.subr.mxu0 0.0
    %6388 = vmatpush1.msra.mxu0 0.0
    %6389 = vmatprep.subr.mxu0 0.0
    %6390 = vmatpush1.msra.mxu0 0.0
    %6391 = vmatprep.subr.mxu0 0.0
    %6392 = vmatpush1.msra.mxu0 0.0
    %6393 = vmatprep.subr.mxu0 0.0
    %6394 = vmatpush1.msra.mxu0 0.0
    %6395 = vmatprep.subr.mxu0 0.0
    %6396 = vmatpush1.msra.mxu0 0.0
    %6397 = vmatprep.subr.mxu0 0.0
    %6398 = vmatpush1.msra.mxu0 0.0
    %6399 = vmatprep.subr.mxu0 0.0
    %6400 = vmatpush1.msra.mxu0 0.0
    %6401 = vmatprep.subr.mxu0 0.0
    %6402 = vmatpush1.msra.mxu0 0.0
    %6403 = vmatprep.subr.mxu0 0.0
    %6404 = vmatpush1.msra.mxu0 0.0
    %6405 = vmatprep.subr.mxu0 0.0
    %6406 = vmatpush1.msra.mxu0 %v6373
    %6407 = vmatprep.subr.mxu0 0.0
    %6408 = vmatpush2.msra.mxu0 0.0
    %6409 = vmatprep.subr.mxu0 0.0
    %6410 = vmatpush2.msra.mxu0 0.0
    %6411 = vmatprep.subr.mxu0 0.0
    %6412 = vmatpush2.msra.mxu0 0.0
    %6413 = vmatprep.subr.mxu0 0.0
    %6414 = vmatpush2.msra.mxu0 0.0
    %6415 = vmatprep.subr.mxu0 0.0
    %6416 = vmatpush2.msra.mxu0 0.0
    %6417 = vmatprep.subr.mxu0 0.0
    %6418 = vmatpush2.msra.mxu0 0.0
    %6419 = vmatprep.subr.mxu0 0.0
    %6420 = vmatpush2.msra.mxu0 0.0
    %6421 = vmatprep.subr.mxu0 0.0
    %6422 = vmatpush2.msra.mxu0 0.0
    %6423 = vmatprep.subr.mxu0 0.0
    %6424 = vmatpush2.msra.mxu0 0.0
    %6425 = vmatprep.subr.mxu0 0.0
    %6426 = vmatpush2.msra.mxu0 0.0
    %6427 = vmatprep.subr.mxu0 0.0
    %6428 = vmatpush2.msra.mxu0 0.0
    %6429 = vmatprep.subr.mxu0 0.0
    %6430 = vmatpush2.msra.mxu0 0.0
    %6431 = vmatprep.subr.mxu0 0.0
    %6432 = vmatpush2.msra.mxu0 0.0
    %6433 = vmatprep.subr.mxu0 0.0
    %6434 = vmatpush2.msra.mxu0 0.0
    %6435 = vmatprep.subr.mxu0 0.0
    %6436 = vmatpush2.msra.mxu0 0.0
    %6437 = vmatprep.subr.mxu0 0.0
    %6438 = vmatpush2.msra.mxu0 0.0
    %6439 = vmatprep.mubr.f32.mxu0 0.0
    %6440 = vmatmul.mubr.f32.gmra.mxu0 %v6370
    %v6441 = vpop.f32.mrf.mxu0
    %v6442 = vadd.f32 0.0, %v6441
    %v6443 = vpop.f32.mrf.mxu0
    %6444 = vdwg.mxu0
    %v6445 = vsel %vm874, %v6367, 0
    %v6448 = vsel %vm878, %v6294, 0
    %6450 = vmatprep.subr.mxu0 0.0
    %6451 = vmatpush1.msra.mxu0 0.0
    %6452 = vmatprep.subr.mxu0 0.0
    %6453 = vmatpush1.msra.mxu0 0.0
    %6454 = vmatprep.subr.mxu0 0.0
    %6455 = vmatpush1.msra.mxu0 0.0
    %6456 = vmatprep.subr.mxu0 0.0
    %6457 = vmatpush1.msra.mxu0 0.0
    %6458 = vmatprep.subr.mxu0 0.0
    %6459 = vmatpush1.msra.mxu0 0.0
    %6460 = vmatprep.subr.mxu0 0.0
    %6461 = vmatpush1.msra.mxu0 0.0
    %6462 = vmatprep.subr.mxu0 0.0
    %6463 = vmatpush1.msra.mxu0 0.0
    %6464 = vmatprep.subr.mxu0 0.0
    %6465 = vmatpush1.msra.mxu0 0.0
    %6466 = vmatprep.subr.mxu0 0.0
    %6467 = vmatpush1.msra.mxu0 0.0
    %6468 = vmatprep.subr.mxu0 0.0
    %6469 = vmatpush1.msra.mxu0 0.0
    %6470 = vmatprep.subr.mxu0 0.0
    %6471 = vmatpush1.msra.mxu0 0.0
    %6472 = vmatprep.subr.mxu0 0.0
    %6473 = vmatpush1.msra.mxu0 0.0
    %6474 = vmatprep.subr.mxu0 0.0
    %6475 = vmatpush1.msra.mxu0 0.0
    %6476 = vmatprep.subr.mxu0 0.0
    %6477 = vmatpush1.msra.mxu0 0.0
    %6478 = vmatprep.subr.mxu0 0.0
    %6479 = vmatpush1.msra.mxu0 0.0
    %6480 = vmatprep.subr.mxu0 0.0
    %6481 = vmatpush1.msra.mxu0 %v6448
    %6482 = vmatprep.subr.mxu0 0.0
    %6483 = vmatpush2.msra.mxu0 0.0
    %6484 = vmatprep.subr.mxu0 0.0
    %6485 = vmatpush2.msra.mxu0 0.0
    %6486 = vmatprep.subr.mxu0 0.0
    %6487 = vmatpush2.msra.mxu0 0.0
    %6488 = vmatprep.subr.mxu0 0.0
    %6489 = vmatpush2.msra.mxu0 0.0
    %6490 = vmatprep.subr.mxu0 0.0
    %6491 = vmatpush2.msra.mxu0 0.0
    %6492 = vmatprep.subr.mxu0 0.0
    %6493 = vmatpush2.msra.mxu0 0.0
    %6494 = vmatprep.subr.mxu0 0.0
    %6495 = vmatpush2.msra.mxu0 0.0
    %6496 = vmatprep.subr.mxu0 0.0
    %6497 = vmatpush2.msra.mxu0 0.0
    %6498 = vmatprep.subr.mxu0 0.0
    %6499 = vmatpush2.msra.mxu0 0.0
    %6500 = vmatprep.subr.mxu0 0.0
    %6501 = vmatpush2.msra.mxu0 0.0
    %6502 = vmatprep.subr.mxu0 0.0
    %6503 = vmatpush2.msra.mxu0 0.0
    %6504 = vmatprep.subr.mxu0 0.0
    %6505 = vmatpush2.msra.mxu0 0.0
    %6506 = vmatprep.subr.mxu0 0.0
    %6507 = vmatpush2.msra.mxu0 0.0
    %6508 = vmatprep.subr.mxu0 0.0
    %6509 = vmatpush2.msra.mxu0 0.0
    %6510 = vmatprep.subr.mxu0 0.0
    %6511 = vmatpush2.msra.mxu0 0.0
    %6512 = vmatprep.subr.mxu0 0.0
    %6513 = vmatpush2.msra.mxu0 0.0
    %6514 = vmatprep.mubr.f32.mxu0 0.0
    %6515 = vmatmul.mubr.f32.gmra.mxu0 %v6445
    %v6516 = vpop.f32.mrf.mxu0
    %v6517 = vadd.f32 %v6442, %v6516
    %v6518 = vpop.f32.mrf.mxu0
    %6519 = vdwg.mxu0
    %v6521 = vrot.slane %v5615, 4
    %v6524 = vrot.slane %v6517, 4
    %v6526 = vsel %vm435, %v5164, %v6521
    %v6527 = vsel %vm435, %v6066, %v6524
    %v6529 = vlaneseq
    %v6530 = vshrl.u32 %v6529, 7
    %v6531 = vsub.s32 0, %v6530
    %v6532 = vrot.slane %v4100, %v6531
    %v6534 = vadd.f32 %v6526, %v6532
    %v6535 = vadd.f32 %v6527, %v6532
    %v6536 = vadd.f32 %v98, %v6534
    %v6537 = vadd.f32 %v99, %v6535
    %v6538 = vsel %vm428, %v6536, 0.0
    %6539 = vadd.xlane.f32.xlu0 %v6538
    %v6540 = vpop.xlane.xlu0 %6539
    %v6541 = vrot.slane %v6540, 4
    %v6542 = vadd.f32 %v6540, %v6541
    %v6543 = vrot.slane %v6542, 2
    %v6544 = vadd.f32 %v6542, %v6543
    %v6545 = vrot.slane %v6544, 1
    %v6546 = vadd.f32 %v6544, %v6545
    %s6547 = vtos %v6546
    %v6548 = vrcp.pop 160.0
    %s6549 = vtos %v6548
    %s6550 = smul.f32 %s6547, %s6549
    %v6551 = vstv %s6550
    %v6552 = vsub.f32 %v6536, %v6551
    %v6553 = vmul.f32 %v6552, %v6552
    %v6554 = vsel %vm428, %v6553, 0.0
    %6555 = vadd.xlane.f32.xlu0 %v6554
    %v6556 = vpop.xlane.xlu0 %6555
    %v6557 = vrot.slane %v6556, 4
    %v6558 = vadd.f32 %v6556, %v6557
    %v6559 = vrot.slane %v6558, 2
    %v6560 = vadd.f32 %v6558, %v6559
    %v6561 = vrot.slane %v6560, 1
    %v6562 = vadd.f32 %v6560, %v6561
    %s6563 = vtos %v6562
    %v6564 = vrcp.pop 160.0
    %s6565 = vtos %v6564
    %s6566 = smul.f32 %s6563, %s6565
    %s6567 = sadd.f32 %s6566, 1e-05
    %v6568 = vstv %s6567
    %v6569 = vrsqrt.pop %v6568
    %s6570 = vtos %v6569
    %v6571 = vstv %s6570
    %v6572 = vmul.f32 %v6552, %v6571
    %v6573 = vsel %vm428, %v6537, 0.0
    %6574 = vadd.xlane.f32.xlu0 %v6573
    %v6575 = vpop.xlane.xlu0 %6574
    %v6576 = vrot.slane %v6575, 4
    %v6577 = vadd.f32 %v6575, %v6576
    %v6578 = vrot.slane %v6577, 2
    %v6579 = vadd.f32 %v6577, %v6578
    %v6580 = vrot.slane %v6579, 1
    %v6581 = vadd.f32 %v6579, %v6580
    %s6582 = vtos %v6581
    %v6583 = vrcp.pop 160.0
    %s6584 = vtos %v6583
    %s6585 = smul.f32 %s6582, %s6584
    %v6586 = vstv %s6585
    %v6587 = vsub.f32 %v6537, %v6586
    %v6588 = vmul.f32 %v6587, %v6587
    %v6589 = vsel %vm428, %v6588, 0.0
    %6590 = vadd.xlane.f32.xlu0 %v6589
    %v6591 = vpop.xlane.xlu0 %6590
    %v6592 = vrot.slane %v6591, 4
    %v6593 = vadd.f32 %v6591, %v6592
    %v6594 = vrot.slane %v6593, 2
    %v6595 = vadd.f32 %v6593, %v6594
    %v6596 = vrot.slane %v6595, 1
    %v6597 = vadd.f32 %v6595, %v6596
    %s6598 = vtos %v6597
    %v6599 = vrcp.pop 160.0
    %s6600 = vtos %v6599
    %s6601 = smul.f32 %s6598, %s6600
    %s6602 = sadd.f32 %s6601, 1e-05
    %v6603 = vstv %s6602
    %v6604 = vrsqrt.pop %v6603
    %s6605 = vtos %v6604
    %v6606 = vstv %s6605
    %v6607 = vmul.f32 %v6587, %v6606
    %v6610 = vlaneseq
    %v6611 = vshrl.u32 %v6610, 7
    %v6612 = vsub.s32 0, %v6611
    %v6613 = vrot.slane %v4149, %v6612
    %v6614 = vlaneseq
    %v6615 = vshrl.u32 %v6614, 7
    %v6616 = vsub.s32 1, %v6615
    %v6617 = vrot.slane %v4149, %v6616
    %v6618 = vlaneseq
    %v6619 = vshrl.u32 %v6618, 7
    %v6620 = vsub.s32 2, %v6619
    %v6621 = vrot.slane %v4149, %v6620
    %v6622 = vlaneseq
    %v6623 = vshrl.u32 %v6622, 7
    %v6624 = vsub.s32 3, %v6623
    %v6625 = vrot.slane %v4149, %v6624
    %v6626 = vlaneseq
    %v6627 = vshrl.u32 %v6626, 7
    %v6628 = vsub.s32 4, %v6627
    %v6629 = vrot.slane %v4149, %v6628
    %v6630 = vlaneseq
    %v6631 = vshrl.u32 %v6630, 7
    %v6632 = vsub.s32 5, %v6631
    %v6633 = vrot.slane %v4149, %v6632
    %v6634 = vlaneseq
    %v6635 = vshrl.u32 %v6634, 7
    %v6636 = vsub.s32 6, %v6635
    %v6637 = vrot.slane %v4149, %v6636
    %v6638 = vlaneseq
    %v6639 = vshrl.u32 %v6638, 7
    %v6640 = vsub.s32 7, %v6639
    %v6641 = vrot.slane %v4149, %v6640
    %v6642 = vlaneseq
    %v6643 = vshrl.u32 %v6642, 7
    %v6644 = vsub.s32 0, %v6643
    %v6645 = vrot.slane %v4150, %v6644
    %v6646 = vlaneseq
    %v6647 = vshrl.u32 %v6646, 7
    %v6648 = vsub.s32 1, %v6647
    %v6649 = vrot.slane %v4150, %v6648
    %v6650 = vlaneseq
    %v6651 = vshrl.u32 %v6650, 7
    %v6652 = vsub.s32 2, %v6651
    %v6653 = vrot.slane %v4150, %v6652
    %v6654 = vlaneseq
    %v6655 = vshrl.u32 %v6654, 7
    %v6656 = vsub.s32 3, %v6655
    %v6657 = vrot.slane %v4150, %v6656
    %v6658 = vlaneseq
    %v6659 = vshrl.u32 %v6658, 7
    %v6660 = vsub.s32 4, %v6659
    %v6661 = vrot.slane %v4150, %v6660
    %v6662 = vlaneseq
    %v6663 = vshrl.u32 %v6662, 7
    %v6664 = vsub.s32 5, %v6663
    %v6665 = vrot.slane %v4150, %v6664
    %v6666 = vlaneseq
    %v6667 = vshrl.u32 %v6666, 7
    %v6668 = vsub.s32 6, %v6667
    %v6669 = vrot.slane %v4150, %v6668
    %v6670 = vlaneseq
    %v6671 = vshrl.u32 %v6670, 7
    %v6672 = vsub.s32 7, %v6671
    %v6673 = vrot.slane %v4150, %v6672
    %v6691 = vsel %vm428, %v6572, 0
    %v6694 = vsel %vm428, %v6607, 0
    %v6697 = vsel %vm435, %v4133, 0
    %v6700 = vsel %vm435, %v4134, 0
    %v6703 = vsel %vm435, %v4135, 0
    %v6706 = vsel %vm435, %v4136, 0
    %v6709 = vsel %vm435, %v4137, 0
    %v6712 = vsel %vm435, %v4138, 0
    %v6715 = vsel %vm435, %v4139, 0
    %v6718 = vsel %vm435, %v4140, 0
    %v6721 = vsel %vm435, %v4141, 0
    %v6724 = vsel %vm435, %v4142, 0
    %v6727 = vsel %vm435, %v4143, 0
    %v6730 = vsel %vm435, %v4144, 0
    %v6733 = vsel %vm435, %v4145, 0
    %v6736 = vsel %vm435, %v4146, 0
    %v6739 = vsel %vm435, %v4147, 0
    %v6742 = vsel %vm435, %v4148, 0
    %6744 = vmatprep.subr.mxu0 0.0
    %6745 = vmatpush1.msra.mxu0 0.0
    %6746 = vmatprep.subr.mxu0 0.0
    %6747 = vmatpush1.msra.mxu0 0.0
    %6748 = vmatprep.subr.mxu0 0.0
    %6749 = vmatpush1.msra.mxu0 0.0
    %6750 = vmatprep.subr.mxu0 0.0
    %6751 = vmatpush1.msra.mxu0 0.0
    %6752 = vmatprep.subr.mxu0 0.0
    %6753 = vmatpush1.msra.mxu0 0.0
    %6754 = vmatprep.subr.mxu0 0.0
    %6755 = vmatpush1.msra.mxu0 0.0
    %6756 = vmatprep.subr.mxu0 0.0
    %6757 = vmatpush1.msra.mxu0 0.0
    %6758 = vmatprep.subr.mxu0 0.0
    %6759 = vmatpush1.msra.mxu0 0.0
    %6760 = vmatprep.subr.mxu0 0.0
    %6761 = vmatpush1.msra.mxu0 0.0
    %6762 = vmatprep.subr.mxu0 0.0
    %6763 = vmatpush1.msra.mxu0 0.0
    %6764 = vmatprep.subr.mxu0 0.0
    %6765 = vmatpush1.msra.mxu0 0.0
    %6766 = vmatprep.subr.mxu0 0.0
    %6767 = vmatpush1.msra.mxu0 0.0
    %6768 = vmatprep.subr.mxu0 0.0
    %6769 = vmatpush1.msra.mxu0 0.0
    %6770 = vmatprep.subr.mxu0 %v6700
    %6771 = vmatpush1.msra.mxu0 %v6697
    %6772 = vmatprep.subr.mxu0 %v4118
    %6773 = vmatpush1.msra.mxu0 %v4117
    %6774 = vmatprep.subr.mxu0 %v4102
    %6775 = vmatpush1.msra.mxu0 %v4101
    %6776 = vmatprep.subr.mxu0 0.0
    %6777 = vmatpush2.msra.mxu0 0.0
    %6778 = vmatprep.subr.mxu0 0.0
    %6779 = vmatpush2.msra.mxu0 0.0
    %6780 = vmatprep.subr.mxu0 0.0
    %6781 = vmatpush2.msra.mxu0 0.0
    %6782 = vmatprep.subr.mxu0 0.0
    %6783 = vmatpush2.msra.mxu0 0.0
    %6784 = vmatprep.subr.mxu0 0.0
    %6785 = vmatpush2.msra.mxu0 0.0
    %6786 = vmatprep.subr.mxu0 0.0
    %6787 = vmatpush2.msra.mxu0 0.0
    %6788 = vmatprep.subr.mxu0 0.0
    %6789 = vmatpush2.msra.mxu0 0.0
    %6790 = vmatprep.subr.mxu0 0.0
    %6791 = vmatpush2.msra.mxu0 0.0
    %6792 = vmatprep.subr.mxu0 0.0
    %6793 = vmatpush2.msra.mxu0 0.0
    %6794 = vmatprep.subr.mxu0 0.0
    %6795 = vmatpush2.msra.mxu0 0.0
    %6796 = vmatprep.subr.mxu0 0.0
    %6797 = vmatpush2.msra.mxu0 0.0
    %6798 = vmatprep.subr.mxu0 0.0
    %6799 = vmatpush2.msra.mxu0 0.0
    %6800 = vmatprep.subr.mxu0 0.0
    %6801 = vmatpush2.msra.mxu0 0.0
    %6802 = vmatprep.subr.mxu0 0.0
    %6803 = vmatpush2.msra.mxu0 0.0
    %6804 = vmatprep.subr.mxu0 0.0
    %6805 = vmatpush2.msra.mxu0 0.0
    %6806 = vmatprep.subr.mxu0 0.0
    %6807 = vmatpush2.msra.mxu0 0.0
    %6808 = vmatprep.mubr.f32.mxu0 0.0
    %6809 = vmatmul.mubr.f32.gmra.mxu0 %v6691
    %v6810 = vpop.f32.mrf.mxu0
    %v6811 = vadd.f32 %v6613, %v6810
    %v6812 = vpop.f32.mrf.mxu0
    %v6813 = vadd.f32 %v6617, %v6812
    %6814 = vmatprep.mubr.f32.mxu0 0.0
    %6815 = vmatmul.mubr.f32.gmra.mxu0 %v6694
    %v6816 = vpop.f32.mrf.mxu0
    %v6817 = vadd.f32 %v6613, %v6816
    %v6818 = vpop.f32.mrf.mxu0
    %v6819 = vadd.f32 %v6617, %v6818
    %6820 = vdwg.mxu0
    %6821 = vmatprep.subr.mxu0 0.0
    %6822 = vmatpush1.msra.mxu0 0.0
    %6823 = vmatprep.subr.mxu0 0.0
    %6824 = vmatpush1.msra.mxu0 0.0
    %6825 = vmatprep.subr.mxu0 0.0
    %6826 = vmatpush1.msra.mxu0 0.0
    %6827 = vmatprep.subr.mxu0 0.0
    %6828 = vmatpush1.msra.mxu0 0.0
    %6829 = vmatprep.subr.mxu0 0.0
    %6830 = vmatpush1.msra.mxu0 0.0
    %6831 = vmatprep.subr.mxu0 0.0
    %6832 = vmatpush1.msra.mxu0 0.0
    %6833 = vmatprep.subr.mxu0 0.0
    %6834 = vmatpush1.msra.mxu0 0.0
    %6835 = vmatprep.subr.mxu0 0.0
    %6836 = vmatpush1.msra.mxu0 0.0
    %6837 = vmatprep.subr.mxu0 0.0
    %6838 = vmatpush1.msra.mxu0 0.0
    %6839 = vmatprep.subr.mxu0 0.0
    %6840 = vmatpush1.msra.mxu0 0.0
    %6841 = vmatprep.subr.mxu0 0.0
    %6842 = vmatpush1.msra.mxu0 0.0
    %6843 = vmatprep.subr.mxu0 0.0
    %6844 = vmatpush1.msra.mxu0 0.0
    %6845 = vmatprep.subr.mxu0 0.0
    %6846 = vmatpush1.msra.mxu0 0.0
    %6847 = vmatprep.subr.mxu0 %v6706
    %6848 = vmatpush1.msra.mxu0 %v6703
    %6849 = vmatprep.subr.mxu0 %v4120
    %6850 = vmatpush1.msra.mxu0 %v4119
    %6851 = vmatprep.subr.mxu0 %v4104
    %6852 = vmatpush1.msra.mxu0 %v4103
    %6853 = vmatprep.subr.mxu0 0.0
    %6854 = vmatpush2.msra.mxu0 0.0
    %6855 = vmatprep.subr.mxu0 0.0
    %6856 = vmatpush2.msra.mxu0 0.0
    %6857 = vmatprep.subr.mxu0 0.0
    %6858 = vmatpush2.msra.mxu0 0.0
    %6859 = vmatprep.subr.mxu0 0.0
    %6860 = vmatpush2.msra.mxu0 0.0
    %6861 = vmatprep.subr.mxu0 0.0
    %6862 = vmatpush2.msra.mxu0 0.0
    %6863 = vmatprep.subr.mxu0 0.0
    %6864 = vmatpush2.msra.mxu0 0.0
    %6865 = vmatprep.subr.mxu0 0.0
    %6866 = vmatpush2.msra.mxu0 0.0
    %6867 = vmatprep.subr.mxu0 0.0
    %6868 = vmatpush2.msra.mxu0 0.0
    %6869 = vmatprep.subr.mxu0 0.0
    %6870 = vmatpush2.msra.mxu0 0.0
    %6871 = vmatprep.subr.mxu0 0.0
    %6872 = vmatpush2.msra.mxu0 0.0
    %6873 = vmatprep.subr.mxu0 0.0
    %6874 = vmatpush2.msra.mxu0 0.0
    %6875 = vmatprep.subr.mxu0 0.0
    %6876 = vmatpush2.msra.mxu0 0.0
    %6877 = vmatprep.subr.mxu0 0.0
    %6878 = vmatpush2.msra.mxu0 0.0
    %6879 = vmatprep.subr.mxu0 0.0
    %6880 = vmatpush2.msra.mxu0 0.0
    %6881 = vmatprep.subr.mxu0 0.0
    %6882 = vmatpush2.msra.mxu0 0.0
    %6883 = vmatprep.subr.mxu0 0.0
    %6884 = vmatpush2.msra.mxu0 0.0
    %6885 = vmatprep.mubr.f32.mxu0 0.0
    %6886 = vmatmul.mubr.f32.gmra.mxu0 %v6691
    %v6887 = vpop.f32.mrf.mxu0
    %v6888 = vadd.f32 %v6621, %v6887
    %v6889 = vpop.f32.mrf.mxu0
    %v6890 = vadd.f32 %v6625, %v6889
    %6891 = vmatprep.mubr.f32.mxu0 0.0
    %6892 = vmatmul.mubr.f32.gmra.mxu0 %v6694
    %v6893 = vpop.f32.mrf.mxu0
    %v6894 = vadd.f32 %v6621, %v6893
    %v6895 = vpop.f32.mrf.mxu0
    %v6896 = vadd.f32 %v6625, %v6895
    %6897 = vdwg.mxu0
    %6898 = vmatprep.subr.mxu0 0.0
    %6899 = vmatpush1.msra.mxu0 0.0
    %6900 = vmatprep.subr.mxu0 0.0
    %6901 = vmatpush1.msra.mxu0 0.0
    %6902 = vmatprep.subr.mxu0 0.0
    %6903 = vmatpush1.msra.mxu0 0.0
    %6904 = vmatprep.subr.mxu0 0.0
    %6905 = vmatpush1.msra.mxu0 0.0
    %6906 = vmatprep.subr.mxu0 0.0
    %6907 = vmatpush1.msra.mxu0 0.0
    %6908 = vmatprep.subr.mxu0 0.0
    %6909 = vmatpush1.msra.mxu0 0.0
    %6910 = vmatprep.subr.mxu0 0.0
    %6911 = vmatpush1.msra.mxu0 0.0
    %6912 = vmatprep.subr.mxu0 0.0
    %6913 = vmatpush1.msra.mxu0 0.0
    %6914 = vmatprep.subr.mxu0 0.0
    %6915 = vmatpush1.msra.mxu0 0.0
    %6916 = vmatprep.subr.mxu0 0.0
    %6917 = vmatpush1.msra.mxu0 0.0
    %6918 = vmatprep.subr.mxu0 0.0
    %6919 = vmatpush1.msra.mxu0 0.0
    %6920 = vmatprep.subr.mxu0 0.0
    %6921 = vmatpush1.msra.mxu0 0.0
    %6922 = vmatprep.subr.mxu0 0.0
    %6923 = vmatpush1.msra.mxu0 0.0
    %6924 = vmatprep.subr.mxu0 %v6712
    %6925 = vmatpush1.msra.mxu0 %v6709
    %6926 = vmatprep.subr.mxu0 %v4122
    %6927 = vmatpush1.msra.mxu0 %v4121
    %6928 = vmatprep.subr.mxu0 %v4106
    %6929 = vmatpush1.msra.mxu0 %v4105
    %6930 = vmatprep.subr.mxu0 0.0
    %6931 = vmatpush2.msra.mxu0 0.0
    %6932 = vmatprep.subr.mxu0 0.0
    %6933 = vmatpush2.msra.mxu0 0.0
    %6934 = vmatprep.subr.mxu0 0.0
    %6935 = vmatpush2.msra.mxu0 0.0
    %6936 = vmatprep.subr.mxu0 0.0
    %6937 = vmatpush2.msra.mxu0 0.0
    %6938 = vmatprep.subr.mxu0 0.0
    %6939 = vmatpush2.msra.mxu0 0.0
    %6940 = vmatprep.subr.mxu0 0.0
    %6941 = vmatpush2.msra.mxu0 0.0
    %6942 = vmatprep.subr.mxu0 0.0
    %6943 = vmatpush2.msra.mxu0 0.0
    %6944 = vmatprep.subr.mxu0 0.0
    %6945 = vmatpush2.msra.mxu0 0.0
    %6946 = vmatprep.subr.mxu0 0.0
    %6947 = vmatpush2.msra.mxu0 0.0
    %6948 = vmatprep.subr.mxu0 0.0
    %6949 = vmatpush2.msra.mxu0 0.0
    %6950 = vmatprep.subr.mxu0 0.0
    %6951 = vmatpush2.msra.mxu0 0.0
    %6952 = vmatprep.subr.mxu0 0.0
    %6953 = vmatpush2.msra.mxu0 0.0
    %6954 = vmatprep.subr.mxu0 0.0
    %6955 = vmatpush2.msra.mxu0 0.0
    %6956 = vmatprep.subr.mxu0 0.0
    %6957 = vmatpush2.msra.mxu0 0.0
    %6958 = vmatprep.subr.mxu0 0.0
    %6959 = vmatpush2.msra.mxu0 0.0
    %6960 = vmatprep.subr.mxu0 0.0
    %6961 = vmatpush2.msra.mxu0 0.0
    %6962 = vmatprep.mubr.f32.mxu0 0.0
    %6963 = vmatmul.mubr.f32.gmra.mxu0 %v6691
    %v6964 = vpop.f32.mrf.mxu0
    %v6965 = vadd.f32 %v6629, %v6964
    %v6966 = vpop.f32.mrf.mxu0
    %v6967 = vadd.f32 %v6633, %v6966
    %6968 = vmatprep.mubr.f32.mxu0 0.0
    %6969 = vmatmul.mubr.f32.gmra.mxu0 %v6694
    %v6970 = vpop.f32.mrf.mxu0
    %v6971 = vadd.f32 %v6629, %v6970
    %v6972 = vpop.f32.mrf.mxu0
    %v6973 = vadd.f32 %v6633, %v6972
    %6974 = vdwg.mxu0
    %6975 = vmatprep.subr.mxu0 0.0
    %6976 = vmatpush1.msra.mxu0 0.0
    %6977 = vmatprep.subr.mxu0 0.0
    %6978 = vmatpush1.msra.mxu0 0.0
    %6979 = vmatprep.subr.mxu0 0.0
    %6980 = vmatpush1.msra.mxu0 0.0
    %6981 = vmatprep.subr.mxu0 0.0
    %6982 = vmatpush1.msra.mxu0 0.0
    %6983 = vmatprep.subr.mxu0 0.0
    %6984 = vmatpush1.msra.mxu0 0.0
    %6985 = vmatprep.subr.mxu0 0.0
    %6986 = vmatpush1.msra.mxu0 0.0
    %6987 = vmatprep.subr.mxu0 0.0
    %6988 = vmatpush1.msra.mxu0 0.0
    %6989 = vmatprep.subr.mxu0 0.0
    %6990 = vmatpush1.msra.mxu0 0.0
    %6991 = vmatprep.subr.mxu0 0.0
    %6992 = vmatpush1.msra.mxu0 0.0
    %6993 = vmatprep.subr.mxu0 0.0
    %6994 = vmatpush1.msra.mxu0 0.0
    %6995 = vmatprep.subr.mxu0 0.0
    %6996 = vmatpush1.msra.mxu0 0.0
    %6997 = vmatprep.subr.mxu0 0.0
    %6998 = vmatpush1.msra.mxu0 0.0
    %6999 = vmatprep.subr.mxu0 0.0
    %7000 = vmatpush1.msra.mxu0 0.0
    %7001 = vmatprep.subr.mxu0 %v6718
    %7002 = vmatpush1.msra.mxu0 %v6715
    %7003 = vmatprep.subr.mxu0 %v4124
    %7004 = vmatpush1.msra.mxu0 %v4123
    %7005 = vmatprep.subr.mxu0 %v4108
    %7006 = vmatpush1.msra.mxu0 %v4107
    %7007 = vmatprep.subr.mxu0 0.0
    %7008 = vmatpush2.msra.mxu0 0.0
    %7009 = vmatprep.subr.mxu0 0.0
    %7010 = vmatpush2.msra.mxu0 0.0
    %7011 = vmatprep.subr.mxu0 0.0
    %7012 = vmatpush2.msra.mxu0 0.0
    %7013 = vmatprep.subr.mxu0 0.0
    %7014 = vmatpush2.msra.mxu0 0.0
    %7015 = vmatprep.subr.mxu0 0.0
    %7016 = vmatpush2.msra.mxu0 0.0
    %7017 = vmatprep.subr.mxu0 0.0
    %7018 = vmatpush2.msra.mxu0 0.0
    %7019 = vmatprep.subr.mxu0 0.0
    %7020 = vmatpush2.msra.mxu0 0.0
    %7021 = vmatprep.subr.mxu0 0.0
    %7022 = vmatpush2.msra.mxu0 0.0
    %7023 = vmatprep.subr.mxu0 0.0
    %7024 = vmatpush2.msra.mxu0 0.0
    %7025 = vmatprep.subr.mxu0 0.0
    %7026 = vmatpush2.msra.mxu0 0.0
    %7027 = vmatprep.subr.mxu0 0.0
    %7028 = vmatpush2.msra.mxu0 0.0
    %7029 = vmatprep.subr.mxu0 0.0
    %7030 = vmatpush2.msra.mxu0 0.0
    %7031 = vmatprep.subr.mxu0 0.0
    %7032 = vmatpush2.msra.mxu0 0.0
    %7033 = vmatprep.subr.mxu0 0.0
    %7034 = vmatpush2.msra.mxu0 0.0
    %7035 = vmatprep.subr.mxu0 0.0
    %7036 = vmatpush2.msra.mxu0 0.0
    %7037 = vmatprep.subr.mxu0 0.0
    %7038 = vmatpush2.msra.mxu0 0.0
    %7039 = vmatprep.mubr.f32.mxu0 0.0
    %7040 = vmatmul.mubr.f32.gmra.mxu0 %v6691
    %v7041 = vpop.f32.mrf.mxu0
    %v7042 = vadd.f32 %v6637, %v7041
    %v7043 = vpop.f32.mrf.mxu0
    %v7044 = vadd.f32 %v6641, %v7043
    %7045 = vmatprep.mubr.f32.mxu0 0.0
    %7046 = vmatmul.mubr.f32.gmra.mxu0 %v6694
    %v7047 = vpop.f32.mrf.mxu0
    %v7048 = vadd.f32 %v6637, %v7047
    %v7049 = vpop.f32.mrf.mxu0
    %v7050 = vadd.f32 %v6641, %v7049
    %7051 = vdwg.mxu0
    %7052 = vmatprep.subr.mxu0 0.0
    %7053 = vmatpush1.msra.mxu0 0.0
    %7054 = vmatprep.subr.mxu0 0.0
    %7055 = vmatpush1.msra.mxu0 0.0
    %7056 = vmatprep.subr.mxu0 0.0
    %7057 = vmatpush1.msra.mxu0 0.0
    %7058 = vmatprep.subr.mxu0 0.0
    %7059 = vmatpush1.msra.mxu0 0.0
    %7060 = vmatprep.subr.mxu0 0.0
    %7061 = vmatpush1.msra.mxu0 0.0
    %7062 = vmatprep.subr.mxu0 0.0
    %7063 = vmatpush1.msra.mxu0 0.0
    %7064 = vmatprep.subr.mxu0 0.0
    %7065 = vmatpush1.msra.mxu0 0.0
    %7066 = vmatprep.subr.mxu0 0.0
    %7067 = vmatpush1.msra.mxu0 0.0
    %7068 = vmatprep.subr.mxu0 0.0
    %7069 = vmatpush1.msra.mxu0 0.0
    %7070 = vmatprep.subr.mxu0 0.0
    %7071 = vmatpush1.msra.mxu0 0.0
    %7072 = vmatprep.subr.mxu0 0.0
    %7073 = vmatpush1.msra.mxu0 0.0
    %7074 = vmatprep.subr.mxu0 0.0
    %7075 = vmatpush1.msra.mxu0 0.0
    %7076 = vmatprep.subr.mxu0 0.0
    %7077 = vmatpush1.msra.mxu0 0.0
    %7078 = vmatprep.subr.mxu0 %v6724
    %7079 = vmatpush1.msra.mxu0 %v6721
    %7080 = vmatprep.subr.mxu0 %v4126
    %7081 = vmatpush1.msra.mxu0 %v4125
    %7082 = vmatprep.subr.mxu0 %v4110
    %7083 = vmatpush1.msra.mxu0 %v4109
    %7084 = vmatprep.subr.mxu0 0.0
    %7085 = vmatpush2.msra.mxu0 0.0
    %7086 = vmatprep.subr.mxu0 0.0
    %7087 = vmatpush2.msra.mxu0 0.0
    %7088 = vmatprep.subr.mxu0 0.0
    %7089 = vmatpush2.msra.mxu0 0.0
    %7090 = vmatprep.subr.mxu0 0.0
    %7091 = vmatpush2.msra.mxu0 0.0
    %7092 = vmatprep.subr.mxu0 0.0
    %7093 = vmatpush2.msra.mxu0 0.0
    %7094 = vmatprep.subr.mxu0 0.0
    %7095 = vmatpush2.msra.mxu0 0.0
    %7096 = vmatprep.subr.mxu0 0.0
    %7097 = vmatpush2.msra.mxu0 0.0
    %7098 = vmatprep.subr.mxu0 0.0
    %7099 = vmatpush2.msra.mxu0 0.0
    %7100 = vmatprep.subr.mxu0 0.0
    %7101 = vmatpush2.msra.mxu0 0.0
    %7102 = vmatprep.subr.mxu0 0.0
    %7103 = vmatpush2.msra.mxu0 0.0
    %7104 = vmatprep.subr.mxu0 0.0
    %7105 = vmatpush2.msra.mxu0 0.0
    %7106 = vmatprep.subr.mxu0 0.0
    %7107 = vmatpush2.msra.mxu0 0.0
    %7108 = vmatprep.subr.mxu0 0.0
    %7109 = vmatpush2.msra.mxu0 0.0
    %7110 = vmatprep.subr.mxu0 0.0
    %7111 = vmatpush2.msra.mxu0 0.0
    %7112 = vmatprep.subr.mxu0 0.0
    %7113 = vmatpush2.msra.mxu0 0.0
    %7114 = vmatprep.subr.mxu0 0.0
    %7115 = vmatpush2.msra.mxu0 0.0
    %7116 = vmatprep.mubr.f32.mxu0 0.0
    %7117 = vmatmul.mubr.f32.gmra.mxu0 %v6691
    %v7118 = vpop.f32.mrf.mxu0
    %v7119 = vadd.f32 %v6645, %v7118
    %v7120 = vpop.f32.mrf.mxu0
    %v7121 = vadd.f32 %v6649, %v7120
    %7122 = vmatprep.mubr.f32.mxu0 0.0
    %7123 = vmatmul.mubr.f32.gmra.mxu0 %v6694
    %v7124 = vpop.f32.mrf.mxu0
    %v7125 = vadd.f32 %v6645, %v7124
    %v7126 = vpop.f32.mrf.mxu0
    %v7127 = vadd.f32 %v6649, %v7126
    %7128 = vdwg.mxu0
    %7129 = vmatprep.subr.mxu0 0.0
    %7130 = vmatpush1.msra.mxu0 0.0
    %7131 = vmatprep.subr.mxu0 0.0
    %7132 = vmatpush1.msra.mxu0 0.0
    %7133 = vmatprep.subr.mxu0 0.0
    %7134 = vmatpush1.msra.mxu0 0.0
    %7135 = vmatprep.subr.mxu0 0.0
    %7136 = vmatpush1.msra.mxu0 0.0
    %7137 = vmatprep.subr.mxu0 0.0
    %7138 = vmatpush1.msra.mxu0 0.0
    %7139 = vmatprep.subr.mxu0 0.0
    %7140 = vmatpush1.msra.mxu0 0.0
    %7141 = vmatprep.subr.mxu0 0.0
    %7142 = vmatpush1.msra.mxu0 0.0
    %7143 = vmatprep.subr.mxu0 0.0
    %7144 = vmatpush1.msra.mxu0 0.0
    %7145 = vmatprep.subr.mxu0 0.0
    %7146 = vmatpush1.msra.mxu0 0.0
    %7147 = vmatprep.subr.mxu0 0.0
    %7148 = vmatpush1.msra.mxu0 0.0
    %7149 = vmatprep.subr.mxu0 0.0
    %7150 = vmatpush1.msra.mxu0 0.0
    %7151 = vmatprep.subr.mxu0 0.0
    %7152 = vmatpush1.msra.mxu0 0.0
    %7153 = vmatprep.subr.mxu0 0.0
    %7154 = vmatpush1.msra.mxu0 0.0
    %7155 = vmatprep.subr.mxu0 %v6730
    %7156 = vmatpush1.msra.mxu0 %v6727
    %7157 = vmatprep.subr.mxu0 %v4128
    %7158 = vmatpush1.msra.mxu0 %v4127
    %7159 = vmatprep.subr.mxu0 %v4112
    %7160 = vmatpush1.msra.mxu0 %v4111
    %7161 = vmatprep.subr.mxu0 0.0
    %7162 = vmatpush2.msra.mxu0 0.0
    %7163 = vmatprep.subr.mxu0 0.0
    %7164 = vmatpush2.msra.mxu0 0.0
    %7165 = vmatprep.subr.mxu0 0.0
    %7166 = vmatpush2.msra.mxu0 0.0
    %7167 = vmatprep.subr.mxu0 0.0
    %7168 = vmatpush2.msra.mxu0 0.0
    %7169 = vmatprep.subr.mxu0 0.0
    %7170 = vmatpush2.msra.mxu0 0.0
    %7171 = vmatprep.subr.mxu0 0.0
    %7172 = vmatpush2.msra.mxu0 0.0
    %7173 = vmatprep.subr.mxu0 0.0
    %7174 = vmatpush2.msra.mxu0 0.0
    %7175 = vmatprep.subr.mxu0 0.0
    %7176 = vmatpush2.msra.mxu0 0.0
    %7177 = vmatprep.subr.mxu0 0.0
    %7178 = vmatpush2.msra.mxu0 0.0
    %7179 = vmatprep.subr.mxu0 0.0
    %7180 = vmatpush2.msra.mxu0 0.0
    %7181 = vmatprep.subr.mxu0 0.0
    %7182 = vmatpush2.msra.mxu0 0.0
    %7183 = vmatprep.subr.mxu0 0.0
    %7184 = vmatpush2.msra.mxu0 0.0
    %7185 = vmatprep.subr.mxu0 0.0
    %7186 = vmatpush2.msra.mxu0 0.0
    %7187 = vmatprep.subr.mxu0 0.0
    %7188 = vmatpush2.msra.mxu0 0.0
    %7189 = vmatprep.subr.mxu0 0.0
    %7190 = vmatpush2.msra.mxu0 0.0
    %7191 = vmatprep.subr.mxu0 0.0
    %7192 = vmatpush2.msra.mxu0 0.0
    %7193 = vmatprep.mubr.f32.mxu0 0.0
    %7194 = vmatmul.mubr.f32.gmra.mxu0 %v6691
    %v7195 = vpop.f32.mrf.mxu0
    %v7196 = vadd.f32 %v6653, %v7195
    %v7197 = vpop.f32.mrf.mxu0
    %v7198 = vadd.f32 %v6657, %v7197
    %7199 = vmatprep.mubr.f32.mxu0 0.0
    %7200 = vmatmul.mubr.f32.gmra.mxu0 %v6694
    %v7201 = vpop.f32.mrf.mxu0
    %v7202 = vadd.f32 %v6653, %v7201
    %v7203 = vpop.f32.mrf.mxu0
    %v7204 = vadd.f32 %v6657, %v7203
    %7205 = vdwg.mxu0
    %7206 = vmatprep.subr.mxu0 0.0
    %7207 = vmatpush1.msra.mxu0 0.0
    %7208 = vmatprep.subr.mxu0 0.0
    %7209 = vmatpush1.msra.mxu0 0.0
    %7210 = vmatprep.subr.mxu0 0.0
    %7211 = vmatpush1.msra.mxu0 0.0
    %7212 = vmatprep.subr.mxu0 0.0
    %7213 = vmatpush1.msra.mxu0 0.0
    %7214 = vmatprep.subr.mxu0 0.0
    %7215 = vmatpush1.msra.mxu0 0.0
    %7216 = vmatprep.subr.mxu0 0.0
    %7217 = vmatpush1.msra.mxu0 0.0
    %7218 = vmatprep.subr.mxu0 0.0
    %7219 = vmatpush1.msra.mxu0 0.0
    %7220 = vmatprep.subr.mxu0 0.0
    %7221 = vmatpush1.msra.mxu0 0.0
    %7222 = vmatprep.subr.mxu0 0.0
    %7223 = vmatpush1.msra.mxu0 0.0
    %7224 = vmatprep.subr.mxu0 0.0
    %7225 = vmatpush1.msra.mxu0 0.0
    %7226 = vmatprep.subr.mxu0 0.0
    %7227 = vmatpush1.msra.mxu0 0.0
    %7228 = vmatprep.subr.mxu0 0.0
    %7229 = vmatpush1.msra.mxu0 0.0
    %7230 = vmatprep.subr.mxu0 0.0
    %7231 = vmatpush1.msra.mxu0 0.0
    %7232 = vmatprep.subr.mxu0 %v6736
    %7233 = vmatpush1.msra.mxu0 %v6733
    %7234 = vmatprep.subr.mxu0 %v4130
    %7235 = vmatpush1.msra.mxu0 %v4129
    %7236 = vmatprep.subr.mxu0 %v4114
    %7237 = vmatpush1.msra.mxu0 %v4113
    %7238 = vmatprep.subr.mxu0 0.0
    %7239 = vmatpush2.msra.mxu0 0.0
    %7240 = vmatprep.subr.mxu0 0.0
    %7241 = vmatpush2.msra.mxu0 0.0
    %7242 = vmatprep.subr.mxu0 0.0
    %7243 = vmatpush2.msra.mxu0 0.0
    %7244 = vmatprep.subr.mxu0 0.0
    %7245 = vmatpush2.msra.mxu0 0.0
    %7246 = vmatprep.subr.mxu0 0.0
    %7247 = vmatpush2.msra.mxu0 0.0
    %7248 = vmatprep.subr.mxu0 0.0
    %7249 = vmatpush2.msra.mxu0 0.0
    %7250 = vmatprep.subr.mxu0 0.0
    %7251 = vmatpush2.msra.mxu0 0.0
    %7252 = vmatprep.subr.mxu0 0.0
    %7253 = vmatpush2.msra.mxu0 0.0
    %7254 = vmatprep.subr.mxu0 0.0
    %7255 = vmatpush2.msra.mxu0 0.0
    %7256 = vmatprep.subr.mxu0 0.0
    %7257 = vmatpush2.msra.mxu0 0.0
    %7258 = vmatprep.subr.mxu0 0.0
    %7259 = vmatpush2.msra.mxu0 0.0
    %7260 = vmatprep.subr.mxu0 0.0
    %7261 = vmatpush2.msra.mxu0 0.0
    %7262 = vmatprep.subr.mxu0 0.0
    %7263 = vmatpush2.msra.mxu0 0.0
    %7264 = vmatprep.subr.mxu0 0.0
    %7265 = vmatpush2.msra.mxu0 0.0
    %7266 = vmatprep.subr.mxu0 0.0
    %7267 = vmatpush2.msra.mxu0 0.0
    %7268 = vmatprep.subr.mxu0 0.0
    %7269 = vmatpush2.msra.mxu0 0.0
    %7270 = vmatprep.mubr.f32.mxu0 0.0
    %7271 = vmatmul.mubr.f32.gmra.mxu0 %v6691
    %v7272 = vpop.f32.mrf.mxu0
    %v7273 = vadd.f32 %v6661, %v7272
    %v7274 = vpop.f32.mrf.mxu0
    %v7275 = vadd.f32 %v6665, %v7274
    %7276 = vmatprep.mubr.f32.mxu0 0.0
    %7277 = vmatmul.mubr.f32.gmra.mxu0 %v6694
    %v7278 = vpop.f32.mrf.mxu0
    %v7279 = vadd.f32 %v6661, %v7278
    %v7280 = vpop.f32.mrf.mxu0
    %v7281 = vadd.f32 %v6665, %v7280
    %7282 = vdwg.mxu0
    %7283 = vmatprep.subr.mxu0 0.0
    %7284 = vmatpush1.msra.mxu0 0.0
    %7285 = vmatprep.subr.mxu0 0.0
    %7286 = vmatpush1.msra.mxu0 0.0
    %7287 = vmatprep.subr.mxu0 0.0
    %7288 = vmatpush1.msra.mxu0 0.0
    %7289 = vmatprep.subr.mxu0 0.0
    %7290 = vmatpush1.msra.mxu0 0.0
    %7291 = vmatprep.subr.mxu0 0.0
    %7292 = vmatpush1.msra.mxu0 0.0
    %7293 = vmatprep.subr.mxu0 0.0
    %7294 = vmatpush1.msra.mxu0 0.0
    %7295 = vmatprep.subr.mxu0 0.0
    %7296 = vmatpush1.msra.mxu0 0.0
    %7297 = vmatprep.subr.mxu0 0.0
    %7298 = vmatpush1.msra.mxu0 0.0
    %7299 = vmatprep.subr.mxu0 0.0
    %7300 = vmatpush1.msra.mxu0 0.0
    %7301 = vmatprep.subr.mxu0 0.0
    %7302 = vmatpush1.msra.mxu0 0.0
    %7303 = vmatprep.subr.mxu0 0.0
    %7304 = vmatpush1.msra.mxu0 0.0
    %7305 = vmatprep.subr.mxu0 0.0
    %7306 = vmatpush1.msra.mxu0 0.0
    %7307 = vmatprep.subr.mxu0 0.0
    %7308 = vmatpush1.msra.mxu0 0.0
    %7309 = vmatprep.subr.mxu0 %v6742
    %7310 = vmatpush1.msra.mxu0 %v6739
    %7311 = vmatprep.subr.mxu0 %v4132
    %7312 = vmatpush1.msra.mxu0 %v4131
    %7313 = vmatprep.subr.mxu0 %v4116
    %7314 = vmatpush1.msra.mxu0 %v4115
    %7315 = vmatprep.subr.mxu0 0.0
    %7316 = vmatpush2.msra.mxu0 0.0
    %7317 = vmatprep.subr.mxu0 0.0
    %7318 = vmatpush2.msra.mxu0 0.0
    %7319 = vmatprep.subr.mxu0 0.0
    %7320 = vmatpush2.msra.mxu0 0.0
    %7321 = vmatprep.subr.mxu0 0.0
    %7322 = vmatpush2.msra.mxu0 0.0
    %7323 = vmatprep.subr.mxu0 0.0
    %7324 = vmatpush2.msra.mxu0 0.0
    %7325 = vmatprep.subr.mxu0 0.0
    %7326 = vmatpush2.msra.mxu0 0.0
    %7327 = vmatprep.subr.mxu0 0.0
    %7328 = vmatpush2.msra.mxu0 0.0
    %7329 = vmatprep.subr.mxu0 0.0
    %7330 = vmatpush2.msra.mxu0 0.0
    %7331 = vmatprep.subr.mxu0 0.0
    %7332 = vmatpush2.msra.mxu0 0.0
    %7333 = vmatprep.subr.mxu0 0.0
    %7334 = vmatpush2.msra.mxu0 0.0
    %7335 = vmatprep.subr.mxu0 0.0
    %7336 = vmatpush2.msra.mxu0 0.0
    %7337 = vmatprep.subr.mxu0 0.0
    %7338 = vmatpush2.msra.mxu0 0.0
    %7339 = vmatprep.subr.mxu0 0.0
    %7340 = vmatpush2.msra.mxu0 0.0
    %7341 = vmatprep.subr.mxu0 0.0
    %7342 = vmatpush2.msra.mxu0 0.0
    %7343 = vmatprep.subr.mxu0 0.0
    %7344 = vmatpush2.msra.mxu0 0.0
    %7345 = vmatprep.subr.mxu0 0.0
    %7346 = vmatpush2.msra.mxu0 0.0
    %7347 = vmatprep.mubr.f32.mxu0 0.0
    %7348 = vmatmul.mubr.f32.gmra.mxu0 %v6691
    %v7349 = vpop.f32.mrf.mxu0
    %v7350 = vadd.f32 %v6669, %v7349
    %v7351 = vpop.f32.mrf.mxu0
    %v7352 = vadd.f32 %v6673, %v7351
    %7353 = vmatprep.mubr.f32.mxu0 0.0
    %7354 = vmatmul.mubr.f32.gmra.mxu0 %v6694
    %v7355 = vpop.f32.mrf.mxu0
    %v7356 = vadd.f32 %v6669, %v7355
    %v7357 = vpop.f32.mrf.mxu0
    %v7358 = vadd.f32 %v6673, %v7357
    %7359 = vdwg.mxu0
    %v7360 = vmax.f32 %v6811, 0.0
    %v7361 = vmax.f32 %v6813, 0.0
    %v7362 = vmax.f32 %v6888, 0.0
    %v7363 = vmax.f32 %v6890, 0.0
    %v7364 = vmax.f32 %v6965, 0.0
    %v7365 = vmax.f32 %v6967, 0.0
    %v7366 = vmax.f32 %v7042, 0.0
    %v7367 = vmax.f32 %v7044, 0.0
    %v7368 = vmax.f32 %v7119, 0.0
    %v7369 = vmax.f32 %v7121, 0.0
    %v7370 = vmax.f32 %v7196, 0.0
    %v7371 = vmax.f32 %v7198, 0.0
    %v7372 = vmax.f32 %v7273, 0.0
    %v7373 = vmax.f32 %v7275, 0.0
    %v7374 = vmax.f32 %v7350, 0.0
    %v7375 = vmax.f32 %v7352, 0.0
    %v7376 = vmax.f32 %v6817, 0.0
    %v7377 = vmax.f32 %v6819, 0.0
    %v7378 = vmax.f32 %v6894, 0.0
    %v7379 = vmax.f32 %v6896, 0.0
    %v7380 = vmax.f32 %v6971, 0.0
    %v7381 = vmax.f32 %v6973, 0.0
    %v7382 = vmax.f32 %v7048, 0.0
    %v7383 = vmax.f32 %v7050, 0.0
    %v7384 = vmax.f32 %v7125, 0.0
    %v7385 = vmax.f32 %v7127, 0.0
    %v7386 = vmax.f32 %v7202, 0.0
    %v7387 = vmax.f32 %v7204, 0.0
    %v7388 = vmax.f32 %v7279, 0.0
    %v7389 = vmax.f32 %v7281, 0.0
    %v7390 = vmax.f32 %v7356, 0.0
    %v7391 = vmax.f32 %v7358, 0.0
    %v7393 = vlaneseq
    %v7394 = vshrl.u32 %v7393, 7
    %v7395 = vsub.s32 0, %v7394
    %v7396 = vrot.slane %v4407, %v7395
    %7398 = vmatprep.subr.mxu0 0.0
    %7399 = vmatpush1.msra.mxu0 %v4166
    %7400 = vmatprep.subr.mxu0 0.0
    %7401 = vmatpush1.msra.mxu0 %v4165
    %7402 = vmatprep.subr.mxu0 0.0
    %7403 = vmatpush1.msra.mxu0 %v4164
    %7404 = vmatprep.subr.mxu0 0.0
    %7405 = vmatpush1.msra.mxu0 %v4163
    %7406 = vmatprep.subr.mxu0 0.0
    %7407 = vmatpush1.msra.mxu0 %v4162
    %7408 = vmatprep.subr.mxu0 0.0
    %7409 = vmatpush1.msra.mxu0 %v4161
    %7410 = vmatprep.subr.mxu0 0.0
    %7411 = vmatpush1.msra.mxu0 %v4160
    %7412 = vmatprep.subr.mxu0 0.0
    %7413 = vmatpush1.msra.mxu0 %v4159
    %7414 = vmatprep.subr.mxu0 0.0
    %7415 = vmatpush1.msra.mxu0 %v4158
    %7416 = vmatprep.subr.mxu0 0.0
    %7417 = vmatpush1.msra.mxu0 %v4157
    %7418 = vmatprep.subr.mxu0 0.0
    %7419 = vmatpush1.msra.mxu0 %v4156
    %7420 = vmatprep.subr.mxu0 0.0
    %7421 = vmatpush1.msra.mxu0 %v4155
    %7422 = vmatprep.subr.mxu0 0.0
    %7423 = vmatpush1.msra.mxu0 %v4154
    %7424 = vmatprep.subr.mxu0 0.0
    %7425 = vmatpush1.msra.mxu0 %v4153
    %7426 = vmatprep.subr.mxu0 0.0
    %7427 = vmatpush1.msra.mxu0 %v4152
    %7428 = vmatprep.subr.mxu0 0.0
    %7429 = vmatpush1.msra.mxu0 %v4151
    %7430 = vmatprep.subr.mxu0 0.0
    %7431 = vmatpush2.msra.mxu0 %v4182
    %7432 = vmatprep.subr.mxu0 0.0
    %7433 = vmatpush2.msra.mxu0 %v4181
    %7434 = vmatprep.subr.mxu0 0.0
    %7435 = vmatpush2.msra.mxu0 %v4180
    %7436 = vmatprep.subr.mxu0 0.0
    %7437 = vmatpush2.msra.mxu0 %v4179
    %7438 = vmatprep.subr.mxu0 0.0
    %7439 = vmatpush2.msra.mxu0 %v4178
    %7440 = vmatprep.subr.mxu0 0.0
    %7441 = vmatpush2.msra.mxu0 %v4177
    %7442 = vmatprep.subr.mxu0 0.0
    %7443 = vmatpush2.msra.mxu0 %v4176
    %7444 = vmatprep.subr.mxu0 0.0
    %7445 = vmatpush2.msra.mxu0 %v4175
    %7446 = vmatprep.subr.mxu0 0.0
    %7447 = vmatpush2.msra.mxu0 %v4174
    %7448 = vmatprep.subr.mxu0 0.0
    %7449 = vmatpush2.msra.mxu0 %v4173
    %7450 = vmatprep.subr.mxu0 0.0
    %7451 = vmatpush2.msra.mxu0 %v4172
    %7452 = vmatprep.subr.mxu0 0.0
    %7453 = vmatpush2.msra.mxu0 %v4171
    %7454 = vmatprep.subr.mxu0 0.0
    %7455 = vmatpush2.msra.mxu0 %v4170
    %7456 = vmatprep.subr.mxu0 0.0
    %7457 = vmatpush2.msra.mxu0 %v4169
    %7458 = vmatprep.subr.mxu0 0.0
    %7459 = vmatpush2.msra.mxu0 %v4168
    %7460 = vmatprep.subr.mxu0 0.0
    %7461 = vmatpush2.msra.mxu0 %v4167
    %7462 = vmatprep.mubr.f32.mxu0 %v7361
    %7463 = vmatmul.mubr.f32.gmra.mxu0 %v7360
    %v7464 = vpop.f32.mrf.mxu0
    %v7465 = vadd.f32 %v7396, %v7464
    %v7466 = vpop.f32.mrf.mxu0
    %7467 = vmatprep.mubr.f32.mxu0 %v7377
    %7468 = vmatmul.mubr.f32.gmra.mxu0 %v7376
    %v7469 = vpop.f32.mrf.mxu0
    %v7470 = vadd.f32 %v7396, %v7469
    %v7471 = vpop.f32.mrf.mxu0
    %7472 = vdwg.mxu0
    %7473 = vmatprep.subr.mxu0 0.0
    %7474 = vmatpush1.msra.mxu0 %v4198
    %7475 = vmatprep.subr.mxu0 0.0
    %7476 = vmatpush1.msra.mxu0 %v4197
    %7477 = vmatprep.subr.mxu0 0.0
    %7478 = vmatpush1.msra.mxu0 %v4196
    %7479 = vmatprep.subr.mxu0 0.0
    %7480 = vmatpush1.msra.mxu0 %v4195
    %7481 = vmatprep.subr.mxu0 0.0
    %7482 = vmatpush1.msra.mxu0 %v4194
    %7483 = vmatprep.subr.mxu0 0.0
    %7484 = vmatpush1.msra.mxu0 %v4193
    %7485 = vmatprep.subr.mxu0 0.0
    %7486 = vmatpush1.msra.mxu0 %v4192
    %7487 = vmatprep.subr.mxu0 0.0
    %7488 = vmatpush1.msra.mxu0 %v4191
    %7489 = vmatprep.subr.mxu0 0.0
    %7490 = vmatpush1.msra.mxu0 %v4190
    %7491 = vmatprep.subr.mxu0 0.0
    %7492 = vmatpush1.msra.mxu0 %v4189
    %7493 = vmatprep.subr.mxu0 0.0
    %7494 = vmatpush1.msra.mxu0 %v4188
    %7495 = vmatprep.subr.mxu0 0.0
    %7496 = vmatpush1.msra.mxu0 %v4187
    %7497 = vmatprep.subr.mxu0 0.0
    %7498 = vmatpush1.msra.mxu0 %v4186
    %7499 = vmatprep.subr.mxu0 0.0
    %7500 = vmatpush1.msra.mxu0 %v4185
    %7501 = vmatprep.subr.mxu0 0.0
    %7502 = vmatpush1.msra.mxu0 %v4184
    %7503 = vmatprep.subr.mxu0 0.0
    %7504 = vmatpush1.msra.mxu0 %v4183
    %7505 = vmatprep.subr.mxu0 0.0
    %7506 = vmatpush2.msra.mxu0 %v4214
    %7507 = vmatprep.subr.mxu0 0.0
    %7508 = vmatpush2.msra.mxu0 %v4213
    %7509 = vmatprep.subr.mxu0 0.0
    %7510 = vmatpush2.msra.mxu0 %v4212
    %7511 = vmatprep.subr.mxu0 0.0
    %7512 = vmatpush2.msra.mxu0 %v4211
    %7513 = vmatprep.subr.mxu0 0.0
    %7514 = vmatpush2.msra.mxu0 %v4210
    %7515 = vmatprep.subr.mxu0 0.0
    %7516 = vmatpush2.msra.mxu0 %v4209
    %7517 = vmatprep.subr.mxu0 0.0
    %7518 = vmatpush2.msra.mxu0 %v4208
    %7519 = vmatprep.subr.mxu0 0.0
    %7520 = vmatpush2.msra.mxu0 %v4207
    %7521 = vmatprep.subr.mxu0 0.0
    %7522 = vmatpush2.msra.mxu0 %v4206
    %7523 = vmatprep.subr.mxu0 0.0
    %7524 = vmatpush2.msra.mxu0 %v4205
    %7525 = vmatprep.subr.mxu0 0.0
    %7526 = vmatpush2.msra.mxu0 %v4204
    %7527 = vmatprep.subr.mxu0 0.0
    %7528 = vmatpush2.msra.mxu0 %v4203
    %7529 = vmatprep.subr.mxu0 0.0
    %7530 = vmatpush2.msra.mxu0 %v4202
    %7531 = vmatprep.subr.mxu0 0.0
    %7532 = vmatpush2.msra.mxu0 %v4201
    %7533 = vmatprep.subr.mxu0 0.0
    %7534 = vmatpush2.msra.mxu0 %v4200
    %7535 = vmatprep.subr.mxu0 0.0
    %7536 = vmatpush2.msra.mxu0 %v4199
    %7537 = vmatprep.mubr.f32.mxu0 %v7363
    %7538 = vmatmul.mubr.f32.gmra.mxu0 %v7362
    %v7539 = vpop.f32.mrf.mxu0
    %v7540 = vadd.f32 %v7465, %v7539
    %v7541 = vpop.f32.mrf.mxu0
    %7542 = vmatprep.mubr.f32.mxu0 %v7379
    %7543 = vmatmul.mubr.f32.gmra.mxu0 %v7378
    %v7544 = vpop.f32.mrf.mxu0
    %v7545 = vadd.f32 %v7470, %v7544
    %v7546 = vpop.f32.mrf.mxu0
    %7547 = vdwg.mxu0
    %7548 = vmatprep.subr.mxu0 0.0
    %7549 = vmatpush1.msra.mxu0 %v4230
    %7550 = vmatprep.subr.mxu0 0.0
    %7551 = vmatpush1.msra.mxu0 %v4229
    %7552 = vmatprep.subr.mxu0 0.0
    %7553 = vmatpush1.msra.mxu0 %v4228
    %7554 = vmatprep.subr.mxu0 0.0
    %7555 = vmatpush1.msra.mxu0 %v4227
    %7556 = vmatprep.subr.mxu0 0.0
    %7557 = vmatpush1.msra.mxu0 %v4226
    %7558 = vmatprep.subr.mxu0 0.0
    %7559 = vmatpush1.msra.mxu0 %v4225
    %7560 = vmatprep.subr.mxu0 0.0
    %7561 = vmatpush1.msra.mxu0 %v4224
    %7562 = vmatprep.subr.mxu0 0.0
    %7563 = vmatpush1.msra.mxu0 %v4223
    %7564 = vmatprep.subr.mxu0 0.0
    %7565 = vmatpush1.msra.mxu0 %v4222
    %7566 = vmatprep.subr.mxu0 0.0
    %7567 = vmatpush1.msra.mxu0 %v4221
    %7568 = vmatprep.subr.mxu0 0.0
    %7569 = vmatpush1.msra.mxu0 %v4220
    %7570 = vmatprep.subr.mxu0 0.0
    %7571 = vmatpush1.msra.mxu0 %v4219
    %7572 = vmatprep.subr.mxu0 0.0
    %7573 = vmatpush1.msra.mxu0 %v4218
    %7574 = vmatprep.subr.mxu0 0.0
    %7575 = vmatpush1.msra.mxu0 %v4217
    %7576 = vmatprep.subr.mxu0 0.0
    %7577 = vmatpush1.msra.mxu0 %v4216
    %7578 = vmatprep.subr.mxu0 0.0
    %7579 = vmatpush1.msra.mxu0 %v4215
    %7580 = vmatprep.subr.mxu0 0.0
    %7581 = vmatpush2.msra.mxu0 %v4246
    %7582 = vmatprep.subr.mxu0 0.0
    %7583 = vmatpush2.msra.mxu0 %v4245
    %7584 = vmatprep.subr.mxu0 0.0
    %7585 = vmatpush2.msra.mxu0 %v4244
    %7586 = vmatprep.subr.mxu0 0.0
    %7587 = vmatpush2.msra.mxu0 %v4243
    %7588 = vmatprep.subr.mxu0 0.0
    %7589 = vmatpush2.msra.mxu0 %v4242
    %7590 = vmatprep.subr.mxu0 0.0
    %7591 = vmatpush2.msra.mxu0 %v4241
    %7592 = vmatprep.subr.mxu0 0.0
    %7593 = vmatpush2.msra.mxu0 %v4240
    %7594 = vmatprep.subr.mxu0 0.0
    %7595 = vmatpush2.msra.mxu0 %v4239
    %7596 = vmatprep.subr.mxu0 0.0
    %7597 = vmatpush2.msra.mxu0 %v4238
    %7598 = vmatprep.subr.mxu0 0.0
    %7599 = vmatpush2.msra.mxu0 %v4237
    %7600 = vmatprep.subr.mxu0 0.0
    %7601 = vmatpush2.msra.mxu0 %v4236
    %7602 = vmatprep.subr.mxu0 0.0
    %7603 = vmatpush2.msra.mxu0 %v4235
    %7604 = vmatprep.subr.mxu0 0.0
    %7605 = vmatpush2.msra.mxu0 %v4234
    %7606 = vmatprep.subr.mxu0 0.0
    %7607 = vmatpush2.msra.mxu0 %v4233
    %7608 = vmatprep.subr.mxu0 0.0
    %7609 = vmatpush2.msra.mxu0 %v4232
    %7610 = vmatprep.subr.mxu0 0.0
    %7611 = vmatpush2.msra.mxu0 %v4231
    %7612 = vmatprep.mubr.f32.mxu0 %v7365
    %7613 = vmatmul.mubr.f32.gmra.mxu0 %v7364
    %v7614 = vpop.f32.mrf.mxu0
    %v7615 = vadd.f32 %v7540, %v7614
    %v7616 = vpop.f32.mrf.mxu0
    %7617 = vmatprep.mubr.f32.mxu0 %v7381
    %7618 = vmatmul.mubr.f32.gmra.mxu0 %v7380
    %v7619 = vpop.f32.mrf.mxu0
    %v7620 = vadd.f32 %v7545, %v7619
    %v7621 = vpop.f32.mrf.mxu0
    %7622 = vdwg.mxu0
    %7623 = vmatprep.subr.mxu0 0.0
    %7624 = vmatpush1.msra.mxu0 %v4262
    %7625 = vmatprep.subr.mxu0 0.0
    %7626 = vmatpush1.msra.mxu0 %v4261
    %7627 = vmatprep.subr.mxu0 0.0
    %7628 = vmatpush1.msra.mxu0 %v4260
    %7629 = vmatprep.subr.mxu0 0.0
    %7630 = vmatpush1.msra.mxu0 %v4259
    %7631 = vmatprep.subr.mxu0 0.0
    %7632 = vmatpush1.msra.mxu0 %v4258
    %7633 = vmatprep.subr.mxu0 0.0
    %7634 = vmatpush1.msra.mxu0 %v4257
    %7635 = vmatprep.subr.mxu0 0.0
    %7636 = vmatpush1.msra.mxu0 %v4256
    %7637 = vmatprep.subr.mxu0 0.0
    %7638 = vmatpush1.msra.mxu0 %v4255
    %7639 = vmatprep.subr.mxu0 0.0
    %7640 = vmatpush1.msra.mxu0 %v4254
    %7641 = vmatprep.subr.mxu0 0.0
    %7642 = vmatpush1.msra.mxu0 %v4253
    %7643 = vmatprep.subr.mxu0 0.0
    %7644 = vmatpush1.msra.mxu0 %v4252
    %7645 = vmatprep.subr.mxu0 0.0
    %7646 = vmatpush1.msra.mxu0 %v4251
    %7647 = vmatprep.subr.mxu0 0.0
    %7648 = vmatpush1.msra.mxu0 %v4250
    %7649 = vmatprep.subr.mxu0 0.0
    %7650 = vmatpush1.msra.mxu0 %v4249
    %7651 = vmatprep.subr.mxu0 0.0
    %7652 = vmatpush1.msra.mxu0 %v4248
    %7653 = vmatprep.subr.mxu0 0.0
    %7654 = vmatpush1.msra.mxu0 %v4247
    %7655 = vmatprep.subr.mxu0 0.0
    %7656 = vmatpush2.msra.mxu0 %v4278
    %7657 = vmatprep.subr.mxu0 0.0
    %7658 = vmatpush2.msra.mxu0 %v4277
    %7659 = vmatprep.subr.mxu0 0.0
    %7660 = vmatpush2.msra.mxu0 %v4276
    %7661 = vmatprep.subr.mxu0 0.0
    %7662 = vmatpush2.msra.mxu0 %v4275
    %7663 = vmatprep.subr.mxu0 0.0
    %7664 = vmatpush2.msra.mxu0 %v4274
    %7665 = vmatprep.subr.mxu0 0.0
    %7666 = vmatpush2.msra.mxu0 %v4273
    %7667 = vmatprep.subr.mxu0 0.0
    %7668 = vmatpush2.msra.mxu0 %v4272
    %7669 = vmatprep.subr.mxu0 0.0
    %7670 = vmatpush2.msra.mxu0 %v4271
    %7671 = vmatprep.subr.mxu0 0.0
    %7672 = vmatpush2.msra.mxu0 %v4270
    %7673 = vmatprep.subr.mxu0 0.0
    %7674 = vmatpush2.msra.mxu0 %v4269
    %7675 = vmatprep.subr.mxu0 0.0
    %7676 = vmatpush2.msra.mxu0 %v4268
    %7677 = vmatprep.subr.mxu0 0.0
    %7678 = vmatpush2.msra.mxu0 %v4267
    %7679 = vmatprep.subr.mxu0 0.0
    %7680 = vmatpush2.msra.mxu0 %v4266
    %7681 = vmatprep.subr.mxu0 0.0
    %7682 = vmatpush2.msra.mxu0 %v4265
    %7683 = vmatprep.subr.mxu0 0.0
    %7684 = vmatpush2.msra.mxu0 %v4264
    %7685 = vmatprep.subr.mxu0 0.0
    %7686 = vmatpush2.msra.mxu0 %v4263
    %7687 = vmatprep.mubr.f32.mxu0 %v7367
    %7688 = vmatmul.mubr.f32.gmra.mxu0 %v7366
    %v7689 = vpop.f32.mrf.mxu0
    %v7690 = vadd.f32 %v7615, %v7689
    %v7691 = vpop.f32.mrf.mxu0
    %7692 = vmatprep.mubr.f32.mxu0 %v7383
    %7693 = vmatmul.mubr.f32.gmra.mxu0 %v7382
    %v7694 = vpop.f32.mrf.mxu0
    %v7695 = vadd.f32 %v7620, %v7694
    %v7696 = vpop.f32.mrf.mxu0
    %7697 = vdwg.mxu0
    %7698 = vmatprep.subr.mxu0 0.0
    %7699 = vmatpush1.msra.mxu0 %v4294
    %7700 = vmatprep.subr.mxu0 0.0
    %7701 = vmatpush1.msra.mxu0 %v4293
    %7702 = vmatprep.subr.mxu0 0.0
    %7703 = vmatpush1.msra.mxu0 %v4292
    %7704 = vmatprep.subr.mxu0 0.0
    %7705 = vmatpush1.msra.mxu0 %v4291
    %7706 = vmatprep.subr.mxu0 0.0
    %7707 = vmatpush1.msra.mxu0 %v4290
    %7708 = vmatprep.subr.mxu0 0.0
    %7709 = vmatpush1.msra.mxu0 %v4289
    %7710 = vmatprep.subr.mxu0 0.0
    %7711 = vmatpush1.msra.mxu0 %v4288
    %7712 = vmatprep.subr.mxu0 0.0
    %7713 = vmatpush1.msra.mxu0 %v4287
    %7714 = vmatprep.subr.mxu0 0.0
    %7715 = vmatpush1.msra.mxu0 %v4286
    %7716 = vmatprep.subr.mxu0 0.0
    %7717 = vmatpush1.msra.mxu0 %v4285
    %7718 = vmatprep.subr.mxu0 0.0
    %7719 = vmatpush1.msra.mxu0 %v4284
    %7720 = vmatprep.subr.mxu0 0.0
    %7721 = vmatpush1.msra.mxu0 %v4283
    %7722 = vmatprep.subr.mxu0 0.0
    %7723 = vmatpush1.msra.mxu0 %v4282
    %7724 = vmatprep.subr.mxu0 0.0
    %7725 = vmatpush1.msra.mxu0 %v4281
    %7726 = vmatprep.subr.mxu0 0.0
    %7727 = vmatpush1.msra.mxu0 %v4280
    %7728 = vmatprep.subr.mxu0 0.0
    %7729 = vmatpush1.msra.mxu0 %v4279
    %7730 = vmatprep.subr.mxu0 0.0
    %7731 = vmatpush2.msra.mxu0 %v4310
    %7732 = vmatprep.subr.mxu0 0.0
    %7733 = vmatpush2.msra.mxu0 %v4309
    %7734 = vmatprep.subr.mxu0 0.0
    %7735 = vmatpush2.msra.mxu0 %v4308
    %7736 = vmatprep.subr.mxu0 0.0
    %7737 = vmatpush2.msra.mxu0 %v4307
    %7738 = vmatprep.subr.mxu0 0.0
    %7739 = vmatpush2.msra.mxu0 %v4306
    %7740 = vmatprep.subr.mxu0 0.0
    %7741 = vmatpush2.msra.mxu0 %v4305
    %7742 = vmatprep.subr.mxu0 0.0
    %7743 = vmatpush2.msra.mxu0 %v4304
    %7744 = vmatprep.subr.mxu0 0.0
    %7745 = vmatpush2.msra.mxu0 %v4303
    %7746 = vmatprep.subr.mxu0 0.0
    %7747 = vmatpush2.msra.mxu0 %v4302
    %7748 = vmatprep.subr.mxu0 0.0
    %7749 = vmatpush2.msra.mxu0 %v4301
    %7750 = vmatprep.subr.mxu0 0.0
    %7751 = vmatpush2.msra.mxu0 %v4300
    %7752 = vmatprep.subr.mxu0 0.0
    %7753 = vmatpush2.msra.mxu0 %v4299
    %7754 = vmatprep.subr.mxu0 0.0
    %7755 = vmatpush2.msra.mxu0 %v4298
    %7756 = vmatprep.subr.mxu0 0.0
    %7757 = vmatpush2.msra.mxu0 %v4297
    %7758 = vmatprep.subr.mxu0 0.0
    %7759 = vmatpush2.msra.mxu0 %v4296
    %7760 = vmatprep.subr.mxu0 0.0
    %7761 = vmatpush2.msra.mxu0 %v4295
    %7762 = vmatprep.mubr.f32.mxu0 %v7369
    %7763 = vmatmul.mubr.f32.gmra.mxu0 %v7368
    %v7764 = vpop.f32.mrf.mxu0
    %v7765 = vadd.f32 %v7690, %v7764
    %v7766 = vpop.f32.mrf.mxu0
    %7767 = vmatprep.mubr.f32.mxu0 %v7385
    %7768 = vmatmul.mubr.f32.gmra.mxu0 %v7384
    %v7769 = vpop.f32.mrf.mxu0
    %v7770 = vadd.f32 %v7695, %v7769
    %v7771 = vpop.f32.mrf.mxu0
    %7772 = vdwg.mxu0
    %7773 = vmatprep.subr.mxu0 0.0
    %7774 = vmatpush1.msra.mxu0 %v4326
    %7775 = vmatprep.subr.mxu0 0.0
    %7776 = vmatpush1.msra.mxu0 %v4325
    %7777 = vmatprep.subr.mxu0 0.0
    %7778 = vmatpush1.msra.mxu0 %v4324
    %7779 = vmatprep.subr.mxu0 0.0
    %7780 = vmatpush1.msra.mxu0 %v4323
    %7781 = vmatprep.subr.mxu0 0.0
    %7782 = vmatpush1.msra.mxu0 %v4322
    %7783 = vmatprep.subr.mxu0 0.0
    %7784 = vmatpush1.msra.mxu0 %v4321
    %7785 = vmatprep.subr.mxu0 0.0
    %7786 = vmatpush1.msra.mxu0 %v4320
    %7787 = vmatprep.subr.mxu0 0.0
    %7788 = vmatpush1.msra.mxu0 %v4319
    %7789 = vmatprep.subr.mxu0 0.0
    %7790 = vmatpush1.msra.mxu0 %v4318
    %7791 = vmatprep.subr.mxu0 0.0
    %7792 = vmatpush1.msra.mxu0 %v4317
    %7793 = vmatprep.subr.mxu0 0.0
    %7794 = vmatpush1.msra.mxu0 %v4316
    %7795 = vmatprep.subr.mxu0 0.0
    %7796 = vmatpush1.msra.mxu0 %v4315
    %7797 = vmatprep.subr.mxu0 0.0
    %7798 = vmatpush1.msra.mxu0 %v4314
    %7799 = vmatprep.subr.mxu0 0.0
    %7800 = vmatpush1.msra.mxu0 %v4313
    %7801 = vmatprep.subr.mxu0 0.0
    %7802 = vmatpush1.msra.mxu0 %v4312
    %7803 = vmatprep.subr.mxu0 0.0
    %7804 = vmatpush1.msra.mxu0 %v4311
    %7805 = vmatprep.subr.mxu0 0.0
    %7806 = vmatpush2.msra.mxu0 %v4342
    %7807 = vmatprep.subr.mxu0 0.0
    %7808 = vmatpush2.msra.mxu0 %v4341
    %7809 = vmatprep.subr.mxu0 0.0
    %7810 = vmatpush2.msra.mxu0 %v4340
    %7811 = vmatprep.subr.mxu0 0.0
    %7812 = vmatpush2.msra.mxu0 %v4339
    %7813 = vmatprep.subr.mxu0 0.0
    %7814 = vmatpush2.msra.mxu0 %v4338
    %7815 = vmatprep.subr.mxu0 0.0
    %7816 = vmatpush2.msra.mxu0 %v4337
    %7817 = vmatprep.subr.mxu0 0.0
    %7818 = vmatpush2.msra.mxu0 %v4336
    %7819 = vmatprep.subr.mxu0 0.0
    %7820 = vmatpush2.msra.mxu0 %v4335
    %7821 = vmatprep.subr.mxu0 0.0
    %7822 = vmatpush2.msra.mxu0 %v4334
    %7823 = vmatprep.subr.mxu0 0.0
    %7824 = vmatpush2.msra.mxu0 %v4333
    %7825 = vmatprep.subr.mxu0 0.0
    %7826 = vmatpush2.msra.mxu0 %v4332
    %7827 = vmatprep.subr.mxu0 0.0
    %7828 = vmatpush2.msra.mxu0 %v4331
    %7829 = vmatprep.subr.mxu0 0.0
    %7830 = vmatpush2.msra.mxu0 %v4330
    %7831 = vmatprep.subr.mxu0 0.0
    %7832 = vmatpush2.msra.mxu0 %v4329
    %7833 = vmatprep.subr.mxu0 0.0
    %7834 = vmatpush2.msra.mxu0 %v4328
    %7835 = vmatprep.subr.mxu0 0.0
    %7836 = vmatpush2.msra.mxu0 %v4327
    %7837 = vmatprep.mubr.f32.mxu0 %v7371
    %7838 = vmatmul.mubr.f32.gmra.mxu0 %v7370
    %v7839 = vpop.f32.mrf.mxu0
    %v7840 = vadd.f32 %v7765, %v7839
    %v7841 = vpop.f32.mrf.mxu0
    %7842 = vmatprep.mubr.f32.mxu0 %v7387
    %7843 = vmatmul.mubr.f32.gmra.mxu0 %v7386
    %v7844 = vpop.f32.mrf.mxu0
    %v7845 = vadd.f32 %v7770, %v7844
    %v7846 = vpop.f32.mrf.mxu0
    %7847 = vdwg.mxu0
    %7848 = vmatprep.subr.mxu0 0.0
    %7849 = vmatpush1.msra.mxu0 %v4358
    %7850 = vmatprep.subr.mxu0 0.0
    %7851 = vmatpush1.msra.mxu0 %v4357
    %7852 = vmatprep.subr.mxu0 0.0
    %7853 = vmatpush1.msra.mxu0 %v4356
    %7854 = vmatprep.subr.mxu0 0.0
    %7855 = vmatpush1.msra.mxu0 %v4355
    %7856 = vmatprep.subr.mxu0 0.0
    %7857 = vmatpush1.msra.mxu0 %v4354
    %7858 = vmatprep.subr.mxu0 0.0
    %7859 = vmatpush1.msra.mxu0 %v4353
    %7860 = vmatprep.subr.mxu0 0.0
    %7861 = vmatpush1.msra.mxu0 %v4352
    %7862 = vmatprep.subr.mxu0 0.0
    %7863 = vmatpush1.msra.mxu0 %v4351
    %7864 = vmatprep.subr.mxu0 0.0
    %7865 = vmatpush1.msra.mxu0 %v4350
    %7866 = vmatprep.subr.mxu0 0.0
    %7867 = vmatpush1.msra.mxu0 %v4349
    %7868 = vmatprep.subr.mxu0 0.0
    %7869 = vmatpush1.msra.mxu0 %v4348
    %7870 = vmatprep.subr.mxu0 0.0
    %7871 = vmatpush1.msra.mxu0 %v4347
    %7872 = vmatprep.subr.mxu0 0.0
    %7873 = vmatpush1.msra.mxu0 %v4346
    %7874 = vmatprep.subr.mxu0 0.0
    %7875 = vmatpush1.msra.mxu0 %v4345
    %7876 = vmatprep.subr.mxu0 0.0
    %7877 = vmatpush1.msra.mxu0 %v4344
    %7878 = vmatprep.subr.mxu0 0.0
    %7879 = vmatpush1.msra.mxu0 %v4343
    %7880 = vmatprep.subr.mxu0 0.0
    %7881 = vmatpush2.msra.mxu0 %v4374
    %7882 = vmatprep.subr.mxu0 0.0
    %7883 = vmatpush2.msra.mxu0 %v4373
    %7884 = vmatprep.subr.mxu0 0.0
    %7885 = vmatpush2.msra.mxu0 %v4372
    %7886 = vmatprep.subr.mxu0 0.0
    %7887 = vmatpush2.msra.mxu0 %v4371
    %7888 = vmatprep.subr.mxu0 0.0
    %7889 = vmatpush2.msra.mxu0 %v4370
    %7890 = vmatprep.subr.mxu0 0.0
    %7891 = vmatpush2.msra.mxu0 %v4369
    %7892 = vmatprep.subr.mxu0 0.0
    %7893 = vmatpush2.msra.mxu0 %v4368
    %7894 = vmatprep.subr.mxu0 0.0
    %7895 = vmatpush2.msra.mxu0 %v4367
    %7896 = vmatprep.subr.mxu0 0.0
    %7897 = vmatpush2.msra.mxu0 %v4366
    %7898 = vmatprep.subr.mxu0 0.0
    %7899 = vmatpush2.msra.mxu0 %v4365
    %7900 = vmatprep.subr.mxu0 0.0
    %7901 = vmatpush2.msra.mxu0 %v4364
    %7902 = vmatprep.subr.mxu0 0.0
    %7903 = vmatpush2.msra.mxu0 %v4363
    %7904 = vmatprep.subr.mxu0 0.0
    %7905 = vmatpush2.msra.mxu0 %v4362
    %7906 = vmatprep.subr.mxu0 0.0
    %7907 = vmatpush2.msra.mxu0 %v4361
    %7908 = vmatprep.subr.mxu0 0.0
    %7909 = vmatpush2.msra.mxu0 %v4360
    %7910 = vmatprep.subr.mxu0 0.0
    %7911 = vmatpush2.msra.mxu0 %v4359
    %7912 = vmatprep.mubr.f32.mxu0 %v7373
    %7913 = vmatmul.mubr.f32.gmra.mxu0 %v7372
    %v7914 = vpop.f32.mrf.mxu0
    %v7915 = vadd.f32 %v7840, %v7914
    %v7916 = vpop.f32.mrf.mxu0
    %7917 = vmatprep.mubr.f32.mxu0 %v7389
    %7918 = vmatmul.mubr.f32.gmra.mxu0 %v7388
    %v7919 = vpop.f32.mrf.mxu0
    %v7920 = vadd.f32 %v7845, %v7919
    %v7921 = vpop.f32.mrf.mxu0
    %7922 = vdwg.mxu0
    %7923 = vmatprep.subr.mxu0 0.0
    %7924 = vmatpush1.msra.mxu0 %v4390
    %7925 = vmatprep.subr.mxu0 0.0
    %7926 = vmatpush1.msra.mxu0 %v4389
    %7927 = vmatprep.subr.mxu0 0.0
    %7928 = vmatpush1.msra.mxu0 %v4388
    %7929 = vmatprep.subr.mxu0 0.0
    %7930 = vmatpush1.msra.mxu0 %v4387
    %7931 = vmatprep.subr.mxu0 0.0
    %7932 = vmatpush1.msra.mxu0 %v4386
    %7933 = vmatprep.subr.mxu0 0.0
    %7934 = vmatpush1.msra.mxu0 %v4385
    %7935 = vmatprep.subr.mxu0 0.0
    %7936 = vmatpush1.msra.mxu0 %v4384
    %7937 = vmatprep.subr.mxu0 0.0
    %7938 = vmatpush1.msra.mxu0 %v4383
    %7939 = vmatprep.subr.mxu0 0.0
    %7940 = vmatpush1.msra.mxu0 %v4382
    %7941 = vmatprep.subr.mxu0 0.0
    %7942 = vmatpush1.msra.mxu0 %v4381
    %7943 = vmatprep.subr.mxu0 0.0
    %7944 = vmatpush1.msra.mxu0 %v4380
    %7945 = vmatprep.subr.mxu0 0.0
    %7946 = vmatpush1.msra.mxu0 %v4379
    %7947 = vmatprep.subr.mxu0 0.0
    %7948 = vmatpush1.msra.mxu0 %v4378
    %7949 = vmatprep.subr.mxu0 0.0
    %7950 = vmatpush1.msra.mxu0 %v4377
    %7951 = vmatprep.subr.mxu0 0.0
    %7952 = vmatpush1.msra.mxu0 %v4376
    %7953 = vmatprep.subr.mxu0 0.0
    %7954 = vmatpush1.msra.mxu0 %v4375
    %7955 = vmatprep.subr.mxu0 0.0
    %7956 = vmatpush2.msra.mxu0 %v4406
    %7957 = vmatprep.subr.mxu0 0.0
    %7958 = vmatpush2.msra.mxu0 %v4405
    %7959 = vmatprep.subr.mxu0 0.0
    %7960 = vmatpush2.msra.mxu0 %v4404
    %7961 = vmatprep.subr.mxu0 0.0
    %7962 = vmatpush2.msra.mxu0 %v4403
    %7963 = vmatprep.subr.mxu0 0.0
    %7964 = vmatpush2.msra.mxu0 %v4402
    %7965 = vmatprep.subr.mxu0 0.0
    %7966 = vmatpush2.msra.mxu0 %v4401
    %7967 = vmatprep.subr.mxu0 0.0
    %7968 = vmatpush2.msra.mxu0 %v4400
    %7969 = vmatprep.subr.mxu0 0.0
    %7970 = vmatpush2.msra.mxu0 %v4399
    %7971 = vmatprep.subr.mxu0 0.0
    %7972 = vmatpush2.msra.mxu0 %v4398
    %7973 = vmatprep.subr.mxu0 0.0
    %7974 = vmatpush2.msra.mxu0 %v4397
    %7975 = vmatprep.subr.mxu0 0.0
    %7976 = vmatpush2.msra.mxu0 %v4396
    %7977 = vmatprep.subr.mxu0 0.0
    %7978 = vmatpush2.msra.mxu0 %v4395
    %7979 = vmatprep.subr.mxu0 0.0
    %7980 = vmatpush2.msra.mxu0 %v4394
    %7981 = vmatprep.subr.mxu0 0.0
    %7982 = vmatpush2.msra.mxu0 %v4393
    %7983 = vmatprep.subr.mxu0 0.0
    %7984 = vmatpush2.msra.mxu0 %v4392
    %7985 = vmatprep.subr.mxu0 0.0
    %7986 = vmatpush2.msra.mxu0 %v4391
    %7987 = vmatprep.mubr.f32.mxu0 %v7375
    %7988 = vmatmul.mubr.f32.gmra.mxu0 %v7374
    %v7989 = vpop.f32.mrf.mxu0
    %v7990 = vadd.f32 %v7915, %v7989
    %v7991 = vpop.f32.mrf.mxu0
    %7992 = vmatprep.mubr.f32.mxu0 %v7391
    %7993 = vmatmul.mubr.f32.gmra.mxu0 %v7390
    %v7994 = vpop.f32.mrf.mxu0
    %v7995 = vadd.f32 %v7920, %v7994
    %v7996 = vpop.f32.mrf.mxu0
    %7997 = vdwg.mxu0
    %v7998 = vadd.f32 %v6572, %v7990
    %v7999 = vadd.f32 %v6607, %v7995
    %v8000 = vsel %vm428, %v7998, 0.0
    %8001 = vadd.xlane.f32.xlu0 %v8000
    %v8002 = vpop.xlane.xlu0 %8001
    %v8003 = vrot.slane %v8002, 4
    %v8004 = vadd.f32 %v8002, %v8003
    %v8005 = vrot.slane %v8004, 2
    %v8006 = vadd.f32 %v8004, %v8005
    %v8007 = vrot.slane %v8006, 1
    %v8008 = vadd.f32 %v8006, %v8007
    %s8009 = vtos %v8008
    %v8010 = vrcp.pop 160.0
    %s8011 = vtos %v8010
    %s8012 = smul.f32 %s8009, %s8011
    %v8013 = vstv %s8012
    %v8014 = vsub.f32 %v7998, %v8013
    %v8015 = vmul.f32 %v8014, %v8014
    %v8016 = vsel %vm428, %v8015, 0.0
    %8017 = vadd.xlane.f32.xlu0 %v8016
    %v8018 = vpop.xlane.xlu0 %8017
    %v8019 = vrot.slane %v8018, 4
    %v8020 = vadd.f32 %v8018, %v8019
    %v8021 = vrot.slane %v8020, 2
    %v8022 = vadd.f32 %v8020, %v8021
    %v8023 = vrot.slane %v8022, 1
    %v8024 = vadd.f32 %v8022, %v8023
    %s8025 = vtos %v8024
    %v8026 = vrcp.pop 160.0
    %s8027 = vtos %v8026
    %s8028 = smul.f32 %s8025, %s8027
    %s8029 = sadd.f32 %s8028, 1e-05
    %v8030 = vstv %s8029
    %v8031 = vrsqrt.pop %v8030
    %s8032 = vtos %v8031
    %v8033 = vstv %s8032
    %v8034 = vmul.f32 %v8014, %v8033
    %v8035 = vsel %vm428, %v7999, 0.0
    %8036 = vadd.xlane.f32.xlu0 %v8035
    %v8037 = vpop.xlane.xlu0 %8036
    %v8038 = vrot.slane %v8037, 4
    %v8039 = vadd.f32 %v8037, %v8038
    %v8040 = vrot.slane %v8039, 2
    %v8041 = vadd.f32 %v8039, %v8040
    %v8042 = vrot.slane %v8041, 1
    %v8043 = vadd.f32 %v8041, %v8042
    %s8044 = vtos %v8043
    %v8045 = vrcp.pop 160.0
    %s8046 = vtos %v8045
    %s8047 = smul.f32 %s8044, %s8046
    %v8048 = vstv %s8047
    %v8049 = vsub.f32 %v7999, %v8048
    %v8050 = vmul.f32 %v8049, %v8049
    %v8051 = vsel %vm428, %v8050, 0.0
    %8052 = vadd.xlane.f32.xlu0 %v8051
    %v8053 = vpop.xlane.xlu0 %8052
    %v8054 = vrot.slane %v8053, 4
    %v8055 = vadd.f32 %v8053, %v8054
    %v8056 = vrot.slane %v8055, 2
    %v8057 = vadd.f32 %v8055, %v8056
    %v8058 = vrot.slane %v8057, 1
    %v8059 = vadd.f32 %v8057, %v8058
    %s8060 = vtos %v8059
    %v8061 = vrcp.pop 160.0
    %s8062 = vtos %v8061
    %s8063 = smul.f32 %s8060, %s8062
    %s8064 = sadd.f32 %s8063, 1e-05
    %v8065 = vstv %s8064
    %v8066 = vrsqrt.pop %v8065
    %s8067 = vtos %v8066
    %v8068 = vstv %s8067
    %v8069 = vmul.f32 %v8049, %v8068
    %8070 = vst.msk [vmem:[#allocation4] sm:$0xff] %vm428, %v8034
    %8071 = vst.msk [vmem:[#allocation4 + $0x8] sm:$0xff] %vm428, %v8069
    // Predicated region
    $region110: #{transformer_layer.1} parent=1 // pred_check
      _
    $region111: #{transformer_layer.1} parent=1 // pred_check_branch
      %8073 = sbr.rel (0) target = $region113
    $region112: #{transformer_layer.1} parent=1 // pred_region
      %s8075 = ssub.s32 256, 256
      %8076 = vsyncadd [#allocation3], %s8075
      %s8077 = sshll.u32 [#allocation2], 4
      %s8078 = int_to_ptr.vmem [resolvable:$true] %s8077
      %8083 = dma.vmem_to_hbm [thread:$0]  %s8078, 256, %s27, [#allocation3], 128, 128, 8
    $region113: #{transformer_layer.1} parent=1 // pred_fallthru
      _
    // Predicated region
    $region114: #{transformer_layer.1} parent=1 // pred_check
      _
    $region115: #{transformer_layer.1} parent=1 // pred_check_branch
      %8085 = sbr.rel (0) target = $region117
    $region116: #{transformer_layer.1} parent=1 // pred_region
      %s8087 = ssub.s32 256, 256
      %8088 = vsyncadd [#allocation5], %s8087
      %s8089 = sshll.u32 [#allocation4], 4
      %s8090 = int_to_ptr.vmem [resolvable:$true] %s8089
      %8095 = dma.vmem_to_hbm [thread:$0]  %s8090, 256, %s28, [#allocation5], 128, 128, 8
    $region117: #{transformer_layer.1} parent=1 // pred_fallthru
      _
    // Predicated region
    $region118: #{transformer_layer.1} parent=1 // pred_check
      _
    $region119: #{transformer_layer.1} parent=1 // pred_check_branch
      %8097 = sbr.rel (0) target = $region121
    $region120: #{transformer_layer.1} parent=1 // pred_region
      %8098 = dma.done [#allocation3], 256
    $region121: #{transformer_layer.1} parent=1 // pred_fallthru
      _
    // Predicated region
    $region122: #{transformer_layer.1} parent=1 // pred_check
      _
    $region123: #{transformer_layer.1} parent=1 // pred_check_branch
      %8100 = sbr.rel (0) target = $region125
    $region124: #{transformer_layer.1} parent=1 // pred_region
      %8101 = dma.done [#allocation5], 256
    $region125: #{transformer_layer.1} parent=1 // pred_fallthru
      _
    %8102 = vsyncpa [#allocation3], 1
    %8103 = vsyncpa [#allocation5], 1

</llo_original>
